<compile_context>
chip_gen: v6e
topology: v6e:2x2x1
jax: 0.10.0
libtpu: 0.0.40
codegen_flags: <defaults>
</compile_context>

<pallas_src>
import functools

import jax
import jax.numpy as jnp
from jax.experimental import pallas as pl
from jax.experimental.pallas import tpu as pltpu

BLOCK_R = 512     # (node, view) rows per tile in the score pass
BLOCK_N = 256     # nodes per tile in the combine pass


def _round_up(x, m):
    return ((x + m - 1) // m) * m


def _pad_axis0(a, mult):
    pad = (-a.shape[0]) % mult
    if pad == 0:
        return a
    widths = [(0, pad)] + [(0, 0)] * (a.ndim - 1)
    return jnp.pad(a, widths)


# ----------------------------- Pallas kernels -----------------------------


def sem_score_kernel(z_ref, w1_ref, b1_ref, w2_ref, s_ref):
    """Per-row projection score s = (tanh(z @ W1 + b1)) . w2 on a [BR, D] tile."""
    h = jnp.tanh(jnp.dot(z_ref[...], w1_ref[...],
                         preferred_element_type=jnp.float32) + b1_ref[...])
    s_ref[...] = jnp.sum(h * w2_ref[...], axis=1, keepdims=True)


def sem_combine_kernel(beta_ref, z_ref, out_ref, *, num_views):
    """out[n, :] = sum_m beta[m] * z[n, m, :]; beta scalars live in SMEM."""
    zb = z_ref[...]                                  # [BN, M, D]
    acc = beta_ref[0] * zb[:, 0, :]
    for m in range(1, num_views):
        acc = acc + beta_ref[m] * zb[:, m, :]
    out_ref[...] = acc.astype(out_ref.dtype)


# ----------------------------- wrapper -----------------------------


def semantic_attention(z, w1, b1, w2, *, block_r=BLOCK_R, block_n=BLOCK_N):
    """z: [N, M, D]; w1: [D, H]; b1: [1, H]; w2: [1, H]  ->  out: [N, D]."""
    n, m, d = z.shape
    hs = w1.shape[1]

    # ---- pass 1: projection scores over the flattened [N*M, D] slab -------
    r = n * m
    z2d = z.reshape(r, d)                       # contiguous -> free reshape
    br = block_r if r >= block_r else _round_up(r, 8)
    z2d_p = _pad_axis0(z2d, br)
    rp = z2d_p.shape[0]

    scores = pl.pallas_call(
        sem_score_kernel,
        out_shape=jax.ShapeDtypeStruct((rp, 1), jnp.float32),
        grid=(rp // br,),
        in_specs=[
            pl.BlockSpec((br, d), lambda i: (i, 0)),
            pl.BlockSpec((d, hs), lambda i: (0, 0)),
            pl.BlockSpec((1, hs), lambda i: (0, 0)),
            pl.BlockSpec((1, hs), lambda i: (0, 0)),
        ],
        out_specs=pl.BlockSpec((br, 1), lambda i: (i, 0)),
        compiler_params=pltpu.CompilerParams(dimension_semantics=("parallel",)),
    )(z2d_p, w1, b1, w2)

    # ---- mean over nodes + softmax over views: M scalars -> plain JAX -----
    w_mean = scores[:r, 0].reshape(n, m).mean(axis=0)          # [M]
    beta = jax.nn.softmax(w_mean).astype(jnp.float32)          # [M]

    # ---- pass 2: beta-weighted combine over the view axis -----------------
    bn = block_n if n >= block_n else _round_up(n, 8)
    z_p = _pad_axis0(z, bn)
    npad = z_p.shape[0]

    kern = functools.partial(sem_combine_kernel, num_views=m)
    out = pl.pallas_call(
        kern,
        out_shape=jax.ShapeDtypeStruct((npad, d), jnp.float32),
        grid=(npad // bn,),
        in_specs=[
            pl.BlockSpec(memory_space=pltpu.MemorySpace.SMEM),   # beta [M]
            pl.BlockSpec((bn, m, d), lambda i: (i, 0, 0)),       # z [BN, M, D]
        ],
        out_specs=pl.BlockSpec((bn, d), lambda i: (i, 0)),
        compiler_params=pltpu.CompilerParams(dimension_semantics=("parallel",)),
    )(beta, z_p)
    return out[:n]


# ----------------------------- pure-JAX reference -----------------------------


def semantic_attention_ref(z, w1, b1, w2):
    h = jnp.tanh(jnp.einsum("nmd,dh->nmh", z, w1) + b1)   # [N, M, H]
    s = jnp.einsum("nmh,h->nm", h, w2[0])                 # [N, M]
    beta = jax.nn.softmax(s.mean(axis=0))                 # [M]
    return jnp.einsum("m,nmd->nd", beta, z)               # [N, D]


# ----------------------------- main -----------------------------

if __name__ == "__main__":
    N, M, D, H = 512, 3, 256, 128     # nodes, meta-paths, in_size, hidden_size

    key = jax.random.PRNGKey(0)
    kz, k1, kb, k2 = jax.random.split(key, 4)
    z = jax.random.normal(kz, (N, M, D), dtype=jnp.float32)
    w1 = 0.1 * jax.random.normal(k1, (D, H), dtype=jnp.float32)
    b1 = 0.1 * jax.random.normal(kb, (1, H), dtype=jnp.float32)
    w2 = 0.1 * jax.random.normal(k2, (1, H), dtype=jnp.float32)

    fwd = jax.jit(semantic_attention)
    out = jax.block_until_ready(fwd(z, w1, b1, w2))

    ref = semantic_attention_ref(z, w1, b1, w2)
    assert out.shape == (N, D), out.shape
    assert bool(jnp.all(jnp.isfinite(out)))
    max_err = float(jnp.max(jnp.abs(out - ref)))
    assert bool(jnp.allclose(out, ref, atol=2e-3, rtol=2e-3)), max_err

    print("KERNEL_OK")
</pallas_src>

<mosaic_0001>
module attributes {stable_mosaic.version = 11 : i64} {
  func.func @sem_score_kernel(%arg0: i32, %arg1: memref<512x256xf32, #tpu.memory_space<vmem>>, %arg2: memref<256x128xf32, #tpu.memory_space<vmem>>, %arg3: memref<1x128xf32, #tpu.memory_space<vmem>>, %arg4: memref<1x128xf32, #tpu.memory_space<vmem>>, %arg5: memref<512x1xf32, #tpu.memory_space<vmem>>) attributes {dimension_semantics = [#tpu.dimension_semantics<parallel>], iteration_bounds = array<i64: 3>, scalar_prefetch = 0 : i64, scratch_operands = 0 : i64, tpu.core_type = #tpu.core_type<tc>, window_params = [{transform_indices = @transform_0, window_bounds = array<i64: 512, 256>}, {pipeline_mode = #tpu.pipeline_mode<synchronous>, transform_indices = @transform_1, window_bounds = array<i64: 256, 128>}, {pipeline_mode = #tpu.pipeline_mode<synchronous>, transform_indices = @transform_2, window_bounds = array<i64: 1, 128>}, {pipeline_mode = #tpu.pipeline_mode<synchronous>, transform_indices = @transform_3, window_bounds = array<i64: 1, 128>}, {transform_indices = @transform_4, window_bounds = array<i64: 512, 1>}]} {
    %c0 = arith.constant 0 : index
    %c0_0 = arith.constant 0 : index
    %0 = vector.load %arg1[%c0, %c0_0] : memref<512x256xf32, #tpu.memory_space<vmem>>, vector<512x256xf32>
    %c0_1 = arith.constant 0 : index
    %c0_2 = arith.constant 0 : index
    %1 = vector.load %arg2[%c0_1, %c0_2] : memref<256x128xf32, #tpu.memory_space<vmem>>, vector<256x128xf32>
    %cst = arith.constant dense<0.000000e+00> : vector<512x128xf32>
    %2 = tpu.matmul %0, %1, %cst {dimension_numbers = #tpu.dot_dimension_numbers<[1], [0], [0], [1], [0, 0, 1, 1], [], []>} : vector<512x256xf32>, vector<256x128xf32>, vector<512x128xf32> -> vector<512x128xf32>
    %c0_3 = arith.constant 0 : index
    %c0_4 = arith.constant 0 : index
    %3 = vector.load %arg3[%c0_3, %c0_4] : memref<1x128xf32, #tpu.memory_space<vmem>>, vector<1x128xf32>
    %4 = vector.broadcast %3 : vector<1x128xf32> to vector<512x128xf32>
    %5 = arith.addf %2, %4 : vector<512x128xf32>
    %6 = math.tanh %5 : vector<512x128xf32>
    %c0_5 = arith.constant 0 : index
    %c0_6 = arith.constant 0 : index
    %7 = vector.load %arg4[%c0_5, %c0_6] : memref<1x128xf32, #tpu.memory_space<vmem>>, vector<1x128xf32>
    %8 = vector.broadcast %7 : vector<1x128xf32> to vector<512x128xf32>
    %9 = arith.mulf %6, %8 : vector<512x128xf32>
    %cst_7 = arith.constant dense<0.000000e+00> : vector<512xf32>
    %10 = vector.multi_reduction <add>, %9, %cst_7 [1] : vector<512x128xf32> to vector<512xf32>
    %11 = vector.shape_cast %10 : vector<512xf32> to vector<512x1xf32>
    %c0_8 = arith.constant 0 : index
    %c0_9 = arith.constant 0 : index
    %12 = vector.load %arg5[%c0_8, %c0_9] : memref<512x1xf32, #tpu.memory_space<vmem>>, vector<512x1xf32>
    tpu.vector_store %arg5[%c0_8, %c0_9], %11 {strides = array<i32>} : memref<512x1xf32, #tpu.memory_space<vmem>>, vector<512x1xf32>,
    return
  }
  func.func @transform_0(%arg0: i32) -> (i32, i32) {
    %c0_i32 = arith.constant 0 : i32
    %c0_i32_0 = arith.constant 0 : i32
    return %arg0, %c0_i32 : i32, i32
  }
  func.func @transform_1(%arg0: i32) -> (i32, i32) {
    %c0_i32 = arith.constant 0 : i32
    %c0_i32_0 = arith.constant 0 : i32
    %c0_i32_1 = arith.constant 0 : i32
    return %c0_i32, %c0_i32_0 : i32, i32
  }
  func.func @transform_2(%arg0: i32) -> (i32, i32) {
    %c0_i32 = arith.constant 0 : i32
    %c0_i32_0 = arith.constant 0 : i32
    %c0_i32_1 = arith.constant 0 : i32
    return %c0_i32, %c0_i32_0 : i32, i32
  }
  func.func @transform_3(%arg0: i32) -> (i32, i32) {
    %c0_i32 = arith.constant 0 : i32
    %c0_i32_0 = arith.constant 0 : i32
    %c0_i32_1 = arith.constant 0 : i32
    return %c0_i32, %c0_i32_0 : i32, i32
  }
  func.func @transform_4(%arg0: i32) -> (i32, i32) {
    %c0_i32 = arith.constant 0 : i32
    %c0_i32_0 = arith.constant 0 : i32
    return %arg0, %c0_i32 : i32, i32
  }
}

module attributes {stable_mosaic.version = 11 : i64} {
  func.func @sem_combine_kernel(%arg0: i32, %arg1: memref<3xf32, #tpu.memory_space<smem>>, %arg2: memref<256x3x256xf32, #tpu.memory_space<vmem>>, %arg3: memref<256x256xf32, #tpu.memory_space<vmem>>) attributes {dimension_semantics = [#tpu.dimension_semantics<parallel>], iteration_bounds = array<i64: 2>, scalar_prefetch = 0 : i64, scratch_operands = 0 : i64, tpu.core_type = #tpu.core_type<tc>, window_params = [{transform_indices = @transform_0, window_bounds = array<i64: 3>}, {transform_indices = @transform_1, window_bounds = array<i64: 256, 3, 256>}, {transform_indices = @transform_2, window_bounds = array<i64: 256, 256>}]} {
    %c0 = arith.constant 0 : index
    %c0_0 = arith.constant 0 : index
    %c0_1 = arith.constant 0 : index
    %0 = vector.load %arg2[%c0, %c0_0, %c0_1] : memref<256x3x256xf32, #tpu.memory_space<vmem>>, vector<256x3x256xf32>
    %c0_2 = arith.constant 0 : index
    %1 = memref.load %arg1[%c0_2] : memref<3xf32, #tpu.memory_space<smem>>
    %2 = vector.extract_strided_slice %0 {offsets = [0, 0, 0], sizes = [256, 1, 256], strides = [1, 1, 1]} : vector<256x3x256xf32> to vector<256x1x256xf32>
    %3 = vector.shape_cast %2 : vector<256x1x256xf32> to vector<256x256xf32>
    %4 = vector.broadcast %1 : f32 to vector<256x256xf32>
    %5 = arith.mulf %4, %3 : vector<256x256xf32>
    %c1 = arith.constant 1 : index
    %6 = memref.load %arg1[%c1] : memref<3xf32, #tpu.memory_space<smem>>
    %7 = vector.extract_strided_slice %0 {offsets = [0, 1, 0], sizes = [256, 1, 256], strides = [1, 1, 1]} : vector<256x3x256xf32> to vector<256x1x256xf32>
    %8 = vector.shape_cast %7 : vector<256x1x256xf32> to vector<256x256xf32>
    %9 = vector.broadcast %6 : f32 to vector<256x256xf32>
    %10 = arith.mulf %9, %8 : vector<256x256xf32>
    %11 = arith.addf %5, %10 : vector<256x256xf32>
    %c2 = arith.constant 2 : index
    %12 = memref.load %arg1[%c2] : memref<3xf32, #tpu.memory_space<smem>>
    %13 = vector.extract_strided_slice %0 {offsets = [0, 2, 0], sizes = [256, 1, 256], strides = [1, 1, 1]} : vector<256x3x256xf32> to vector<256x1x256xf32>
    %14 = vector.shape_cast %13 : vector<256x1x256xf32> to vector<256x256xf32>
    %15 = vector.broadcast %12 : f32 to vector<256x256xf32>
    %16 = arith.mulf %15, %14 : vector<256x256xf32>
    %17 = arith.addf %11, %16 : vector<256x256xf32>
    %c0_3 = arith.constant 0 : index
    %c0_4 = arith.constant 0 : index
    %18 = vector.load %arg3[%c0_3, %c0_4] : memref<256x256xf32, #tpu.memory_space<vmem>>, vector<256x256xf32>
    tpu.vector_store %arg3[%c0_3, %c0_4], %17 {strides = array<i32>} : memref<256x256xf32, #tpu.memory_space<vmem>>, vector<256x256xf32>,
    return
  }
  func.func @transform_0(%arg0: i32) -> i32 {
    %c0_i32 = arith.constant 0 : i32
    %c0_i32_0 = arith.constant 0 : i32
    return %c0_i32 : i32
  }
  func.func @transform_1(%arg0: i32) -> (i32, i32, i32) {
    %c0_i32 = arith.constant 0 : i32
    %c0_i32_0 = arith.constant 0 : i32
    %c0_i32_1 = arith.constant 0 : i32
    return %arg0, %c0_i32, %c0_i32_0 : i32, i32, i32
  }
  func.func @transform_2(%arg0: i32) -> (i32, i32) {
    %c0_i32 = arith.constant 0 : i32
    %c0_i32_0 = arith.constant 0 : i32
    return %arg0, %c0_i32 : i32, i32
  }
}

</mosaic_0001>

<llo_original>
// kernel: squeeze.1
$region0: #{squeeze.1}
  %s0 = inlined_call_operand.vmem [shape: f32[1536], index: 0, kind: input, shape index: {}]
  %s1 = inlined_call_operand.vmem [shape: f32[512,3], index: 1, kind: output, shape index: {}]
  %v2 = vld [vmem:[%s0] ss:$3 sm:$0xf]
  %vm3 = vcmask 23552
  %4 = vst.msk [vmem:[%s1] sm:$0x1] %vm3, %v2
  %s5 = scalar_lea.vmem %s1, 127
  %6 = vst.msk [vmem:[%s5] sm:$0x2] %vm3, %v2
  %s7 = scalar_lea.vmem %s1, 254
  %8 = vst.msk [vmem:[%s7] sm:$0x4] %vm3, %v2
  %s9 = scalar_lea.vmem %s1, 381
  %10 = vst.msk [vmem:[%s9] sm:$0x8] %vm3, %v2
  %s11 = scalar_lea.vmem %s0, 1
  %v12 = vld [vmem:[%s11] ss:$3 sm:$0xf]
  %13 = vrot.lane.b32.xlu0 %v12, 127
  %v14 = vpop.permute.xlu0 %13
  %vm15 = vcmask 23552
  %s16 = scalar_lea.vmem %s1, 43
  %17 = vst.msk [vmem:[%s16] sm:$0x1] %vm15, %v14
  %s18 = scalar_lea.vmem %s1, 170
  %19 = vst.msk [vmem:[%s18] sm:$0x2] %vm15, %v14
  %s20 = scalar_lea.vmem %s1, 297
  %21 = vst.msk [vmem:[%s20] sm:$0x4] %vm15, %v14
  %s22 = scalar_lea.vmem %s1, 424
  %23 = vst.msk [vmem:[%s22] sm:$0x8] %vm15, %v14
  %s24 = scalar_lea.vmem %s0, 2
  %v25 = vld [vmem:[%s24] ss:$3 sm:$0xf]
  %26 = vrot.lane.b32.xlu0 %v25, 126
  %v27 = vpop.permute.xlu0 %26
  %vm28 = vcmask 23552
  %s29 = scalar_lea.vmem %s1, 86
  %30 = vst.msk [vmem:[%s29] sm:$0x1] %vm28, %v27
  %s31 = scalar_lea.vmem %s1, 213
  %32 = vst.msk [vmem:[%s31] sm:$0x2] %vm28, %v27
  %s33 = scalar_lea.vmem %s1, 340
  %34 = vst.msk [vmem:[%s33] sm:$0x4] %vm28, %v27
  %s35 = scalar_lea.vmem %s1, 467
  %36 = vst.msk [vmem:[%s35] sm:$0x8] %vm28, %v27
  %v37 = vld [vmem:[%s0] ss:$3 sm:$0xf]
  %38 = vrot.lane.b32.xlu0 %v37, 125
  %v39 = vpop.permute.xlu0 %38
  %vm40 = vcmask 23552
  %s41 = scalar_lea.vmem %s1, 1
  %42 = vst.msk [vmem:[%s41] sm:$0x1] %vm40, %v39
  %s43 = scalar_lea.vmem %s1, 128
  %44 = vst.msk [vmem:[%s43] sm:$0x2] %vm40, %v39
  %s45 = scalar_lea.vmem %s1, 255
  %46 = vst.msk [vmem:[%s45] sm:$0x4] %vm40, %v39
  %s47 = scalar_lea.vmem %s1, 382
  %48 = vst.msk [vmem:[%s47] sm:$0x8] %vm40, %v39
  %s49 = scalar_lea.vmem %s0, 1
  %v50 = vld [vmem:[%s49] ss:$3 sm:$0xf]
  %51 = vrot.lane.b32.xlu0 %v50, 124
  %v52 = vpop.permute.xlu0 %51
  %vm53 = vcmask 23552
  %s54 = scalar_lea.vmem %s1, 44
  %55 = vst.msk [vmem:[%s54] sm:$0x1] %vm53, %v52
  %s56 = scalar_lea.vmem %s1, 171
  %57 = vst.msk [vmem:[%s56] sm:$0x2] %vm53, %v52
  %s58 = scalar_lea.vmem %s1, 298
  %59 = vst.msk [vmem:[%s58] sm:$0x4] %vm53, %v52
  %s60 = scalar_lea.vmem %s1, 425
  %61 = vst.msk [vmem:[%s60] sm:$0x8] %vm53, %v52
  %s62 = scalar_lea.vmem %s0, 2
  %v63 = vld [vmem:[%s62] ss:$3 sm:$0xf]
  %64 = vrot.lane.b32.xlu0 %v63, 123
  %v65 = vpop.permute.xlu0 %64
  %vm66 = vcmask 23552
  %s67 = scalar_lea.vmem %s1, 87
  %68 = vst.msk [vmem:[%s67] sm:$0x1] %vm66, %v65
  %s69 = scalar_lea.vmem %s1, 214
  %70 = vst.msk [vmem:[%s69] sm:$0x2] %vm66, %v65
  %s71 = scalar_lea.vmem %s1, 341
  %72 = vst.msk [vmem:[%s71] sm:$0x4] %vm66, %v65
  %s73 = scalar_lea.vmem %s1, 468
  %74 = vst.msk [vmem:[%s73] sm:$0x8] %vm66, %v65
  %v75 = vld [vmem:[%s0] ss:$3 sm:$0xf]
  %76 = vrot.lane.b32.xlu0 %v75, 122
  %v77 = vpop.permute.xlu0 %76
  %vm78 = vcmask 23552
  %s79 = scalar_lea.vmem %s1, 2
  %80 = vst.msk [vmem:[%s79] sm:$0x1] %vm78, %v77
  %s81 = scalar_lea.vmem %s1, 129
  %82 = vst.msk [vmem:[%s81] sm:$0x2] %vm78, %v77
  %s83 = scalar_lea.vmem %s1, 256
  %84 = vst.msk [vmem:[%s83] sm:$0x4] %vm78, %v77
  %s85 = scalar_lea.vmem %s1, 383
  %86 = vst.msk [vmem:[%s85] sm:$0x8] %vm78, %v77
  %s87 = scalar_lea.vmem %s0, 1
  %v88 = vld [vmem:[%s87] ss:$3 sm:$0xf]
  %89 = vrot.lane.b32.xlu0 %v88, 121
  %v90 = vpop.permute.xlu0 %89
  %vm91 = vcmask 23552
  %s92 = scalar_lea.vmem %s1, 45
  %93 = vst.msk [vmem:[%s92] sm:$0x1] %vm91, %v90
  %s94 = scalar_lea.vmem %s1, 172
  %95 = vst.msk [vmem:[%s94] sm:$0x2] %vm91, %v90
  %s96 = scalar_lea.vmem %s1, 299
  %97 = vst.msk [vmem:[%s96] sm:$0x4] %vm91, %v90
  %s98 = scalar_lea.vmem %s1, 426
  %99 = vst.msk [vmem:[%s98] sm:$0x8] %vm91, %v90
  %s100 = scalar_lea.vmem %s0, 2
  %v101 = vld [vmem:[%s100] ss:$3 sm:$0xf]
  %102 = vrot.lane.b32.xlu0 %v101, 120
  %v103 = vpop.permute.xlu0 %102
  %vm104 = vcmask 23552
  %s105 = scalar_lea.vmem %s1, 88
  %106 = vst.msk [vmem:[%s105] sm:$0x1] %vm104, %v103
  %s107 = scalar_lea.vmem %s1, 215
  %108 = vst.msk [vmem:[%s107] sm:$0x2] %vm104, %v103
  %s109 = scalar_lea.vmem %s1, 342
  %110 = vst.msk [vmem:[%s109] sm:$0x4] %vm104, %v103
  %s111 = scalar_lea.vmem %s1, 469
  %112 = vst.msk [vmem:[%s111] sm:$0x8] %vm104, %v103
  %v113 = vld [vmem:[%s0] ss:$3 sm:$0xf]
  %114 = vrot.lane.b32.xlu0 %v113, 119
  %v115 = vpop.permute.xlu0 %114
  %vm116 = vcmask 23552
  %s117 = scalar_lea.vmem %s1, 3
  %118 = vst.msk [vmem:[%s117] sm:$0x1] %vm116, %v115
  %s119 = scalar_lea.vmem %s1, 130
  %120 = vst.msk [vmem:[%s119] sm:$0x2] %vm116, %v115
  %s121 = scalar_lea.vmem %s1, 257
  %122 = vst.msk [vmem:[%s121] sm:$0x4] %vm116, %v115
  %s123 = scalar_lea.vmem %s1, 384
  %124 = vst.msk [vmem:[%s123] sm:$0x8] %vm116, %v115
  %s125 = scalar_lea.vmem %s0, 1
  %v126 = vld [vmem:[%s125] ss:$3 sm:$0xf]
  %127 = vrot.lane.b32.xlu0 %v126, 118
  %v128 = vpop.permute.xlu0 %127
  %vm129 = vcmask 23552
  %s130 = scalar_lea.vmem %s1, 46
  %131 = vst.msk [vmem:[%s130] sm:$0x1] %vm129, %v128
  %s132 = scalar_lea.vmem %s1, 173
  %133 = vst.msk [vmem:[%s132] sm:$0x2] %vm129, %v128
  %s134 = scalar_lea.vmem %s1, 300
  %135 = vst.msk [vmem:[%s134] sm:$0x4] %vm129, %v128
  %s136 = scalar_lea.vmem %s1, 427
  %137 = vst.msk [vmem:[%s136] sm:$0x8] %vm129, %v128
  %s138 = scalar_lea.vmem %s0, 2
  %v139 = vld [vmem:[%s138] ss:$3 sm:$0xf]
  %140 = vrot.lane.b32.xlu0 %v139, 117
  %v141 = vpop.permute.xlu0 %140
  %vm142 = vcmask 23552
  %s143 = scalar_lea.vmem %s1, 89
  %144 = vst.msk [vmem:[%s143] sm:$0x1] %vm142, %v141
  %s145 = scalar_lea.vmem %s1, 216
  %146 = vst.msk [vmem:[%s145] sm:$0x2] %vm142, %v141
  %s147 = scalar_lea.vmem %s1, 343
  %148 = vst.msk [vmem:[%s147] sm:$0x4] %vm142, %v141
  %s149 = scalar_lea.vmem %s1, 470
  %150 = vst.msk [vmem:[%s149] sm:$0x8] %vm142, %v141
  %v151 = vld [vmem:[%s0] ss:$3 sm:$0xf]
  %152 = vrot.lane.b32.xlu0 %v151, 116
  %v153 = vpop.permute.xlu0 %152
  %vm154 = vcmask 23552
  %s155 = scalar_lea.vmem %s1, 4
  %156 = vst.msk [vmem:[%s155] sm:$0x1] %vm154, %v153
  %s157 = scalar_lea.vmem %s1, 131
  %158 = vst.msk [vmem:[%s157] sm:$0x2] %vm154, %v153
  %s159 = scalar_lea.vmem %s1, 258
  %160 = vst.msk [vmem:[%s159] sm:$0x4] %vm154, %v153
  %s161 = scalar_lea.vmem %s1, 385
  %162 = vst.msk [vmem:[%s161] sm:$0x8] %vm154, %v153
  %s163 = scalar_lea.vmem %s0, 1
  %v164 = vld [vmem:[%s163] ss:$3 sm:$0xf]
  %165 = vrot.lane.b32.xlu0 %v164, 115
  %v166 = vpop.permute.xlu0 %165
  %vm167 = vcmask 23552
  %s168 = scalar_lea.vmem %s1, 47
  %169 = vst.msk [vmem:[%s168] sm:$0x1] %vm167, %v166
  %s170 = scalar_lea.vmem %s1, 174
  %171 = vst.msk [vmem:[%s170] sm:$0x2] %vm167, %v166
  %s172 = scalar_lea.vmem %s1, 301
  %173 = vst.msk [vmem:[%s172] sm:$0x4] %vm167, %v166
  %s174 = scalar_lea.vmem %s1, 428
  %175 = vst.msk [vmem:[%s174] sm:$0x8] %vm167, %v166
  %s176 = scalar_lea.vmem %s0, 2
  %v177 = vld [vmem:[%s176] ss:$3 sm:$0xf]
  %178 = vrot.lane.b32.xlu0 %v177, 114
  %v179 = vpop.permute.xlu0 %178
  %vm180 = vcmask 23552
  %s181 = scalar_lea.vmem %s1, 90
  %182 = vst.msk [vmem:[%s181] sm:$0x1] %vm180, %v179
  %s183 = scalar_lea.vmem %s1, 217
  %184 = vst.msk [vmem:[%s183] sm:$0x2] %vm180, %v179
  %s185 = scalar_lea.vmem %s1, 344
  %186 = vst.msk [vmem:[%s185] sm:$0x4] %vm180, %v179
  %s187 = scalar_lea.vmem %s1, 471
  %188 = vst.msk [vmem:[%s187] sm:$0x8] %vm180, %v179
  %v189 = vld [vmem:[%s0] ss:$3 sm:$0xf]
  %190 = vrot.lane.b32.xlu0 %v189, 113
  %v191 = vpop.permute.xlu0 %190
  %vm192 = vcmask 23552
  %s193 = scalar_lea.vmem %s1, 5
  %194 = vst.msk [vmem:[%s193] sm:$0x1] %vm192, %v191
  %s195 = scalar_lea.vmem %s1, 132
  %196 = vst.msk [vmem:[%s195] sm:$0x2] %vm192, %v191
  %s197 = scalar_lea.vmem %s1, 259
  %198 = vst.msk [vmem:[%s197] sm:$0x4] %vm192, %v191
  %s199 = scalar_lea.vmem %s1, 386
  %200 = vst.msk [vmem:[%s199] sm:$0x8] %vm192, %v191
  %s201 = scalar_lea.vmem %s0, 1
  %v202 = vld [vmem:[%s201] ss:$3 sm:$0xf]
  %203 = vrot.lane.b32.xlu0 %v202, 112
  %v204 = vpop.permute.xlu0 %203
  %vm205 = vcmask 23552
  %s206 = scalar_lea.vmem %s1, 48
  %207 = vst.msk [vmem:[%s206] sm:$0x1] %vm205, %v204
  %s208 = scalar_lea.vmem %s1, 175
  %209 = vst.msk [vmem:[%s208] sm:$0x2] %vm205, %v204
  %s210 = scalar_lea.vmem %s1, 302
  %211 = vst.msk [vmem:[%s210] sm:$0x4] %vm205, %v204
  %s212 = scalar_lea.vmem %s1, 429
  %213 = vst.msk [vmem:[%s212] sm:$0x8] %vm205, %v204
  %s214 = scalar_lea.vmem %s0, 2
  %v215 = vld [vmem:[%s214] ss:$3 sm:$0xf]
  %216 = vrot.lane.b32.xlu0 %v215, 111
  %v217 = vpop.permute.xlu0 %216
  %vm218 = vcmask 23552
  %s219 = scalar_lea.vmem %s1, 91
  %220 = vst.msk [vmem:[%s219] sm:$0x1] %vm218, %v217
  %s221 = scalar_lea.vmem %s1, 218
  %222 = vst.msk [vmem:[%s221] sm:$0x2] %vm218, %v217
  %s223 = scalar_lea.vmem %s1, 345
  %224 = vst.msk [vmem:[%s223] sm:$0x4] %vm218, %v217
  %s225 = scalar_lea.vmem %s1, 472
  %226 = vst.msk [vmem:[%s225] sm:$0x8] %vm218, %v217
  %v227 = vld [vmem:[%s0] ss:$3 sm:$0xf]
  %228 = vrot.lane.b32.xlu0 %v227, 110
  %v229 = vpop.permute.xlu0 %228
  %vm230 = vcmask 23552
  %s231 = scalar_lea.vmem %s1, 6
  %232 = vst.msk [vmem:[%s231] sm:$0x1] %vm230, %v229
  %s233 = scalar_lea.vmem %s1, 133
  %234 = vst.msk [vmem:[%s233] sm:$0x2] %vm230, %v229
  %s235 = scalar_lea.vmem %s1, 260
  %236 = vst.msk [vmem:[%s235] sm:$0x4] %vm230, %v229
  %s237 = scalar_lea.vmem %s1, 387
  %238 = vst.msk [vmem:[%s237] sm:$0x8] %vm230, %v229
  %s239 = scalar_lea.vmem %s0, 1
  %v240 = vld [vmem:[%s239] ss:$3 sm:$0xf]
  %241 = vrot.lane.b32.xlu0 %v240, 109
  %v242 = vpop.permute.xlu0 %241
  %vm243 = vcmask 23552
  %s244 = scalar_lea.vmem %s1, 49
  %245 = vst.msk [vmem:[%s244] sm:$0x1] %vm243, %v242
  %s246 = scalar_lea.vmem %s1, 176
  %247 = vst.msk [vmem:[%s246] sm:$0x2] %vm243, %v242
  %s248 = scalar_lea.vmem %s1, 303
  %249 = vst.msk [vmem:[%s248] sm:$0x4] %vm243, %v242
  %s250 = scalar_lea.vmem %s1, 430
  %251 = vst.msk [vmem:[%s250] sm:$0x8] %vm243, %v242
  %s252 = scalar_lea.vmem %s0, 2
  %v253 = vld [vmem:[%s252] ss:$3 sm:$0xf]
  %254 = vrot.lane.b32.xlu0 %v253, 108
  %v255 = vpop.permute.xlu0 %254
  %vm256 = vcmask 23552
  %s257 = scalar_lea.vmem %s1, 92
  %258 = vst.msk [vmem:[%s257] sm:$0x1] %vm256, %v255
  %s259 = scalar_lea.vmem %s1, 219
  %260 = vst.msk [vmem:[%s259] sm:$0x2] %vm256, %v255
  %s261 = scalar_lea.vmem %s1, 346
  %262 = vst.msk [vmem:[%s261] sm:$0x4] %vm256, %v255
  %s263 = scalar_lea.vmem %s1, 473
  %264 = vst.msk [vmem:[%s263] sm:$0x8] %vm256, %v255
  %v265 = vld [vmem:[%s0] ss:$3 sm:$0xf]
  %266 = vrot.lane.b32.xlu0 %v265, 107
  %v267 = vpop.permute.xlu0 %266
  %vm268 = vcmask 23552
  %s269 = scalar_lea.vmem %s1, 7
  %270 = vst.msk [vmem:[%s269] sm:$0x1] %vm268, %v267
  %s271 = scalar_lea.vmem %s1, 134
  %272 = vst.msk [vmem:[%s271] sm:$0x2] %vm268, %v267
  %s273 = scalar_lea.vmem %s1, 261
  %274 = vst.msk [vmem:[%s273] sm:$0x4] %vm268, %v267
  %s275 = scalar_lea.vmem %s1, 388
  %276 = vst.msk [vmem:[%s275] sm:$0x8] %vm268, %v267
  %s277 = scalar_lea.vmem %s0, 1
  %v278 = vld [vmem:[%s277] ss:$3 sm:$0xf]
  %279 = vrot.lane.b32.xlu0 %v278, 106
  %v280 = vpop.permute.xlu0 %279
  %vm281 = vcmask 23552
  %s282 = scalar_lea.vmem %s1, 50
  %283 = vst.msk [vmem:[%s282] sm:$0x1] %vm281, %v280
  %s284 = scalar_lea.vmem %s1, 177
  %285 = vst.msk [vmem:[%s284] sm:$0x2] %vm281, %v280
  %s286 = scalar_lea.vmem %s1, 304
  %287 = vst.msk [vmem:[%s286] sm:$0x4] %vm281, %v280
  %s288 = scalar_lea.vmem %s1, 431
  %289 = vst.msk [vmem:[%s288] sm:$0x8] %vm281, %v280
  %s290 = scalar_lea.vmem %s0, 2
  %v291 = vld [vmem:[%s290] ss:$3 sm:$0xf]
  %292 = vrot.lane.b32.xlu0 %v291, 105
  %v293 = vpop.permute.xlu0 %292
  %vm294 = vcmask 23552
  %s295 = scalar_lea.vmem %s1, 93
  %296 = vst.msk [vmem:[%s295] sm:$0x1] %vm294, %v293
  %s297 = scalar_lea.vmem %s1, 220
  %298 = vst.msk [vmem:[%s297] sm:$0x2] %vm294, %v293
  %s299 = scalar_lea.vmem %s1, 347
  %300 = vst.msk [vmem:[%s299] sm:$0x4] %vm294, %v293
  %s301 = scalar_lea.vmem %s1, 474
  %302 = vst.msk [vmem:[%s301] sm:$0x8] %vm294, %v293
  %v303 = vld [vmem:[%s0] ss:$3 sm:$0xf]
  %304 = vrot.lane.b32.xlu0 %v303, 104
  %v305 = vpop.permute.xlu0 %304
  %vm306 = vcmask 23552
  %s307 = scalar_lea.vmem %s1, 8
  %308 = vst.msk [vmem:[%s307] sm:$0x1] %vm306, %v305
  %s309 = scalar_lea.vmem %s1, 135
  %310 = vst.msk [vmem:[%s309] sm:$0x2] %vm306, %v305
  %s311 = scalar_lea.vmem %s1, 262
  %312 = vst.msk [vmem:[%s311] sm:$0x4] %vm306, %v305
  %s313 = scalar_lea.vmem %s1, 389
  %314 = vst.msk [vmem:[%s313] sm:$0x8] %vm306, %v305
  %s315 = scalar_lea.vmem %s0, 1
  %v316 = vld [vmem:[%s315] ss:$3 sm:$0xf]
  %317 = vrot.lane.b32.xlu0 %v316, 103
  %v318 = vpop.permute.xlu0 %317
  %vm319 = vcmask 23552
  %s320 = scalar_lea.vmem %s1, 51
  %321 = vst.msk [vmem:[%s320] sm:$0x1] %vm319, %v318
  %s322 = scalar_lea.vmem %s1, 178
  %323 = vst.msk [vmem:[%s322] sm:$0x2] %vm319, %v318
  %s324 = scalar_lea.vmem %s1, 305
  %325 = vst.msk [vmem:[%s324] sm:$0x4] %vm319, %v318
  %s326 = scalar_lea.vmem %s1, 432
  %327 = vst.msk [vmem:[%s326] sm:$0x8] %vm319, %v318
  %s328 = scalar_lea.vmem %s0, 2
  %v329 = vld [vmem:[%s328] ss:$3 sm:$0xf]
  %330 = vrot.lane.b32.xlu0 %v329, 102
  %v331 = vpop.permute.xlu0 %330
  %vm332 = vcmask 23552
  %s333 = scalar_lea.vmem %s1, 94
  %334 = vst.msk [vmem:[%s333] sm:$0x1] %vm332, %v331
  %s335 = scalar_lea.vmem %s1, 221
  %336 = vst.msk [vmem:[%s335] sm:$0x2] %vm332, %v331
  %s337 = scalar_lea.vmem %s1, 348
  %338 = vst.msk [vmem:[%s337] sm:$0x4] %vm332, %v331
  %s339 = scalar_lea.vmem %s1, 475
  %340 = vst.msk [vmem:[%s339] sm:$0x8] %vm332, %v331
  %v341 = vld [vmem:[%s0] ss:$3 sm:$0xf]
  %342 = vrot.lane.b32.xlu0 %v341, 101
  %v343 = vpop.permute.xlu0 %342
  %vm344 = vcmask 23552
  %s345 = scalar_lea.vmem %s1, 9
  %346 = vst.msk [vmem:[%s345] sm:$0x1] %vm344, %v343
  %s347 = scalar_lea.vmem %s1, 136
  %348 = vst.msk [vmem:[%s347] sm:$0x2] %vm344, %v343
  %s349 = scalar_lea.vmem %s1, 263
  %350 = vst.msk [vmem:[%s349] sm:$0x4] %vm344, %v343
  %s351 = scalar_lea.vmem %s1, 390
  %352 = vst.msk [vmem:[%s351] sm:$0x8] %vm344, %v343
  %s353 = scalar_lea.vmem %s0, 1
  %v354 = vld [vmem:[%s353] ss:$3 sm:$0xf]
  %355 = vrot.lane.b32.xlu0 %v354, 100
  %v356 = vpop.permute.xlu0 %355
  %vm357 = vcmask 23552
  %s358 = scalar_lea.vmem %s1, 52
  %359 = vst.msk [vmem:[%s358] sm:$0x1] %vm357, %v356
  %s360 = scalar_lea.vmem %s1, 179
  %361 = vst.msk [vmem:[%s360] sm:$0x2] %vm357, %v356
  %s362 = scalar_lea.vmem %s1, 306
  %363 = vst.msk [vmem:[%s362] sm:$0x4] %vm357, %v356
  %s364 = scalar_lea.vmem %s1, 433
  %365 = vst.msk [vmem:[%s364] sm:$0x8] %vm357, %v356
  %s366 = scalar_lea.vmem %s0, 2
  %v367 = vld [vmem:[%s366] ss:$3 sm:$0xf]
  %368 = vrot.lane.b32.xlu0 %v367, 99
  %v369 = vpop.permute.xlu0 %368
  %vm370 = vcmask 23552
  %s371 = scalar_lea.vmem %s1, 95
  %372 = vst.msk [vmem:[%s371] sm:$0x1] %vm370, %v369
  %s373 = scalar_lea.vmem %s1, 222
  %374 = vst.msk [vmem:[%s373] sm:$0x2] %vm370, %v369
  %s375 = scalar_lea.vmem %s1, 349
  %376 = vst.msk [vmem:[%s375] sm:$0x4] %vm370, %v369
  %s377 = scalar_lea.vmem %s1, 476
  %378 = vst.msk [vmem:[%s377] sm:$0x8] %vm370, %v369
  %v379 = vld [vmem:[%s0] ss:$3 sm:$0xf]
  %380 = vrot.lane.b32.xlu0 %v379, 98
  %v381 = vpop.permute.xlu0 %380
  %vm382 = vcmask 23552
  %s383 = scalar_lea.vmem %s1, 10
  %384 = vst.msk [vmem:[%s383] sm:$0x1] %vm382, %v381
  %s385 = scalar_lea.vmem %s1, 137
  %386 = vst.msk [vmem:[%s385] sm:$0x2] %vm382, %v381
  %s387 = scalar_lea.vmem %s1, 264
  %388 = vst.msk [vmem:[%s387] sm:$0x4] %vm382, %v381
  %s389 = scalar_lea.vmem %s1, 391
  %390 = vst.msk [vmem:[%s389] sm:$0x8] %vm382, %v381
  %s391 = scalar_lea.vmem %s0, 1
  %v392 = vld [vmem:[%s391] ss:$3 sm:$0xf]
  %393 = vrot.lane.b32.xlu0 %v392, 97
  %v394 = vpop.permute.xlu0 %393
  %vm395 = vcmask 23552
  %s396 = scalar_lea.vmem %s1, 53
  %397 = vst.msk [vmem:[%s396] sm:$0x1] %vm395, %v394
  %s398 = scalar_lea.vmem %s1, 180
  %399 = vst.msk [vmem:[%s398] sm:$0x2] %vm395, %v394
  %s400 = scalar_lea.vmem %s1, 307
  %401 = vst.msk [vmem:[%s400] sm:$0x4] %vm395, %v394
  %s402 = scalar_lea.vmem %s1, 434
  %403 = vst.msk [vmem:[%s402] sm:$0x8] %vm395, %v394
  %s404 = scalar_lea.vmem %s0, 2
  %v405 = vld [vmem:[%s404] ss:$3 sm:$0xf]
  %406 = vrot.lane.b32.xlu0 %v405, 96
  %v407 = vpop.permute.xlu0 %406
  %vm408 = vcmask 23552
  %s409 = scalar_lea.vmem %s1, 96
  %410 = vst.msk [vmem:[%s409] sm:$0x1] %vm408, %v407
  %s411 = scalar_lea.vmem %s1, 223
  %412 = vst.msk [vmem:[%s411] sm:$0x2] %vm408, %v407
  %s413 = scalar_lea.vmem %s1, 350
  %414 = vst.msk [vmem:[%s413] sm:$0x4] %vm408, %v407
  %s415 = scalar_lea.vmem %s1, 477
  %416 = vst.msk [vmem:[%s415] sm:$0x8] %vm408, %v407
  %v417 = vld [vmem:[%s0] ss:$3 sm:$0xf]
  %418 = vrot.lane.b32.xlu0 %v417, 95
  %v419 = vpop.permute.xlu0 %418
  %vm420 = vcmask 23552
  %s421 = scalar_lea.vmem %s1, 11
  %422 = vst.msk [vmem:[%s421] sm:$0x1] %vm420, %v419
  %s423 = scalar_lea.vmem %s1, 138
  %424 = vst.msk [vmem:[%s423] sm:$0x2] %vm420, %v419
  %s425 = scalar_lea.vmem %s1, 265
  %426 = vst.msk [vmem:[%s425] sm:$0x4] %vm420, %v419
  %s427 = scalar_lea.vmem %s1, 392
  %428 = vst.msk [vmem:[%s427] sm:$0x8] %vm420, %v419
  %s429 = scalar_lea.vmem %s0, 1
  %v430 = vld [vmem:[%s429] ss:$3 sm:$0xf]
  %431 = vrot.lane.b32.xlu0 %v430, 94
  %v432 = vpop.permute.xlu0 %431
  %vm433 = vcmask 23552
  %s434 = scalar_lea.vmem %s1, 54
  %435 = vst.msk [vmem:[%s434] sm:$0x1] %vm433, %v432
  %s436 = scalar_lea.vmem %s1, 181
  %437 = vst.msk [vmem:[%s436] sm:$0x2] %vm433, %v432
  %s438 = scalar_lea.vmem %s1, 308
  %439 = vst.msk [vmem:[%s438] sm:$0x4] %vm433, %v432
  %s440 = scalar_lea.vmem %s1, 435
  %441 = vst.msk [vmem:[%s440] sm:$0x8] %vm433, %v432
  %s442 = scalar_lea.vmem %s0, 2
  %v443 = vld [vmem:[%s442] ss:$3 sm:$0xf]
  %444 = vrot.lane.b32.xlu0 %v443, 93
  %v445 = vpop.permute.xlu0 %444
  %vm446 = vcmask 23552
  %s447 = scalar_lea.vmem %s1, 97
  %448 = vst.msk [vmem:[%s447] sm:$0x1] %vm446, %v445
  %s449 = scalar_lea.vmem %s1, 224
  %450 = vst.msk [vmem:[%s449] sm:$0x2] %vm446, %v445
  %s451 = scalar_lea.vmem %s1, 351
  %452 = vst.msk [vmem:[%s451] sm:$0x4] %vm446, %v445
  %s453 = scalar_lea.vmem %s1, 478
  %454 = vst.msk [vmem:[%s453] sm:$0x8] %vm446, %v445
  %v455 = vld [vmem:[%s0] ss:$3 sm:$0xf]
  %456 = vrot.lane.b32.xlu0 %v455, 92
  %v457 = vpop.permute.xlu0 %456
  %vm458 = vcmask 23552
  %s459 = scalar_lea.vmem %s1, 12
  %460 = vst.msk [vmem:[%s459] sm:$0x1] %vm458, %v457
  %s461 = scalar_lea.vmem %s1, 139
  %462 = vst.msk [vmem:[%s461] sm:$0x2] %vm458, %v457
  %s463 = scalar_lea.vmem %s1, 266
  %464 = vst.msk [vmem:[%s463] sm:$0x4] %vm458, %v457
  %s465 = scalar_lea.vmem %s1, 393
  %466 = vst.msk [vmem:[%s465] sm:$0x8] %vm458, %v457
  %s467 = scalar_lea.vmem %s0, 1
  %v468 = vld [vmem:[%s467] ss:$3 sm:$0xf]
  %469 = vrot.lane.b32.xlu0 %v468, 91
  %v470 = vpop.permute.xlu0 %469
  %vm471 = vcmask 23552
  %s472 = scalar_lea.vmem %s1, 55
  %473 = vst.msk [vmem:[%s472] sm:$0x1] %vm471, %v470
  %s474 = scalar_lea.vmem %s1, 182
  %475 = vst.msk [vmem:[%s474] sm:$0x2] %vm471, %v470
  %s476 = scalar_lea.vmem %s1, 309
  %477 = vst.msk [vmem:[%s476] sm:$0x4] %vm471, %v470
  %s478 = scalar_lea.vmem %s1, 436
  %479 = vst.msk [vmem:[%s478] sm:$0x8] %vm471, %v470
  %s480 = scalar_lea.vmem %s0, 2
  %v481 = vld [vmem:[%s480] ss:$3 sm:$0xf]
  %482 = vrot.lane.b32.xlu0 %v481, 90
  %v483 = vpop.permute.xlu0 %482
  %vm484 = vcmask 23552
  %s485 = scalar_lea.vmem %s1, 98
  %486 = vst.msk [vmem:[%s485] sm:$0x1] %vm484, %v483
  %s487 = scalar_lea.vmem %s1, 225
  %488 = vst.msk [vmem:[%s487] sm:$0x2] %vm484, %v483
  %s489 = scalar_lea.vmem %s1, 352
  %490 = vst.msk [vmem:[%s489] sm:$0x4] %vm484, %v483
  %s491 = scalar_lea.vmem %s1, 479
  %492 = vst.msk [vmem:[%s491] sm:$0x8] %vm484, %v483
  %v493 = vld [vmem:[%s0] ss:$3 sm:$0xf]
  %494 = vrot.lane.b32.xlu0 %v493, 89
  %v495 = vpop.permute.xlu0 %494
  %vm496 = vcmask 23552
  %s497 = scalar_lea.vmem %s1, 13
  %498 = vst.msk [vmem:[%s497] sm:$0x1] %vm496, %v495
  %s499 = scalar_lea.vmem %s1, 140
  %500 = vst.msk [vmem:[%s499] sm:$0x2] %vm496, %v495
  %s501 = scalar_lea.vmem %s1, 267
  %502 = vst.msk [vmem:[%s501] sm:$0x4] %vm496, %v495
  %s503 = scalar_lea.vmem %s1, 394
  %504 = vst.msk [vmem:[%s503] sm:$0x8] %vm496, %v495
  %s505 = scalar_lea.vmem %s0, 1
  %v506 = vld [vmem:[%s505] ss:$3 sm:$0xf]
  %507 = vrot.lane.b32.xlu0 %v506, 88
  %v508 = vpop.permute.xlu0 %507
  %vm509 = vcmask 23552
  %s510 = scalar_lea.vmem %s1, 56
  %511 = vst.msk [vmem:[%s510] sm:$0x1] %vm509, %v508
  %s512 = scalar_lea.vmem %s1, 183
  %513 = vst.msk [vmem:[%s512] sm:$0x2] %vm509, %v508
  %s514 = scalar_lea.vmem %s1, 310
  %515 = vst.msk [vmem:[%s514] sm:$0x4] %vm509, %v508
  %s516 = scalar_lea.vmem %s1, 437
  %517 = vst.msk [vmem:[%s516] sm:$0x8] %vm509, %v508
  %s518 = scalar_lea.vmem %s0, 2
  %v519 = vld [vmem:[%s518] ss:$3 sm:$0xf]
  %520 = vrot.lane.b32.xlu0 %v519, 87
  %v521 = vpop.permute.xlu0 %520
  %vm522 = vcmask 23552
  %s523 = scalar_lea.vmem %s1, 99
  %524 = vst.msk [vmem:[%s523] sm:$0x1] %vm522, %v521
  %s525 = scalar_lea.vmem %s1, 226
  %526 = vst.msk [vmem:[%s525] sm:$0x2] %vm522, %v521
  %s527 = scalar_lea.vmem %s1, 353
  %528 = vst.msk [vmem:[%s527] sm:$0x4] %vm522, %v521
  %s529 = scalar_lea.vmem %s1, 480
  %530 = vst.msk [vmem:[%s529] sm:$0x8] %vm522, %v521
  %v531 = vld [vmem:[%s0] ss:$3 sm:$0xf]
  %532 = vrot.lane.b32.xlu0 %v531, 86
  %v533 = vpop.permute.xlu0 %532
  %vm534 = vcmask 23552
  %s535 = scalar_lea.vmem %s1, 14
  %536 = vst.msk [vmem:[%s535] sm:$0x1] %vm534, %v533
  %s537 = scalar_lea.vmem %s1, 141
  %538 = vst.msk [vmem:[%s537] sm:$0x2] %vm534, %v533
  %s539 = scalar_lea.vmem %s1, 268
  %540 = vst.msk [vmem:[%s539] sm:$0x4] %vm534, %v533
  %s541 = scalar_lea.vmem %s1, 395
  %542 = vst.msk [vmem:[%s541] sm:$0x8] %vm534, %v533
  %s543 = scalar_lea.vmem %s0, 1
  %v544 = vld [vmem:[%s543] ss:$3 sm:$0xf]
  %545 = vrot.lane.b32.xlu0 %v544, 85
  %v546 = vpop.permute.xlu0 %545
  %vm547 = vcmask 23552
  %s548 = scalar_lea.vmem %s1, 57
  %549 = vst.msk [vmem:[%s548] sm:$0x1] %vm547, %v546
  %s550 = scalar_lea.vmem %s1, 184
  %551 = vst.msk [vmem:[%s550] sm:$0x2] %vm547, %v546
  %s552 = scalar_lea.vmem %s1, 311
  %553 = vst.msk [vmem:[%s552] sm:$0x4] %vm547, %v546
  %s554 = scalar_lea.vmem %s1, 438
  %555 = vst.msk [vmem:[%s554] sm:$0x8] %vm547, %v546
  %s556 = scalar_lea.vmem %s0, 2
  %v557 = vld [vmem:[%s556] ss:$3 sm:$0xf]
  %558 = vrot.lane.b32.xlu0 %v557, 84
  %v559 = vpop.permute.xlu0 %558
  %vm560 = vcmask 23552
  %s561 = scalar_lea.vmem %s1, 100
  %562 = vst.msk [vmem:[%s561] sm:$0x1] %vm560, %v559
  %s563 = scalar_lea.vmem %s1, 227
  %564 = vst.msk [vmem:[%s563] sm:$0x2] %vm560, %v559
  %s565 = scalar_lea.vmem %s1, 354
  %566 = vst.msk [vmem:[%s565] sm:$0x4] %vm560, %v559
  %s567 = scalar_lea.vmem %s1, 481
  %568 = vst.msk [vmem:[%s567] sm:$0x8] %vm560, %v559
  %v569 = vld [vmem:[%s0] ss:$3 sm:$0xf]
  %570 = vrot.lane.b32.xlu0 %v569, 83
  %v571 = vpop.permute.xlu0 %570
  %vm572 = vcmask 23552
  %s573 = scalar_lea.vmem %s1, 15
  %574 = vst.msk [vmem:[%s573] sm:$0x1] %vm572, %v571
  %s575 = scalar_lea.vmem %s1, 142
  %576 = vst.msk [vmem:[%s575] sm:$0x2] %vm572, %v571
  %s577 = scalar_lea.vmem %s1, 269
  %578 = vst.msk [vmem:[%s577] sm:$0x4] %vm572, %v571
  %s579 = scalar_lea.vmem %s1, 396
  %580 = vst.msk [vmem:[%s579] sm:$0x8] %vm572, %v571
  %s581 = scalar_lea.vmem %s0, 1
  %v582 = vld [vmem:[%s581] ss:$3 sm:$0xf]
  %583 = vrot.lane.b32.xlu0 %v582, 82
  %v584 = vpop.permute.xlu0 %583
  %vm585 = vcmask 23552
  %s586 = scalar_lea.vmem %s1, 58
  %587 = vst.msk [vmem:[%s586] sm:$0x1] %vm585, %v584
  %s588 = scalar_lea.vmem %s1, 185
  %589 = vst.msk [vmem:[%s588] sm:$0x2] %vm585, %v584
  %s590 = scalar_lea.vmem %s1, 312
  %591 = vst.msk [vmem:[%s590] sm:$0x4] %vm585, %v584
  %s592 = scalar_lea.vmem %s1, 439
  %593 = vst.msk [vmem:[%s592] sm:$0x8] %vm585, %v584
  %s594 = scalar_lea.vmem %s0, 2
  %v595 = vld [vmem:[%s594] ss:$3 sm:$0xf]
  %596 = vrot.lane.b32.xlu0 %v595, 81
  %v597 = vpop.permute.xlu0 %596
  %vm598 = vcmask 23552
  %s599 = scalar_lea.vmem %s1, 101
  %600 = vst.msk [vmem:[%s599] sm:$0x1] %vm598, %v597
  %s601 = scalar_lea.vmem %s1, 228
  %602 = vst.msk [vmem:[%s601] sm:$0x2] %vm598, %v597
  %s603 = scalar_lea.vmem %s1, 355
  %604 = vst.msk [vmem:[%s603] sm:$0x4] %vm598, %v597
  %s605 = scalar_lea.vmem %s1, 482
  %606 = vst.msk [vmem:[%s605] sm:$0x8] %vm598, %v597
  %v607 = vld [vmem:[%s0] ss:$3 sm:$0xf]
  %608 = vrot.lane.b32.xlu0 %v607, 80
  %v609 = vpop.permute.xlu0 %608
  %vm610 = vcmask 23552
  %s611 = scalar_lea.vmem %s1, 16
  %612 = vst.msk [vmem:[%s611] sm:$0x1] %vm610, %v609
  %s613 = scalar_lea.vmem %s1, 143
  %614 = vst.msk [vmem:[%s613] sm:$0x2] %vm610, %v609
  %s615 = scalar_lea.vmem %s1, 270
  %616 = vst.msk [vmem:[%s615] sm:$0x4] %vm610, %v609
  %s617 = scalar_lea.vmem %s1, 397
  %618 = vst.msk [vmem:[%s617] sm:$0x8] %vm610, %v609
  %s619 = scalar_lea.vmem %s0, 1
  %v620 = vld [vmem:[%s619] ss:$3 sm:$0xf]
  %621 = vrot.lane.b32.xlu0 %v620, 79
  %v622 = vpop.permute.xlu0 %621
  %vm623 = vcmask 23552
  %s624 = scalar_lea.vmem %s1, 59
  %625 = vst.msk [vmem:[%s624] sm:$0x1] %vm623, %v622
  %s626 = scalar_lea.vmem %s1, 186
  %627 = vst.msk [vmem:[%s626] sm:$0x2] %vm623, %v622
  %s628 = scalar_lea.vmem %s1, 313
  %629 = vst.msk [vmem:[%s628] sm:$0x4] %vm623, %v622
  %s630 = scalar_lea.vmem %s1, 440
  %631 = vst.msk [vmem:[%s630] sm:$0x8] %vm623, %v622
  %s632 = scalar_lea.vmem %s0, 2
  %v633 = vld [vmem:[%s632] ss:$3 sm:$0xf]
  %634 = vrot.lane.b32.xlu0 %v633, 78
  %v635 = vpop.permute.xlu0 %634
  %vm636 = vcmask 23552
  %s637 = scalar_lea.vmem %s1, 102
  %638 = vst.msk [vmem:[%s637] sm:$0x1] %vm636, %v635
  %s639 = scalar_lea.vmem %s1, 229
  %640 = vst.msk [vmem:[%s639] sm:$0x2] %vm636, %v635
  %s641 = scalar_lea.vmem %s1, 356
  %642 = vst.msk [vmem:[%s641] sm:$0x4] %vm636, %v635
  %s643 = scalar_lea.vmem %s1, 483
  %644 = vst.msk [vmem:[%s643] sm:$0x8] %vm636, %v635
  %v645 = vld [vmem:[%s0] ss:$3 sm:$0xf]
  %646 = vrot.lane.b32.xlu0 %v645, 77
  %v647 = vpop.permute.xlu0 %646
  %vm648 = vcmask 23552
  %s649 = scalar_lea.vmem %s1, 17
  %650 = vst.msk [vmem:[%s649] sm:$0x1] %vm648, %v647
  %s651 = scalar_lea.vmem %s1, 144
  %652 = vst.msk [vmem:[%s651] sm:$0x2] %vm648, %v647
  %s653 = scalar_lea.vmem %s1, 271
  %654 = vst.msk [vmem:[%s653] sm:$0x4] %vm648, %v647
  %s655 = scalar_lea.vmem %s1, 398
  %656 = vst.msk [vmem:[%s655] sm:$0x8] %vm648, %v647
  %s657 = scalar_lea.vmem %s0, 1
  %v658 = vld [vmem:[%s657] ss:$3 sm:$0xf]
  %659 = vrot.lane.b32.xlu0 %v658, 76
  %v660 = vpop.permute.xlu0 %659
  %vm661 = vcmask 23552
  %s662 = scalar_lea.vmem %s1, 60
  %663 = vst.msk [vmem:[%s662] sm:$0x1] %vm661, %v660
  %s664 = scalar_lea.vmem %s1, 187
  %665 = vst.msk [vmem:[%s664] sm:$0x2] %vm661, %v660
  %s666 = scalar_lea.vmem %s1, 314
  %667 = vst.msk [vmem:[%s666] sm:$0x4] %vm661, %v660
  %s668 = scalar_lea.vmem %s1, 441
  %669 = vst.msk [vmem:[%s668] sm:$0x8] %vm661, %v660
  %s670 = scalar_lea.vmem %s0, 2
  %v671 = vld [vmem:[%s670] ss:$3 sm:$0xf]
  %672 = vrot.lane.b32.xlu0 %v671, 75
  %v673 = vpop.permute.xlu0 %672
  %vm674 = vcmask 23552
  %s675 = scalar_lea.vmem %s1, 103
  %676 = vst.msk [vmem:[%s675] sm:$0x1] %vm674, %v673
  %s677 = scalar_lea.vmem %s1, 230
  %678 = vst.msk [vmem:[%s677] sm:$0x2] %vm674, %v673
  %s679 = scalar_lea.vmem %s1, 357
  %680 = vst.msk [vmem:[%s679] sm:$0x4] %vm674, %v673
  %s681 = scalar_lea.vmem %s1, 484
  %682 = vst.msk [vmem:[%s681] sm:$0x8] %vm674, %v673
  %v683 = vld [vmem:[%s0] ss:$3 sm:$0xf]
  %684 = vrot.lane.b32.xlu0 %v683, 74
  %v685 = vpop.permute.xlu0 %684
  %vm686 = vcmask 23552
  %s687 = scalar_lea.vmem %s1, 18
  %688 = vst.msk [vmem:[%s687] sm:$0x1] %vm686, %v685
  %s689 = scalar_lea.vmem %s1, 145
  %690 = vst.msk [vmem:[%s689] sm:$0x2] %vm686, %v685
  %s691 = scalar_lea.vmem %s1, 272
  %692 = vst.msk [vmem:[%s691] sm:$0x4] %vm686, %v685
  %s693 = scalar_lea.vmem %s1, 399
  %694 = vst.msk [vmem:[%s693] sm:$0x8] %vm686, %v685
  %s695 = scalar_lea.vmem %s0, 1
  %v696 = vld [vmem:[%s695] ss:$3 sm:$0xf]
  %697 = vrot.lane.b32.xlu0 %v696, 73
  %v698 = vpop.permute.xlu0 %697
  %vm699 = vcmask 23552
  %s700 = scalar_lea.vmem %s1, 61
  %701 = vst.msk [vmem:[%s700] sm:$0x1] %vm699, %v698
  %s702 = scalar_lea.vmem %s1, 188
  %703 = vst.msk [vmem:[%s702] sm:$0x2] %vm699, %v698
  %s704 = scalar_lea.vmem %s1, 315
  %705 = vst.msk [vmem:[%s704] sm:$0x4] %vm699, %v698
  %s706 = scalar_lea.vmem %s1, 442
  %707 = vst.msk [vmem:[%s706] sm:$0x8] %vm699, %v698
  %s708 = scalar_lea.vmem %s0, 2
  %v709 = vld [vmem:[%s708] ss:$3 sm:$0xf]
  %710 = vrot.lane.b32.xlu0 %v709, 72
  %v711 = vpop.permute.xlu0 %710
  %vm712 = vcmask 23552
  %s713 = scalar_lea.vmem %s1, 104
  %714 = vst.msk [vmem:[%s713] sm:$0x1] %vm712, %v711
  %s715 = scalar_lea.vmem %s1, 231
  %716 = vst.msk [vmem:[%s715] sm:$0x2] %vm712, %v711
  %s717 = scalar_lea.vmem %s1, 358
  %718 = vst.msk [vmem:[%s717] sm:$0x4] %vm712, %v711
  %s719 = scalar_lea.vmem %s1, 485
  %720 = vst.msk [vmem:[%s719] sm:$0x8] %vm712, %v711
  %v721 = vld [vmem:[%s0] ss:$3 sm:$0xf]
  %722 = vrot.lane.b32.xlu0 %v721, 71
  %v723 = vpop.permute.xlu0 %722
  %vm724 = vcmask 23552
  %s725 = scalar_lea.vmem %s1, 19
  %726 = vst.msk [vmem:[%s725] sm:$0x1] %vm724, %v723
  %s727 = scalar_lea.vmem %s1, 146
  %728 = vst.msk [vmem:[%s727] sm:$0x2] %vm724, %v723
  %s729 = scalar_lea.vmem %s1, 273
  %730 = vst.msk [vmem:[%s729] sm:$0x4] %vm724, %v723
  %s731 = scalar_lea.vmem %s1, 400
  %732 = vst.msk [vmem:[%s731] sm:$0x8] %vm724, %v723
  %s733 = scalar_lea.vmem %s0, 1
  %v734 = vld [vmem:[%s733] ss:$3 sm:$0xf]
  %735 = vrot.lane.b32.xlu0 %v734, 70
  %v736 = vpop.permute.xlu0 %735
  %vm737 = vcmask 23552
  %s738 = scalar_lea.vmem %s1, 62
  %739 = vst.msk [vmem:[%s738] sm:$0x1] %vm737, %v736
  %s740 = scalar_lea.vmem %s1, 189
  %741 = vst.msk [vmem:[%s740] sm:$0x2] %vm737, %v736
  %s742 = scalar_lea.vmem %s1, 316
  %743 = vst.msk [vmem:[%s742] sm:$0x4] %vm737, %v736
  %s744 = scalar_lea.vmem %s1, 443
  %745 = vst.msk [vmem:[%s744] sm:$0x8] %vm737, %v736
  %s746 = scalar_lea.vmem %s0, 2
  %v747 = vld [vmem:[%s746] ss:$3 sm:$0xf]
  %748 = vrot.lane.b32.xlu0 %v747, 69
  %v749 = vpop.permute.xlu0 %748
  %vm750 = vcmask 23552
  %s751 = scalar_lea.vmem %s1, 105
  %752 = vst.msk [vmem:[%s751] sm:$0x1] %vm750, %v749
  %s753 = scalar_lea.vmem %s1, 232
  %754 = vst.msk [vmem:[%s753] sm:$0x2] %vm750, %v749
  %s755 = scalar_lea.vmem %s1, 359
  %756 = vst.msk [vmem:[%s755] sm:$0x4] %vm750, %v749
  %s757 = scalar_lea.vmem %s1, 486
  %758 = vst.msk [vmem:[%s757] sm:$0x8] %vm750, %v749
  %v759 = vld [vmem:[%s0] ss:$3 sm:$0xf]
  %760 = vrot.lane.b32.xlu0 %v759, 68
  %v761 = vpop.permute.xlu0 %760
  %vm762 = vcmask 23552
  %s763 = scalar_lea.vmem %s1, 20
  %764 = vst.msk [vmem:[%s763] sm:$0x1] %vm762, %v761
  %s765 = scalar_lea.vmem %s1, 147
  %766 = vst.msk [vmem:[%s765] sm:$0x2] %vm762, %v761
  %s767 = scalar_lea.vmem %s1, 274
  %768 = vst.msk [vmem:[%s767] sm:$0x4] %vm762, %v761
  %s769 = scalar_lea.vmem %s1, 401
  %770 = vst.msk [vmem:[%s769] sm:$0x8] %vm762, %v761
  %s771 = scalar_lea.vmem %s0, 1
  %v772 = vld [vmem:[%s771] ss:$3 sm:$0xf]
  %773 = vrot.lane.b32.xlu0 %v772, 67
  %v774 = vpop.permute.xlu0 %773
  %vm775 = vcmask 23552
  %s776 = scalar_lea.vmem %s1, 63
  %777 = vst.msk [vmem:[%s776] sm:$0x1] %vm775, %v774
  %s778 = scalar_lea.vmem %s1, 190
  %779 = vst.msk [vmem:[%s778] sm:$0x2] %vm775, %v774
  %s780 = scalar_lea.vmem %s1, 317
  %781 = vst.msk [vmem:[%s780] sm:$0x4] %vm775, %v774
  %s782 = scalar_lea.vmem %s1, 444
  %783 = vst.msk [vmem:[%s782] sm:$0x8] %vm775, %v774
  %s784 = scalar_lea.vmem %s0, 2
  %v785 = vld [vmem:[%s784] ss:$3 sm:$0xf]
  %786 = vrot.lane.b32.xlu0 %v785, 66
  %v787 = vpop.permute.xlu0 %786
  %vm788 = vcmask 23552
  %s789 = scalar_lea.vmem %s1, 106
  %790 = vst.msk [vmem:[%s789] sm:$0x1] %vm788, %v787
  %s791 = scalar_lea.vmem %s1, 233
  %792 = vst.msk [vmem:[%s791] sm:$0x2] %vm788, %v787
  %s793 = scalar_lea.vmem %s1, 360
  %794 = vst.msk [vmem:[%s793] sm:$0x4] %vm788, %v787
  %s795 = scalar_lea.vmem %s1, 487
  %796 = vst.msk [vmem:[%s795] sm:$0x8] %vm788, %v787
  %v797 = vld [vmem:[%s0] ss:$3 sm:$0xf]
  %798 = vrot.lane.b32.xlu0 %v797, 65
  %v799 = vpop.permute.xlu0 %798
  %vm800 = vcmask 23552
  %s801 = scalar_lea.vmem %s1, 21
  %802 = vst.msk [vmem:[%s801] sm:$0x1] %vm800, %v799
  %s803 = scalar_lea.vmem %s1, 148
  %804 = vst.msk [vmem:[%s803] sm:$0x2] %vm800, %v799
  %s805 = scalar_lea.vmem %s1, 275
  %806 = vst.msk [vmem:[%s805] sm:$0x4] %vm800, %v799
  %s807 = scalar_lea.vmem %s1, 402
  %808 = vst.msk [vmem:[%s807] sm:$0x8] %vm800, %v799
  %s809 = scalar_lea.vmem %s0, 1
  %v810 = vld [vmem:[%s809] ss:$3 sm:$0xf]
  %811 = vrot.lane.b32.xlu0 %v810, 64
  %v812 = vpop.permute.xlu0 %811
  %vm813 = vcmask 23552
  %s814 = scalar_lea.vmem %s1, 64
  %815 = vst.msk [vmem:[%s814] sm:$0x1] %vm813, %v812
  %s816 = scalar_lea.vmem %s1, 191
  %817 = vst.msk [vmem:[%s816] sm:$0x2] %vm813, %v812
  %s818 = scalar_lea.vmem %s1, 318
  %819 = vst.msk [vmem:[%s818] sm:$0x4] %vm813, %v812
  %s820 = scalar_lea.vmem %s1, 445
  %821 = vst.msk [vmem:[%s820] sm:$0x8] %vm813, %v812
  %s822 = scalar_lea.vmem %s0, 2
  %v823 = vld [vmem:[%s822] ss:$3 sm:$0xf]
  %824 = vrot.lane.b32.xlu0 %v823, 63
  %v825 = vpop.permute.xlu0 %824
  %vm826 = vcmask 23552
  %s827 = scalar_lea.vmem %s1, 107
  %828 = vst.msk [vmem:[%s827] sm:$0x1] %vm826, %v825
  %s829 = scalar_lea.vmem %s1, 234
  %830 = vst.msk [vmem:[%s829] sm:$0x2] %vm826, %v825
  %s831 = scalar_lea.vmem %s1, 361
  %832 = vst.msk [vmem:[%s831] sm:$0x4] %vm826, %v825
  %s833 = scalar_lea.vmem %s1, 488
  %834 = vst.msk [vmem:[%s833] sm:$0x8] %vm826, %v825
  %v835 = vld [vmem:[%s0] ss:$3 sm:$0xf]
  %836 = vrot.lane.b32.xlu0 %v835, 62
  %v837 = vpop.permute.xlu0 %836
  %vm838 = vcmask 23552
  %s839 = scalar_lea.vmem %s1, 22
  %840 = vst.msk [vmem:[%s839] sm:$0x1] %vm838, %v837
  %s841 = scalar_lea.vmem %s1, 149
  %842 = vst.msk [vmem:[%s841] sm:$0x2] %vm838, %v837
  %s843 = scalar_lea.vmem %s1, 276
  %844 = vst.msk [vmem:[%s843] sm:$0x4] %vm838, %v837
  %s845 = scalar_lea.vmem %s1, 403
  %846 = vst.msk [vmem:[%s845] sm:$0x8] %vm838, %v837
  %s847 = scalar_lea.vmem %s0, 1
  %v848 = vld [vmem:[%s847] ss:$3 sm:$0xf]
  %849 = vrot.lane.b32.xlu0 %v848, 61
  %v850 = vpop.permute.xlu0 %849
  %vm851 = vcmask 23552
  %s852 = scalar_lea.vmem %s1, 65
  %853 = vst.msk [vmem:[%s852] sm:$0x1] %vm851, %v850
  %s854 = scalar_lea.vmem %s1, 192
  %855 = vst.msk [vmem:[%s854] sm:$0x2] %vm851, %v850
  %s856 = scalar_lea.vmem %s1, 319
  %857 = vst.msk [vmem:[%s856] sm:$0x4] %vm851, %v850
  %s858 = scalar_lea.vmem %s1, 446
  %859 = vst.msk [vmem:[%s858] sm:$0x8] %vm851, %v850
  %s860 = scalar_lea.vmem %s0, 2
  %v861 = vld [vmem:[%s860] ss:$3 sm:$0xf]
  %862 = vrot.lane.b32.xlu0 %v861, 60
  %v863 = vpop.permute.xlu0 %862
  %vm864 = vcmask 23552
  %s865 = scalar_lea.vmem %s1, 108
  %866 = vst.msk [vmem:[%s865] sm:$0x1] %vm864, %v863
  %s867 = scalar_lea.vmem %s1, 235
  %868 = vst.msk [vmem:[%s867] sm:$0x2] %vm864, %v863
  %s869 = scalar_lea.vmem %s1, 362
  %870 = vst.msk [vmem:[%s869] sm:$0x4] %vm864, %v863
  %s871 = scalar_lea.vmem %s1, 489
  %872 = vst.msk [vmem:[%s871] sm:$0x8] %vm864, %v863
  %v873 = vld [vmem:[%s0] ss:$3 sm:$0xf]
  %874 = vrot.lane.b32.xlu0 %v873, 59
  %v875 = vpop.permute.xlu0 %874
  %vm876 = vcmask 23552
  %s877 = scalar_lea.vmem %s1, 23
  %878 = vst.msk [vmem:[%s877] sm:$0x1] %vm876, %v875
  %s879 = scalar_lea.vmem %s1, 150
  %880 = vst.msk [vmem:[%s879] sm:$0x2] %vm876, %v875
  %s881 = scalar_lea.vmem %s1, 277
  %882 = vst.msk [vmem:[%s881] sm:$0x4] %vm876, %v875
  %s883 = scalar_lea.vmem %s1, 404
  %884 = vst.msk [vmem:[%s883] sm:$0x8] %vm876, %v875
  %s885 = scalar_lea.vmem %s0, 1
  %v886 = vld [vmem:[%s885] ss:$3 sm:$0xf]
  %887 = vrot.lane.b32.xlu0 %v886, 58
  %v888 = vpop.permute.xlu0 %887
  %vm889 = vcmask 23552
  %s890 = scalar_lea.vmem %s1, 66
  %891 = vst.msk [vmem:[%s890] sm:$0x1] %vm889, %v888
  %s892 = scalar_lea.vmem %s1, 193
  %893 = vst.msk [vmem:[%s892] sm:$0x2] %vm889, %v888
  %s894 = scalar_lea.vmem %s1, 320
  %895 = vst.msk [vmem:[%s894] sm:$0x4] %vm889, %v888
  %s896 = scalar_lea.vmem %s1, 447
  %897 = vst.msk [vmem:[%s896] sm:$0x8] %vm889, %v888
  %s898 = scalar_lea.vmem %s0, 2
  %v899 = vld [vmem:[%s898] ss:$3 sm:$0xf]
  %900 = vrot.lane.b32.xlu0 %v899, 57
  %v901 = vpop.permute.xlu0 %900
  %vm902 = vcmask 23552
  %s903 = scalar_lea.vmem %s1, 109
  %904 = vst.msk [vmem:[%s903] sm:$0x1] %vm902, %v901
  %s905 = scalar_lea.vmem %s1, 236
  %906 = vst.msk [vmem:[%s905] sm:$0x2] %vm902, %v901
  %s907 = scalar_lea.vmem %s1, 363
  %908 = vst.msk [vmem:[%s907] sm:$0x4] %vm902, %v901
  %s909 = scalar_lea.vmem %s1, 490
  %910 = vst.msk [vmem:[%s909] sm:$0x8] %vm902, %v901
  %v911 = vld [vmem:[%s0] ss:$3 sm:$0xf]
  %912 = vrot.lane.b32.xlu0 %v911, 56
  %v913 = vpop.permute.xlu0 %912
  %vm914 = vcmask 23552
  %s915 = scalar_lea.vmem %s1, 24
  %916 = vst.msk [vmem:[%s915] sm:$0x1] %vm914, %v913
  %s917 = scalar_lea.vmem %s1, 151
  %918 = vst.msk [vmem:[%s917] sm:$0x2] %vm914, %v913
  %s919 = scalar_lea.vmem %s1, 278
  %920 = vst.msk [vmem:[%s919] sm:$0x4] %vm914, %v913
  %s921 = scalar_lea.vmem %s1, 405
  %922 = vst.msk [vmem:[%s921] sm:$0x8] %vm914, %v913
  %s923 = scalar_lea.vmem %s0, 1
  %v924 = vld [vmem:[%s923] ss:$3 sm:$0xf]
  %925 = vrot.lane.b32.xlu0 %v924, 55
  %v926 = vpop.permute.xlu0 %925
  %vm927 = vcmask 23552
  %s928 = scalar_lea.vmem %s1, 67
  %929 = vst.msk [vmem:[%s928] sm:$0x1] %vm927, %v926
  %s930 = scalar_lea.vmem %s1, 194
  %931 = vst.msk [vmem:[%s930] sm:$0x2] %vm927, %v926
  %s932 = scalar_lea.vmem %s1, 321
  %933 = vst.msk [vmem:[%s932] sm:$0x4] %vm927, %v926
  %s934 = scalar_lea.vmem %s1, 448
  %935 = vst.msk [vmem:[%s934] sm:$0x8] %vm927, %v926
  %s936 = scalar_lea.vmem %s0, 2
  %v937 = vld [vmem:[%s936] ss:$3 sm:$0xf]
  %938 = vrot.lane.b32.xlu0 %v937, 54
  %v939 = vpop.permute.xlu0 %938
  %vm940 = vcmask 23552
  %s941 = scalar_lea.vmem %s1, 110
  %942 = vst.msk [vmem:[%s941] sm:$0x1] %vm940, %v939
  %s943 = scalar_lea.vmem %s1, 237
  %944 = vst.msk [vmem:[%s943] sm:$0x2] %vm940, %v939
  %s945 = scalar_lea.vmem %s1, 364
  %946 = vst.msk [vmem:[%s945] sm:$0x4] %vm940, %v939
  %s947 = scalar_lea.vmem %s1, 491
  %948 = vst.msk [vmem:[%s947] sm:$0x8] %vm940, %v939
  %v949 = vld [vmem:[%s0] ss:$3 sm:$0xf]
  %950 = vrot.lane.b32.xlu0 %v949, 53
  %v951 = vpop.permute.xlu0 %950
  %vm952 = vcmask 23552
  %s953 = scalar_lea.vmem %s1, 25
  %954 = vst.msk [vmem:[%s953] sm:$0x1] %vm952, %v951
  %s955 = scalar_lea.vmem %s1, 152
  %956 = vst.msk [vmem:[%s955] sm:$0x2] %vm952, %v951
  %s957 = scalar_lea.vmem %s1, 279
  %958 = vst.msk [vmem:[%s957] sm:$0x4] %vm952, %v951
  %s959 = scalar_lea.vmem %s1, 406
  %960 = vst.msk [vmem:[%s959] sm:$0x8] %vm952, %v951
  %s961 = scalar_lea.vmem %s0, 1
  %v962 = vld [vmem:[%s961] ss:$3 sm:$0xf]
  %963 = vrot.lane.b32.xlu0 %v962, 52
  %v964 = vpop.permute.xlu0 %963
  %vm965 = vcmask 23552
  %s966 = scalar_lea.vmem %s1, 68
  %967 = vst.msk [vmem:[%s966] sm:$0x1] %vm965, %v964
  %s968 = scalar_lea.vmem %s1, 195
  %969 = vst.msk [vmem:[%s968] sm:$0x2] %vm965, %v964
  %s970 = scalar_lea.vmem %s1, 322
  %971 = vst.msk [vmem:[%s970] sm:$0x4] %vm965, %v964
  %s972 = scalar_lea.vmem %s1, 449
  %973 = vst.msk [vmem:[%s972] sm:$0x8] %vm965, %v964
  %s974 = scalar_lea.vmem %s0, 2
  %v975 = vld [vmem:[%s974] ss:$3 sm:$0xf]
  %976 = vrot.lane.b32.xlu0 %v975, 51
  %v977 = vpop.permute.xlu0 %976
  %vm978 = vcmask 23552
  %s979 = scalar_lea.vmem %s1, 111
  %980 = vst.msk [vmem:[%s979] sm:$0x1] %vm978, %v977
  %s981 = scalar_lea.vmem %s1, 238
  %982 = vst.msk [vmem:[%s981] sm:$0x2] %vm978, %v977
  %s983 = scalar_lea.vmem %s1, 365
  %984 = vst.msk [vmem:[%s983] sm:$0x4] %vm978, %v977
  %s985 = scalar_lea.vmem %s1, 492
  %986 = vst.msk [vmem:[%s985] sm:$0x8] %vm978, %v977
  %v987 = vld [vmem:[%s0] ss:$3 sm:$0xf]
  %988 = vrot.lane.b32.xlu0 %v987, 50
  %v989 = vpop.permute.xlu0 %988
  %vm990 = vcmask 23552
  %s991 = scalar_lea.vmem %s1, 26
  %992 = vst.msk [vmem:[%s991] sm:$0x1] %vm990, %v989
  %s993 = scalar_lea.vmem %s1, 153
  %994 = vst.msk [vmem:[%s993] sm:$0x2] %vm990, %v989
  %s995 = scalar_lea.vmem %s1, 280
  %996 = vst.msk [vmem:[%s995] sm:$0x4] %vm990, %v989
  %s997 = scalar_lea.vmem %s1, 407
  %998 = vst.msk [vmem:[%s997] sm:$0x8] %vm990, %v989
  %s999 = scalar_lea.vmem %s0, 1
  %v1000 = vld [vmem:[%s999] ss:$3 sm:$0xf]
  %1001 = vrot.lane.b32.xlu0 %v1000, 49
  %v1002 = vpop.permute.xlu0 %1001
  %vm1003 = vcmask 23552
  %s1004 = scalar_lea.vmem %s1, 69
  %1005 = vst.msk [vmem:[%s1004] sm:$0x1] %vm1003, %v1002
  %s1006 = scalar_lea.vmem %s1, 196
  %1007 = vst.msk [vmem:[%s1006] sm:$0x2] %vm1003, %v1002
  %s1008 = scalar_lea.vmem %s1, 323
  %1009 = vst.msk [vmem:[%s1008] sm:$0x4] %vm1003, %v1002
  %s1010 = scalar_lea.vmem %s1, 450
  %1011 = vst.msk [vmem:[%s1010] sm:$0x8] %vm1003, %v1002
  %s1012 = scalar_lea.vmem %s0, 2
  %v1013 = vld [vmem:[%s1012] ss:$3 sm:$0xf]
  %1014 = vrot.lane.b32.xlu0 %v1013, 48
  %v1015 = vpop.permute.xlu0 %1014
  %vm1016 = vcmask 23552
  %s1017 = scalar_lea.vmem %s1, 112
  %1018 = vst.msk [vmem:[%s1017] sm:$0x1] %vm1016, %v1015
  %s1019 = scalar_lea.vmem %s1, 239
  %1020 = vst.msk [vmem:[%s1019] sm:$0x2] %vm1016, %v1015
  %s1021 = scalar_lea.vmem %s1, 366
  %1022 = vst.msk [vmem:[%s1021] sm:$0x4] %vm1016, %v1015
  %s1023 = scalar_lea.vmem %s1, 493
  %1024 = vst.msk [vmem:[%s1023] sm:$0x8] %vm1016, %v1015
  %v1025 = vld [vmem:[%s0] ss:$3 sm:$0xf]
  %1026 = vrot.lane.b32.xlu0 %v1025, 47
  %v1027 = vpop.permute.xlu0 %1026
  %vm1028 = vcmask 23552
  %s1029 = scalar_lea.vmem %s1, 27
  %1030 = vst.msk [vmem:[%s1029] sm:$0x1] %vm1028, %v1027
  %s1031 = scalar_lea.vmem %s1, 154
  %1032 = vst.msk [vmem:[%s1031] sm:$0x2] %vm1028, %v1027
  %s1033 = scalar_lea.vmem %s1, 281
  %1034 = vst.msk [vmem:[%s1033] sm:$0x4] %vm1028, %v1027
  %s1035 = scalar_lea.vmem %s1, 408
  %1036 = vst.msk [vmem:[%s1035] sm:$0x8] %vm1028, %v1027
  %s1037 = scalar_lea.vmem %s0, 1
  %v1038 = vld [vmem:[%s1037] ss:$3 sm:$0xf]
  %1039 = vrot.lane.b32.xlu0 %v1038, 46
  %v1040 = vpop.permute.xlu0 %1039
  %vm1041 = vcmask 23552
  %s1042 = scalar_lea.vmem %s1, 70
  %1043 = vst.msk [vmem:[%s1042] sm:$0x1] %vm1041, %v1040
  %s1044 = scalar_lea.vmem %s1, 197
  %1045 = vst.msk [vmem:[%s1044] sm:$0x2] %vm1041, %v1040
  %s1046 = scalar_lea.vmem %s1, 324
  %1047 = vst.msk [vmem:[%s1046] sm:$0x4] %vm1041, %v1040
  %s1048 = scalar_lea.vmem %s1, 451
  %1049 = vst.msk [vmem:[%s1048] sm:$0x8] %vm1041, %v1040
  %s1050 = scalar_lea.vmem %s0, 2
  %v1051 = vld [vmem:[%s1050] ss:$3 sm:$0xf]
  %1052 = vrot.lane.b32.xlu0 %v1051, 45
  %v1053 = vpop.permute.xlu0 %1052
  %vm1054 = vcmask 23552
  %s1055 = scalar_lea.vmem %s1, 113
  %1056 = vst.msk [vmem:[%s1055] sm:$0x1] %vm1054, %v1053
  %s1057 = scalar_lea.vmem %s1, 240
  %1058 = vst.msk [vmem:[%s1057] sm:$0x2] %vm1054, %v1053
  %s1059 = scalar_lea.vmem %s1, 367
  %1060 = vst.msk [vmem:[%s1059] sm:$0x4] %vm1054, %v1053
  %s1061 = scalar_lea.vmem %s1, 494
  %1062 = vst.msk [vmem:[%s1061] sm:$0x8] %vm1054, %v1053
  %v1063 = vld [vmem:[%s0] ss:$3 sm:$0xf]
  %1064 = vrot.lane.b32.xlu0 %v1063, 44
  %v1065 = vpop.permute.xlu0 %1064
  %vm1066 = vcmask 23552
  %s1067 = scalar_lea.vmem %s1, 28
  %1068 = vst.msk [vmem:[%s1067] sm:$0x1] %vm1066, %v1065
  %s1069 = scalar_lea.vmem %s1, 155
  %1070 = vst.msk [vmem:[%s1069] sm:$0x2] %vm1066, %v1065
  %s1071 = scalar_lea.vmem %s1, 282
  %1072 = vst.msk [vmem:[%s1071] sm:$0x4] %vm1066, %v1065
  %s1073 = scalar_lea.vmem %s1, 409
  %1074 = vst.msk [vmem:[%s1073] sm:$0x8] %vm1066, %v1065
  %s1075 = scalar_lea.vmem %s0, 1
  %v1076 = vld [vmem:[%s1075] ss:$3 sm:$0xf]
  %1077 = vrot.lane.b32.xlu0 %v1076, 43
  %v1078 = vpop.permute.xlu0 %1077
  %vm1079 = vcmask 23552
  %s1080 = scalar_lea.vmem %s1, 71
  %1081 = vst.msk [vmem:[%s1080] sm:$0x1] %vm1079, %v1078
  %s1082 = scalar_lea.vmem %s1, 198
  %1083 = vst.msk [vmem:[%s1082] sm:$0x2] %vm1079, %v1078
  %s1084 = scalar_lea.vmem %s1, 325
  %1085 = vst.msk [vmem:[%s1084] sm:$0x4] %vm1079, %v1078
  %s1086 = scalar_lea.vmem %s1, 452
  %1087 = vst.msk [vmem:[%s1086] sm:$0x8] %vm1079, %v1078
  %s1088 = scalar_lea.vmem %s0, 2
  %v1089 = vld [vmem:[%s1088] ss:$3 sm:$0xf]
  %1090 = vrot.lane.b32.xlu0 %v1089, 42
  %v1091 = vpop.permute.xlu0 %1090
  %vm1092 = vcmask 23552
  %s1093 = scalar_lea.vmem %s1, 114
  %1094 = vst.msk [vmem:[%s1093] sm:$0x1] %vm1092, %v1091
  %s1095 = scalar_lea.vmem %s1, 241
  %1096 = vst.msk [vmem:[%s1095] sm:$0x2] %vm1092, %v1091
  %s1097 = scalar_lea.vmem %s1, 368
  %1098 = vst.msk [vmem:[%s1097] sm:$0x4] %vm1092, %v1091
  %s1099 = scalar_lea.vmem %s1, 495
  %1100 = vst.msk [vmem:[%s1099] sm:$0x8] %vm1092, %v1091
  %v1101 = vld [vmem:[%s0] ss:$3 sm:$0xf]
  %1102 = vrot.lane.b32.xlu0 %v1101, 41
  %v1103 = vpop.permute.xlu0 %1102
  %vm1104 = vcmask 23552
  %s1105 = scalar_lea.vmem %s1, 29
  %1106 = vst.msk [vmem:[%s1105] sm:$0x1] %vm1104, %v1103
  %s1107 = scalar_lea.vmem %s1, 156
  %1108 = vst.msk [vmem:[%s1107] sm:$0x2] %vm1104, %v1103
  %s1109 = scalar_lea.vmem %s1, 283
  %1110 = vst.msk [vmem:[%s1109] sm:$0x4] %vm1104, %v1103
  %s1111 = scalar_lea.vmem %s1, 410
  %1112 = vst.msk [vmem:[%s1111] sm:$0x8] %vm1104, %v1103
  %s1113 = scalar_lea.vmem %s0, 1
  %v1114 = vld [vmem:[%s1113] ss:$3 sm:$0xf]
  %1115 = vrot.lane.b32.xlu0 %v1114, 40
  %v1116 = vpop.permute.xlu0 %1115
  %vm1117 = vcmask 23552
  %s1118 = scalar_lea.vmem %s1, 72
  %1119 = vst.msk [vmem:[%s1118] sm:$0x1] %vm1117, %v1116
  %s1120 = scalar_lea.vmem %s1, 199
  %1121 = vst.msk [vmem:[%s1120] sm:$0x2] %vm1117, %v1116
  %s1122 = scalar_lea.vmem %s1, 326
  %1123 = vst.msk [vmem:[%s1122] sm:$0x4] %vm1117, %v1116
  %s1124 = scalar_lea.vmem %s1, 453
  %1125 = vst.msk [vmem:[%s1124] sm:$0x8] %vm1117, %v1116
  %s1126 = scalar_lea.vmem %s0, 2
  %v1127 = vld [vmem:[%s1126] ss:$3 sm:$0xf]
  %1128 = vrot.lane.b32.xlu0 %v1127, 39
  %v1129 = vpop.permute.xlu0 %1128
  %vm1130 = vcmask 23552
  %s1131 = scalar_lea.vmem %s1, 115
  %1132 = vst.msk [vmem:[%s1131] sm:$0x1] %vm1130, %v1129
  %s1133 = scalar_lea.vmem %s1, 242
  %1134 = vst.msk [vmem:[%s1133] sm:$0x2] %vm1130, %v1129
  %s1135 = scalar_lea.vmem %s1, 369
  %1136 = vst.msk [vmem:[%s1135] sm:$0x4] %vm1130, %v1129
  %s1137 = scalar_lea.vmem %s1, 496
  %1138 = vst.msk [vmem:[%s1137] sm:$0x8] %vm1130, %v1129
  %v1139 = vld [vmem:[%s0] ss:$3 sm:$0xf]
  %1140 = vrot.lane.b32.xlu0 %v1139, 38
  %v1141 = vpop.permute.xlu0 %1140
  %vm1142 = vcmask 23552
  %s1143 = scalar_lea.vmem %s1, 30
  %1144 = vst.msk [vmem:[%s1143] sm:$0x1] %vm1142, %v1141
  %s1145 = scalar_lea.vmem %s1, 157
  %1146 = vst.msk [vmem:[%s1145] sm:$0x2] %vm1142, %v1141
  %s1147 = scalar_lea.vmem %s1, 284
  %1148 = vst.msk [vmem:[%s1147] sm:$0x4] %vm1142, %v1141
  %s1149 = scalar_lea.vmem %s1, 411
  %1150 = vst.msk [vmem:[%s1149] sm:$0x8] %vm1142, %v1141
  %s1151 = scalar_lea.vmem %s0, 1
  %v1152 = vld [vmem:[%s1151] ss:$3 sm:$0xf]
  %1153 = vrot.lane.b32.xlu0 %v1152, 37
  %v1154 = vpop.permute.xlu0 %1153
  %vm1155 = vcmask 23552
  %s1156 = scalar_lea.vmem %s1, 73
  %1157 = vst.msk [vmem:[%s1156] sm:$0x1] %vm1155, %v1154
  %s1158 = scalar_lea.vmem %s1, 200
  %1159 = vst.msk [vmem:[%s1158] sm:$0x2] %vm1155, %v1154
  %s1160 = scalar_lea.vmem %s1, 327
  %1161 = vst.msk [vmem:[%s1160] sm:$0x4] %vm1155, %v1154
  %s1162 = scalar_lea.vmem %s1, 454
  %1163 = vst.msk [vmem:[%s1162] sm:$0x8] %vm1155, %v1154
  %s1164 = scalar_lea.vmem %s0, 2
  %v1165 = vld [vmem:[%s1164] ss:$3 sm:$0xf]
  %1166 = vrot.lane.b32.xlu0 %v1165, 36
  %v1167 = vpop.permute.xlu0 %1166
  %vm1168 = vcmask 23552
  %s1169 = scalar_lea.vmem %s1, 116
  %1170 = vst.msk [vmem:[%s1169] sm:$0x1] %vm1168, %v1167
  %s1171 = scalar_lea.vmem %s1, 243
  %1172 = vst.msk [vmem:[%s1171] sm:$0x2] %vm1168, %v1167
  %s1173 = scalar_lea.vmem %s1, 370
  %1174 = vst.msk [vmem:[%s1173] sm:$0x4] %vm1168, %v1167
  %s1175 = scalar_lea.vmem %s1, 497
  %1176 = vst.msk [vmem:[%s1175] sm:$0x8] %vm1168, %v1167
  %v1177 = vld [vmem:[%s0] ss:$3 sm:$0xf]
  %1178 = vrot.lane.b32.xlu0 %v1177, 35
  %v1179 = vpop.permute.xlu0 %1178
  %vm1180 = vcmask 23552
  %s1181 = scalar_lea.vmem %s1, 31
  %1182 = vst.msk [vmem:[%s1181] sm:$0x1] %vm1180, %v1179
  %s1183 = scalar_lea.vmem %s1, 158
  %1184 = vst.msk [vmem:[%s1183] sm:$0x2] %vm1180, %v1179
  %s1185 = scalar_lea.vmem %s1, 285
  %1186 = vst.msk [vmem:[%s1185] sm:$0x4] %vm1180, %v1179
  %s1187 = scalar_lea.vmem %s1, 412
  %1188 = vst.msk [vmem:[%s1187] sm:$0x8] %vm1180, %v1179
  %s1189 = scalar_lea.vmem %s0, 1
  %v1190 = vld [vmem:[%s1189] ss:$3 sm:$0xf]
  %1191 = vrot.lane.b32.xlu0 %v1190, 34
  %v1192 = vpop.permute.xlu0 %1191
  %vm1193 = vcmask 23552
  %s1194 = scalar_lea.vmem %s1, 74
  %1195 = vst.msk [vmem:[%s1194] sm:$0x1] %vm1193, %v1192
  %s1196 = scalar_lea.vmem %s1, 201
  %1197 = vst.msk [vmem:[%s1196] sm:$0x2] %vm1193, %v1192
  %s1198 = scalar_lea.vmem %s1, 328
  %1199 = vst.msk [vmem:[%s1198] sm:$0x4] %vm1193, %v1192
  %s1200 = scalar_lea.vmem %s1, 455
  %1201 = vst.msk [vmem:[%s1200] sm:$0x8] %vm1193, %v1192
  %s1202 = scalar_lea.vmem %s0, 2
  %v1203 = vld [vmem:[%s1202] ss:$3 sm:$0xf]
  %1204 = vrot.lane.b32.xlu0 %v1203, 33
  %v1205 = vpop.permute.xlu0 %1204
  %vm1206 = vcmask 23552
  %s1207 = scalar_lea.vmem %s1, 117
  %1208 = vst.msk [vmem:[%s1207] sm:$0x1] %vm1206, %v1205
  %s1209 = scalar_lea.vmem %s1, 244
  %1210 = vst.msk [vmem:[%s1209] sm:$0x2] %vm1206, %v1205
  %s1211 = scalar_lea.vmem %s1, 371
  %1212 = vst.msk [vmem:[%s1211] sm:$0x4] %vm1206, %v1205
  %s1213 = scalar_lea.vmem %s1, 498
  %1214 = vst.msk [vmem:[%s1213] sm:$0x8] %vm1206, %v1205
  %v1215 = vld [vmem:[%s0] ss:$3 sm:$0xf]
  %1216 = vrot.lane.b32.xlu0 %v1215, 32
  %v1217 = vpop.permute.xlu0 %1216
  %vm1218 = vcmask 23552
  %s1219 = scalar_lea.vmem %s1, 32
  %1220 = vst.msk [vmem:[%s1219] sm:$0x1] %vm1218, %v1217
  %s1221 = scalar_lea.vmem %s1, 159
  %1222 = vst.msk [vmem:[%s1221] sm:$0x2] %vm1218, %v1217
  %s1223 = scalar_lea.vmem %s1, 286
  %1224 = vst.msk [vmem:[%s1223] sm:$0x4] %vm1218, %v1217
  %s1225 = scalar_lea.vmem %s1, 413
  %1226 = vst.msk [vmem:[%s1225] sm:$0x8] %vm1218, %v1217
  %s1227 = scalar_lea.vmem %s0, 1
  %v1228 = vld [vmem:[%s1227] ss:$3 sm:$0xf]
  %1229 = vrot.lane.b32.xlu0 %v1228, 31
  %v1230 = vpop.permute.xlu0 %1229
  %vm1231 = vcmask 23552
  %s1232 = scalar_lea.vmem %s1, 75
  %1233 = vst.msk [vmem:[%s1232] sm:$0x1] %vm1231, %v1230
  %s1234 = scalar_lea.vmem %s1, 202
  %1235 = vst.msk [vmem:[%s1234] sm:$0x2] %vm1231, %v1230
  %s1236 = scalar_lea.vmem %s1, 329
  %1237 = vst.msk [vmem:[%s1236] sm:$0x4] %vm1231, %v1230
  %s1238 = scalar_lea.vmem %s1, 456
  %1239 = vst.msk [vmem:[%s1238] sm:$0x8] %vm1231, %v1230
  %s1240 = scalar_lea.vmem %s0, 2
  %v1241 = vld [vmem:[%s1240] ss:$3 sm:$0xf]
  %1242 = vrot.lane.b32.xlu0 %v1241, 30
  %v1243 = vpop.permute.xlu0 %1242
  %vm1244 = vcmask 23552
  %s1245 = scalar_lea.vmem %s1, 118
  %1246 = vst.msk [vmem:[%s1245] sm:$0x1] %vm1244, %v1243
  %s1247 = scalar_lea.vmem %s1, 245
  %1248 = vst.msk [vmem:[%s1247] sm:$0x2] %vm1244, %v1243
  %s1249 = scalar_lea.vmem %s1, 372
  %1250 = vst.msk [vmem:[%s1249] sm:$0x4] %vm1244, %v1243
  %s1251 = scalar_lea.vmem %s1, 499
  %1252 = vst.msk [vmem:[%s1251] sm:$0x8] %vm1244, %v1243
  %v1253 = vld [vmem:[%s0] ss:$3 sm:$0xf]
  %1254 = vrot.lane.b32.xlu0 %v1253, 29
  %v1255 = vpop.permute.xlu0 %1254
  %vm1256 = vcmask 23552
  %s1257 = scalar_lea.vmem %s1, 33
  %1258 = vst.msk [vmem:[%s1257] sm:$0x1] %vm1256, %v1255
  %s1259 = scalar_lea.vmem %s1, 160
  %1260 = vst.msk [vmem:[%s1259] sm:$0x2] %vm1256, %v1255
  %s1261 = scalar_lea.vmem %s1, 287
  %1262 = vst.msk [vmem:[%s1261] sm:$0x4] %vm1256, %v1255
  %s1263 = scalar_lea.vmem %s1, 414
  %1264 = vst.msk [vmem:[%s1263] sm:$0x8] %vm1256, %v1255
  %s1265 = scalar_lea.vmem %s0, 1
  %v1266 = vld [vmem:[%s1265] ss:$3 sm:$0xf]
  %1267 = vrot.lane.b32.xlu0 %v1266, 28
  %v1268 = vpop.permute.xlu0 %1267
  %vm1269 = vcmask 23552
  %s1270 = scalar_lea.vmem %s1, 76
  %1271 = vst.msk [vmem:[%s1270] sm:$0x1] %vm1269, %v1268
  %s1272 = scalar_lea.vmem %s1, 203
  %1273 = vst.msk [vmem:[%s1272] sm:$0x2] %vm1269, %v1268
  %s1274 = scalar_lea.vmem %s1, 330
  %1275 = vst.msk [vmem:[%s1274] sm:$0x4] %vm1269, %v1268
  %s1276 = scalar_lea.vmem %s1, 457
  %1277 = vst.msk [vmem:[%s1276] sm:$0x8] %vm1269, %v1268
  %s1278 = scalar_lea.vmem %s0, 2
  %v1279 = vld [vmem:[%s1278] ss:$3 sm:$0xf]
  %1280 = vrot.lane.b32.xlu0 %v1279, 27
  %v1281 = vpop.permute.xlu0 %1280
  %vm1282 = vcmask 23552
  %s1283 = scalar_lea.vmem %s1, 119
  %1284 = vst.msk [vmem:[%s1283] sm:$0x1] %vm1282, %v1281
  %s1285 = scalar_lea.vmem %s1, 246
  %1286 = vst.msk [vmem:[%s1285] sm:$0x2] %vm1282, %v1281
  %s1287 = scalar_lea.vmem %s1, 373
  %1288 = vst.msk [vmem:[%s1287] sm:$0x4] %vm1282, %v1281
  %s1289 = scalar_lea.vmem %s1, 500
  %1290 = vst.msk [vmem:[%s1289] sm:$0x8] %vm1282, %v1281
  %v1291 = vld [vmem:[%s0] ss:$3 sm:$0xf]
  %1292 = vrot.lane.b32.xlu0 %v1291, 26
  %v1293 = vpop.permute.xlu0 %1292
  %vm1294 = vcmask 23552
  %s1295 = scalar_lea.vmem %s1, 34
  %1296 = vst.msk [vmem:[%s1295] sm:$0x1] %vm1294, %v1293
  %s1297 = scalar_lea.vmem %s1, 161
  %1298 = vst.msk [vmem:[%s1297] sm:$0x2] %vm1294, %v1293
  %s1299 = scalar_lea.vmem %s1, 288
  %1300 = vst.msk [vmem:[%s1299] sm:$0x4] %vm1294, %v1293
  %s1301 = scalar_lea.vmem %s1, 415
  %1302 = vst.msk [vmem:[%s1301] sm:$0x8] %vm1294, %v1293
  %s1303 = scalar_lea.vmem %s0, 1
  %v1304 = vld [vmem:[%s1303] ss:$3 sm:$0xf]
  %1305 = vrot.lane.b32.xlu0 %v1304, 25
  %v1306 = vpop.permute.xlu0 %1305
  %vm1307 = vcmask 23552
  %s1308 = scalar_lea.vmem %s1, 77
  %1309 = vst.msk [vmem:[%s1308] sm:$0x1] %vm1307, %v1306
  %s1310 = scalar_lea.vmem %s1, 204
  %1311 = vst.msk [vmem:[%s1310] sm:$0x2] %vm1307, %v1306
  %s1312 = scalar_lea.vmem %s1, 331
  %1313 = vst.msk [vmem:[%s1312] sm:$0x4] %vm1307, %v1306
  %s1314 = scalar_lea.vmem %s1, 458
  %1315 = vst.msk [vmem:[%s1314] sm:$0x8] %vm1307, %v1306
  %s1316 = scalar_lea.vmem %s0, 2
  %v1317 = vld [vmem:[%s1316] ss:$3 sm:$0xf]
  %1318 = vrot.lane.b32.xlu0 %v1317, 24
  %v1319 = vpop.permute.xlu0 %1318
  %vm1320 = vcmask 23552
  %s1321 = scalar_lea.vmem %s1, 120
  %1322 = vst.msk [vmem:[%s1321] sm:$0x1] %vm1320, %v1319
  %s1323 = scalar_lea.vmem %s1, 247
  %1324 = vst.msk [vmem:[%s1323] sm:$0x2] %vm1320, %v1319
  %s1325 = scalar_lea.vmem %s1, 374
  %1326 = vst.msk [vmem:[%s1325] sm:$0x4] %vm1320, %v1319
  %s1327 = scalar_lea.vmem %s1, 501
  %1328 = vst.msk [vmem:[%s1327] sm:$0x8] %vm1320, %v1319
  %v1329 = vld [vmem:[%s0] ss:$3 sm:$0xf]
  %1330 = vrot.lane.b32.xlu0 %v1329, 23
  %v1331 = vpop.permute.xlu0 %1330
  %vm1332 = vcmask 23552
  %s1333 = scalar_lea.vmem %s1, 35
  %1334 = vst.msk [vmem:[%s1333] sm:$0x1] %vm1332, %v1331
  %s1335 = scalar_lea.vmem %s1, 162
  %1336 = vst.msk [vmem:[%s1335] sm:$0x2] %vm1332, %v1331
  %s1337 = scalar_lea.vmem %s1, 289
  %1338 = vst.msk [vmem:[%s1337] sm:$0x4] %vm1332, %v1331
  %s1339 = scalar_lea.vmem %s1, 416
  %1340 = vst.msk [vmem:[%s1339] sm:$0x8] %vm1332, %v1331
  %s1341 = scalar_lea.vmem %s0, 1
  %v1342 = vld [vmem:[%s1341] ss:$3 sm:$0xf]
  %1343 = vrot.lane.b32.xlu0 %v1342, 22
  %v1344 = vpop.permute.xlu0 %1343
  %vm1345 = vcmask 23552
  %s1346 = scalar_lea.vmem %s1, 78
  %1347 = vst.msk [vmem:[%s1346] sm:$0x1] %vm1345, %v1344
  %s1348 = scalar_lea.vmem %s1, 205
  %1349 = vst.msk [vmem:[%s1348] sm:$0x2] %vm1345, %v1344
  %s1350 = scalar_lea.vmem %s1, 332
  %1351 = vst.msk [vmem:[%s1350] sm:$0x4] %vm1345, %v1344
  %s1352 = scalar_lea.vmem %s1, 459
  %1353 = vst.msk [vmem:[%s1352] sm:$0x8] %vm1345, %v1344
  %s1354 = scalar_lea.vmem %s0, 2
  %v1355 = vld [vmem:[%s1354] ss:$3 sm:$0xf]
  %1356 = vrot.lane.b32.xlu0 %v1355, 21
  %v1357 = vpop.permute.xlu0 %1356
  %vm1358 = vcmask 23552
  %s1359 = scalar_lea.vmem %s1, 121
  %1360 = vst.msk [vmem:[%s1359] sm:$0x1] %vm1358, %v1357
  %s1361 = scalar_lea.vmem %s1, 248
  %1362 = vst.msk [vmem:[%s1361] sm:$0x2] %vm1358, %v1357
  %s1363 = scalar_lea.vmem %s1, 375
  %1364 = vst.msk [vmem:[%s1363] sm:$0x4] %vm1358, %v1357
  %s1365 = scalar_lea.vmem %s1, 502
  %1366 = vst.msk [vmem:[%s1365] sm:$0x8] %vm1358, %v1357
  %v1367 = vld [vmem:[%s0] ss:$3 sm:$0xf]
  %1368 = vrot.lane.b32.xlu0 %v1367, 20
  %v1369 = vpop.permute.xlu0 %1368
  %vm1370 = vcmask 23552
  %s1371 = scalar_lea.vmem %s1, 36
  %1372 = vst.msk [vmem:[%s1371] sm:$0x1] %vm1370, %v1369
  %s1373 = scalar_lea.vmem %s1, 163
  %1374 = vst.msk [vmem:[%s1373] sm:$0x2] %vm1370, %v1369
  %s1375 = scalar_lea.vmem %s1, 290
  %1376 = vst.msk [vmem:[%s1375] sm:$0x4] %vm1370, %v1369
  %s1377 = scalar_lea.vmem %s1, 417
  %1378 = vst.msk [vmem:[%s1377] sm:$0x8] %vm1370, %v1369
  %s1379 = scalar_lea.vmem %s0, 1
  %v1380 = vld [vmem:[%s1379] ss:$3 sm:$0xf]
  %1381 = vrot.lane.b32.xlu0 %v1380, 19
  %v1382 = vpop.permute.xlu0 %1381
  %vm1383 = vcmask 23552
  %s1384 = scalar_lea.vmem %s1, 79
  %1385 = vst.msk [vmem:[%s1384] sm:$0x1] %vm1383, %v1382
  %s1386 = scalar_lea.vmem %s1, 206
  %1387 = vst.msk [vmem:[%s1386] sm:$0x2] %vm1383, %v1382
  %s1388 = scalar_lea.vmem %s1, 333
  %1389 = vst.msk [vmem:[%s1388] sm:$0x4] %vm1383, %v1382
  %s1390 = scalar_lea.vmem %s1, 460
  %1391 = vst.msk [vmem:[%s1390] sm:$0x8] %vm1383, %v1382
  %s1392 = scalar_lea.vmem %s0, 2
  %v1393 = vld [vmem:[%s1392] ss:$3 sm:$0xf]
  %1394 = vrot.lane.b32.xlu0 %v1393, 18
  %v1395 = vpop.permute.xlu0 %1394
  %vm1396 = vcmask 23552
  %s1397 = scalar_lea.vmem %s1, 122
  %1398 = vst.msk [vmem:[%s1397] sm:$0x1] %vm1396, %v1395
  %s1399 = scalar_lea.vmem %s1, 249
  %1400 = vst.msk [vmem:[%s1399] sm:$0x2] %vm1396, %v1395
  %s1401 = scalar_lea.vmem %s1, 376
  %1402 = vst.msk [vmem:[%s1401] sm:$0x4] %vm1396, %v1395
  %s1403 = scalar_lea.vmem %s1, 503
  %1404 = vst.msk [vmem:[%s1403] sm:$0x8] %vm1396, %v1395
  %v1405 = vld [vmem:[%s0] ss:$3 sm:$0xf]
  %1406 = vrot.lane.b32.xlu0 %v1405, 17
  %v1407 = vpop.permute.xlu0 %1406
  %vm1408 = vcmask 23552
  %s1409 = scalar_lea.vmem %s1, 37
  %1410 = vst.msk [vmem:[%s1409] sm:$0x1] %vm1408, %v1407
  %s1411 = scalar_lea.vmem %s1, 164
  %1412 = vst.msk [vmem:[%s1411] sm:$0x2] %vm1408, %v1407
  %s1413 = scalar_lea.vmem %s1, 291
  %1414 = vst.msk [vmem:[%s1413] sm:$0x4] %vm1408, %v1407
  %s1415 = scalar_lea.vmem %s1, 418
  %1416 = vst.msk [vmem:[%s1415] sm:$0x8] %vm1408, %v1407
  %s1417 = scalar_lea.vmem %s0, 1
  %v1418 = vld [vmem:[%s1417] ss:$3 sm:$0xf]
  %1419 = vrot.lane.b32.xlu0 %v1418, 16
  %v1420 = vpop.permute.xlu0 %1419
  %vm1421 = vcmask 23552
  %s1422 = scalar_lea.vmem %s1, 80
  %1423 = vst.msk [vmem:[%s1422] sm:$0x1] %vm1421, %v1420
  %s1424 = scalar_lea.vmem %s1, 207
  %1425 = vst.msk [vmem:[%s1424] sm:$0x2] %vm1421, %v1420
  %s1426 = scalar_lea.vmem %s1, 334
  %1427 = vst.msk [vmem:[%s1426] sm:$0x4] %vm1421, %v1420
  %s1428 = scalar_lea.vmem %s1, 461
  %1429 = vst.msk [vmem:[%s1428] sm:$0x8] %vm1421, %v1420
  %s1430 = scalar_lea.vmem %s0, 2
  %v1431 = vld [vmem:[%s1430] ss:$3 sm:$0xf]
  %1432 = vrot.lane.b32.xlu0 %v1431, 15
  %v1433 = vpop.permute.xlu0 %1432
  %vm1434 = vcmask 23552
  %s1435 = scalar_lea.vmem %s1, 123
  %1436 = vst.msk [vmem:[%s1435] sm:$0x1] %vm1434, %v1433
  %s1437 = scalar_lea.vmem %s1, 250
  %1438 = vst.msk [vmem:[%s1437] sm:$0x2] %vm1434, %v1433
  %s1439 = scalar_lea.vmem %s1, 377
  %1440 = vst.msk [vmem:[%s1439] sm:$0x4] %vm1434, %v1433
  %s1441 = scalar_lea.vmem %s1, 504
  %1442 = vst.msk [vmem:[%s1441] sm:$0x8] %vm1434, %v1433
  %v1443 = vld [vmem:[%s0] ss:$3 sm:$0xf]
  %1444 = vrot.lane.b32.xlu0 %v1443, 14
  %v1445 = vpop.permute.xlu0 %1444
  %vm1446 = vcmask 23552
  %s1447 = scalar_lea.vmem %s1, 38
  %1448 = vst.msk [vmem:[%s1447] sm:$0x1] %vm1446, %v1445
  %s1449 = scalar_lea.vmem %s1, 165
  %1450 = vst.msk [vmem:[%s1449] sm:$0x2] %vm1446, %v1445
  %s1451 = scalar_lea.vmem %s1, 292
  %1452 = vst.msk [vmem:[%s1451] sm:$0x4] %vm1446, %v1445
  %s1453 = scalar_lea.vmem %s1, 419
  %1454 = vst.msk [vmem:[%s1453] sm:$0x8] %vm1446, %v1445
  %s1455 = scalar_lea.vmem %s0, 1
  %v1456 = vld [vmem:[%s1455] ss:$3 sm:$0xf]
  %1457 = vrot.lane.b32.xlu0 %v1456, 13
  %v1458 = vpop.permute.xlu0 %1457
  %vm1459 = vcmask 23552
  %s1460 = scalar_lea.vmem %s1, 81
  %1461 = vst.msk [vmem:[%s1460] sm:$0x1] %vm1459, %v1458
  %s1462 = scalar_lea.vmem %s1, 208
  %1463 = vst.msk [vmem:[%s1462] sm:$0x2] %vm1459, %v1458
  %s1464 = scalar_lea.vmem %s1, 335
  %1465 = vst.msk [vmem:[%s1464] sm:$0x4] %vm1459, %v1458
  %s1466 = scalar_lea.vmem %s1, 462
  %1467 = vst.msk [vmem:[%s1466] sm:$0x8] %vm1459, %v1458
  %s1468 = scalar_lea.vmem %s0, 2
  %v1469 = vld [vmem:[%s1468] ss:$3 sm:$0xf]
  %1470 = vrot.lane.b32.xlu0 %v1469, 12
  %v1471 = vpop.permute.xlu0 %1470
  %vm1472 = vcmask 23552
  %s1473 = scalar_lea.vmem %s1, 124
  %1474 = vst.msk [vmem:[%s1473] sm:$0x1] %vm1472, %v1471
  %s1475 = scalar_lea.vmem %s1, 251
  %1476 = vst.msk [vmem:[%s1475] sm:$0x2] %vm1472, %v1471
  %s1477 = scalar_lea.vmem %s1, 378
  %1478 = vst.msk [vmem:[%s1477] sm:$0x4] %vm1472, %v1471
  %s1479 = scalar_lea.vmem %s1, 505
  %1480 = vst.msk [vmem:[%s1479] sm:$0x8] %vm1472, %v1471
  %v1481 = vld [vmem:[%s0] ss:$3 sm:$0xf]
  %1482 = vrot.lane.b32.xlu0 %v1481, 11
  %v1483 = vpop.permute.xlu0 %1482
  %vm1484 = vcmask 23552
  %s1485 = scalar_lea.vmem %s1, 39
  %1486 = vst.msk [vmem:[%s1485] sm:$0x1] %vm1484, %v1483
  %s1487 = scalar_lea.vmem %s1, 166
  %1488 = vst.msk [vmem:[%s1487] sm:$0x2] %vm1484, %v1483
  %s1489 = scalar_lea.vmem %s1, 293
  %1490 = vst.msk [vmem:[%s1489] sm:$0x4] %vm1484, %v1483
  %s1491 = scalar_lea.vmem %s1, 420
  %1492 = vst.msk [vmem:[%s1491] sm:$0x8] %vm1484, %v1483
  %s1493 = scalar_lea.vmem %s0, 1
  %v1494 = vld [vmem:[%s1493] ss:$3 sm:$0xf]
  %1495 = vrot.lane.b32.xlu0 %v1494, 10
  %v1496 = vpop.permute.xlu0 %1495
  %vm1497 = vcmask 23552
  %s1498 = scalar_lea.vmem %s1, 82
  %1499 = vst.msk [vmem:[%s1498] sm:$0x1] %vm1497, %v1496
  %s1500 = scalar_lea.vmem %s1, 209
  %1501 = vst.msk [vmem:[%s1500] sm:$0x2] %vm1497, %v1496
  %s1502 = scalar_lea.vmem %s1, 336
  %1503 = vst.msk [vmem:[%s1502] sm:$0x4] %vm1497, %v1496
  %s1504 = scalar_lea.vmem %s1, 463
  %1505 = vst.msk [vmem:[%s1504] sm:$0x8] %vm1497, %v1496
  %s1506 = scalar_lea.vmem %s0, 2
  %v1507 = vld [vmem:[%s1506] ss:$3 sm:$0xf]
  %1508 = vrot.lane.b32.xlu0 %v1507, 9
  %v1509 = vpop.permute.xlu0 %1508
  %vm1510 = vcmask 23552
  %s1511 = scalar_lea.vmem %s1, 125
  %1512 = vst.msk [vmem:[%s1511] sm:$0x1] %vm1510, %v1509
  %s1513 = scalar_lea.vmem %s1, 252
  %1514 = vst.msk [vmem:[%s1513] sm:$0x2] %vm1510, %v1509
  %s1515 = scalar_lea.vmem %s1, 379
  %1516 = vst.msk [vmem:[%s1515] sm:$0x4] %vm1510, %v1509
  %s1517 = scalar_lea.vmem %s1, 506
  %1518 = vst.msk [vmem:[%s1517] sm:$0x8] %vm1510, %v1509
  %v1519 = vld [vmem:[%s0] ss:$3 sm:$0xf]
  %1520 = vrot.lane.b32.xlu0 %v1519, 8
  %v1521 = vpop.permute.xlu0 %1520
  %vm1522 = vcmask 23552
  %s1523 = scalar_lea.vmem %s1, 40
  %1524 = vst.msk [vmem:[%s1523] sm:$0x1] %vm1522, %v1521
  %s1525 = scalar_lea.vmem %s1, 167
  %1526 = vst.msk [vmem:[%s1525] sm:$0x2] %vm1522, %v1521
  %s1527 = scalar_lea.vmem %s1, 294
  %1528 = vst.msk [vmem:[%s1527] sm:$0x4] %vm1522, %v1521
  %s1529 = scalar_lea.vmem %s1, 421
  %1530 = vst.msk [vmem:[%s1529] sm:$0x8] %vm1522, %v1521
  %s1531 = scalar_lea.vmem %s0, 1
  %v1532 = vld [vmem:[%s1531] ss:$3 sm:$0xf]
  %1533 = vrot.lane.b32.xlu0 %v1532, 7
  %v1534 = vpop.permute.xlu0 %1533
  %vm1535 = vcmask 23552
  %s1536 = scalar_lea.vmem %s1, 83
  %1537 = vst.msk [vmem:[%s1536] sm:$0x1] %vm1535, %v1534
  %s1538 = scalar_lea.vmem %s1, 210
  %1539 = vst.msk [vmem:[%s1538] sm:$0x2] %vm1535, %v1534
  %s1540 = scalar_lea.vmem %s1, 337
  %1541 = vst.msk [vmem:[%s1540] sm:$0x4] %vm1535, %v1534
  %s1542 = scalar_lea.vmem %s1, 464
  %1543 = vst.msk [vmem:[%s1542] sm:$0x8] %vm1535, %v1534
  %s1544 = scalar_lea.vmem %s0, 2
  %v1545 = vld [vmem:[%s1544] ss:$3 sm:$0xf]
  %1546 = vrot.lane.b32.xlu0 %v1545, 6
  %v1547 = vpop.permute.xlu0 %1546
  %vm1548 = vcmask 23552
  %s1549 = scalar_lea.vmem %s1, 126
  %1550 = vst.msk [vmem:[%s1549] sm:$0x1] %vm1548, %v1547
  %s1551 = scalar_lea.vmem %s1, 253
  %1552 = vst.msk [vmem:[%s1551] sm:$0x2] %vm1548, %v1547
  %s1553 = scalar_lea.vmem %s1, 380
  %1554 = vst.msk [vmem:[%s1553] sm:$0x4] %vm1548, %v1547
  %s1555 = scalar_lea.vmem %s1, 507
  %1556 = vst.msk [vmem:[%s1555] sm:$0x8] %vm1548, %v1547
  %v1557 = vld [vmem:[%s0] ss:$3 sm:$0xf]
  %1558 = vrot.lane.b32.xlu0 %v1557, 5
  %v1559 = vpop.permute.xlu0 %1558
  %vm1560 = vcmask 23552
  %s1561 = scalar_lea.vmem %s1, 41
  %1562 = vst.msk [vmem:[%s1561] sm:$0x1] %vm1560, %v1559
  %s1563 = scalar_lea.vmem %s1, 168
  %1564 = vst.msk [vmem:[%s1563] sm:$0x2] %vm1560, %v1559
  %s1565 = scalar_lea.vmem %s1, 295
  %1566 = vst.msk [vmem:[%s1565] sm:$0x4] %vm1560, %v1559
  %s1567 = scalar_lea.vmem %s1, 422
  %1568 = vst.msk [vmem:[%s1567] sm:$0x8] %vm1560, %v1559
  %s1569 = scalar_lea.vmem %s0, 1
  %v1570 = vld [vmem:[%s1569] ss:$3 sm:$0xf]
  %1571 = vrot.lane.b32.xlu0 %v1570, 4
  %v1572 = vpop.permute.xlu0 %1571
  %vm1573 = vcmask 23552
  %s1574 = scalar_lea.vmem %s1, 84
  %1575 = vst.msk [vmem:[%s1574] sm:$0x1] %vm1573, %v1572
  %s1576 = scalar_lea.vmem %s1, 211
  %1577 = vst.msk [vmem:[%s1576] sm:$0x2] %vm1573, %v1572
  %s1578 = scalar_lea.vmem %s1, 338
  %1579 = vst.msk [vmem:[%s1578] sm:$0x4] %vm1573, %v1572
  %s1580 = scalar_lea.vmem %s1, 465
  %1581 = vst.msk [vmem:[%s1580] sm:$0x8] %vm1573, %v1572
  %s1582 = scalar_lea.vmem %s0, 2
  %v1583 = vld [vmem:[%s1582] ss:$3 sm:$0xf]
  %1584 = vrot.lane.b32.xlu0 %v1583, 3
  %v1585 = vpop.permute.xlu0 %1584
  %vm1586 = vcmask 23552
  %s1587 = scalar_lea.vmem %s1, 127
  %1588 = vst.msk [vmem:[%s1587] sm:$0x1] %vm1586, %v1585
  %s1589 = scalar_lea.vmem %s1, 254
  %1590 = vst.msk [vmem:[%s1589] sm:$0x2] %vm1586, %v1585
  %s1591 = scalar_lea.vmem %s1, 381
  %1592 = vst.msk [vmem:[%s1591] sm:$0x4] %vm1586, %v1585
  %s1593 = scalar_lea.vmem %s1, 508
  %1594 = vst.msk [vmem:[%s1593] sm:$0x8] %vm1586, %v1585
  %v1595 = vld [vmem:[%s0] ss:$3 sm:$0xf]
  %s1596 = scalar_lea.vmem %s0, 1
  %v1597 = vld [vmem:[%s1596] ss:$3 sm:$0xf]
  %vm1598 = vcmask 1031168
  %v1599 = vsel %vm1598, %v1597, %v1595
  %1600 = vrot.lane.b32.xlu0 %v1599, 2
  %v1601 = vpop.permute.xlu0 %1600
  %vm1602 = vcmask 15360
  %s1603 = scalar_lea.vmem %s1, 42
  %1604 = vst.msk [vmem:[%s1603] sm:$0x1] %vm1602, %v1601
  %s1605 = scalar_lea.vmem %s1, 169
  %1606 = vst.msk [vmem:[%s1605] sm:$0x2] %vm1602, %v1601
  %s1607 = scalar_lea.vmem %s1, 296
  %1608 = vst.msk [vmem:[%s1607] sm:$0x4] %vm1602, %v1601
  %s1609 = scalar_lea.vmem %s1, 423
  %1610 = vst.msk [vmem:[%s1609] sm:$0x8] %vm1602, %v1601
  %vm1611 = vcmask 23568
  %s1612 = scalar_lea.vmem %s1, 42
  %1613 = vst.msk [vmem:[%s1612] sm:$0x1] %vm1611, %v1601
  %s1614 = scalar_lea.vmem %s1, 169
  %1615 = vst.msk [vmem:[%s1614] sm:$0x2] %vm1611, %v1601
  %s1616 = scalar_lea.vmem %s1, 296
  %1617 = vst.msk [vmem:[%s1616] sm:$0x4] %vm1611, %v1601
  %s1618 = scalar_lea.vmem %s1, 423
  %1619 = vst.msk [vmem:[%s1618] sm:$0x8] %vm1611, %v1601
  %s1620 = scalar_lea.vmem %s0, 1
  %v1621 = vld [vmem:[%s1620] ss:$3 sm:$0xf]
  %s1622 = scalar_lea.vmem %s0, 2
  %v1623 = vld [vmem:[%s1622] ss:$3 sm:$0xf]
  %vm1624 = vcmask 1039360
  %v1625 = vsel %vm1624, %v1623, %v1621
  %1626 = vrot.lane.b32.xlu0 %v1625, 1
  %v1627 = vpop.permute.xlu0 %1626
  %vm1628 = vcmask 7168
  %s1629 = scalar_lea.vmem %s1, 85
  %1630 = vst.msk [vmem:[%s1629] sm:$0x1] %vm1628, %v1627
  %s1631 = scalar_lea.vmem %s1, 212
  %1632 = vst.msk [vmem:[%s1631] sm:$0x2] %vm1628, %v1627
  %s1633 = scalar_lea.vmem %s1, 339
  %1634 = vst.msk [vmem:[%s1633] sm:$0x4] %vm1628, %v1627
  %s1635 = scalar_lea.vmem %s1, 466
  %1636 = vst.msk [vmem:[%s1635] sm:$0x8] %vm1628, %v1627
  %vm1637 = vcmask 23560
  %s1638 = scalar_lea.vmem %s1, 85
  %1639 = vst.msk [vmem:[%s1638] sm:$0x1] %vm1637, %v1627
  %s1640 = scalar_lea.vmem %s1, 212
  %1641 = vst.msk [vmem:[%s1640] sm:$0x2] %vm1637, %v1627
  %s1642 = scalar_lea.vmem %s1, 339
  %1643 = vst.msk [vmem:[%s1642] sm:$0x4] %vm1637, %v1627
  %s1644 = scalar_lea.vmem %s1, 466
  %1645 = vst.msk [vmem:[%s1644] sm:$0x8] %vm1637, %v1627

// kernel: semantic_attention.2
$region0: #{semantic_attention.2}
  #allocation0 [shape = 'u32[]', space=smem, size = 0x4, offset = 0x4, fixed_abs, tag = 'smem constant byte address 0x4 - core index']
  #allocation1 [shape = 'u32[144,128]{1,0:T(1,128)}', space=vmem, size = 0x12000, scoped, tag = 'internal scratch']
  %s0 = inlined_call_operand.vmem [shape: f32[1536,256], index: 0, kind: input, shape index: {}]
  %s1 = inlined_call_operand.vmem [shape: f32[256,128], index: 1, kind: input, shape index: {}]
  %s2 = inlined_call_operand.vmem [shape: f32[1,128], index: 2, kind: input, shape index: {}]
  %s3 = inlined_call_operand.vmem [shape: f32[1,128], index: 3, kind: input, shape index: {}]
  %s4 = inlined_call_operand.vmem [shape: f32[1536,1], index: 4, kind: output, shape index: {}]
  %s5 = sld [smem:[#allocation0]]
  $region49: #{semantic_attention.2} parent=0
    _
  %s7 = ssub.s32 1, %s5
  %s8 = scalar_select 0, %s7, %s5
  loop: start=0, step=1, limit=5
  $region2: #{semantic_attention.2} parent=0 // loop_pre_header
    _
  $region3: #{semantic_attention.2} parent=0 // loop_header
    %s10 = sphi 0, %s14
    %p11 = scmp.ge.s32.totalorder %s10, 5
    %s20 = sphi 0, %s22
    %s23 = sphi 0, %s20
    %s24 = sphi 0, %s23
    %s40 = sphi 0, %s24
    %s44 = sphi 0, %s44
    %s46 = sphi 0, %s44
    %s47 = sphi 0, %s46
    %s61 = sphi 0, %s47
    %s65 = sphi 0, %s65
    %s67 = sphi 0, %s65
    %s68 = sphi 0, %s67
    %s82 = sphi 0, %s68
    %s86 = sphi 0, %s86
    %s88 = sphi 0, %s86
    %s89 = sphi 0, %s88
    %s103 = sphi 0, %s89
    %s109 = sphi 0, %s111
    %s112 = sphi 0, %s109
    %s113 = sphi 0, %s112
    %s129 = sphi 0, %s113
  $region4: #{semantic_attention.2} parent=0 // loop_header_branch
    %13 = sbr.rel (%p11) target = $region8
  $region5: #{semantic_attention.2} parent=0 // loop_body
    %s15 = ssub.s32 %s10, 1
    %s16 = ssub.s32 %s10, 2
    %s17 = sadd.s32 %s10, 1
    %s18 = ssub.s32 %s10, %s17
    %p19 = scmp.eq.s32.totalorder %s18, 0
    %s21 = sadd.s32 %s20, 1
    %s22 = scalar_select %p19, %s20, %s21
    %p25 = pneg %p19
    %p26 = scmp.eq.s32.totalorder %s10, 2
    %p27 = por %p25, %p26
    %p28 = scmp.ne.s32.totalorder %s20, %s23
    %p29 = scmp.eq.s32.totalorder %s10, 0
    %p30 = por %p28, %p29
    %p31 = scmp.ne.s32.totalorder %s20, %s23
    %p32 = scmp.eq.s32.totalorder %s15, 2
    %p33 = por %p31, %p32
    %p34 = scmp.ne.s32.totalorder %s23, %s24
    %p35 = scmp.eq.s32.totalorder %s15, 0
    %p36 = por %p34, %p35
    %p37 = scmp.ne.s32.totalorder %s23, %s24
    %p38 = scmp.eq.s32.totalorder %s16, 2
    %p39 = por %p37, %p38
    %p41 = scmp.ne.s32.totalorder %s24, %s40
    %p42 = scmp.eq.s32.totalorder %s16, 0
    %p43 = por %p41, %p42
    %s45 = sadd.s32 %s44, 1
    %p48 = scmp.eq.s32.totalorder %s10, 2
    %p49 = scmp.ne.s32.totalorder %s44, %s46
    %p50 = scmp.eq.s32.totalorder %s10, 0
    %p51 = por %p49, %p50
    %p52 = scmp.ne.s32.totalorder %s44, %s46
    %p53 = scmp.eq.s32.totalorder %s15, 2
    %p54 = por %p52, %p53
    %p55 = scmp.ne.s32.totalorder %s46, %s47
    %p56 = scmp.eq.s32.totalorder %s15, 0
    %p57 = por %p55, %p56
    %p58 = scmp.ne.s32.totalorder %s46, %s47
    %p59 = scmp.eq.s32.totalorder %s16, 2
    %p60 = por %p58, %p59
    %p62 = scmp.ne.s32.totalorder %s47, %s61
    %p63 = scmp.eq.s32.totalorder %s16, 0
    %p64 = por %p62, %p63
    %s66 = sadd.s32 %s65, 1
    %p69 = scmp.eq.s32.totalorder %s10, 2
    %p70 = scmp.ne.s32.totalorder %s65, %s67
    %p71 = scmp.eq.s32.totalorder %s10, 0
    %p72 = por %p70, %p71
    %p73 = scmp.ne.s32.totalorder %s65, %s67
    %p74 = scmp.eq.s32.totalorder %s15, 2
    %p75 = por %p73, %p74
    %p76 = scmp.ne.s32.totalorder %s67, %s68
    %p77 = scmp.eq.s32.totalorder %s15, 0
    %p78 = por %p76, %p77
    %p79 = scmp.ne.s32.totalorder %s67, %s68
    %p80 = scmp.eq.s32.totalorder %s16, 2
    %p81 = por %p79, %p80
    %p83 = scmp.ne.s32.totalorder %s68, %s82
    %p84 = scmp.eq.s32.totalorder %s16, 0
    %p85 = por %p83, %p84
    %s87 = sadd.s32 %s86, 1
    %p90 = scmp.eq.s32.totalorder %s10, 2
    %p91 = scmp.ne.s32.totalorder %s86, %s88
    %p92 = scmp.eq.s32.totalorder %s10, 0
    %p93 = por %p91, %p92
    %p94 = scmp.ne.s32.totalorder %s86, %s88
    %p95 = scmp.eq.s32.totalorder %s15, 2
    %p96 = por %p94, %p95
    %p97 = scmp.ne.s32.totalorder %s88, %s89
    %p98 = scmp.eq.s32.totalorder %s15, 0
    %p99 = por %p97, %p98
    %p100 = scmp.ne.s32.totalorder %s88, %s89
    %p101 = scmp.eq.s32.totalorder %s16, 2
    %p102 = por %p100, %p101
    %p104 = scmp.ne.s32.totalorder %s89, %s103
    %p105 = scmp.eq.s32.totalorder %s16, 0
    %p106 = por %p104, %p105
    %s107 = ssub.s32 %s10, %s17
    %p108 = scmp.eq.s32.totalorder %s107, 0
    %s110 = sadd.s32 %s109, 1
    %s111 = scalar_select %p108, %s109, %s110
    %p114 = pneg %p108
    %p115 = scmp.eq.s32.totalorder %s10, 2
    %p116 = por %p114, %p115
    %p117 = scmp.ne.s32.totalorder %s109, %s112
    %p118 = scmp.eq.s32.totalorder %s10, 0
    %p119 = por %p117, %p118
    %p120 = scmp.ne.s32.totalorder %s109, %s112
    %p121 = scmp.eq.s32.totalorder %s15, 2
    %p122 = por %p120, %p121
    %p123 = scmp.ne.s32.totalorder %s112, %s113
    %p124 = scmp.eq.s32.totalorder %s15, 0
    %p125 = por %p123, %p124
    %p126 = scmp.ne.s32.totalorder %s112, %s113
    %p127 = scmp.eq.s32.totalorder %s16, 2
    %p128 = por %p126, %p127
    %p130 = scmp.ne.s32.totalorder %s113, %s129
    %p131 = scmp.eq.s32.totalorder %s16, 0
    %p132 = por %p130, %p131
    %p133 = scmp.le.s32.totalorder 1, %s10
    %p134 = scmp.lt.s32.totalorder %s10, 4
    %p135 = pnand %p133, %p134
    %p136 = pneg %p135
    // Predicated region
    $region9: #{semantic_attention.2} parent=5 // pred_check
      _
    $region10: #{semantic_attention.2} parent=5 // pred_check_branch
      %138 = sbr.rel (%p135) target = $region12
    $region11: #{semantic_attention.2} parent=5 // pred_region
      %s139 = ssub.s32 %s10, 1
      // Predicated region
      $region13: #{semantic_attention.2} parent=11 // pred_check
        %p140 = pneg %p57
      $region14: #{semantic_attention.2} parent=11 // pred_check_branch
        %142 = sbr.rel (%p140) target = $region16
      $region15: #{semantic_attention.2} parent=11 // pred_region
        _
      $region16: #{semantic_attention.2} parent=11 // pred_fallthru
        _
      // Predicated region
      $region17: #{semantic_attention.2} parent=11 // pred_check
        %p143 = pneg %p78
      $region18: #{semantic_attention.2} parent=11 // pred_check_branch
        %145 = sbr.rel (%p143) target = $region20
      $region19: #{semantic_attention.2} parent=11 // pred_region
        _
      $region20: #{semantic_attention.2} parent=11 // pred_fallthru
        _
      // Predicated region
      $region21: #{semantic_attention.2} parent=11 // pred_check
        %p146 = pneg %p99
      $region22: #{semantic_attention.2} parent=11 // pred_check_branch
        %148 = sbr.rel (%p146) target = $region24
      $region23: #{semantic_attention.2} parent=11 // pred_region
        _
      $region24: #{semantic_attention.2} parent=11 // pred_fallthru
        _
    $region12: #{semantic_attention.2} parent=5 // pred_fallthru
      _
    %p149 = scmp.lt.s32.totalorder %s10, 3
    // Predicated region
    $region25: #{semantic_attention.2} parent=5 // pred_check
      %p150 = pneg %p149
    $region26: #{semantic_attention.2} parent=5 // pred_check_branch
      %152 = sbr.rel (%p150) target = $region28
    $region27: #{semantic_attention.2} parent=5 // pred_region
      // Predicated region
      $region29: #{semantic_attention.2} parent=27 // pred_check
        %p153 = pneg %p30
      $region30: #{semantic_attention.2} parent=27 // pred_check_branch
        %155 = sbr.rel (%p153) target = $region32
      $region31: #{semantic_attention.2} parent=27 // pred_region
        %s156 = smul.u32 64, %s10
        %p157 = scmp.lt.s32.totalorder %s156, 191
        %s158 = scalar_select %p157, %s156, 191
        %s159 = smul.addr %s158, 2
        %s160 = smul.addr %s159, 8
        %s161 = scalar_lea.vmem %s0, %s160
        %s162 = smul.u32 64, %s10
      $region32: #{semantic_attention.2} parent=27 // pred_fallthru
        _
    $region28: #{semantic_attention.2} parent=5 // pred_fallthru
      _
    %p163 = scmp.le.s32.totalorder 1, %s10
    %p164 = scmp.lt.s32.totalorder %s10, 4
    %p165 = pnand %p163, %p164
    %p166 = pneg %p165
    // Predicated region
    $region33: #{semantic_attention.2} parent=5 // pred_check
      _
    $region34: #{semantic_attention.2} parent=5 // pred_check_branch
      %168 = sbr.rel (%p165) target = $region36
    $region35: #{semantic_attention.2} parent=5 // pred_region
      %s169 = ssub.s32 %s10, 1
      %s170 = smul.u32 64, %s15
      %p171 = scmp.lt.s32.totalorder %s170, 191
      %s172 = scalar_select %p171, %s170, 191
      %s173 = smul.addr %s172, 2
      %s174 = smul.addr %s173, 8
      %s175 = scalar_lea.vmem %s0, %s174
      %p176 = pneg %p36
      %p177 = pneg %p33
      %p178 = pneg %p57
      %p179 = pneg %p54
      %p180 = pneg %p78
      %p181 = pneg %p75
      %p182 = pneg %p99
      %p183 = pneg %p96
      %p184 = pneg %p125
      %p185 = pneg %p122
      %s186 = smul.u32 64, %s15
      %p187 = scmp.lt.s32.totalorder %s186, 191
      %s188 = scalar_select %p187, %s186, 191
      %s189 = smul.addr %s188, 8
      %s190 = scalar_lea.vmem %s4, %s189
      %s191 = smul.u32 64, %s15
      %p192 = scmp.lt.s32.totalorder %s191, 191
      %s193 = scalar_select %p192, %s191, 191
      %s194 = smul.addr %s193, 2
      %s195 = smul.addr %s194, 8
      %s196 = scalar_lea.vmem %s0, %s195
      %s197 = smul.u32 64, %s15
      %s198 = smul.u32 64, %s15
      %p199 = scmp.lt.s32.totalorder %s198, 191
      %s200 = scalar_select %p199, %s198, 191
      %s201 = smul.addr %s200, 8
      %s202 = scalar_lea.vmem %s4, %s201
      %s203 = smul.u32 64, %s15
      %v204 = vld [vmem:[%s196] sm:$0xff]
      %v205 = vld [vmem:[%s196 + $0x8] sm:$0xff]
      %v206 = vld [vmem:[%s196 + $0x10] sm:$0xff]
      %v207 = vld [vmem:[%s196 + $0x18] sm:$0xff]
      %v208 = vld [vmem:[%s196 + $0x20] sm:$0xff]
      %v209 = vld [vmem:[%s196 + $0x28] sm:$0xff]
      %v210 = vld [vmem:[%s196 + $0x30] sm:$0xff]
      %v211 = vld [vmem:[%s196 + $0x38] sm:$0xff]
      %v212 = vld [vmem:[%s196 + $0x40] sm:$0xff]
      %v213 = vld [vmem:[%s196 + $0x48] sm:$0xff]
      %v214 = vld [vmem:[%s196 + $0x50] sm:$0xff]
      %v215 = vld [vmem:[%s196 + $0x58] sm:$0xff]
      %v216 = vld [vmem:[%s196 + $0x60] sm:$0xff]
      %v217 = vld [vmem:[%s196 + $0x68] sm:$0xff]
      %v218 = vld [vmem:[%s196 + $0x70] sm:$0xff]
      %v219 = vld [vmem:[%s196 + $0x78] sm:$0xff]
      %v220 = vld [vmem:[%s196 + $0x80] sm:$0xff]
      %v221 = vld [vmem:[%s196 + $0x88] sm:$0xff]
      %v222 = vld [vmem:[%s196 + $0x90] sm:$0xff]
      %v223 = vld [vmem:[%s196 + $0x98] sm:$0xff]
      %v224 = vld [vmem:[%s196 + $0xa0] sm:$0xff]
      %v225 = vld [vmem:[%s196 + $0xa8] sm:$0xff]
      %v226 = vld [vmem:[%s196 + $0xb0] sm:$0xff]
      %v227 = vld [vmem:[%s196 + $0xb8] sm:$0xff]
      %v228 = vld [vmem:[%s196 + $0xc0] sm:$0xff]
      %v229 = vld [vmem:[%s196 + $0xc8] sm:$0xff]
      %v230 = vld [vmem:[%s196 + $0xd0] sm:$0xff]
      %v231 = vld [vmem:[%s196 + $0xd8] sm:$0xff]
      %v232 = vld [vmem:[%s196 + $0xe0] sm:$0xff]
      %v233 = vld [vmem:[%s196 + $0xe8] sm:$0xff]
      %v234 = vld [vmem:[%s196 + $0xf0] sm:$0xff]
      %v235 = vld [vmem:[%s196 + $0xf8] sm:$0xff]
      %v236 = vld [vmem:[%s196 + $0x100] sm:$0xff]
      %v237 = vld [vmem:[%s196 + $0x108] sm:$0xff]
      %v238 = vld [vmem:[%s196 + $0x110] sm:$0xff]
      %v239 = vld [vmem:[%s196 + $0x118] sm:$0xff]
      %v240 = vld [vmem:[%s196 + $0x120] sm:$0xff]
      %v241 = vld [vmem:[%s196 + $0x128] sm:$0xff]
      %v242 = vld [vmem:[%s196 + $0x130] sm:$0xff]
      %v243 = vld [vmem:[%s196 + $0x138] sm:$0xff]
      %v244 = vld [vmem:[%s196 + $0x140] sm:$0xff]
      %v245 = vld [vmem:[%s196 + $0x148] sm:$0xff]
      %v246 = vld [vmem:[%s196 + $0x150] sm:$0xff]
      %v247 = vld [vmem:[%s196 + $0x158] sm:$0xff]
      %v248 = vld [vmem:[%s196 + $0x160] sm:$0xff]
      %v249 = vld [vmem:[%s196 + $0x168] sm:$0xff]
      %v250 = vld [vmem:[%s196 + $0x170] sm:$0xff]
      %v251 = vld [vmem:[%s196 + $0x178] sm:$0xff]
      %v252 = vld [vmem:[%s196 + $0x180] sm:$0xff]
      %v253 = vld [vmem:[%s196 + $0x188] sm:$0xff]
      %v254 = vld [vmem:[%s196 + $0x190] sm:$0xff]
      %v255 = vld [vmem:[%s196 + $0x198] sm:$0xff]
      %v256 = vld [vmem:[%s196 + $0x1a0] sm:$0xff]
      %v257 = vld [vmem:[%s196 + $0x1a8] sm:$0xff]
      %v258 = vld [vmem:[%s196 + $0x1b0] sm:$0xff]
      %v259 = vld [vmem:[%s196 + $0x1b8] sm:$0xff]
      %v260 = vld [vmem:[%s196 + $0x1c0] sm:$0xff]
      %v261 = vld [vmem:[%s196 + $0x1c8] sm:$0xff]
      %v262 = vld [vmem:[%s196 + $0x1d0] sm:$0xff]
      %v263 = vld [vmem:[%s196 + $0x1d8] sm:$0xff]
      %v264 = vld [vmem:[%s196 + $0x1e0] sm:$0xff]
      %v265 = vld [vmem:[%s196 + $0x1e8] sm:$0xff]
      %v266 = vld [vmem:[%s196 + $0x1f0] sm:$0xff]
      %v267 = vld [vmem:[%s196 + $0x1f8] sm:$0xff]
      %v268 = vld [vmem:[%s196 + $0x200] sm:$0xff]
      %v269 = vld [vmem:[%s196 + $0x208] sm:$0xff]
      %v270 = vld [vmem:[%s196 + $0x210] sm:$0xff]
      %v271 = vld [vmem:[%s196 + $0x218] sm:$0xff]
      %v272 = vld [vmem:[%s196 + $0x220] sm:$0xff]
      %v273 = vld [vmem:[%s196 + $0x228] sm:$0xff]
      %v274 = vld [vmem:[%s196 + $0x230] sm:$0xff]
      %v275 = vld [vmem:[%s196 + $0x238] sm:$0xff]
      %v276 = vld [vmem:[%s196 + $0x240] sm:$0xff]
      %v277 = vld [vmem:[%s196 + $0x248] sm:$0xff]
      %v278 = vld [vmem:[%s196 + $0x250] sm:$0xff]
      %v279 = vld [vmem:[%s196 + $0x258] sm:$0xff]
      %v280 = vld [vmem:[%s196 + $0x260] sm:$0xff]
      %v281 = vld [vmem:[%s196 + $0x268] sm:$0xff]
      %v282 = vld [vmem:[%s196 + $0x270] sm:$0xff]
      %v283 = vld [vmem:[%s196 + $0x278] sm:$0xff]
      %v284 = vld [vmem:[%s196 + $0x280] sm:$0xff]
      %v285 = vld [vmem:[%s196 + $0x288] sm:$0xff]
      %v286 = vld [vmem:[%s196 + $0x290] sm:$0xff]
      %v287 = vld [vmem:[%s196 + $0x298] sm:$0xff]
      %v288 = vld [vmem:[%s196 + $0x2a0] sm:$0xff]
      %v289 = vld [vmem:[%s196 + $0x2a8] sm:$0xff]
      %v290 = vld [vmem:[%s196 + $0x2b0] sm:$0xff]
      %v291 = vld [vmem:[%s196 + $0x2b8] sm:$0xff]
      %v292 = vld [vmem:[%s196 + $0x2c0] sm:$0xff]
      %v293 = vld [vmem:[%s196 + $0x2c8] sm:$0xff]
      %v294 = vld [vmem:[%s196 + $0x2d0] sm:$0xff]
      %v295 = vld [vmem:[%s196 + $0x2d8] sm:$0xff]
      %v296 = vld [vmem:[%s196 + $0x2e0] sm:$0xff]
      %v297 = vld [vmem:[%s196 + $0x2e8] sm:$0xff]
      %v298 = vld [vmem:[%s196 + $0x2f0] sm:$0xff]
      %v299 = vld [vmem:[%s196 + $0x2f8] sm:$0xff]
      %v300 = vld [vmem:[%s196 + $0x300] sm:$0xff]
      %v301 = vld [vmem:[%s196 + $0x308] sm:$0xff]
      %v302 = vld [vmem:[%s196 + $0x310] sm:$0xff]
      %v303 = vld [vmem:[%s196 + $0x318] sm:$0xff]
      %v304 = vld [vmem:[%s196 + $0x320] sm:$0xff]
      %v305 = vld [vmem:[%s196 + $0x328] sm:$0xff]
      %v306 = vld [vmem:[%s196 + $0x330] sm:$0xff]
      %v307 = vld [vmem:[%s196 + $0x338] sm:$0xff]
      %v308 = vld [vmem:[%s196 + $0x340] sm:$0xff]
      %v309 = vld [vmem:[%s196 + $0x348] sm:$0xff]
      %v310 = vld [vmem:[%s196 + $0x350] sm:$0xff]
      %v311 = vld [vmem:[%s196 + $0x358] sm:$0xff]
      %v312 = vld [vmem:[%s196 + $0x360] sm:$0xff]
      %v313 = vld [vmem:[%s196 + $0x368] sm:$0xff]
      %v314 = vld [vmem:[%s196 + $0x370] sm:$0xff]
      %v315 = vld [vmem:[%s196 + $0x378] sm:$0xff]
      %v316 = vld [vmem:[%s196 + $0x380] sm:$0xff]
      %v317 = vld [vmem:[%s196 + $0x388] sm:$0xff]
      %v318 = vld [vmem:[%s196 + $0x390] sm:$0xff]
      %v319 = vld [vmem:[%s196 + $0x398] sm:$0xff]
      %v320 = vld [vmem:[%s196 + $0x3a0] sm:$0xff]
      %v321 = vld [vmem:[%s196 + $0x3a8] sm:$0xff]
      %v322 = vld [vmem:[%s196 + $0x3b0] sm:$0xff]
      %v323 = vld [vmem:[%s196 + $0x3b8] sm:$0xff]
      %v324 = vld [vmem:[%s196 + $0x3c0] sm:$0xff]
      %v325 = vld [vmem:[%s196 + $0x3c8] sm:$0xff]
      %v326 = vld [vmem:[%s196 + $0x3d0] sm:$0xff]
      %v327 = vld [vmem:[%s196 + $0x3d8] sm:$0xff]
      %v328 = vld [vmem:[%s196 + $0x3e0] sm:$0xff]
      %v329 = vld [vmem:[%s196 + $0x3e8] sm:$0xff]
      %v330 = vld [vmem:[%s196 + $0x3f0] sm:$0xff]
      %v331 = vld [vmem:[%s196 + $0x3f8] sm:$0xff]
      %v332 = vld [vmem:[%s1] sm:$0xff]
      %v333 = vld [vmem:[%s1 + $0x8] sm:$0xff]
      %v334 = vld [vmem:[%s1 + $0x10] sm:$0xff]
      %v335 = vld [vmem:[%s1 + $0x18] sm:$0xff]
      %v336 = vld [vmem:[%s1 + $0x20] sm:$0xff]
      %v337 = vld [vmem:[%s1 + $0x28] sm:$0xff]
      %v338 = vld [vmem:[%s1 + $0x30] sm:$0xff]
      %v339 = vld [vmem:[%s1 + $0x38] sm:$0xff]
      %v340 = vld [vmem:[%s1 + $0x40] sm:$0xff]
      %v341 = vld [vmem:[%s1 + $0x48] sm:$0xff]
      %v342 = vld [vmem:[%s1 + $0x50] sm:$0xff]
      %v343 = vld [vmem:[%s1 + $0x58] sm:$0xff]
      %v344 = vld [vmem:[%s1 + $0x60] sm:$0xff]
      %v345 = vld [vmem:[%s1 + $0x68] sm:$0xff]
      %v346 = vld [vmem:[%s1 + $0x70] sm:$0xff]
      %v347 = vld [vmem:[%s1 + $0x78] sm:$0xff]
      %v348 = vld [vmem:[%s1 + $0x80] sm:$0xff]
      %v349 = vld [vmem:[%s1 + $0x88] sm:$0xff]
      %v350 = vld [vmem:[%s1 + $0x90] sm:$0xff]
      %v351 = vld [vmem:[%s1 + $0x98] sm:$0xff]
      %v352 = vld [vmem:[%s1 + $0xa0] sm:$0xff]
      %v353 = vld [vmem:[%s1 + $0xa8] sm:$0xff]
      %v354 = vld [vmem:[%s1 + $0xb0] sm:$0xff]
      %v355 = vld [vmem:[%s1 + $0xb8] sm:$0xff]
      %v356 = vld [vmem:[%s1 + $0xc0] sm:$0xff]
      %v357 = vld [vmem:[%s1 + $0xc8] sm:$0xff]
      %v358 = vld [vmem:[%s1 + $0xd0] sm:$0xff]
      %v359 = vld [vmem:[%s1 + $0xd8] sm:$0xff]
      %v360 = vld [vmem:[%s1 + $0xe0] sm:$0xff]
      %v361 = vld [vmem:[%s1 + $0xe8] sm:$0xff]
      %v362 = vld [vmem:[%s1 + $0xf0] sm:$0xff]
      %v363 = vld [vmem:[%s1 + $0xf8] sm:$0xff]
      %v364 = vld [vmem:[%s2] sm:$0x1]
      %v366 = vlaneseq
      %v367 = vshrl.u32 %v366, 7
      %v368 = vsub.s32 0, %v367
      %v369 = vrot.slane %v364, %v368
      %371 = vmatprep.subr.mxu0 0.0
      %372 = vmatpush1.msra.mxu0 %v347
      %373 = vmatprep.subr.mxu0 0.0
      %374 = vmatpush1.msra.mxu0 %v346
      %375 = vmatprep.subr.mxu0 0.0
      %376 = vmatpush1.msra.mxu0 %v345
      %377 = vmatprep.subr.mxu0 0.0
      %378 = vmatpush1.msra.mxu0 %v344
      %379 = vmatprep.subr.mxu0 0.0
      %380 = vmatpush1.msra.mxu0 %v343
      %381 = vmatprep.subr.mxu0 0.0
      %382 = vmatpush1.msra.mxu0 %v342
      %383 = vmatprep.subr.mxu0 0.0
      %384 = vmatpush1.msra.mxu0 %v341
      %385 = vmatprep.subr.mxu0 0.0
      %386 = vmatpush1.msra.mxu0 %v340
      %387 = vmatprep.subr.mxu0 0.0
      %388 = vmatpush1.msra.mxu0 %v339
      %389 = vmatprep.subr.mxu0 0.0
      %390 = vmatpush1.msra.mxu0 %v338
      %391 = vmatprep.subr.mxu0 0.0
      %392 = vmatpush1.msra.mxu0 %v337
      %393 = vmatprep.subr.mxu0 0.0
      %394 = vmatpush1.msra.mxu0 %v336
      %395 = vmatprep.subr.mxu0 0.0
      %396 = vmatpush1.msra.mxu0 %v335
      %397 = vmatprep.subr.mxu0 0.0
      %398 = vmatpush1.msra.mxu0 %v334
      %399 = vmatprep.subr.mxu0 0.0
      %400 = vmatpush1.msra.mxu0 %v333
      %401 = vmatprep.subr.mxu0 0.0
      %402 = vmatpush1.msra.mxu0 %v332
      %403 = vmatprep.subr.mxu0 0.0
      %404 = vmatpush2.msra.mxu0 %v363
      %405 = vmatprep.subr.mxu0 0.0
      %406 = vmatpush2.msra.mxu0 %v362
      %407 = vmatprep.subr.mxu0 0.0
      %408 = vmatpush2.msra.mxu0 %v361
      %409 = vmatprep.subr.mxu0 0.0
      %410 = vmatpush2.msra.mxu0 %v360
      %411 = vmatprep.subr.mxu0 0.0
      %412 = vmatpush2.msra.mxu0 %v359
      %413 = vmatprep.subr.mxu0 0.0
      %414 = vmatpush2.msra.mxu0 %v358
      %415 = vmatprep.subr.mxu0 0.0
      %416 = vmatpush2.msra.mxu0 %v357
      %417 = vmatprep.subr.mxu0 0.0
      %418 = vmatpush2.msra.mxu0 %v356
      %419 = vmatprep.subr.mxu0 0.0
      %420 = vmatpush2.msra.mxu0 %v355
      %421 = vmatprep.subr.mxu0 0.0
      %422 = vmatpush2.msra.mxu0 %v354
      %423 = vmatprep.subr.mxu0 0.0
      %424 = vmatpush2.msra.mxu0 %v353
      %425 = vmatprep.subr.mxu0 0.0
      %426 = vmatpush2.msra.mxu0 %v352
      %427 = vmatprep.subr.mxu0 0.0
      %428 = vmatpush2.msra.mxu0 %v351
      %429 = vmatprep.subr.mxu0 0.0
      %430 = vmatpush2.msra.mxu0 %v350
      %431 = vmatprep.subr.mxu0 0.0
      %432 = vmatpush2.msra.mxu0 %v349
      %433 = vmatprep.subr.mxu0 0.0
      %434 = vmatpush2.msra.mxu0 %v348
      %435 = vmatprep.mubr.f32.mxu0 %v205
      %436 = vmatmul.mubr.f32.gmra.mxu0 %v204
      %v437 = vpop.f32.mrf.mxu0
      %v438 = vadd.f32 %v369, %v437
      %v439 = vpop.f32.mrf.mxu0
      %440 = vmatprep.mubr.f32.mxu0 %v207
      %441 = vmatmul.mubr.f32.gmra.mxu0 %v206
      %v442 = vpop.f32.mrf.mxu0
      %v443 = vadd.f32 %v369, %v442
      %v444 = vpop.f32.mrf.mxu0
      %445 = vmatprep.mubr.f32.mxu0 %v209
      %446 = vmatmul.mubr.f32.gmra.mxu0 %v208
      %v447 = vpop.f32.mrf.mxu0
      %v448 = vadd.f32 %v369, %v447
      %v449 = vpop.f32.mrf.mxu0
      %450 = vmatprep.mubr.f32.mxu0 %v211
      %451 = vmatmul.mubr.f32.gmra.mxu0 %v210
      %v452 = vpop.f32.mrf.mxu0
      %v453 = vadd.f32 %v369, %v452
      %v454 = vpop.f32.mrf.mxu0
      %455 = vmatprep.mubr.f32.mxu0 %v213
      %456 = vmatmul.mubr.f32.gmra.mxu0 %v212
      %v457 = vpop.f32.mrf.mxu0
      %v458 = vadd.f32 %v369, %v457
      %v459 = vpop.f32.mrf.mxu0
      %460 = vmatprep.mubr.f32.mxu0 %v215
      %461 = vmatmul.mubr.f32.gmra.mxu0 %v214
      %v462 = vpop.f32.mrf.mxu0
      %v463 = vadd.f32 %v369, %v462
      %v464 = vpop.f32.mrf.mxu0
      %465 = vmatprep.mubr.f32.mxu0 %v217
      %466 = vmatmul.mubr.f32.gmra.mxu0 %v216
      %v467 = vpop.f32.mrf.mxu0
      %v468 = vadd.f32 %v369, %v467
      %v469 = vpop.f32.mrf.mxu0
      %470 = vmatprep.mubr.f32.mxu0 %v219
      %471 = vmatmul.mubr.f32.gmra.mxu0 %v218
      %v472 = vpop.f32.mrf.mxu0
      %v473 = vadd.f32 %v369, %v472
      %v474 = vpop.f32.mrf.mxu0
      %475 = vmatprep.mubr.f32.mxu0 %v221
      %476 = vmatmul.mubr.f32.gmra.mxu0 %v220
      %v477 = vpop.f32.mrf.mxu0
      %v478 = vadd.f32 %v369, %v477
      %v479 = vpop.f32.mrf.mxu0
      %480 = vmatprep.mubr.f32.mxu0 %v223
      %481 = vmatmul.mubr.f32.gmra.mxu0 %v222
      %v482 = vpop.f32.mrf.mxu0
      %v483 = vadd.f32 %v369, %v482
      %v484 = vpop.f32.mrf.mxu0
      %485 = vmatprep.mubr.f32.mxu0 %v225
      %486 = vmatmul.mubr.f32.gmra.mxu0 %v224
      %v487 = vpop.f32.mrf.mxu0
      %v488 = vadd.f32 %v369, %v487
      %v489 = vpop.f32.mrf.mxu0
      %490 = vmatprep.mubr.f32.mxu0 %v227
      %491 = vmatmul.mubr.f32.gmra.mxu0 %v226
      %v492 = vpop.f32.mrf.mxu0
      %v493 = vadd.f32 %v369, %v492
      %v494 = vpop.f32.mrf.mxu0
      %495 = vmatprep.mubr.f32.mxu0 %v229
      %496 = vmatmul.mubr.f32.gmra.mxu0 %v228
      %v497 = vpop.f32.mrf.mxu0
      %v498 = vadd.f32 %v369, %v497
      %v499 = vpop.f32.mrf.mxu0
      %500 = vmatprep.mubr.f32.mxu0 %v231
      %501 = vmatmul.mubr.f32.gmra.mxu0 %v230
      %v502 = vpop.f32.mrf.mxu0
      %v503 = vadd.f32 %v369, %v502
      %v504 = vpop.f32.mrf.mxu0
      %505 = vmatprep.mubr.f32.mxu0 %v233
      %506 = vmatmul.mubr.f32.gmra.mxu0 %v232
      %v507 = vpop.f32.mrf.mxu0
      %v508 = vadd.f32 %v369, %v507
      %v509 = vpop.f32.mrf.mxu0
      %510 = vmatprep.mubr.f32.mxu0 %v235
      %511 = vmatmul.mubr.f32.gmra.mxu0 %v234
      %v512 = vpop.f32.mrf.mxu0
      %v513 = vadd.f32 %v369, %v512
      %v514 = vpop.f32.mrf.mxu0
      %515 = vmatprep.mubr.f32.mxu0 %v237
      %516 = vmatmul.mubr.f32.gmra.mxu0 %v236
      %v517 = vpop.f32.mrf.mxu0
      %v518 = vadd.f32 %v369, %v517
      %v519 = vpop.f32.mrf.mxu0
      %520 = vmatprep.mubr.f32.mxu0 %v239
      %521 = vmatmul.mubr.f32.gmra.mxu0 %v238
      %v522 = vpop.f32.mrf.mxu0
      %v523 = vadd.f32 %v369, %v522
      %v524 = vpop.f32.mrf.mxu0
      %525 = vmatprep.mubr.f32.mxu0 %v241
      %526 = vmatmul.mubr.f32.gmra.mxu0 %v240
      %v527 = vpop.f32.mrf.mxu0
      %v528 = vadd.f32 %v369, %v527
      %v529 = vpop.f32.mrf.mxu0
      %530 = vmatprep.mubr.f32.mxu0 %v243
      %531 = vmatmul.mubr.f32.gmra.mxu0 %v242
      %v532 = vpop.f32.mrf.mxu0
      %v533 = vadd.f32 %v369, %v532
      %v534 = vpop.f32.mrf.mxu0
      %535 = vmatprep.mubr.f32.mxu0 %v245
      %536 = vmatmul.mubr.f32.gmra.mxu0 %v244
      %v537 = vpop.f32.mrf.mxu0
      %v538 = vadd.f32 %v369, %v537
      %v539 = vpop.f32.mrf.mxu0
      %540 = vmatprep.mubr.f32.mxu0 %v247
      %541 = vmatmul.mubr.f32.gmra.mxu0 %v246
      %v542 = vpop.f32.mrf.mxu0
      %v543 = vadd.f32 %v369, %v542
      %v544 = vpop.f32.mrf.mxu0
      %545 = vmatprep.mubr.f32.mxu0 %v249
      %546 = vmatmul.mubr.f32.gmra.mxu0 %v248
      %v547 = vpop.f32.mrf.mxu0
      %v548 = vadd.f32 %v369, %v547
      %v549 = vpop.f32.mrf.mxu0
      %550 = vmatprep.mubr.f32.mxu0 %v251
      %551 = vmatmul.mubr.f32.gmra.mxu0 %v250
      %v552 = vpop.f32.mrf.mxu0
      %v553 = vadd.f32 %v369, %v552
      %v554 = vpop.f32.mrf.mxu0
      %555 = vmatprep.mubr.f32.mxu0 %v253
      %556 = vmatmul.mubr.f32.gmra.mxu0 %v252
      %v557 = vpop.f32.mrf.mxu0
      %v558 = vadd.f32 %v369, %v557
      %v559 = vpop.f32.mrf.mxu0
      %560 = vmatprep.mubr.f32.mxu0 %v255
      %561 = vmatmul.mubr.f32.gmra.mxu0 %v254
      %v562 = vpop.f32.mrf.mxu0
      %v563 = vadd.f32 %v369, %v562
      %v564 = vpop.f32.mrf.mxu0
      %565 = vmatprep.mubr.f32.mxu0 %v257
      %566 = vmatmul.mubr.f32.gmra.mxu0 %v256
      %v567 = vpop.f32.mrf.mxu0
      %v568 = vadd.f32 %v369, %v567
      %v569 = vpop.f32.mrf.mxu0
      %570 = vmatprep.mubr.f32.mxu0 %v259
      %571 = vmatmul.mubr.f32.gmra.mxu0 %v258
      %v572 = vpop.f32.mrf.mxu0
      %v573 = vadd.f32 %v369, %v572
      %v574 = vpop.f32.mrf.mxu0
      %575 = vmatprep.mubr.f32.mxu0 %v261
      %576 = vmatmul.mubr.f32.gmra.mxu0 %v260
      %v577 = vpop.f32.mrf.mxu0
      %v578 = vadd.f32 %v369, %v577
      %v579 = vpop.f32.mrf.mxu0
      %580 = vmatprep.mubr.f32.mxu0 %v263
      %581 = vmatmul.mubr.f32.gmra.mxu0 %v262
      %v582 = vpop.f32.mrf.mxu0
      %v583 = vadd.f32 %v369, %v582
      %v584 = vpop.f32.mrf.mxu0
      %585 = vmatprep.mubr.f32.mxu0 %v265
      %586 = vmatmul.mubr.f32.gmra.mxu0 %v264
      %v587 = vpop.f32.mrf.mxu0
      %v588 = vadd.f32 %v369, %v587
      %v589 = vpop.f32.mrf.mxu0
      %590 = vmatprep.mubr.f32.mxu0 %v267
      %591 = vmatmul.mubr.f32.gmra.mxu0 %v266
      %v592 = vpop.f32.mrf.mxu0
      %v593 = vadd.f32 %v369, %v592
      %v594 = vpop.f32.mrf.mxu0
      %595 = vmatprep.mubr.f32.mxu0 %v269
      %596 = vmatmul.mubr.f32.gmra.mxu0 %v268
      %v597 = vpop.f32.mrf.mxu0
      %v598 = vadd.f32 %v369, %v597
      %v599 = vpop.f32.mrf.mxu0
      %600 = vmatprep.mubr.f32.mxu0 %v271
      %601 = vmatmul.mubr.f32.gmra.mxu0 %v270
      %v602 = vpop.f32.mrf.mxu0
      %v603 = vadd.f32 %v369, %v602
      %v604 = vpop.f32.mrf.mxu0
      %605 = vmatprep.mubr.f32.mxu0 %v273
      %606 = vmatmul.mubr.f32.gmra.mxu0 %v272
      %v607 = vpop.f32.mrf.mxu0
      %v608 = vadd.f32 %v369, %v607
      %v609 = vpop.f32.mrf.mxu0
      %610 = vmatprep.mubr.f32.mxu0 %v275
      %611 = vmatmul.mubr.f32.gmra.mxu0 %v274
      %v612 = vpop.f32.mrf.mxu0
      %v613 = vadd.f32 %v369, %v612
      %v614 = vpop.f32.mrf.mxu0
      %615 = vmatprep.mubr.f32.mxu0 %v277
      %616 = vmatmul.mubr.f32.gmra.mxu0 %v276
      %v617 = vpop.f32.mrf.mxu0
      %v618 = vadd.f32 %v369, %v617
      %v619 = vpop.f32.mrf.mxu0
      %620 = vmatprep.mubr.f32.mxu0 %v279
      %621 = vmatmul.mubr.f32.gmra.mxu0 %v278
      %v622 = vpop.f32.mrf.mxu0
      %v623 = vadd.f32 %v369, %v622
      %v624 = vpop.f32.mrf.mxu0
      %625 = vmatprep.mubr.f32.mxu0 %v281
      %626 = vmatmul.mubr.f32.gmra.mxu0 %v280
      %v627 = vpop.f32.mrf.mxu0
      %v628 = vadd.f32 %v369, %v627
      %v629 = vpop.f32.mrf.mxu0
      %630 = vmatprep.mubr.f32.mxu0 %v283
      %631 = vmatmul.mubr.f32.gmra.mxu0 %v282
      %v632 = vpop.f32.mrf.mxu0
      %v633 = vadd.f32 %v369, %v632
      %v634 = vpop.f32.mrf.mxu0
      %635 = vmatprep.mubr.f32.mxu0 %v285
      %636 = vmatmul.mubr.f32.gmra.mxu0 %v284
      %v637 = vpop.f32.mrf.mxu0
      %v638 = vadd.f32 %v369, %v637
      %v639 = vpop.f32.mrf.mxu0
      %640 = vmatprep.mubr.f32.mxu0 %v287
      %641 = vmatmul.mubr.f32.gmra.mxu0 %v286
      %v642 = vpop.f32.mrf.mxu0
      %v643 = vadd.f32 %v369, %v642
      %v644 = vpop.f32.mrf.mxu0
      %645 = vmatprep.mubr.f32.mxu0 %v289
      %646 = vmatmul.mubr.f32.gmra.mxu0 %v288
      %v647 = vpop.f32.mrf.mxu0
      %v648 = vadd.f32 %v369, %v647
      %v649 = vpop.f32.mrf.mxu0
      %650 = vmatprep.mubr.f32.mxu0 %v291
      %651 = vmatmul.mubr.f32.gmra.mxu0 %v290
      %v652 = vpop.f32.mrf.mxu0
      %v653 = vadd.f32 %v369, %v652
      %v654 = vpop.f32.mrf.mxu0
      %655 = vmatprep.mubr.f32.mxu0 %v293
      %656 = vmatmul.mubr.f32.gmra.mxu0 %v292
      %v657 = vpop.f32.mrf.mxu0
      %v658 = vadd.f32 %v369, %v657
      %v659 = vpop.f32.mrf.mxu0
      %660 = vmatprep.mubr.f32.mxu0 %v295
      %661 = vmatmul.mubr.f32.gmra.mxu0 %v294
      %v662 = vpop.f32.mrf.mxu0
      %v663 = vadd.f32 %v369, %v662
      %v664 = vpop.f32.mrf.mxu0
      %665 = vmatprep.mubr.f32.mxu0 %v297
      %666 = vmatmul.mubr.f32.gmra.mxu0 %v296
      %v667 = vpop.f32.mrf.mxu0
      %v668 = vadd.f32 %v369, %v667
      %v669 = vpop.f32.mrf.mxu0
      %670 = vmatprep.mubr.f32.mxu0 %v299
      %671 = vmatmul.mubr.f32.gmra.mxu0 %v298
      %v672 = vpop.f32.mrf.mxu0
      %v673 = vadd.f32 %v369, %v672
      %v674 = vpop.f32.mrf.mxu0
      %675 = vmatprep.mubr.f32.mxu0 %v301
      %676 = vmatmul.mubr.f32.gmra.mxu0 %v300
      %v677 = vpop.f32.mrf.mxu0
      %v678 = vadd.f32 %v369, %v677
      %v679 = vpop.f32.mrf.mxu0
      %680 = vmatprep.mubr.f32.mxu0 %v303
      %681 = vmatmul.mubr.f32.gmra.mxu0 %v302
      %v682 = vpop.f32.mrf.mxu0
      %v683 = vadd.f32 %v369, %v682
      %v684 = vpop.f32.mrf.mxu0
      %685 = vmatprep.mubr.f32.mxu0 %v305
      %686 = vmatmul.mubr.f32.gmra.mxu0 %v304
      %v687 = vpop.f32.mrf.mxu0
      %v688 = vadd.f32 %v369, %v687
      %v689 = vpop.f32.mrf.mxu0
      %690 = vmatprep.mubr.f32.mxu0 %v307
      %691 = vmatmul.mubr.f32.gmra.mxu0 %v306
      %v692 = vpop.f32.mrf.mxu0
      %v693 = vadd.f32 %v369, %v692
      %v694 = vpop.f32.mrf.mxu0
      %695 = vmatprep.mubr.f32.mxu0 %v309
      %696 = vmatmul.mubr.f32.gmra.mxu0 %v308
      %v697 = vpop.f32.mrf.mxu0
      %v698 = vadd.f32 %v369, %v697
      %v699 = vpop.f32.mrf.mxu0
      %700 = vmatprep.mubr.f32.mxu0 %v311
      %701 = vmatmul.mubr.f32.gmra.mxu0 %v310
      %v702 = vpop.f32.mrf.mxu0
      %v703 = vadd.f32 %v369, %v702
      %v704 = vpop.f32.mrf.mxu0
      %705 = vmatprep.mubr.f32.mxu0 %v313
      %706 = vmatmul.mubr.f32.gmra.mxu0 %v312
      %v707 = vpop.f32.mrf.mxu0
      %v708 = vadd.f32 %v369, %v707
      %v709 = vpop.f32.mrf.mxu0
      %710 = vmatprep.mubr.f32.mxu0 %v315
      %711 = vmatmul.mubr.f32.gmra.mxu0 %v314
      %v712 = vpop.f32.mrf.mxu0
      %v713 = vadd.f32 %v369, %v712
      %v714 = vpop.f32.mrf.mxu0
      %715 = vmatprep.mubr.f32.mxu0 %v317
      %716 = vmatmul.mubr.f32.gmra.mxu0 %v316
      %v717 = vpop.f32.mrf.mxu0
      %v718 = vadd.f32 %v369, %v717
      %v719 = vpop.f32.mrf.mxu0
      %720 = vmatprep.mubr.f32.mxu0 %v319
      %721 = vmatmul.mubr.f32.gmra.mxu0 %v318
      %v722 = vpop.f32.mrf.mxu0
      %v723 = vadd.f32 %v369, %v722
      %v724 = vpop.f32.mrf.mxu0
      %725 = vmatprep.mubr.f32.mxu0 %v321
      %726 = vmatmul.mubr.f32.gmra.mxu0 %v320
      %v727 = vpop.f32.mrf.mxu0
      %v728 = vadd.f32 %v369, %v727
      %v729 = vpop.f32.mrf.mxu0
      %730 = vmatprep.mubr.f32.mxu0 %v323
      %731 = vmatmul.mubr.f32.gmra.mxu0 %v322
      %v732 = vpop.f32.mrf.mxu0
      %v733 = vadd.f32 %v369, %v732
      %v734 = vpop.f32.mrf.mxu0
      %735 = vmatprep.mubr.f32.mxu0 %v325
      %736 = vmatmul.mubr.f32.gmra.mxu0 %v324
      %v737 = vpop.f32.mrf.mxu0
      %v738 = vadd.f32 %v369, %v737
      %v739 = vpop.f32.mrf.mxu0
      %740 = vmatprep.mubr.f32.mxu0 %v327
      %741 = vmatmul.mubr.f32.gmra.mxu0 %v326
      %v742 = vpop.f32.mrf.mxu0
      %v743 = vadd.f32 %v369, %v742
      %v744 = vpop.f32.mrf.mxu0
      %745 = vmatprep.mubr.f32.mxu0 %v329
      %746 = vmatmul.mubr.f32.gmra.mxu0 %v328
      %v747 = vpop.f32.mrf.mxu0
      %v748 = vadd.f32 %v369, %v747
      %v749 = vpop.f32.mrf.mxu0
      %750 = vmatprep.mubr.f32.mxu0 %v331
      %751 = vmatmul.mubr.f32.gmra.mxu0 %v330
      %v752 = vpop.f32.mrf.mxu0
      %v753 = vadd.f32 %v369, %v752
      %v754 = vpop.f32.mrf.mxu0
      %755 = vdwg.mxu0
      %v756 = vtanh.pop %v438
      %v757 = vtanh.pop %v443
      %v758 = vtanh.pop %v448
      %v759 = vtanh.pop %v453
      %v760 = vtanh.pop %v458
      %v761 = vtanh.pop %v463
      %v762 = vtanh.pop %v468
      %v763 = vtanh.pop %v473
      %v764 = vtanh.pop %v478
      %v765 = vtanh.pop %v483
      %v766 = vtanh.pop %v488
      %v767 = vtanh.pop %v493
      %v768 = vtanh.pop %v498
      %v769 = vtanh.pop %v503
      %v770 = vtanh.pop %v508
      %v771 = vtanh.pop %v513
      %v772 = vtanh.pop %v518
      %v773 = vtanh.pop %v523
      %v774 = vtanh.pop %v528
      %v775 = vtanh.pop %v533
      %v776 = vtanh.pop %v538
      %v777 = vtanh.pop %v543
      %v778 = vtanh.pop %v548
      %v779 = vtanh.pop %v553
      %v780 = vtanh.pop %v558
      %v781 = vtanh.pop %v563
      %v782 = vtanh.pop %v568
      %v783 = vtanh.pop %v573
      %v784 = vtanh.pop %v578
      %v785 = vtanh.pop %v583
      %v786 = vtanh.pop %v588
      %v787 = vtanh.pop %v593
      %v788 = vtanh.pop %v598
      %v789 = vtanh.pop %v603
      %v790 = vtanh.pop %v608
      %v791 = vtanh.pop %v613
      %v792 = vtanh.pop %v618
      %v793 = vtanh.pop %v623
      %v794 = vtanh.pop %v628
      %v795 = vtanh.pop %v633
      %v796 = vtanh.pop %v638
      %v797 = vtanh.pop %v643
      %v798 = vtanh.pop %v648
      %v799 = vtanh.pop %v653
      %v800 = vtanh.pop %v658
      %v801 = vtanh.pop %v663
      %v802 = vtanh.pop %v668
      %v803 = vtanh.pop %v673
      %v804 = vtanh.pop %v678
      %v805 = vtanh.pop %v683
      %v806 = vtanh.pop %v688
      %v807 = vtanh.pop %v693
      %v808 = vtanh.pop %v698
      %v809 = vtanh.pop %v703
      %v810 = vtanh.pop %v708
      %v811 = vtanh.pop %v713
      %v812 = vtanh.pop %v718
      %v813 = vtanh.pop %v723
      %v814 = vtanh.pop %v728
      %v815 = vtanh.pop %v733
      %v816 = vtanh.pop %v738
      %v817 = vtanh.pop %v743
      %v818 = vtanh.pop %v748
      %v819 = vtanh.pop %v753
      %v820 = vld [vmem:[%s3] sm:$0x1]
      %v822 = vlaneseq
      %v823 = vshrl.u32 %v822, 7
      %v824 = vsub.s32 0, %v823
      %v825 = vrot.slane %v820, %v824
      %v827 = vmul.f32 %v756, %v825
      %v828 = vmul.f32 %v757, %v825
      %v829 = vmul.f32 %v758, %v825
      %v830 = vmul.f32 %v759, %v825
      %v831 = vmul.f32 %v760, %v825
      %v832 = vmul.f32 %v761, %v825
      %v833 = vmul.f32 %v762, %v825
      %v834 = vmul.f32 %v763, %v825
      %v835 = vmul.f32 %v764, %v825
      %v836 = vmul.f32 %v765, %v825
      %v837 = vmul.f32 %v766, %v825
      %v838 = vmul.f32 %v767, %v825
      %v839 = vmul.f32 %v768, %v825
      %v840 = vmul.f32 %v769, %v825
      %v841 = vmul.f32 %v770, %v825
      %v842 = vmul.f32 %v771, %v825
      %v843 = vmul.f32 %v772, %v825
      %v844 = vmul.f32 %v773, %v825
      %v845 = vmul.f32 %v774, %v825
      %v846 = vmul.f32 %v775, %v825
      %v847 = vmul.f32 %v776, %v825
      %v848 = vmul.f32 %v777, %v825
      %v849 = vmul.f32 %v778, %v825
      %v850 = vmul.f32 %v779, %v825
      %v851 = vmul.f32 %v780, %v825
      %v852 = vmul.f32 %v781, %v825
      %v853 = vmul.f32 %v782, %v825
      %v854 = vmul.f32 %v783, %v825
      %v855 = vmul.f32 %v784, %v825
      %v856 = vmul.f32 %v785, %v825
      %v857 = vmul.f32 %v786, %v825
      %v858 = vmul.f32 %v787, %v825
      %v859 = vmul.f32 %v788, %v825
      %v860 = vmul.f32 %v789, %v825
      %v861 = vmul.f32 %v790, %v825
      %v862 = vmul.f32 %v791, %v825
      %v863 = vmul.f32 %v792, %v825
      %v864 = vmul.f32 %v793, %v825
      %v865 = vmul.f32 %v794, %v825
      %v866 = vmul.f32 %v795, %v825
      %v867 = vmul.f32 %v796, %v825
      %v868 = vmul.f32 %v797, %v825
      %v869 = vmul.f32 %v798, %v825
      %v870 = vmul.f32 %v799, %v825
      %v871 = vmul.f32 %v800, %v825
      %v872 = vmul.f32 %v801, %v825
      %v873 = vmul.f32 %v802, %v825
      %v874 = vmul.f32 %v803, %v825
      %v875 = vmul.f32 %v804, %v825
      %v876 = vmul.f32 %v805, %v825
      %v877 = vmul.f32 %v806, %v825
      %v878 = vmul.f32 %v807, %v825
      %v879 = vmul.f32 %v808, %v825
      %v880 = vmul.f32 %v809, %v825
      %v881 = vmul.f32 %v810, %v825
      %v882 = vmul.f32 %v811, %v825
      %v883 = vmul.f32 %v812, %v825
      %v884 = vmul.f32 %v813, %v825
      %v885 = vmul.f32 %v814, %v825
      %v886 = vmul.f32 %v815, %v825
      %v887 = vmul.f32 %v816, %v825
      %v888 = vmul.f32 %v817, %v825
      %v889 = vmul.f32 %v818, %v825
      %v890 = vmul.f32 %v819, %v825
      %891 = vadd.xlane.f32.xlu0 %v827
      %v892 = vpop.xlane.xlu0 %891
      %893 = vadd.xlane.f32.xlu0 %v828
      %v894 = vpop.xlane.xlu0 %893
      %895 = vadd.xlane.f32.xlu0 %v829
      %v896 = vpop.xlane.xlu0 %895
      %897 = vadd.xlane.f32.xlu0 %v830
      %v898 = vpop.xlane.xlu0 %897
      %899 = vadd.xlane.f32.xlu0 %v831
      %v900 = vpop.xlane.xlu0 %899
      %901 = vadd.xlane.f32.xlu0 %v832
      %v902 = vpop.xlane.xlu0 %901
      %903 = vadd.xlane.f32.xlu0 %v833
      %v904 = vpop.xlane.xlu0 %903
      %905 = vadd.xlane.f32.xlu0 %v834
      %v906 = vpop.xlane.xlu0 %905
      %907 = vadd.xlane.f32.xlu0 %v835
      %v908 = vpop.xlane.xlu0 %907
      %909 = vadd.xlane.f32.xlu0 %v836
      %v910 = vpop.xlane.xlu0 %909
      %911 = vadd.xlane.f32.xlu0 %v837
      %v912 = vpop.xlane.xlu0 %911
      %913 = vadd.xlane.f32.xlu0 %v838
      %v914 = vpop.xlane.xlu0 %913
      %915 = vadd.xlane.f32.xlu0 %v839
      %v916 = vpop.xlane.xlu0 %915
      %917 = vadd.xlane.f32.xlu0 %v840
      %v918 = vpop.xlane.xlu0 %917
      %919 = vadd.xlane.f32.xlu0 %v841
      %v920 = vpop.xlane.xlu0 %919
      %921 = vadd.xlane.f32.xlu0 %v842
      %v922 = vpop.xlane.xlu0 %921
      %923 = vadd.xlane.f32.xlu0 %v843
      %v924 = vpop.xlane.xlu0 %923
      %925 = vadd.xlane.f32.xlu0 %v844
      %v926 = vpop.xlane.xlu0 %925
      %927 = vadd.xlane.f32.xlu0 %v845
      %v928 = vpop.xlane.xlu0 %927
      %929 = vadd.xlane.f32.xlu0 %v846
      %v930 = vpop.xlane.xlu0 %929
      %931 = vadd.xlane.f32.xlu0 %v847
      %v932 = vpop.xlane.xlu0 %931
      %933 = vadd.xlane.f32.xlu0 %v848
      %v934 = vpop.xlane.xlu0 %933
      %935 = vadd.xlane.f32.xlu0 %v849
      %v936 = vpop.xlane.xlu0 %935
      %937 = vadd.xlane.f32.xlu0 %v850
      %v938 = vpop.xlane.xlu0 %937
      %939 = vadd.xlane.f32.xlu0 %v851
      %v940 = vpop.xlane.xlu0 %939
      %941 = vadd.xlane.f32.xlu0 %v852
      %v942 = vpop.xlane.xlu0 %941
      %943 = vadd.xlane.f32.xlu0 %v853
      %v944 = vpop.xlane.xlu0 %943
      %945 = vadd.xlane.f32.xlu0 %v854
      %v946 = vpop.xlane.xlu0 %945
      %947 = vadd.xlane.f32.xlu0 %v855
      %v948 = vpop.xlane.xlu0 %947
      %949 = vadd.xlane.f32.xlu0 %v856
      %v950 = vpop.xlane.xlu0 %949
      %951 = vadd.xlane.f32.xlu0 %v857
      %v952 = vpop.xlane.xlu0 %951
      %953 = vadd.xlane.f32.xlu0 %v858
      %v954 = vpop.xlane.xlu0 %953
      %955 = vadd.xlane.f32.xlu0 %v859
      %v956 = vpop.xlane.xlu0 %955
      %957 = vadd.xlane.f32.xlu0 %v860
      %v958 = vpop.xlane.xlu0 %957
      %959 = vadd.xlane.f32.xlu0 %v861
      %v960 = vpop.xlane.xlu0 %959
      %961 = vadd.xlane.f32.xlu0 %v862
      %v962 = vpop.xlane.xlu0 %961
      %963 = vadd.xlane.f32.xlu0 %v863
      %v964 = vpop.xlane.xlu0 %963
      %965 = vadd.xlane.f32.xlu0 %v864
      %v966 = vpop.xlane.xlu0 %965
      %967 = vadd.xlane.f32.xlu0 %v865
      %v968 = vpop.xlane.xlu0 %967
      %969 = vadd.xlane.f32.xlu0 %v866
      %v970 = vpop.xlane.xlu0 %969
      %971 = vadd.xlane.f32.xlu0 %v867
      %v972 = vpop.xlane.xlu0 %971
      %973 = vadd.xlane.f32.xlu0 %v868
      %v974 = vpop.xlane.xlu0 %973
      %975 = vadd.xlane.f32.xlu0 %v869
      %v976 = vpop.xlane.xlu0 %975
      %977 = vadd.xlane.f32.xlu0 %v870
      %v978 = vpop.xlane.xlu0 %977
      %979 = vadd.xlane.f32.xlu0 %v871
      %v980 = vpop.xlane.xlu0 %979
      %981 = vadd.xlane.f32.xlu0 %v872
      %v982 = vpop.xlane.xlu0 %981
      %983 = vadd.xlane.f32.xlu0 %v873
      %v984 = vpop.xlane.xlu0 %983
      %985 = vadd.xlane.f32.xlu0 %v874
      %v986 = vpop.xlane.xlu0 %985
      %987 = vadd.xlane.f32.xlu0 %v875
      %v988 = vpop.xlane.xlu0 %987
      %989 = vadd.xlane.f32.xlu0 %v876
      %v990 = vpop.xlane.xlu0 %989
      %991 = vadd.xlane.f32.xlu0 %v877
      %v992 = vpop.xlane.xlu0 %991
      %993 = vadd.xlane.f32.xlu0 %v878
      %v994 = vpop.xlane.xlu0 %993
      %995 = vadd.xlane.f32.xlu0 %v879
      %v996 = vpop.xlane.xlu0 %995
      %997 = vadd.xlane.f32.xlu0 %v880
      %v998 = vpop.xlane.xlu0 %997
      %999 = vadd.xlane.f32.xlu0 %v881
      %v1000 = vpop.xlane.xlu0 %999
      %1001 = vadd.xlane.f32.xlu0 %v882
      %v1002 = vpop.xlane.xlu0 %1001
      %1003 = vadd.xlane.f32.xlu0 %v883
      %v1004 = vpop.xlane.xlu0 %1003
      %1005 = vadd.xlane.f32.xlu0 %v884
      %v1006 = vpop.xlane.xlu0 %1005
      %1007 = vadd.xlane.f32.xlu0 %v885
      %v1008 = vpop.xlane.xlu0 %1007
      %1009 = vadd.xlane.f32.xlu0 %v886
      %v1010 = vpop.xlane.xlu0 %1009
      %1011 = vadd.xlane.f32.xlu0 %v887
      %v1012 = vpop.xlane.xlu0 %1011
      %1013 = vadd.xlane.f32.xlu0 %v888
      %v1014 = vpop.xlane.xlu0 %1013
      %1015 = vadd.xlane.f32.xlu0 %v889
      %v1016 = vpop.xlane.xlu0 %1015
      %1017 = vadd.xlane.f32.xlu0 %v890
      %v1018 = vpop.xlane.xlu0 %1017
      %vm1019 = vcmask 7168
      %1020 = vst.msk [vmem:[%s202] sm:$0xff] %vm1019, %v892
      %1021 = vst.msk [vmem:[%s202 + $0x8] sm:$0xff] %vm1019, %v894
      %1022 = vst.msk [vmem:[%s202 + $0x10] sm:$0xff] %vm1019, %v896
      %1023 = vst.msk [vmem:[%s202 + $0x18] sm:$0xff] %vm1019, %v898
      %1024 = vst.msk [vmem:[%s202 + $0x20] sm:$0xff] %vm1019, %v900
      %1025 = vst.msk [vmem:[%s202 + $0x28] sm:$0xff] %vm1019, %v902
      %1026 = vst.msk [vmem:[%s202 + $0x30] sm:$0xff] %vm1019, %v904
      %1027 = vst.msk [vmem:[%s202 + $0x38] sm:$0xff] %vm1019, %v906
      %1028 = vst.msk [vmem:[%s202 + $0x40] sm:$0xff] %vm1019, %v908
      %1029 = vst.msk [vmem:[%s202 + $0x48] sm:$0xff] %vm1019, %v910
      %1030 = vst.msk [vmem:[%s202 + $0x50] sm:$0xff] %vm1019, %v912
      %1031 = vst.msk [vmem:[%s202 + $0x58] sm:$0xff] %vm1019, %v914
      %1032 = vst.msk [vmem:[%s202 + $0x60] sm:$0xff] %vm1019, %v916
      %1033 = vst.msk [vmem:[%s202 + $0x68] sm:$0xff] %vm1019, %v918
      %1034 = vst.msk [vmem:[%s202 + $0x70] sm:$0xff] %vm1019, %v920
      %1035 = vst.msk [vmem:[%s202 + $0x78] sm:$0xff] %vm1019, %v922
      %1036 = vst.msk [vmem:[%s202 + $0x80] sm:$0xff] %vm1019, %v924
      %1037 = vst.msk [vmem:[%s202 + $0x88] sm:$0xff] %vm1019, %v926
      %1038 = vst.msk [vmem:[%s202 + $0x90] sm:$0xff] %vm1019, %v928
      %1039 = vst.msk [vmem:[%s202 + $0x98] sm:$0xff] %vm1019, %v930
      %1040 = vst.msk [vmem:[%s202 + $0xa0] sm:$0xff] %vm1019, %v932
      %1041 = vst.msk [vmem:[%s202 + $0xa8] sm:$0xff] %vm1019, %v934
      %1042 = vst.msk [vmem:[%s202 + $0xb0] sm:$0xff] %vm1019, %v936
      %1043 = vst.msk [vmem:[%s202 + $0xb8] sm:$0xff] %vm1019, %v938
      %1044 = vst.msk [vmem:[%s202 + $0xc0] sm:$0xff] %vm1019, %v940
      %1045 = vst.msk [vmem:[%s202 + $0xc8] sm:$0xff] %vm1019, %v942
      %1046 = vst.msk [vmem:[%s202 + $0xd0] sm:$0xff] %vm1019, %v944
      %1047 = vst.msk [vmem:[%s202 + $0xd8] sm:$0xff] %vm1019, %v946
      %1048 = vst.msk [vmem:[%s202 + $0xe0] sm:$0xff] %vm1019, %v948
      %1049 = vst.msk [vmem:[%s202 + $0xe8] sm:$0xff] %vm1019, %v950
      %1050 = vst.msk [vmem:[%s202 + $0xf0] sm:$0xff] %vm1019, %v952
      %1051 = vst.msk [vmem:[%s202 + $0xf8] sm:$0xff] %vm1019, %v954
      %1052 = vst.msk [vmem:[%s202 + $0x100] sm:$0xff] %vm1019, %v956
      %1053 = vst.msk [vmem:[%s202 + $0x108] sm:$0xff] %vm1019, %v958
      %1054 = vst.msk [vmem:[%s202 + $0x110] sm:$0xff] %vm1019, %v960
      %1055 = vst.msk [vmem:[%s202 + $0x118] sm:$0xff] %vm1019, %v962
      %1056 = vst.msk [vmem:[%s202 + $0x120] sm:$0xff] %vm1019, %v964
      %1057 = vst.msk [vmem:[%s202 + $0x128] sm:$0xff] %vm1019, %v966
      %1058 = vst.msk [vmem:[%s202 + $0x130] sm:$0xff] %vm1019, %v968
      %1059 = vst.msk [vmem:[%s202 + $0x138] sm:$0xff] %vm1019, %v970
      %1060 = vst.msk [vmem:[%s202 + $0x140] sm:$0xff] %vm1019, %v972
      %1061 = vst.msk [vmem:[%s202 + $0x148] sm:$0xff] %vm1019, %v974
      %1062 = vst.msk [vmem:[%s202 + $0x150] sm:$0xff] %vm1019, %v976
      %1063 = vst.msk [vmem:[%s202 + $0x158] sm:$0xff] %vm1019, %v978
      %1064 = vst.msk [vmem:[%s202 + $0x160] sm:$0xff] %vm1019, %v980
      %1065 = vst.msk [vmem:[%s202 + $0x168] sm:$0xff] %vm1019, %v982
      %1066 = vst.msk [vmem:[%s202 + $0x170] sm:$0xff] %vm1019, %v984
      %1067 = vst.msk [vmem:[%s202 + $0x178] sm:$0xff] %vm1019, %v986
      %1068 = vst.msk [vmem:[%s202 + $0x180] sm:$0xff] %vm1019, %v988
      %1069 = vst.msk [vmem:[%s202 + $0x188] sm:$0xff] %vm1019, %v990
      %1070 = vst.msk [vmem:[%s202 + $0x190] sm:$0xff] %vm1019, %v992
      %1071 = vst.msk [vmem:[%s202 + $0x198] sm:$0xff] %vm1019, %v994
      %1072 = vst.msk [vmem:[%s202 + $0x1a0] sm:$0xff] %vm1019, %v996
      %1073 = vst.msk [vmem:[%s202 + $0x1a8] sm:$0xff] %vm1019, %v998
      %1074 = vst.msk [vmem:[%s202 + $0x1b0] sm:$0xff] %vm1019, %v1000
      %1075 = vst.msk [vmem:[%s202 + $0x1b8] sm:$0xff] %vm1019, %v1002
      %1076 = vst.msk [vmem:[%s202 + $0x1c0] sm:$0xff] %vm1019, %v1004
      %1077 = vst.msk [vmem:[%s202 + $0x1c8] sm:$0xff] %vm1019, %v1006
      %1078 = vst.msk [vmem:[%s202 + $0x1d0] sm:$0xff] %vm1019, %v1008
      %1079 = vst.msk [vmem:[%s202 + $0x1d8] sm:$0xff] %vm1019, %v1010
      %1080 = vst.msk [vmem:[%s202 + $0x1e0] sm:$0xff] %vm1019, %v1012
      %1081 = vst.msk [vmem:[%s202 + $0x1e8] sm:$0xff] %vm1019, %v1014
      %1082 = vst.msk [vmem:[%s202 + $0x1f0] sm:$0xff] %vm1019, %v1016
      %1083 = vst.msk [vmem:[%s202 + $0x1f8] sm:$0xff] %vm1019, %v1018
      %s1084 = smul.u32 64, %s15
      %p1085 = scmp.lt.s32.totalorder %s1084, 191
      %s1086 = scalar_select %p1085, %s1084, 191
      %s1087 = smul.addr %s1086, 8
      %s1088 = scalar_lea.vmem %s4, %s1087
      // Predicated region
      $region37: #{semantic_attention.2} parent=35 // pred_check
        %p1089 = pneg %p122
      $region38: #{semantic_attention.2} parent=35 // pred_check_branch
        %1091 = sbr.rel (%p1089) target = $region40
      $region39: #{semantic_attention.2} parent=35 // pred_region
        %s1092 = smul.u32 64, %s15
      $region40: #{semantic_attention.2} parent=35 // pred_fallthru
        _
    $region36: #{semantic_attention.2} parent=5 // pred_fallthru
      _
    %p1093 = scmp.le.s32.totalorder 2, %s10
    // Predicated region
    $region41: #{semantic_attention.2} parent=5 // pred_check
      %p1094 = pneg %p1093
    $region42: #{semantic_attention.2} parent=5 // pred_check_branch
      %1096 = sbr.rel (%p1094) target = $region44
    $region43: #{semantic_attention.2} parent=5 // pred_region
      %s1097 = ssub.s32 %s10, 2
      // Predicated region
      $region45: #{semantic_attention.2} parent=43 // pred_check
        %p1098 = pneg %p128
      $region46: #{semantic_attention.2} parent=43 // pred_check_branch
        %1100 = sbr.rel (%p1098) target = $region48
      $region47: #{semantic_attention.2} parent=43 // pred_region
        %s1101 = smul.u32 64, %s16
        %p1102 = scmp.lt.s32.totalorder %s1101, 191
        %s1103 = scalar_select %p1102, %s1101, 191
        %s1104 = smul.addr %s1103, 8
        %s1105 = scalar_lea.vmem %s4, %s1104
      $region48: #{semantic_attention.2} parent=43 // pred_fallthru
        _
    $region44: #{semantic_attention.2} parent=5 // pred_fallthru
      _
  $region6: #{semantic_attention.2} parent=0 // loop_footer
    %s14 = sadd.s32 1, %s10
  $region7: #{semantic_attention.2} parent=0 // loop_footer_branch
    %9 = sbr.rel target = $region3
  $region8: #{semantic_attention.2} parent=0 // loop_exit
    _

// kernel: semantic_attention.3
$region0: #{semantic_attention.3}
  #allocation0 [shape = 'u32[]', space=smem, size = 0x4, offset = 0x4, fixed_abs, tag = 'smem constant byte address 0x4 - core index']
  #allocation1 [shape = 'u32[144,128]{1,0:T(1,128)}', space=vmem, size = 0x12000, scoped, tag = 'internal scratch']
  %s0 = inlined_call_operand.vmem [shape: f32[3], index: 0, kind: input, shape index: {}]
  %s1 = inlined_call_operand.vmem [shape: f32[512,3,256], index: 1, kind: input, shape index: {}]
  %s2 = inlined_call_operand.hbm [shape: f32[512,256], index: 2, kind: output, shape index: {}]
  %s3 = sld [smem:[#allocation0]]
  $region45: #{semantic_attention.3} parent=0
    _
  %s5 = ssub.s32 1, %s3
  %s6 = scalar_select 0, %s5, %s3
  $region1: #{semantic_attention.3} parent=0
    #allocation2 [shape = 'u8[512]{0}', space=smem, size = 0x200, scoped, tag = 'input window, operand 0, single buffered']
    #allocation3 [shape = 's32[2]{0}', space=sflag, size = 0x8, scoped, tag = 'scoped memory for semantic_attention.3']
    #allocation4 [shape = 's32[2]{0}', space=sflag, size = 0x8, scoped, tag = 'scoped memory for semantic_attention.3']
    #allocation5 [shape = 'u8[524288]{0}', space=vmem, size = 0x80000, scoped, tag = 'output window, operand 0']
    %7 = vsyncpa [#allocation4], 0
    %8 = vsyncpa [#allocation3], 0
    %s9 = scalar_lea.sflag [#allocation3], 1
    %10 = vsyncpa %s9, 0
    loop: start=0, step=1, limit=4
    $region2: #{semantic_attention.3} parent=1 // loop_pre_header
      _
    $region3: #{semantic_attention.3} parent=1 // loop_header
      %s12 = sphi 0, %s16
      %p13 = scmp.ge.s32.totalorder %s12, 4
      %s20 = sphi 0, %s20
      %s22 = sphi 0, %s20
      %s23 = sphi 0, %s22
      %s37 = sphi 0, %s23
      %s43 = sphi 0, %s45
      %s46 = sphi 0, %s43
      %s47 = sphi 0, %s46
      %s63 = sphi 0, %s47
      %s69 = sphi 0, %s71
      %s72 = sphi 0, %s69
      %s73 = sphi 0, %s72
      %s89 = sphi 0, %s73
    $region4: #{semantic_attention.3} parent=1 // loop_header_branch
      %15 = sbr.rel (%p13) target = $region8
    $region5: #{semantic_attention.3} parent=1 // loop_body
      %s17 = ssub.s32 %s12, 1
      %s18 = ssub.s32 %s12, 2
      %s19 = sadd.s32 %s12, 1
      %s21 = sadd.s32 %s20, 1
      %p24 = scmp.eq.s32.totalorder %s12, 1
      %p25 = scmp.ne.s32.totalorder %s20, %s22
      %p26 = scmp.eq.s32.totalorder %s12, 0
      %p27 = por %p25, %p26
      %p28 = scmp.ne.s32.totalorder %s20, %s22
      %p29 = scmp.eq.s32.totalorder %s17, 1
      %p30 = por %p28, %p29
      %p31 = scmp.ne.s32.totalorder %s22, %s23
      %p32 = scmp.eq.s32.totalorder %s17, 0
      %p33 = por %p31, %p32
      %p34 = scmp.ne.s32.totalorder %s22, %s23
      %p35 = scmp.eq.s32.totalorder %s18, 1
      %p36 = por %p34, %p35
      %p38 = scmp.ne.s32.totalorder %s23, %s37
      %p39 = scmp.eq.s32.totalorder %s18, 0
      %p40 = por %p38, %p39
      %s41 = ssub.s32 %s12, %s19
      %p42 = scmp.eq.s32.totalorder %s41, 0
      %s44 = sadd.s32 %s43, 1
      %s45 = scalar_select %p42, %s43, %s44
      %p48 = pneg %p42
      %p49 = scmp.eq.s32.totalorder %s12, 1
      %p50 = por %p48, %p49
      %p51 = scmp.ne.s32.totalorder %s43, %s46
      %p52 = scmp.eq.s32.totalorder %s12, 0
      %p53 = por %p51, %p52
      %p54 = scmp.ne.s32.totalorder %s43, %s46
      %p55 = scmp.eq.s32.totalorder %s17, 1
      %p56 = por %p54, %p55
      %p57 = scmp.ne.s32.totalorder %s46, %s47
      %p58 = scmp.eq.s32.totalorder %s17, 0
      %p59 = por %p57, %p58
      %p60 = scmp.ne.s32.totalorder %s46, %s47
      %p61 = scmp.eq.s32.totalorder %s18, 1
      %p62 = por %p60, %p61
      %p64 = scmp.ne.s32.totalorder %s47, %s63
      %p65 = scmp.eq.s32.totalorder %s18, 0
      %p66 = por %p64, %p65
      %s67 = ssub.s32 %s12, %s19
      %p68 = scmp.eq.s32.totalorder %s67, 0
      %s70 = sadd.s32 %s69, 1
      %s71 = scalar_select %p68, %s69, %s70
      %p74 = pneg %p68
      %p75 = scmp.eq.s32.totalorder %s12, 1
      %p76 = por %p74, %p75
      %p77 = scmp.ne.s32.totalorder %s69, %s72
      %p78 = scmp.eq.s32.totalorder %s12, 0
      %p79 = por %p77, %p78
      %p80 = scmp.ne.s32.totalorder %s69, %s72
      %p81 = scmp.eq.s32.totalorder %s17, 1
      %p82 = por %p80, %p81
      %p83 = scmp.ne.s32.totalorder %s72, %s73
      %p84 = scmp.eq.s32.totalorder %s17, 0
      %p85 = por %p83, %p84
      %p86 = scmp.ne.s32.totalorder %s72, %s73
      %p87 = scmp.eq.s32.totalorder %s18, 1
      %p88 = por %p86, %p87
      %p90 = scmp.ne.s32.totalorder %s73, %s89
      %p91 = scmp.eq.s32.totalorder %s18, 0
      %p92 = por %p90, %p91
      %p93 = scmp.le.s32.totalorder 1, %s12
      %p94 = scmp.lt.s32.totalorder %s12, 3
      %p95 = pnand %p93, %p94
      %p96 = pneg %p95
      // Predicated region
      $region9: #{semantic_attention.3} parent=5 // pred_check
        _
      $region10: #{semantic_attention.3} parent=5 // pred_check_branch
        %98 = sbr.rel (%p95) target = $region12
      $region11: #{semantic_attention.3} parent=5 // pred_region
        %s99 = ssub.s32 %s12, 1
        // Predicated region
        $region13: #{semantic_attention.3} parent=11 // pred_check
          %p100 = pneg %p33
        $region14: #{semantic_attention.3} parent=11 // pred_check_branch
          %102 = sbr.rel (%p100) target = $region16
        $region15: #{semantic_attention.3} parent=11 // pred_region
          %s104 = ssub.s32 16, 16
          %105 = vsyncadd [#allocation4], %s104
          %s107 = sshll.u32 %s0, 4
          %s108 = int_to_ptr.vmem [resolvable:$true] %s107
          %110 = dma.vmem_to_smem %s108, 16, [#allocation2], [#allocation4]
        $region16: #{semantic_attention.3} parent=11 // pred_fallthru
          _
      $region12: #{semantic_attention.3} parent=5 // pred_fallthru
        _
      %p111 = scmp.lt.s32.totalorder %s12, 2
      // Predicated region
      $region17: #{semantic_attention.3} parent=5 // pred_check
        %p112 = pneg %p111
      $region18: #{semantic_attention.3} parent=5 // pred_check_branch
        %114 = sbr.rel (%p112) target = $region20
      $region19: #{semantic_attention.3} parent=5 // pred_region
        // Predicated region
        $region21: #{semantic_attention.3} parent=19 // pred_check
          %p115 = pneg %p53
        $region22: #{semantic_attention.3} parent=19 // pred_check_branch
          %117 = sbr.rel (%p115) target = $region24
        $region23: #{semantic_attention.3} parent=19 // pred_region
          %s118 = smul.u32 256, %s12
          %p119 = scmp.lt.s32.totalorder %s118, 511
          %s120 = scalar_select %p119, %s118, 511
          %s121 = smul.addr %s120, 2
          %s122 = smul.addr %s121, 4
          %s123 = scalar_lea.vmem %s1, %s122
          %s124 = smul.u32 256, %s12
        $region24: #{semantic_attention.3} parent=19 // pred_fallthru
          _
      $region20: #{semantic_attention.3} parent=5 // pred_fallthru
        _
      %p125 = scmp.le.s32.totalorder 1, %s12
      %p126 = scmp.lt.s32.totalorder %s12, 3
      %p127 = pnand %p125, %p126
      %p128 = pneg %p127
      // Predicated region
      $region25: #{semantic_attention.3} parent=5 // pred_check
        _
      $region26: #{semantic_attention.3} parent=5 // pred_check_branch
        %130 = sbr.rel (%p127) target = $region28
      $region27: #{semantic_attention.3} parent=5 // pred_region
        %s131 = ssub.s32 %s12, 1
        // Predicated region
        $region29: #{semantic_attention.3} parent=27 // pred_check
          %p132 = pneg %p33
        $region30: #{semantic_attention.3} parent=27 // pred_check_branch
          %134 = sbr.rel (%p132) target = $region32
        $region31: #{semantic_attention.3} parent=27 // pred_region
          %135 = dma.done [#allocation4], 16
        $region32: #{semantic_attention.3} parent=27 // pred_fallthru
          _
        %136 = sfence
        %p137 = pneg %p33
        %p138 = pneg %p30
        %s139 = smul.u32 256, %s17
        %p140 = scmp.lt.s32.totalorder %s139, 511
        %s141 = scalar_select %p140, %s139, 511
        %s142 = smul.addr %s141, 2
        %s143 = smul.addr %s142, 4
        %s144 = scalar_lea.vmem %s1, %s143
        %p145 = pneg %p59
        %p146 = pneg %p56
        %p147 = pneg %p85
        %p148 = pneg %p82
        %s149 = sand.u32 %s72, 1
        %s150 = scalar_lea.sflag [#allocation3], %s149
        %s151 = sand.u32 %s72, 1
        %s152 = smul.addr %s151, 512
        %s153 = scalar_lea.vmem [#allocation5], %s152
        %s154 = smul.u32 256, %s17
        %p155 = scmp.lt.s32.totalorder %s154, 511
        %s156 = scalar_select %p155, %s154, 511
        %s157 = smul.addr %s156, 2
        %s158 = smul.addr %s157, 4
        %s159 = scalar_lea.vmem %s1, %s158
        %s160 = smul.u32 256, %s17
        %s161 = smul.u32 32, %s17
        %v162 = vld [vmem:[%s159] sm:$0x77]
        %v163 = vld [vmem:[%s159 + $0x8] sm:$0x77]
        %v164 = vld [vmem:[%s159 + $0x10] sm:$0x77]
        %v165 = vld [vmem:[%s159 + $0x18] sm:$0x77]
        %v166 = vld [vmem:[%s159 + $0x20] sm:$0x77]
        %v167 = vld [vmem:[%s159 + $0x28] sm:$0x77]
        %v168 = vld [vmem:[%s159 + $0x30] sm:$0x77]
        %v169 = vld [vmem:[%s159 + $0x38] sm:$0x77]
        %v170 = vld [vmem:[%s159 + $0x40] sm:$0x77]
        %v171 = vld [vmem:[%s159 + $0x48] sm:$0x77]
        %v172 = vld [vmem:[%s159 + $0x50] sm:$0x77]
        %v173 = vld [vmem:[%s159 + $0x58] sm:$0x77]
        %v174 = vld [vmem:[%s159 + $0x60] sm:$0x77]
        %v175 = vld [vmem:[%s159 + $0x68] sm:$0x77]
        %v176 = vld [vmem:[%s159 + $0x70] sm:$0x77]
        %v177 = vld [vmem:[%s159 + $0x78] sm:$0x77]
        %v178 = vld [vmem:[%s159 + $0x80] sm:$0x77]
        %v179 = vld [vmem:[%s159 + $0x88] sm:$0x77]
        %v180 = vld [vmem:[%s159 + $0x90] sm:$0x77]
        %v181 = vld [vmem:[%s159 + $0x98] sm:$0x77]
        %v182 = vld [vmem:[%s159 + $0xa0] sm:$0x77]
        %v183 = vld [vmem:[%s159 + $0xa8] sm:$0x77]
        %v184 = vld [vmem:[%s159 + $0xb0] sm:$0x77]
        %v185 = vld [vmem:[%s159 + $0xb8] sm:$0x77]
        %v186 = vld [vmem:[%s159 + $0xc0] sm:$0x77]
        %v187 = vld [vmem:[%s159 + $0xc8] sm:$0x77]
        %v188 = vld [vmem:[%s159 + $0xd0] sm:$0x77]
        %v189 = vld [vmem:[%s159 + $0xd8] sm:$0x77]
        %v190 = vld [vmem:[%s159 + $0xe0] sm:$0x77]
        %v191 = vld [vmem:[%s159 + $0xe8] sm:$0x77]
        %v192 = vld [vmem:[%s159 + $0xf0] sm:$0x77]
        %v193 = vld [vmem:[%s159 + $0xf8] sm:$0x77]
        %v194 = vld [vmem:[%s159 + $0x100] sm:$0x77]
        %v195 = vld [vmem:[%s159 + $0x108] sm:$0x77]
        %v196 = vld [vmem:[%s159 + $0x110] sm:$0x77]
        %v197 = vld [vmem:[%s159 + $0x118] sm:$0x77]
        %v198 = vld [vmem:[%s159 + $0x120] sm:$0x77]
        %v199 = vld [vmem:[%s159 + $0x128] sm:$0x77]
        %v200 = vld [vmem:[%s159 + $0x130] sm:$0x77]
        %v201 = vld [vmem:[%s159 + $0x138] sm:$0x77]
        %v202 = vld [vmem:[%s159 + $0x140] sm:$0x77]
        %v203 = vld [vmem:[%s159 + $0x148] sm:$0x77]
        %v204 = vld [vmem:[%s159 + $0x150] sm:$0x77]
        %v205 = vld [vmem:[%s159 + $0x158] sm:$0x77]
        %v206 = vld [vmem:[%s159 + $0x160] sm:$0x77]
        %v207 = vld [vmem:[%s159 + $0x168] sm:$0x77]
        %v208 = vld [vmem:[%s159 + $0x170] sm:$0x77]
        %v209 = vld [vmem:[%s159 + $0x178] sm:$0x77]
        %v210 = vld [vmem:[%s159 + $0x180] sm:$0x77]
        %v211 = vld [vmem:[%s159 + $0x188] sm:$0x77]
        %v212 = vld [vmem:[%s159 + $0x190] sm:$0x77]
        %v213 = vld [vmem:[%s159 + $0x198] sm:$0x77]
        %v214 = vld [vmem:[%s159 + $0x1a0] sm:$0x77]
        %v215 = vld [vmem:[%s159 + $0x1a8] sm:$0x77]
        %v216 = vld [vmem:[%s159 + $0x1b0] sm:$0x77]
        %v217 = vld [vmem:[%s159 + $0x1b8] sm:$0x77]
        %v218 = vld [vmem:[%s159 + $0x1c0] sm:$0x77]
        %v219 = vld [vmem:[%s159 + $0x1c8] sm:$0x77]
        %v220 = vld [vmem:[%s159 + $0x1d0] sm:$0x77]
        %v221 = vld [vmem:[%s159 + $0x1d8] sm:$0x77]
        %v222 = vld [vmem:[%s159 + $0x1e0] sm:$0x77]
        %v223 = vld [vmem:[%s159 + $0x1e8] sm:$0x77]
        %v224 = vld [vmem:[%s159 + $0x1f0] sm:$0x77]
        %v225 = vld [vmem:[%s159 + $0x1f8] sm:$0x77]
        %v226 = vld [vmem:[%s159 + $0x200] sm:$0x77]
        %v227 = vld [vmem:[%s159 + $0x208] sm:$0x77]
        %v228 = vld [vmem:[%s159 + $0x210] sm:$0x77]
        %v229 = vld [vmem:[%s159 + $0x218] sm:$0x77]
        %v230 = vld [vmem:[%s159 + $0x220] sm:$0x77]
        %v231 = vld [vmem:[%s159 + $0x228] sm:$0x77]
        %v232 = vld [vmem:[%s159 + $0x230] sm:$0x77]
        %v233 = vld [vmem:[%s159 + $0x238] sm:$0x77]
        %v234 = vld [vmem:[%s159 + $0x240] sm:$0x77]
        %v235 = vld [vmem:[%s159 + $0x248] sm:$0x77]
        %v236 = vld [vmem:[%s159 + $0x250] sm:$0x77]
        %v237 = vld [vmem:[%s159 + $0x258] sm:$0x77]
        %v238 = vld [vmem:[%s159 + $0x260] sm:$0x77]
        %v239 = vld [vmem:[%s159 + $0x268] sm:$0x77]
        %v240 = vld [vmem:[%s159 + $0x270] sm:$0x77]
        %v241 = vld [vmem:[%s159 + $0x278] sm:$0x77]
        %v242 = vld [vmem:[%s159 + $0x280] sm:$0x77]
        %v243 = vld [vmem:[%s159 + $0x288] sm:$0x77]
        %v244 = vld [vmem:[%s159 + $0x290] sm:$0x77]
        %v245 = vld [vmem:[%s159 + $0x298] sm:$0x77]
        %v246 = vld [vmem:[%s159 + $0x2a0] sm:$0x77]
        %v247 = vld [vmem:[%s159 + $0x2a8] sm:$0x77]
        %v248 = vld [vmem:[%s159 + $0x2b0] sm:$0x77]
        %v249 = vld [vmem:[%s159 + $0x2b8] sm:$0x77]
        %v250 = vld [vmem:[%s159 + $0x2c0] sm:$0x77]
        %v251 = vld [vmem:[%s159 + $0x2c8] sm:$0x77]
        %v252 = vld [vmem:[%s159 + $0x2d0] sm:$0x77]
        %v253 = vld [vmem:[%s159 + $0x2d8] sm:$0x77]
        %v254 = vld [vmem:[%s159 + $0x2e0] sm:$0x77]
        %v255 = vld [vmem:[%s159 + $0x2e8] sm:$0x77]
        %v256 = vld [vmem:[%s159 + $0x2f0] sm:$0x77]
        %v257 = vld [vmem:[%s159 + $0x2f8] sm:$0x77]
        %v258 = vld [vmem:[%s159 + $0x300] sm:$0x77]
        %v259 = vld [vmem:[%s159 + $0x308] sm:$0x77]
        %v260 = vld [vmem:[%s159 + $0x310] sm:$0x77]
        %v261 = vld [vmem:[%s159 + $0x318] sm:$0x77]
        %v262 = vld [vmem:[%s159 + $0x320] sm:$0x77]
        %v263 = vld [vmem:[%s159 + $0x328] sm:$0x77]
        %v264 = vld [vmem:[%s159 + $0x330] sm:$0x77]
        %v265 = vld [vmem:[%s159 + $0x338] sm:$0x77]
        %v266 = vld [vmem:[%s159 + $0x340] sm:$0x77]
        %v267 = vld [vmem:[%s159 + $0x348] sm:$0x77]
        %v268 = vld [vmem:[%s159 + $0x350] sm:$0x77]
        %v269 = vld [vmem:[%s159 + $0x358] sm:$0x77]
        %v270 = vld [vmem:[%s159 + $0x360] sm:$0x77]
        %v271 = vld [vmem:[%s159 + $0x368] sm:$0x77]
        %v272 = vld [vmem:[%s159 + $0x370] sm:$0x77]
        %v273 = vld [vmem:[%s159 + $0x378] sm:$0x77]
        %v274 = vld [vmem:[%s159 + $0x380] sm:$0x77]
        %v275 = vld [vmem:[%s159 + $0x388] sm:$0x77]
        %v276 = vld [vmem:[%s159 + $0x390] sm:$0x77]
        %v277 = vld [vmem:[%s159 + $0x398] sm:$0x77]
        %v278 = vld [vmem:[%s159 + $0x3a0] sm:$0x77]
        %v279 = vld [vmem:[%s159 + $0x3a8] sm:$0x77]
        %v280 = vld [vmem:[%s159 + $0x3b0] sm:$0x77]
        %v281 = vld [vmem:[%s159 + $0x3b8] sm:$0x77]
        %v282 = vld [vmem:[%s159 + $0x3c0] sm:$0x77]
        %v283 = vld [vmem:[%s159 + $0x3c8] sm:$0x77]
        %v284 = vld [vmem:[%s159 + $0x3d0] sm:$0x77]
        %v285 = vld [vmem:[%s159 + $0x3d8] sm:$0x77]
        %v286 = vld [vmem:[%s159 + $0x3e0] sm:$0x77]
        %v287 = vld [vmem:[%s159 + $0x3e8] sm:$0x77]
        %v288 = vld [vmem:[%s159 + $0x3f0] sm:$0x77]
        %v289 = vld [vmem:[%s159 + $0x3f8] sm:$0x77]
        %v290 = vld [vmem:[%s159 + $0x400] sm:$0x77]
        %v291 = vld [vmem:[%s159 + $0x408] sm:$0x77]
        %v292 = vld [vmem:[%s159 + $0x410] sm:$0x77]
        %v293 = vld [vmem:[%s159 + $0x418] sm:$0x77]
        %v294 = vld [vmem:[%s159 + $0x420] sm:$0x77]
        %v295 = vld [vmem:[%s159 + $0x428] sm:$0x77]
        %v296 = vld [vmem:[%s159 + $0x430] sm:$0x77]
        %v297 = vld [vmem:[%s159 + $0x438] sm:$0x77]
        %v298 = vld [vmem:[%s159 + $0x440] sm:$0x77]
        %v299 = vld [vmem:[%s159 + $0x448] sm:$0x77]
        %v300 = vld [vmem:[%s159 + $0x450] sm:$0x77]
        %v301 = vld [vmem:[%s159 + $0x458] sm:$0x77]
        %v302 = vld [vmem:[%s159 + $0x460] sm:$0x77]
        %v303 = vld [vmem:[%s159 + $0x468] sm:$0x77]
        %v304 = vld [vmem:[%s159 + $0x470] sm:$0x77]
        %v305 = vld [vmem:[%s159 + $0x478] sm:$0x77]
        %v306 = vld [vmem:[%s159 + $0x480] sm:$0x77]
        %v307 = vld [vmem:[%s159 + $0x488] sm:$0x77]
        %v308 = vld [vmem:[%s159 + $0x490] sm:$0x77]
        %v309 = vld [vmem:[%s159 + $0x498] sm:$0x77]
        %v310 = vld [vmem:[%s159 + $0x4a0] sm:$0x77]
        %v311 = vld [vmem:[%s159 + $0x4a8] sm:$0x77]
        %v312 = vld [vmem:[%s159 + $0x4b0] sm:$0x77]
        %v313 = vld [vmem:[%s159 + $0x4b8] sm:$0x77]
        %v314 = vld [vmem:[%s159 + $0x4c0] sm:$0x77]
        %v315 = vld [vmem:[%s159 + $0x4c8] sm:$0x77]
        %v316 = vld [vmem:[%s159 + $0x4d0] sm:$0x77]
        %v317 = vld [vmem:[%s159 + $0x4d8] sm:$0x77]
        %v318 = vld [vmem:[%s159 + $0x4e0] sm:$0x77]
        %v319 = vld [vmem:[%s159 + $0x4e8] sm:$0x77]
        %v320 = vld [vmem:[%s159 + $0x4f0] sm:$0x77]
        %v321 = vld [vmem:[%s159 + $0x4f8] sm:$0x77]
        %v322 = vld [vmem:[%s159 + $0x500] sm:$0x77]
        %v323 = vld [vmem:[%s159 + $0x508] sm:$0x77]
        %v324 = vld [vmem:[%s159 + $0x510] sm:$0x77]
        %v325 = vld [vmem:[%s159 + $0x518] sm:$0x77]
        %v326 = vld [vmem:[%s159 + $0x520] sm:$0x77]
        %v327 = vld [vmem:[%s159 + $0x528] sm:$0x77]
        %v328 = vld [vmem:[%s159 + $0x530] sm:$0x77]
        %v329 = vld [vmem:[%s159 + $0x538] sm:$0x77]
        %v330 = vld [vmem:[%s159 + $0x540] sm:$0x77]
        %v331 = vld [vmem:[%s159 + $0x548] sm:$0x77]
        %v332 = vld [vmem:[%s159 + $0x550] sm:$0x77]
        %v333 = vld [vmem:[%s159 + $0x558] sm:$0x77]
        %v334 = vld [vmem:[%s159 + $0x560] sm:$0x77]
        %v335 = vld [vmem:[%s159 + $0x568] sm:$0x77]
        %v336 = vld [vmem:[%s159 + $0x570] sm:$0x77]
        %v337 = vld [vmem:[%s159 + $0x578] sm:$0x77]
        %v338 = vld [vmem:[%s159 + $0x580] sm:$0x77]
        %v339 = vld [vmem:[%s159 + $0x588] sm:$0x77]
        %v340 = vld [vmem:[%s159 + $0x590] sm:$0x77]
        %v341 = vld [vmem:[%s159 + $0x598] sm:$0x77]
        %v342 = vld [vmem:[%s159 + $0x5a0] sm:$0x77]
        %v343 = vld [vmem:[%s159 + $0x5a8] sm:$0x77]
        %v344 = vld [vmem:[%s159 + $0x5b0] sm:$0x77]
        %v345 = vld [vmem:[%s159 + $0x5b8] sm:$0x77]
        %v346 = vld [vmem:[%s159 + $0x5c0] sm:$0x77]
        %v347 = vld [vmem:[%s159 + $0x5c8] sm:$0x77]
        %v348 = vld [vmem:[%s159 + $0x5d0] sm:$0x77]
        %v349 = vld [vmem:[%s159 + $0x5d8] sm:$0x77]
        %v350 = vld [vmem:[%s159 + $0x5e0] sm:$0x77]
        %v351 = vld [vmem:[%s159 + $0x5e8] sm:$0x77]
        %v352 = vld [vmem:[%s159 + $0x5f0] sm:$0x77]
        %v353 = vld [vmem:[%s159 + $0x5f8] sm:$0x77]
        %v354 = vld [vmem:[%s159 + $0x600] sm:$0x77]
        %v355 = vld [vmem:[%s159 + $0x608] sm:$0x77]
        %v356 = vld [vmem:[%s159 + $0x610] sm:$0x77]
        %v357 = vld [vmem:[%s159 + $0x618] sm:$0x77]
        %v358 = vld [vmem:[%s159 + $0x620] sm:$0x77]
        %v359 = vld [vmem:[%s159 + $0x628] sm:$0x77]
        %v360 = vld [vmem:[%s159 + $0x630] sm:$0x77]
        %v361 = vld [vmem:[%s159 + $0x638] sm:$0x77]
        %v362 = vld [vmem:[%s159 + $0x640] sm:$0x77]
        %v363 = vld [vmem:[%s159 + $0x648] sm:$0x77]
        %v364 = vld [vmem:[%s159 + $0x650] sm:$0x77]
        %v365 = vld [vmem:[%s159 + $0x658] sm:$0x77]
        %v366 = vld [vmem:[%s159 + $0x660] sm:$0x77]
        %v367 = vld [vmem:[%s159 + $0x668] sm:$0x77]
        %v368 = vld [vmem:[%s159 + $0x670] sm:$0x77]
        %v369 = vld [vmem:[%s159 + $0x678] sm:$0x77]
        %v370 = vld [vmem:[%s159 + $0x680] sm:$0x77]
        %v371 = vld [vmem:[%s159 + $0x688] sm:$0x77]
        %v372 = vld [vmem:[%s159 + $0x690] sm:$0x77]
        %v373 = vld [vmem:[%s159 + $0x698] sm:$0x77]
        %v374 = vld [vmem:[%s159 + $0x6a0] sm:$0x77]
        %v375 = vld [vmem:[%s159 + $0x6a8] sm:$0x77]
        %v376 = vld [vmem:[%s159 + $0x6b0] sm:$0x77]
        %v377 = vld [vmem:[%s159 + $0x6b8] sm:$0x77]
        %v378 = vld [vmem:[%s159 + $0x6c0] sm:$0x77]
        %v379 = vld [vmem:[%s159 + $0x6c8] sm:$0x77]
        %v380 = vld [vmem:[%s159 + $0x6d0] sm:$0x77]
        %v381 = vld [vmem:[%s159 + $0x6d8] sm:$0x77]
        %v382 = vld [vmem:[%s159 + $0x6e0] sm:$0x77]
        %v383 = vld [vmem:[%s159 + $0x6e8] sm:$0x77]
        %v384 = vld [vmem:[%s159 + $0x6f0] sm:$0x77]
        %v385 = vld [vmem:[%s159 + $0x6f8] sm:$0x77]
        %v386 = vld [vmem:[%s159 + $0x700] sm:$0x77]
        %v387 = vld [vmem:[%s159 + $0x708] sm:$0x77]
        %v388 = vld [vmem:[%s159 + $0x710] sm:$0x77]
        %v389 = vld [vmem:[%s159 + $0x718] sm:$0x77]
        %v390 = vld [vmem:[%s159 + $0x720] sm:$0x77]
        %v391 = vld [vmem:[%s159 + $0x728] sm:$0x77]
        %v392 = vld [vmem:[%s159 + $0x730] sm:$0x77]
        %v393 = vld [vmem:[%s159 + $0x738] sm:$0x77]
        %v394 = vld [vmem:[%s159 + $0x740] sm:$0x77]
        %v395 = vld [vmem:[%s159 + $0x748] sm:$0x77]
        %v396 = vld [vmem:[%s159 + $0x750] sm:$0x77]
        %v397 = vld [vmem:[%s159 + $0x758] sm:$0x77]
        %v398 = vld [vmem:[%s159 + $0x760] sm:$0x77]
        %v399 = vld [vmem:[%s159 + $0x768] sm:$0x77]
        %v400 = vld [vmem:[%s159 + $0x770] sm:$0x77]
        %v401 = vld [vmem:[%s159 + $0x778] sm:$0x77]
        %v402 = vld [vmem:[%s159 + $0x780] sm:$0x77]
        %v403 = vld [vmem:[%s159 + $0x788] sm:$0x77]
        %v404 = vld [vmem:[%s159 + $0x790] sm:$0x77]
        %v405 = vld [vmem:[%s159 + $0x798] sm:$0x77]
        %v406 = vld [vmem:[%s159 + $0x7a0] sm:$0x77]
        %v407 = vld [vmem:[%s159 + $0x7a8] sm:$0x77]
        %v408 = vld [vmem:[%s159 + $0x7b0] sm:$0x77]
        %v409 = vld [vmem:[%s159 + $0x7b8] sm:$0x77]
        %v410 = vld [vmem:[%s159 + $0x7c0] sm:$0x77]
        %v411 = vld [vmem:[%s159 + $0x7c8] sm:$0x77]
        %v412 = vld [vmem:[%s159 + $0x7d0] sm:$0x77]
        %v413 = vld [vmem:[%s159 + $0x7d8] sm:$0x77]
        %v414 = vld [vmem:[%s159 + $0x7e0] sm:$0x77]
        %v415 = vld [vmem:[%s159 + $0x7e8] sm:$0x77]
        %v416 = vld [vmem:[%s159 + $0x7f0] sm:$0x77]
        %v417 = vld [vmem:[%s159 + $0x7f8] sm:$0x77]
        %s418 = sld [smem:[#allocation2]]
        %v419 = vstv %s418
        %v420 = vmul.f32 %v419, %v162
        %v421 = vmul.f32 %v419, %v163
        %v422 = vmul.f32 %v419, %v164
        %v423 = vmul.f32 %v419, %v165
        %v424 = vmul.f32 %v419, %v166
        %v425 = vmul.f32 %v419, %v167
        %v426 = vmul.f32 %v419, %v168
        %v427 = vmul.f32 %v419, %v169
        %v428 = vmul.f32 %v419, %v170
        %v429 = vmul.f32 %v419, %v171
        %v430 = vmul.f32 %v419, %v172
        %v431 = vmul.f32 %v419, %v173
        %v432 = vmul.f32 %v419, %v174
        %v433 = vmul.f32 %v419, %v175
        %v434 = vmul.f32 %v419, %v176
        %v435 = vmul.f32 %v419, %v177
        %v436 = vmul.f32 %v419, %v178
        %v437 = vmul.f32 %v419, %v179
        %v438 = vmul.f32 %v419, %v180
        %v439 = vmul.f32 %v419, %v181
        %v440 = vmul.f32 %v419, %v182
        %v441 = vmul.f32 %v419, %v183
        %v442 = vmul.f32 %v419, %v184
        %v443 = vmul.f32 %v419, %v185
        %v444 = vmul.f32 %v419, %v186
        %v445 = vmul.f32 %v419, %v187
        %v446 = vmul.f32 %v419, %v188
        %v447 = vmul.f32 %v419, %v189
        %v448 = vmul.f32 %v419, %v190
        %v449 = vmul.f32 %v419, %v191
        %v450 = vmul.f32 %v419, %v192
        %v451 = vmul.f32 %v419, %v193
        %v452 = vmul.f32 %v419, %v194
        %v453 = vmul.f32 %v419, %v195
        %v454 = vmul.f32 %v419, %v196
        %v455 = vmul.f32 %v419, %v197
        %v456 = vmul.f32 %v419, %v198
        %v457 = vmul.f32 %v419, %v199
        %v458 = vmul.f32 %v419, %v200
        %v459 = vmul.f32 %v419, %v201
        %v460 = vmul.f32 %v419, %v202
        %v461 = vmul.f32 %v419, %v203
        %v462 = vmul.f32 %v419, %v204
        %v463 = vmul.f32 %v419, %v205
        %v464 = vmul.f32 %v419, %v206
        %v465 = vmul.f32 %v419, %v207
        %v466 = vmul.f32 %v419, %v208
        %v467 = vmul.f32 %v419, %v209
        %v468 = vmul.f32 %v419, %v210
        %v469 = vmul.f32 %v419, %v211
        %v470 = vmul.f32 %v419, %v212
        %v471 = vmul.f32 %v419, %v213
        %v472 = vmul.f32 %v419, %v214
        %v473 = vmul.f32 %v419, %v215
        %v474 = vmul.f32 %v419, %v216
        %v475 = vmul.f32 %v419, %v217
        %v476 = vmul.f32 %v419, %v218
        %v477 = vmul.f32 %v419, %v219
        %v478 = vmul.f32 %v419, %v220
        %v479 = vmul.f32 %v419, %v221
        %v480 = vmul.f32 %v419, %v222
        %v481 = vmul.f32 %v419, %v223
        %v482 = vmul.f32 %v419, %v224
        %v483 = vmul.f32 %v419, %v225
        %v484 = vmul.f32 %v419, %v226
        %v485 = vmul.f32 %v419, %v227
        %v486 = vmul.f32 %v419, %v228
        %v487 = vmul.f32 %v419, %v229
        %v488 = vmul.f32 %v419, %v230
        %v489 = vmul.f32 %v419, %v231
        %v490 = vmul.f32 %v419, %v232
        %v491 = vmul.f32 %v419, %v233
        %v492 = vmul.f32 %v419, %v234
        %v493 = vmul.f32 %v419, %v235
        %v494 = vmul.f32 %v419, %v236
        %v495 = vmul.f32 %v419, %v237
        %v496 = vmul.f32 %v419, %v238
        %v497 = vmul.f32 %v419, %v239
        %v498 = vmul.f32 %v419, %v240
        %v499 = vmul.f32 %v419, %v241
        %v500 = vmul.f32 %v419, %v242
        %v501 = vmul.f32 %v419, %v243
        %v502 = vmul.f32 %v419, %v244
        %v503 = vmul.f32 %v419, %v245
        %v504 = vmul.f32 %v419, %v246
        %v505 = vmul.f32 %v419, %v247
        %v506 = vmul.f32 %v419, %v248
        %v507 = vmul.f32 %v419, %v249
        %v508 = vmul.f32 %v419, %v250
        %v509 = vmul.f32 %v419, %v251
        %v510 = vmul.f32 %v419, %v252
        %v511 = vmul.f32 %v419, %v253
        %v512 = vmul.f32 %v419, %v254
        %v513 = vmul.f32 %v419, %v255
        %v514 = vmul.f32 %v419, %v256
        %v515 = vmul.f32 %v419, %v257
        %v516 = vmul.f32 %v419, %v258
        %v517 = vmul.f32 %v419, %v259
        %v518 = vmul.f32 %v419, %v260
        %v519 = vmul.f32 %v419, %v261
        %v520 = vmul.f32 %v419, %v262
        %v521 = vmul.f32 %v419, %v263
        %v522 = vmul.f32 %v419, %v264
        %v523 = vmul.f32 %v419, %v265
        %v524 = vmul.f32 %v419, %v266
        %v525 = vmul.f32 %v419, %v267
        %v526 = vmul.f32 %v419, %v268
        %v527 = vmul.f32 %v419, %v269
        %v528 = vmul.f32 %v419, %v270
        %v529 = vmul.f32 %v419, %v271
        %v530 = vmul.f32 %v419, %v272
        %v531 = vmul.f32 %v419, %v273
        %v532 = vmul.f32 %v419, %v274
        %v533 = vmul.f32 %v419, %v275
        %v534 = vmul.f32 %v419, %v276
        %v535 = vmul.f32 %v419, %v277
        %v536 = vmul.f32 %v419, %v278
        %v537 = vmul.f32 %v419, %v279
        %v538 = vmul.f32 %v419, %v280
        %v539 = vmul.f32 %v419, %v281
        %v540 = vmul.f32 %v419, %v282
        %v541 = vmul.f32 %v419, %v283
        %v542 = vmul.f32 %v419, %v284
        %v543 = vmul.f32 %v419, %v285
        %v544 = vmul.f32 %v419, %v286
        %v545 = vmul.f32 %v419, %v287
        %v546 = vmul.f32 %v419, %v288
        %v547 = vmul.f32 %v419, %v289
        %v548 = vmul.f32 %v419, %v290
        %v549 = vmul.f32 %v419, %v291
        %v550 = vmul.f32 %v419, %v292
        %v551 = vmul.f32 %v419, %v293
        %v552 = vmul.f32 %v419, %v294
        %v553 = vmul.f32 %v419, %v295
        %v554 = vmul.f32 %v419, %v296
        %v555 = vmul.f32 %v419, %v297
        %v556 = vmul.f32 %v419, %v298
        %v557 = vmul.f32 %v419, %v299
        %v558 = vmul.f32 %v419, %v300
        %v559 = vmul.f32 %v419, %v301
        %v560 = vmul.f32 %v419, %v302
        %v561 = vmul.f32 %v419, %v303
        %v562 = vmul.f32 %v419, %v304
        %v563 = vmul.f32 %v419, %v305
        %v564 = vmul.f32 %v419, %v306
        %v565 = vmul.f32 %v419, %v307
        %v566 = vmul.f32 %v419, %v308
        %v567 = vmul.f32 %v419, %v309
        %v568 = vmul.f32 %v419, %v310
        %v569 = vmul.f32 %v419, %v311
        %v570 = vmul.f32 %v419, %v312
        %v571 = vmul.f32 %v419, %v313
        %v572 = vmul.f32 %v419, %v314
        %v573 = vmul.f32 %v419, %v315
        %v574 = vmul.f32 %v419, %v316
        %v575 = vmul.f32 %v419, %v317
        %v576 = vmul.f32 %v419, %v318
        %v577 = vmul.f32 %v419, %v319
        %v578 = vmul.f32 %v419, %v320
        %v579 = vmul.f32 %v419, %v321
        %v580 = vmul.f32 %v419, %v322
        %v581 = vmul.f32 %v419, %v323
        %v582 = vmul.f32 %v419, %v324
        %v583 = vmul.f32 %v419, %v325
        %v584 = vmul.f32 %v419, %v326
        %v585 = vmul.f32 %v419, %v327
        %v586 = vmul.f32 %v419, %v328
        %v587 = vmul.f32 %v419, %v329
        %v588 = vmul.f32 %v419, %v330
        %v589 = vmul.f32 %v419, %v331
        %v590 = vmul.f32 %v419, %v332
        %v591 = vmul.f32 %v419, %v333
        %v592 = vmul.f32 %v419, %v334
        %v593 = vmul.f32 %v419, %v335
        %v594 = vmul.f32 %v419, %v336
        %v595 = vmul.f32 %v419, %v337
        %v596 = vmul.f32 %v419, %v338
        %v597 = vmul.f32 %v419, %v339
        %v598 = vmul.f32 %v419, %v340
        %v599 = vmul.f32 %v419, %v341
        %v600 = vmul.f32 %v419, %v342
        %v601 = vmul.f32 %v419, %v343
        %v602 = vmul.f32 %v419, %v344
        %v603 = vmul.f32 %v419, %v345
        %v604 = vmul.f32 %v419, %v346
        %v605 = vmul.f32 %v419, %v347
        %v606 = vmul.f32 %v419, %v348
        %v607 = vmul.f32 %v419, %v349
        %v608 = vmul.f32 %v419, %v350
        %v609 = vmul.f32 %v419, %v351
        %v610 = vmul.f32 %v419, %v352
        %v611 = vmul.f32 %v419, %v353
        %v612 = vmul.f32 %v419, %v354
        %v613 = vmul.f32 %v419, %v355
        %v614 = vmul.f32 %v419, %v356
        %v615 = vmul.f32 %v419, %v357
        %v616 = vmul.f32 %v419, %v358
        %v617 = vmul.f32 %v419, %v359
        %v618 = vmul.f32 %v419, %v360
        %v619 = vmul.f32 %v419, %v361
        %v620 = vmul.f32 %v419, %v362
        %v621 = vmul.f32 %v419, %v363
        %v622 = vmul.f32 %v419, %v364
        %v623 = vmul.f32 %v419, %v365
        %v624 = vmul.f32 %v419, %v366
        %v625 = vmul.f32 %v419, %v367
        %v626 = vmul.f32 %v419, %v368
        %v627 = vmul.f32 %v419, %v369
        %v628 = vmul.f32 %v419, %v370
        %v629 = vmul.f32 %v419, %v371
        %v630 = vmul.f32 %v419, %v372
        %v631 = vmul.f32 %v419, %v373
        %v632 = vmul.f32 %v419, %v374
        %v633 = vmul.f32 %v419, %v375
        %v634 = vmul.f32 %v419, %v376
        %v635 = vmul.f32 %v419, %v377
        %v636 = vmul.f32 %v419, %v378
        %v637 = vmul.f32 %v419, %v379
        %v638 = vmul.f32 %v419, %v380
        %v639 = vmul.f32 %v419, %v381
        %v640 = vmul.f32 %v419, %v382
        %v641 = vmul.f32 %v419, %v383
        %v642 = vmul.f32 %v419, %v384
        %v643 = vmul.f32 %v419, %v385
        %v644 = vmul.f32 %v419, %v386
        %v645 = vmul.f32 %v419, %v387
        %v646 = vmul.f32 %v419, %v388
        %v647 = vmul.f32 %v419, %v389
        %v648 = vmul.f32 %v419, %v390
        %v649 = vmul.f32 %v419, %v391
        %v650 = vmul.f32 %v419, %v392
        %v651 = vmul.f32 %v419, %v393
        %v652 = vmul.f32 %v419, %v394
        %v653 = vmul.f32 %v419, %v395
        %v654 = vmul.f32 %v419, %v396
        %v655 = vmul.f32 %v419, %v397
        %v656 = vmul.f32 %v419, %v398
        %v657 = vmul.f32 %v419, %v399
        %v658 = vmul.f32 %v419, %v400
        %v659 = vmul.f32 %v419, %v401
        %v660 = vmul.f32 %v419, %v402
        %v661 = vmul.f32 %v419, %v403
        %v662 = vmul.f32 %v419, %v404
        %v663 = vmul.f32 %v419, %v405
        %v664 = vmul.f32 %v419, %v406
        %v665 = vmul.f32 %v419, %v407
        %v666 = vmul.f32 %v419, %v408
        %v667 = vmul.f32 %v419, %v409
        %v668 = vmul.f32 %v419, %v410
        %v669 = vmul.f32 %v419, %v411
        %v670 = vmul.f32 %v419, %v412
        %v671 = vmul.f32 %v419, %v413
        %v672 = vmul.f32 %v419, %v414
        %v673 = vmul.f32 %v419, %v415
        %v674 = vmul.f32 %v419, %v416
        %v675 = vmul.f32 %v419, %v417
        %s676 = sld [smem:[#allocation2 + $0x1]]
        %v677 = vstv %s676
        %v678 = vmul.f32 %v677, %v162
        %v679 = vmul.f32 %v677, %v163
        %v680 = vmul.f32 %v677, %v164
        %v681 = vmul.f32 %v677, %v165
        %v682 = vmul.f32 %v677, %v166
        %v683 = vmul.f32 %v677, %v167
        %v684 = vmul.f32 %v677, %v168
        %v685 = vmul.f32 %v677, %v169
        %v686 = vmul.f32 %v677, %v170
        %v687 = vmul.f32 %v677, %v171
        %v688 = vmul.f32 %v677, %v172
        %v689 = vmul.f32 %v677, %v173
        %v690 = vmul.f32 %v677, %v174
        %v691 = vmul.f32 %v677, %v175
        %v692 = vmul.f32 %v677, %v176
        %v693 = vmul.f32 %v677, %v177
        %v694 = vmul.f32 %v677, %v178
        %v695 = vmul.f32 %v677, %v179
        %v696 = vmul.f32 %v677, %v180
        %v697 = vmul.f32 %v677, %v181
        %v698 = vmul.f32 %v677, %v182
        %v699 = vmul.f32 %v677, %v183
        %v700 = vmul.f32 %v677, %v184
        %v701 = vmul.f32 %v677, %v185
        %v702 = vmul.f32 %v677, %v186
        %v703 = vmul.f32 %v677, %v187
        %v704 = vmul.f32 %v677, %v188
        %v705 = vmul.f32 %v677, %v189
        %v706 = vmul.f32 %v677, %v190
        %v707 = vmul.f32 %v677, %v191
        %v708 = vmul.f32 %v677, %v192
        %v709 = vmul.f32 %v677, %v193
        %v710 = vmul.f32 %v677, %v194
        %v711 = vmul.f32 %v677, %v195
        %v712 = vmul.f32 %v677, %v196
        %v713 = vmul.f32 %v677, %v197
        %v714 = vmul.f32 %v677, %v198
        %v715 = vmul.f32 %v677, %v199
        %v716 = vmul.f32 %v677, %v200
        %v717 = vmul.f32 %v677, %v201
        %v718 = vmul.f32 %v677, %v202
        %v719 = vmul.f32 %v677, %v203
        %v720 = vmul.f32 %v677, %v204
        %v721 = vmul.f32 %v677, %v205
        %v722 = vmul.f32 %v677, %v206
        %v723 = vmul.f32 %v677, %v207
        %v724 = vmul.f32 %v677, %v208
        %v725 = vmul.f32 %v677, %v209
        %v726 = vmul.f32 %v677, %v210
        %v727 = vmul.f32 %v677, %v211
        %v728 = vmul.f32 %v677, %v212
        %v729 = vmul.f32 %v677, %v213
        %v730 = vmul.f32 %v677, %v214
        %v731 = vmul.f32 %v677, %v215
        %v732 = vmul.f32 %v677, %v216
        %v733 = vmul.f32 %v677, %v217
        %v734 = vmul.f32 %v677, %v218
        %v735 = vmul.f32 %v677, %v219
        %v736 = vmul.f32 %v677, %v220
        %v737 = vmul.f32 %v677, %v221
        %v738 = vmul.f32 %v677, %v222
        %v739 = vmul.f32 %v677, %v223
        %v740 = vmul.f32 %v677, %v224
        %v741 = vmul.f32 %v677, %v225
        %v742 = vmul.f32 %v677, %v226
        %v743 = vmul.f32 %v677, %v227
        %v744 = vmul.f32 %v677, %v228
        %v745 = vmul.f32 %v677, %v229
        %v746 = vmul.f32 %v677, %v230
        %v747 = vmul.f32 %v677, %v231
        %v748 = vmul.f32 %v677, %v232
        %v749 = vmul.f32 %v677, %v233
        %v750 = vmul.f32 %v677, %v234
        %v751 = vmul.f32 %v677, %v235
        %v752 = vmul.f32 %v677, %v236
        %v753 = vmul.f32 %v677, %v237
        %v754 = vmul.f32 %v677, %v238
        %v755 = vmul.f32 %v677, %v239
        %v756 = vmul.f32 %v677, %v240
        %v757 = vmul.f32 %v677, %v241
        %v758 = vmul.f32 %v677, %v242
        %v759 = vmul.f32 %v677, %v243
        %v760 = vmul.f32 %v677, %v244
        %v761 = vmul.f32 %v677, %v245
        %v762 = vmul.f32 %v677, %v246
        %v763 = vmul.f32 %v677, %v247
        %v764 = vmul.f32 %v677, %v248
        %v765 = vmul.f32 %v677, %v249
        %v766 = vmul.f32 %v677, %v250
        %v767 = vmul.f32 %v677, %v251
        %v768 = vmul.f32 %v677, %v252
        %v769 = vmul.f32 %v677, %v253
        %v770 = vmul.f32 %v677, %v254
        %v771 = vmul.f32 %v677, %v255
        %v772 = vmul.f32 %v677, %v256
        %v773 = vmul.f32 %v677, %v257
        %v774 = vmul.f32 %v677, %v258
        %v775 = vmul.f32 %v677, %v259
        %v776 = vmul.f32 %v677, %v260
        %v777 = vmul.f32 %v677, %v261
        %v778 = vmul.f32 %v677, %v262
        %v779 = vmul.f32 %v677, %v263
        %v780 = vmul.f32 %v677, %v264
        %v781 = vmul.f32 %v677, %v265
        %v782 = vmul.f32 %v677, %v266
        %v783 = vmul.f32 %v677, %v267
        %v784 = vmul.f32 %v677, %v268
        %v785 = vmul.f32 %v677, %v269
        %v786 = vmul.f32 %v677, %v270
        %v787 = vmul.f32 %v677, %v271
        %v788 = vmul.f32 %v677, %v272
        %v789 = vmul.f32 %v677, %v273
        %v790 = vmul.f32 %v677, %v274
        %v791 = vmul.f32 %v677, %v275
        %v792 = vmul.f32 %v677, %v276
        %v793 = vmul.f32 %v677, %v277
        %v794 = vmul.f32 %v677, %v278
        %v795 = vmul.f32 %v677, %v279
        %v796 = vmul.f32 %v677, %v280
        %v797 = vmul.f32 %v677, %v281
        %v798 = vmul.f32 %v677, %v282
        %v799 = vmul.f32 %v677, %v283
        %v800 = vmul.f32 %v677, %v284
        %v801 = vmul.f32 %v677, %v285
        %v802 = vmul.f32 %v677, %v286
        %v803 = vmul.f32 %v677, %v287
        %v804 = vmul.f32 %v677, %v288
        %v805 = vmul.f32 %v677, %v289
        %v806 = vmul.f32 %v677, %v290
        %v807 = vmul.f32 %v677, %v291
        %v808 = vmul.f32 %v677, %v292
        %v809 = vmul.f32 %v677, %v293
        %v810 = vmul.f32 %v677, %v294
        %v811 = vmul.f32 %v677, %v295
        %v812 = vmul.f32 %v677, %v296
        %v813 = vmul.f32 %v677, %v297
        %v814 = vmul.f32 %v677, %v298
        %v815 = vmul.f32 %v677, %v299
        %v816 = vmul.f32 %v677, %v300
        %v817 = vmul.f32 %v677, %v301
        %v818 = vmul.f32 %v677, %v302
        %v819 = vmul.f32 %v677, %v303
        %v820 = vmul.f32 %v677, %v304
        %v821 = vmul.f32 %v677, %v305
        %v822 = vmul.f32 %v677, %v306
        %v823 = vmul.f32 %v677, %v307
        %v824 = vmul.f32 %v677, %v308
        %v825 = vmul.f32 %v677, %v309
        %v826 = vmul.f32 %v677, %v310
        %v827 = vmul.f32 %v677, %v311
        %v828 = vmul.f32 %v677, %v312
        %v829 = vmul.f32 %v677, %v313
        %v830 = vmul.f32 %v677, %v314
        %v831 = vmul.f32 %v677, %v315
        %v832 = vmul.f32 %v677, %v316
        %v833 = vmul.f32 %v677, %v317
        %v834 = vmul.f32 %v677, %v318
        %v835 = vmul.f32 %v677, %v319
        %v836 = vmul.f32 %v677, %v320
        %v837 = vmul.f32 %v677, %v321
        %v838 = vmul.f32 %v677, %v322
        %v839 = vmul.f32 %v677, %v323
        %v840 = vmul.f32 %v677, %v324
        %v841 = vmul.f32 %v677, %v325
        %v842 = vmul.f32 %v677, %v326
        %v843 = vmul.f32 %v677, %v327
        %v844 = vmul.f32 %v677, %v328
        %v845 = vmul.f32 %v677, %v329
        %v846 = vmul.f32 %v677, %v330
        %v847 = vmul.f32 %v677, %v331
        %v848 = vmul.f32 %v677, %v332
        %v849 = vmul.f32 %v677, %v333
        %v850 = vmul.f32 %v677, %v334
        %v851 = vmul.f32 %v677, %v335
        %v852 = vmul.f32 %v677, %v336
        %v853 = vmul.f32 %v677, %v337
        %v854 = vmul.f32 %v677, %v338
        %v855 = vmul.f32 %v677, %v339
        %v856 = vmul.f32 %v677, %v340
        %v857 = vmul.f32 %v677, %v341
        %v858 = vmul.f32 %v677, %v342
        %v859 = vmul.f32 %v677, %v343
        %v860 = vmul.f32 %v677, %v344
        %v861 = vmul.f32 %v677, %v345
        %v862 = vmul.f32 %v677, %v346
        %v863 = vmul.f32 %v677, %v347
        %v864 = vmul.f32 %v677, %v348
        %v865 = vmul.f32 %v677, %v349
        %v866 = vmul.f32 %v677, %v350
        %v867 = vmul.f32 %v677, %v351
        %v868 = vmul.f32 %v677, %v352
        %v869 = vmul.f32 %v677, %v353
        %v870 = vmul.f32 %v677, %v354
        %v871 = vmul.f32 %v677, %v355
        %v872 = vmul.f32 %v677, %v356
        %v873 = vmul.f32 %v677, %v357
        %v874 = vmul.f32 %v677, %v358
        %v875 = vmul.f32 %v677, %v359
        %v876 = vmul.f32 %v677, %v360
        %v877 = vmul.f32 %v677, %v361
        %v878 = vmul.f32 %v677, %v362
        %v879 = vmul.f32 %v677, %v363
        %v880 = vmul.f32 %v677, %v364
        %v881 = vmul.f32 %v677, %v365
        %v882 = vmul.f32 %v677, %v366
        %v883 = vmul.f32 %v677, %v367
        %v884 = vmul.f32 %v677, %v368
        %v885 = vmul.f32 %v677, %v369
        %v886 = vmul.f32 %v677, %v370
        %v887 = vmul.f32 %v677, %v371
        %v888 = vmul.f32 %v677, %v372
        %v889 = vmul.f32 %v677, %v373
        %v890 = vmul.f32 %v677, %v374
        %v891 = vmul.f32 %v677, %v375
        %v892 = vmul.f32 %v677, %v376
        %v893 = vmul.f32 %v677, %v377
        %v894 = vmul.f32 %v677, %v378
        %v895 = vmul.f32 %v677, %v379
        %v896 = vmul.f32 %v677, %v380
        %v897 = vmul.f32 %v677, %v381
        %v898 = vmul.f32 %v677, %v382
        %v899 = vmul.f32 %v677, %v383
        %v900 = vmul.f32 %v677, %v384
        %v901 = vmul.f32 %v677, %v385
        %v902 = vmul.f32 %v677, %v386
        %v903 = vmul.f32 %v677, %v387
        %v904 = vmul.f32 %v677, %v388
        %v905 = vmul.f32 %v677, %v389
        %v906 = vmul.f32 %v677, %v390
        %v907 = vmul.f32 %v677, %v391
        %v908 = vmul.f32 %v677, %v392
        %v909 = vmul.f32 %v677, %v393
        %v910 = vmul.f32 %v677, %v394
        %v911 = vmul.f32 %v677, %v395
        %v912 = vmul.f32 %v677, %v396
        %v913 = vmul.f32 %v677, %v397
        %v914 = vmul.f32 %v677, %v398
        %v915 = vmul.f32 %v677, %v399
        %v916 = vmul.f32 %v677, %v400
        %v917 = vmul.f32 %v677, %v401
        %v918 = vmul.f32 %v677, %v402
        %v919 = vmul.f32 %v677, %v403
        %v920 = vmul.f32 %v677, %v404
        %v921 = vmul.f32 %v677, %v405
        %v922 = vmul.f32 %v677, %v406
        %v923 = vmul.f32 %v677, %v407
        %v924 = vmul.f32 %v677, %v408
        %v925 = vmul.f32 %v677, %v409
        %v926 = vmul.f32 %v677, %v410
        %v927 = vmul.f32 %v677, %v411
        %v928 = vmul.f32 %v677, %v412
        %v929 = vmul.f32 %v677, %v413
        %v930 = vmul.f32 %v677, %v414
        %v931 = vmul.f32 %v677, %v415
        %v932 = vmul.f32 %v677, %v416
        %v933 = vmul.f32 %v677, %v417
        %v1190 = vrot.slane %v678, 5
        %v1191 = vrot.slane %v1190, 4
        %v1192 = vrot.slane %v679, 5
        %v1193 = vrot.slane %v1192, 4
        %v1194 = vrot.slane %v680, 5
        %v1195 = vrot.slane %v1194, 4
        %v1196 = vrot.slane %v681, 5
        %v1197 = vrot.slane %v1196, 4
        %v1198 = vrot.slane %v682, 5
        %v1199 = vrot.slane %v1198, 4
        %v1200 = vrot.slane %v683, 5
        %v1201 = vrot.slane %v1200, 4
        %v1202 = vrot.slane %v684, 5
        %v1203 = vrot.slane %v1202, 4
        %v1204 = vrot.slane %v685, 5
        %v1205 = vrot.slane %v1204, 4
        %v1206 = vrot.slane %v686, 5
        %v1207 = vrot.slane %v1206, 4
        %v1208 = vrot.slane %v687, 5
        %v1209 = vrot.slane %v1208, 4
        %v1210 = vrot.slane %v688, 5
        %v1211 = vrot.slane %v1210, 4
        %v1212 = vrot.slane %v689, 5
        %v1213 = vrot.slane %v1212, 4
        %v1214 = vrot.slane %v690, 5
        %v1215 = vrot.slane %v1214, 4
        %v1216 = vrot.slane %v691, 5
        %v1217 = vrot.slane %v1216, 4
        %v1218 = vrot.slane %v692, 5
        %v1219 = vrot.slane %v1218, 4
        %v1220 = vrot.slane %v693, 5
        %v1221 = vrot.slane %v1220, 4
        %v1222 = vrot.slane %v694, 5
        %v1223 = vrot.slane %v1222, 4
        %v1224 = vrot.slane %v695, 5
        %v1225 = vrot.slane %v1224, 4
        %v1226 = vrot.slane %v696, 5
        %v1227 = vrot.slane %v1226, 4
        %v1228 = vrot.slane %v697, 5
        %v1229 = vrot.slane %v1228, 4
        %v1230 = vrot.slane %v698, 5
        %v1231 = vrot.slane %v1230, 4
        %v1232 = vrot.slane %v699, 5
        %v1233 = vrot.slane %v1232, 4
        %v1234 = vrot.slane %v700, 5
        %v1235 = vrot.slane %v1234, 4
        %v1236 = vrot.slane %v701, 5
        %v1237 = vrot.slane %v1236, 4
        %v1238 = vrot.slane %v702, 5
        %v1239 = vrot.slane %v1238, 4
        %v1240 = vrot.slane %v703, 5
        %v1241 = vrot.slane %v1240, 4
        %v1242 = vrot.slane %v704, 5
        %v1243 = vrot.slane %v1242, 4
        %v1244 = vrot.slane %v705, 5
        %v1245 = vrot.slane %v1244, 4
        %v1246 = vrot.slane %v706, 5
        %v1247 = vrot.slane %v1246, 4
        %v1248 = vrot.slane %v707, 5
        %v1249 = vrot.slane %v1248, 4
        %v1250 = vrot.slane %v708, 5
        %v1251 = vrot.slane %v1250, 4
        %v1252 = vrot.slane %v709, 5
        %v1253 = vrot.slane %v1252, 4
        %v1254 = vrot.slane %v710, 5
        %v1255 = vrot.slane %v1254, 4
        %v1256 = vrot.slane %v711, 5
        %v1257 = vrot.slane %v1256, 4
        %v1258 = vrot.slane %v712, 5
        %v1259 = vrot.slane %v1258, 4
        %v1260 = vrot.slane %v713, 5
        %v1261 = vrot.slane %v1260, 4
        %v1262 = vrot.slane %v714, 5
        %v1263 = vrot.slane %v1262, 4
        %v1264 = vrot.slane %v715, 5
        %v1265 = vrot.slane %v1264, 4
        %v1266 = vrot.slane %v716, 5
        %v1267 = vrot.slane %v1266, 4
        %v1268 = vrot.slane %v717, 5
        %v1269 = vrot.slane %v1268, 4
        %v1270 = vrot.slane %v718, 5
        %v1271 = vrot.slane %v1270, 4
        %v1272 = vrot.slane %v719, 5
        %v1273 = vrot.slane %v1272, 4
        %v1274 = vrot.slane %v720, 5
        %v1275 = vrot.slane %v1274, 4
        %v1276 = vrot.slane %v721, 5
        %v1277 = vrot.slane %v1276, 4
        %v1278 = vrot.slane %v722, 5
        %v1279 = vrot.slane %v1278, 4
        %v1280 = vrot.slane %v723, 5
        %v1281 = vrot.slane %v1280, 4
        %v1282 = vrot.slane %v724, 5
        %v1283 = vrot.slane %v1282, 4
        %v1284 = vrot.slane %v725, 5
        %v1285 = vrot.slane %v1284, 4
        %v1286 = vrot.slane %v726, 5
        %v1287 = vrot.slane %v1286, 4
        %v1288 = vrot.slane %v727, 5
        %v1289 = vrot.slane %v1288, 4
        %v1290 = vrot.slane %v728, 5
        %v1291 = vrot.slane %v1290, 4
        %v1292 = vrot.slane %v729, 5
        %v1293 = vrot.slane %v1292, 4
        %v1294 = vrot.slane %v730, 5
        %v1295 = vrot.slane %v1294, 4
        %v1296 = vrot.slane %v731, 5
        %v1297 = vrot.slane %v1296, 4
        %v1298 = vrot.slane %v732, 5
        %v1299 = vrot.slane %v1298, 4
        %v1300 = vrot.slane %v733, 5
        %v1301 = vrot.slane %v1300, 4
        %v1302 = vrot.slane %v734, 5
        %v1303 = vrot.slane %v1302, 4
        %v1304 = vrot.slane %v735, 5
        %v1305 = vrot.slane %v1304, 4
        %v1306 = vrot.slane %v736, 5
        %v1307 = vrot.slane %v1306, 4
        %v1308 = vrot.slane %v737, 5
        %v1309 = vrot.slane %v1308, 4
        %v1310 = vrot.slane %v738, 5
        %v1311 = vrot.slane %v1310, 4
        %v1312 = vrot.slane %v739, 5
        %v1313 = vrot.slane %v1312, 4
        %v1314 = vrot.slane %v740, 5
        %v1315 = vrot.slane %v1314, 4
        %v1316 = vrot.slane %v741, 5
        %v1317 = vrot.slane %v1316, 4
        %v1318 = vrot.slane %v742, 5
        %v1319 = vrot.slane %v1318, 4
        %v1320 = vrot.slane %v743, 5
        %v1321 = vrot.slane %v1320, 4
        %v1322 = vrot.slane %v744, 5
        %v1323 = vrot.slane %v1322, 4
        %v1324 = vrot.slane %v745, 5
        %v1325 = vrot.slane %v1324, 4
        %v1326 = vrot.slane %v746, 5
        %v1327 = vrot.slane %v1326, 4
        %v1328 = vrot.slane %v747, 5
        %v1329 = vrot.slane %v1328, 4
        %v1330 = vrot.slane %v748, 5
        %v1331 = vrot.slane %v1330, 4
        %v1332 = vrot.slane %v749, 5
        %v1333 = vrot.slane %v1332, 4
        %v1334 = vrot.slane %v750, 5
        %v1335 = vrot.slane %v1334, 4
        %v1336 = vrot.slane %v751, 5
        %v1337 = vrot.slane %v1336, 4
        %v1338 = vrot.slane %v752, 5
        %v1339 = vrot.slane %v1338, 4
        %v1340 = vrot.slane %v753, 5
        %v1341 = vrot.slane %v1340, 4
        %v1342 = vrot.slane %v754, 5
        %v1343 = vrot.slane %v1342, 4
        %v1344 = vrot.slane %v755, 5
        %v1345 = vrot.slane %v1344, 4
        %v1346 = vrot.slane %v756, 5
        %v1347 = vrot.slane %v1346, 4
        %v1348 = vrot.slane %v757, 5
        %v1349 = vrot.slane %v1348, 4
        %v1350 = vrot.slane %v758, 5
        %v1351 = vrot.slane %v1350, 4
        %v1352 = vrot.slane %v759, 5
        %v1353 = vrot.slane %v1352, 4
        %v1354 = vrot.slane %v760, 5
        %v1355 = vrot.slane %v1354, 4
        %v1356 = vrot.slane %v761, 5
        %v1357 = vrot.slane %v1356, 4
        %v1358 = vrot.slane %v762, 5
        %v1359 = vrot.slane %v1358, 4
        %v1360 = vrot.slane %v763, 5
        %v1361 = vrot.slane %v1360, 4
        %v1362 = vrot.slane %v764, 5
        %v1363 = vrot.slane %v1362, 4
        %v1364 = vrot.slane %v765, 5
        %v1365 = vrot.slane %v1364, 4
        %v1366 = vrot.slane %v766, 5
        %v1367 = vrot.slane %v1366, 4
        %v1368 = vrot.slane %v767, 5
        %v1369 = vrot.slane %v1368, 4
        %v1370 = vrot.slane %v768, 5
        %v1371 = vrot.slane %v1370, 4
        %v1372 = vrot.slane %v769, 5
        %v1373 = vrot.slane %v1372, 4
        %v1374 = vrot.slane %v770, 5
        %v1375 = vrot.slane %v1374, 4
        %v1376 = vrot.slane %v771, 5
        %v1377 = vrot.slane %v1376, 4
        %v1378 = vrot.slane %v772, 5
        %v1379 = vrot.slane %v1378, 4
        %v1380 = vrot.slane %v773, 5
        %v1381 = vrot.slane %v1380, 4
        %v1382 = vrot.slane %v774, 5
        %v1383 = vrot.slane %v1382, 4
        %v1384 = vrot.slane %v775, 5
        %v1385 = vrot.slane %v1384, 4
        %v1386 = vrot.slane %v776, 5
        %v1387 = vrot.slane %v1386, 4
        %v1388 = vrot.slane %v777, 5
        %v1389 = vrot.slane %v1388, 4
        %v1390 = vrot.slane %v778, 5
        %v1391 = vrot.slane %v1390, 4
        %v1392 = vrot.slane %v779, 5
        %v1393 = vrot.slane %v1392, 4
        %v1394 = vrot.slane %v780, 5
        %v1395 = vrot.slane %v1394, 4
        %v1396 = vrot.slane %v781, 5
        %v1397 = vrot.slane %v1396, 4
        %v1398 = vrot.slane %v782, 5
        %v1399 = vrot.slane %v1398, 4
        %v1400 = vrot.slane %v783, 5
        %v1401 = vrot.slane %v1400, 4
        %v1402 = vrot.slane %v784, 5
        %v1403 = vrot.slane %v1402, 4
        %v1404 = vrot.slane %v785, 5
        %v1405 = vrot.slane %v1404, 4
        %v1406 = vrot.slane %v786, 5
        %v1407 = vrot.slane %v1406, 4
        %v1408 = vrot.slane %v787, 5
        %v1409 = vrot.slane %v1408, 4
        %v1410 = vrot.slane %v788, 5
        %v1411 = vrot.slane %v1410, 4
        %v1412 = vrot.slane %v789, 5
        %v1413 = vrot.slane %v1412, 4
        %v1414 = vrot.slane %v790, 5
        %v1415 = vrot.slane %v1414, 4
        %v1416 = vrot.slane %v791, 5
        %v1417 = vrot.slane %v1416, 4
        %v1418 = vrot.slane %v792, 5
        %v1419 = vrot.slane %v1418, 4
        %v1420 = vrot.slane %v793, 5
        %v1421 = vrot.slane %v1420, 4
        %v1422 = vrot.slane %v794, 5
        %v1423 = vrot.slane %v1422, 4
        %v1424 = vrot.slane %v795, 5
        %v1425 = vrot.slane %v1424, 4
        %v1426 = vrot.slane %v796, 5
        %v1427 = vrot.slane %v1426, 4
        %v1428 = vrot.slane %v797, 5
        %v1429 = vrot.slane %v1428, 4
        %v1430 = vrot.slane %v798, 5
        %v1431 = vrot.slane %v1430, 4
        %v1432 = vrot.slane %v799, 5
        %v1433 = vrot.slane %v1432, 4
        %v1434 = vrot.slane %v800, 5
        %v1435 = vrot.slane %v1434, 4
        %v1436 = vrot.slane %v801, 5
        %v1437 = vrot.slane %v1436, 4
        %v1438 = vrot.slane %v802, 5
        %v1439 = vrot.slane %v1438, 4
        %v1440 = vrot.slane %v803, 5
        %v1441 = vrot.slane %v1440, 4
        %v1442 = vrot.slane %v804, 5
        %v1443 = vrot.slane %v1442, 4
        %v1444 = vrot.slane %v805, 5
        %v1445 = vrot.slane %v1444, 4
        %v1446 = vrot.slane %v806, 5
        %v1447 = vrot.slane %v1446, 4
        %v1448 = vrot.slane %v807, 5
        %v1449 = vrot.slane %v1448, 4
        %v1450 = vrot.slane %v808, 5
        %v1451 = vrot.slane %v1450, 4
        %v1452 = vrot.slane %v809, 5
        %v1453 = vrot.slane %v1452, 4
        %v1454 = vrot.slane %v810, 5
        %v1455 = vrot.slane %v1454, 4
        %v1456 = vrot.slane %v811, 5
        %v1457 = vrot.slane %v1456, 4
        %v1458 = vrot.slane %v812, 5
        %v1459 = vrot.slane %v1458, 4
        %v1460 = vrot.slane %v813, 5
        %v1461 = vrot.slane %v1460, 4
        %v1462 = vrot.slane %v814, 5
        %v1463 = vrot.slane %v1462, 4
        %v1464 = vrot.slane %v815, 5
        %v1465 = vrot.slane %v1464, 4
        %v1466 = vrot.slane %v816, 5
        %v1467 = vrot.slane %v1466, 4
        %v1468 = vrot.slane %v817, 5
        %v1469 = vrot.slane %v1468, 4
        %v1470 = vrot.slane %v818, 5
        %v1471 = vrot.slane %v1470, 4
        %v1472 = vrot.slane %v819, 5
        %v1473 = vrot.slane %v1472, 4
        %v1474 = vrot.slane %v820, 5
        %v1475 = vrot.slane %v1474, 4
        %v1476 = vrot.slane %v821, 5
        %v1477 = vrot.slane %v1476, 4
        %v1478 = vrot.slane %v822, 5
        %v1479 = vrot.slane %v1478, 4
        %v1480 = vrot.slane %v823, 5
        %v1481 = vrot.slane %v1480, 4
        %v1482 = vrot.slane %v824, 5
        %v1483 = vrot.slane %v1482, 4
        %v1484 = vrot.slane %v825, 5
        %v1485 = vrot.slane %v1484, 4
        %v1486 = vrot.slane %v826, 5
        %v1487 = vrot.slane %v1486, 4
        %v1488 = vrot.slane %v827, 5
        %v1489 = vrot.slane %v1488, 4
        %v1490 = vrot.slane %v828, 5
        %v1491 = vrot.slane %v1490, 4
        %v1492 = vrot.slane %v829, 5
        %v1493 = vrot.slane %v1492, 4
        %v1494 = vrot.slane %v830, 5
        %v1495 = vrot.slane %v1494, 4
        %v1496 = vrot.slane %v831, 5
        %v1497 = vrot.slane %v1496, 4
        %v1498 = vrot.slane %v832, 5
        %v1499 = vrot.slane %v1498, 4
        %v1500 = vrot.slane %v833, 5
        %v1501 = vrot.slane %v1500, 4
        %v1502 = vrot.slane %v834, 5
        %v1503 = vrot.slane %v1502, 4
        %v1504 = vrot.slane %v835, 5
        %v1505 = vrot.slane %v1504, 4
        %v1506 = vrot.slane %v836, 5
        %v1507 = vrot.slane %v1506, 4
        %v1508 = vrot.slane %v837, 5
        %v1509 = vrot.slane %v1508, 4
        %v1510 = vrot.slane %v838, 5
        %v1511 = vrot.slane %v1510, 4
        %v1512 = vrot.slane %v839, 5
        %v1513 = vrot.slane %v1512, 4
        %v1514 = vrot.slane %v840, 5
        %v1515 = vrot.slane %v1514, 4
        %v1516 = vrot.slane %v841, 5
        %v1517 = vrot.slane %v1516, 4
        %v1518 = vrot.slane %v842, 5
        %v1519 = vrot.slane %v1518, 4
        %v1520 = vrot.slane %v843, 5
        %v1521 = vrot.slane %v1520, 4
        %v1522 = vrot.slane %v844, 5
        %v1523 = vrot.slane %v1522, 4
        %v1524 = vrot.slane %v845, 5
        %v1525 = vrot.slane %v1524, 4
        %v1526 = vrot.slane %v846, 5
        %v1527 = vrot.slane %v1526, 4
        %v1528 = vrot.slane %v847, 5
        %v1529 = vrot.slane %v1528, 4
        %v1530 = vrot.slane %v848, 5
        %v1531 = vrot.slane %v1530, 4
        %v1532 = vrot.slane %v849, 5
        %v1533 = vrot.slane %v1532, 4
        %v1534 = vrot.slane %v850, 5
        %v1535 = vrot.slane %v1534, 4
        %v1536 = vrot.slane %v851, 5
        %v1537 = vrot.slane %v1536, 4
        %v1538 = vrot.slane %v852, 5
        %v1539 = vrot.slane %v1538, 4
        %v1540 = vrot.slane %v853, 5
        %v1541 = vrot.slane %v1540, 4
        %v1542 = vrot.slane %v854, 5
        %v1543 = vrot.slane %v1542, 4
        %v1544 = vrot.slane %v855, 5
        %v1545 = vrot.slane %v1544, 4
        %v1546 = vrot.slane %v856, 5
        %v1547 = vrot.slane %v1546, 4
        %v1548 = vrot.slane %v857, 5
        %v1549 = vrot.slane %v1548, 4
        %v1550 = vrot.slane %v858, 5
        %v1551 = vrot.slane %v1550, 4
        %v1552 = vrot.slane %v859, 5
        %v1553 = vrot.slane %v1552, 4
        %v1554 = vrot.slane %v860, 5
        %v1555 = vrot.slane %v1554, 4
        %v1556 = vrot.slane %v861, 5
        %v1557 = vrot.slane %v1556, 4
        %v1558 = vrot.slane %v862, 5
        %v1559 = vrot.slane %v1558, 4
        %v1560 = vrot.slane %v863, 5
        %v1561 = vrot.slane %v1560, 4
        %v1562 = vrot.slane %v864, 5
        %v1563 = vrot.slane %v1562, 4
        %v1564 = vrot.slane %v865, 5
        %v1565 = vrot.slane %v1564, 4
        %v1566 = vrot.slane %v866, 5
        %v1567 = vrot.slane %v1566, 4
        %v1568 = vrot.slane %v867, 5
        %v1569 = vrot.slane %v1568, 4
        %v1570 = vrot.slane %v868, 5
        %v1571 = vrot.slane %v1570, 4
        %v1572 = vrot.slane %v869, 5
        %v1573 = vrot.slane %v1572, 4
        %v1574 = vrot.slane %v870, 5
        %v1575 = vrot.slane %v1574, 4
        %v1576 = vrot.slane %v871, 5
        %v1577 = vrot.slane %v1576, 4
        %v1578 = vrot.slane %v872, 5
        %v1579 = vrot.slane %v1578, 4
        %v1580 = vrot.slane %v873, 5
        %v1581 = vrot.slane %v1580, 4
        %v1582 = vrot.slane %v874, 5
        %v1583 = vrot.slane %v1582, 4
        %v1584 = vrot.slane %v875, 5
        %v1585 = vrot.slane %v1584, 4
        %v1586 = vrot.slane %v876, 5
        %v1587 = vrot.slane %v1586, 4
        %v1588 = vrot.slane %v877, 5
        %v1589 = vrot.slane %v1588, 4
        %v1590 = vrot.slane %v878, 5
        %v1591 = vrot.slane %v1590, 4
        %v1592 = vrot.slane %v879, 5
        %v1593 = vrot.slane %v1592, 4
        %v1594 = vrot.slane %v880, 5
        %v1595 = vrot.slane %v1594, 4
        %v1596 = vrot.slane %v881, 5
        %v1597 = vrot.slane %v1596, 4
        %v1598 = vrot.slane %v882, 5
        %v1599 = vrot.slane %v1598, 4
        %v1600 = vrot.slane %v883, 5
        %v1601 = vrot.slane %v1600, 4
        %v1602 = vrot.slane %v884, 5
        %v1603 = vrot.slane %v1602, 4
        %v1604 = vrot.slane %v885, 5
        %v1605 = vrot.slane %v1604, 4
        %v1606 = vrot.slane %v886, 5
        %v1607 = vrot.slane %v1606, 4
        %v1608 = vrot.slane %v887, 5
        %v1609 = vrot.slane %v1608, 4
        %v1610 = vrot.slane %v888, 5
        %v1611 = vrot.slane %v1610, 4
        %v1612 = vrot.slane %v889, 5
        %v1613 = vrot.slane %v1612, 4
        %v1614 = vrot.slane %v890, 5
        %v1615 = vrot.slane %v1614, 4
        %v1616 = vrot.slane %v891, 5
        %v1617 = vrot.slane %v1616, 4
        %v1618 = vrot.slane %v892, 5
        %v1619 = vrot.slane %v1618, 4
        %v1620 = vrot.slane %v893, 5
        %v1621 = vrot.slane %v1620, 4
        %v1622 = vrot.slane %v894, 5
        %v1623 = vrot.slane %v1622, 4
        %v1624 = vrot.slane %v895, 5
        %v1625 = vrot.slane %v1624, 4
        %v1626 = vrot.slane %v896, 5
        %v1627 = vrot.slane %v1626, 4
        %v1628 = vrot.slane %v897, 5
        %v1629 = vrot.slane %v1628, 4
        %v1630 = vrot.slane %v898, 5
        %v1631 = vrot.slane %v1630, 4
        %v1632 = vrot.slane %v899, 5
        %v1633 = vrot.slane %v1632, 4
        %v1634 = vrot.slane %v900, 5
        %v1635 = vrot.slane %v1634, 4
        %v1636 = vrot.slane %v901, 5
        %v1637 = vrot.slane %v1636, 4
        %v1638 = vrot.slane %v902, 5
        %v1639 = vrot.slane %v1638, 4
        %v1640 = vrot.slane %v903, 5
        %v1641 = vrot.slane %v1640, 4
        %v1642 = vrot.slane %v904, 5
        %v1643 = vrot.slane %v1642, 4
        %v1644 = vrot.slane %v905, 5
        %v1645 = vrot.slane %v1644, 4
        %v1646 = vrot.slane %v906, 5
        %v1647 = vrot.slane %v1646, 4
        %v1648 = vrot.slane %v907, 5
        %v1649 = vrot.slane %v1648, 4
        %v1650 = vrot.slane %v908, 5
        %v1651 = vrot.slane %v1650, 4
        %v1652 = vrot.slane %v909, 5
        %v1653 = vrot.slane %v1652, 4
        %v1654 = vrot.slane %v910, 5
        %v1655 = vrot.slane %v1654, 4
        %v1656 = vrot.slane %v911, 5
        %v1657 = vrot.slane %v1656, 4
        %v1658 = vrot.slane %v912, 5
        %v1659 = vrot.slane %v1658, 4
        %v1660 = vrot.slane %v913, 5
        %v1661 = vrot.slane %v1660, 4
        %v1662 = vrot.slane %v914, 5
        %v1663 = vrot.slane %v1662, 4
        %v1664 = vrot.slane %v915, 5
        %v1665 = vrot.slane %v1664, 4
        %v1666 = vrot.slane %v916, 5
        %v1667 = vrot.slane %v1666, 4
        %v1668 = vrot.slane %v917, 5
        %v1669 = vrot.slane %v1668, 4
        %v1670 = vrot.slane %v918, 5
        %v1671 = vrot.slane %v1670, 4
        %v1672 = vrot.slane %v919, 5
        %v1673 = vrot.slane %v1672, 4
        %v1674 = vrot.slane %v920, 5
        %v1675 = vrot.slane %v1674, 4
        %v1676 = vrot.slane %v921, 5
        %v1677 = vrot.slane %v1676, 4
        %v1678 = vrot.slane %v922, 5
        %v1679 = vrot.slane %v1678, 4
        %v1680 = vrot.slane %v923, 5
        %v1681 = vrot.slane %v1680, 4
        %v1682 = vrot.slane %v924, 5
        %v1683 = vrot.slane %v1682, 4
        %v1684 = vrot.slane %v925, 5
        %v1685 = vrot.slane %v1684, 4
        %v1686 = vrot.slane %v926, 5
        %v1687 = vrot.slane %v1686, 4
        %v1688 = vrot.slane %v927, 5
        %v1689 = vrot.slane %v1688, 4
        %v1690 = vrot.slane %v928, 5
        %v1691 = vrot.slane %v1690, 4
        %v1692 = vrot.slane %v929, 5
        %v1693 = vrot.slane %v1692, 4
        %v1694 = vrot.slane %v930, 5
        %v1695 = vrot.slane %v1694, 4
        %v1696 = vrot.slane %v931, 5
        %v1697 = vrot.slane %v1696, 4
        %v1698 = vrot.slane %v932, 5
        %v1699 = vrot.slane %v1698, 4
        %v1700 = vrot.slane %v933, 5
        %v1701 = vrot.slane %v1700, 4
        %v1958 = vadd.f32 %v420, %v1191
        %v1959 = vadd.f32 %v421, %v1193
        %v1960 = vadd.f32 %v422, %v1195
        %v1961 = vadd.f32 %v423, %v1197
        %v1962 = vadd.f32 %v424, %v1199
        %v1963 = vadd.f32 %v425, %v1201
        %v1964 = vadd.f32 %v426, %v1203
        %v1965 = vadd.f32 %v427, %v1205
        %v1966 = vadd.f32 %v428, %v1207
        %v1967 = vadd.f32 %v429, %v1209
        %v1968 = vadd.f32 %v430, %v1211
        %v1969 = vadd.f32 %v431, %v1213
        %v1970 = vadd.f32 %v432, %v1215
        %v1971 = vadd.f32 %v433, %v1217
        %v1972 = vadd.f32 %v434, %v1219
        %v1973 = vadd.f32 %v435, %v1221
        %v1974 = vadd.f32 %v436, %v1223
        %v1975 = vadd.f32 %v437, %v1225
        %v1976 = vadd.f32 %v438, %v1227
        %v1977 = vadd.f32 %v439, %v1229
        %v1978 = vadd.f32 %v440, %v1231
        %v1979 = vadd.f32 %v441, %v1233
        %v1980 = vadd.f32 %v442, %v1235
        %v1981 = vadd.f32 %v443, %v1237
        %v1982 = vadd.f32 %v444, %v1239
        %v1983 = vadd.f32 %v445, %v1241
        %v1984 = vadd.f32 %v446, %v1243
        %v1985 = vadd.f32 %v447, %v1245
        %v1986 = vadd.f32 %v448, %v1247
        %v1987 = vadd.f32 %v449, %v1249
        %v1988 = vadd.f32 %v450, %v1251
        %v1989 = vadd.f32 %v451, %v1253
        %v1990 = vadd.f32 %v452, %v1255
        %v1991 = vadd.f32 %v453, %v1257
        %v1992 = vadd.f32 %v454, %v1259
        %v1993 = vadd.f32 %v455, %v1261
        %v1994 = vadd.f32 %v456, %v1263
        %v1995 = vadd.f32 %v457, %v1265
        %v1996 = vadd.f32 %v458, %v1267
        %v1997 = vadd.f32 %v459, %v1269
        %v1998 = vadd.f32 %v460, %v1271
        %v1999 = vadd.f32 %v461, %v1273
        %v2000 = vadd.f32 %v462, %v1275
        %v2001 = vadd.f32 %v463, %v1277
        %v2002 = vadd.f32 %v464, %v1279
        %v2003 = vadd.f32 %v465, %v1281
        %v2004 = vadd.f32 %v466, %v1283
        %v2005 = vadd.f32 %v467, %v1285
        %v2006 = vadd.f32 %v468, %v1287
        %v2007 = vadd.f32 %v469, %v1289
        %v2008 = vadd.f32 %v470, %v1291
        %v2009 = vadd.f32 %v471, %v1293
        %v2010 = vadd.f32 %v472, %v1295
        %v2011 = vadd.f32 %v473, %v1297
        %v2012 = vadd.f32 %v474, %v1299
        %v2013 = vadd.f32 %v475, %v1301
        %v2014 = vadd.f32 %v476, %v1303
        %v2015 = vadd.f32 %v477, %v1305
        %v2016 = vadd.f32 %v478, %v1307
        %v2017 = vadd.f32 %v479, %v1309
        %v2018 = vadd.f32 %v480, %v1311
        %v2019 = vadd.f32 %v481, %v1313
        %v2020 = vadd.f32 %v482, %v1315
        %v2021 = vadd.f32 %v483, %v1317
        %v2022 = vadd.f32 %v484, %v1319
        %v2023 = vadd.f32 %v485, %v1321
        %v2024 = vadd.f32 %v486, %v1323
        %v2025 = vadd.f32 %v487, %v1325
        %v2026 = vadd.f32 %v488, %v1327
        %v2027 = vadd.f32 %v489, %v1329
        %v2028 = vadd.f32 %v490, %v1331
        %v2029 = vadd.f32 %v491, %v1333
        %v2030 = vadd.f32 %v492, %v1335
        %v2031 = vadd.f32 %v493, %v1337
        %v2032 = vadd.f32 %v494, %v1339
        %v2033 = vadd.f32 %v495, %v1341
        %v2034 = vadd.f32 %v496, %v1343
        %v2035 = vadd.f32 %v497, %v1345
        %v2036 = vadd.f32 %v498, %v1347
        %v2037 = vadd.f32 %v499, %v1349
        %v2038 = vadd.f32 %v500, %v1351
        %v2039 = vadd.f32 %v501, %v1353
        %v2040 = vadd.f32 %v502, %v1355
        %v2041 = vadd.f32 %v503, %v1357
        %v2042 = vadd.f32 %v504, %v1359
        %v2043 = vadd.f32 %v505, %v1361
        %v2044 = vadd.f32 %v506, %v1363
        %v2045 = vadd.f32 %v507, %v1365
        %v2046 = vadd.f32 %v508, %v1367
        %v2047 = vadd.f32 %v509, %v1369
        %v2048 = vadd.f32 %v510, %v1371
        %v2049 = vadd.f32 %v511, %v1373
        %v2050 = vadd.f32 %v512, %v1375
        %v2051 = vadd.f32 %v513, %v1377
        %v2052 = vadd.f32 %v514, %v1379
        %v2053 = vadd.f32 %v515, %v1381
        %v2054 = vadd.f32 %v516, %v1383
        %v2055 = vadd.f32 %v517, %v1385
        %v2056 = vadd.f32 %v518, %v1387
        %v2057 = vadd.f32 %v519, %v1389
        %v2058 = vadd.f32 %v520, %v1391
        %v2059 = vadd.f32 %v521, %v1393
        %v2060 = vadd.f32 %v522, %v1395
        %v2061 = vadd.f32 %v523, %v1397
        %v2062 = vadd.f32 %v524, %v1399
        %v2063 = vadd.f32 %v525, %v1401
        %v2064 = vadd.f32 %v526, %v1403
        %v2065 = vadd.f32 %v527, %v1405
        %v2066 = vadd.f32 %v528, %v1407
        %v2067 = vadd.f32 %v529, %v1409
        %v2068 = vadd.f32 %v530, %v1411
        %v2069 = vadd.f32 %v531, %v1413
        %v2070 = vadd.f32 %v532, %v1415
        %v2071 = vadd.f32 %v533, %v1417
        %v2072 = vadd.f32 %v534, %v1419
        %v2073 = vadd.f32 %v535, %v1421
        %v2074 = vadd.f32 %v536, %v1423
        %v2075 = vadd.f32 %v537, %v1425
        %v2076 = vadd.f32 %v538, %v1427
        %v2077 = vadd.f32 %v539, %v1429
        %v2078 = vadd.f32 %v540, %v1431
        %v2079 = vadd.f32 %v541, %v1433
        %v2080 = vadd.f32 %v542, %v1435
        %v2081 = vadd.f32 %v543, %v1437
        %v2082 = vadd.f32 %v544, %v1439
        %v2083 = vadd.f32 %v545, %v1441
        %v2084 = vadd.f32 %v546, %v1443
        %v2085 = vadd.f32 %v547, %v1445
        %v2086 = vadd.f32 %v548, %v1447
        %v2087 = vadd.f32 %v549, %v1449
        %v2088 = vadd.f32 %v550, %v1451
        %v2089 = vadd.f32 %v551, %v1453
        %v2090 = vadd.f32 %v552, %v1455
        %v2091 = vadd.f32 %v553, %v1457
        %v2092 = vadd.f32 %v554, %v1459
        %v2093 = vadd.f32 %v555, %v1461
        %v2094 = vadd.f32 %v556, %v1463
        %v2095 = vadd.f32 %v557, %v1465
        %v2096 = vadd.f32 %v558, %v1467
        %v2097 = vadd.f32 %v559, %v1469
        %v2098 = vadd.f32 %v560, %v1471
        %v2099 = vadd.f32 %v561, %v1473
        %v2100 = vadd.f32 %v562, %v1475
        %v2101 = vadd.f32 %v563, %v1477
        %v2102 = vadd.f32 %v564, %v1479
        %v2103 = vadd.f32 %v565, %v1481
        %v2104 = vadd.f32 %v566, %v1483
        %v2105 = vadd.f32 %v567, %v1485
        %v2106 = vadd.f32 %v568, %v1487
        %v2107 = vadd.f32 %v569, %v1489
        %v2108 = vadd.f32 %v570, %v1491
        %v2109 = vadd.f32 %v571, %v1493
        %v2110 = vadd.f32 %v572, %v1495
        %v2111 = vadd.f32 %v573, %v1497
        %v2112 = vadd.f32 %v574, %v1499
        %v2113 = vadd.f32 %v575, %v1501
        %v2114 = vadd.f32 %v576, %v1503
        %v2115 = vadd.f32 %v577, %v1505
        %v2116 = vadd.f32 %v578, %v1507
        %v2117 = vadd.f32 %v579, %v1509
        %v2118 = vadd.f32 %v580, %v1511
        %v2119 = vadd.f32 %v581, %v1513
        %v2120 = vadd.f32 %v582, %v1515
        %v2121 = vadd.f32 %v583, %v1517
        %v2122 = vadd.f32 %v584, %v1519
        %v2123 = vadd.f32 %v585, %v1521
        %v2124 = vadd.f32 %v586, %v1523
        %v2125 = vadd.f32 %v587, %v1525
        %v2126 = vadd.f32 %v588, %v1527
        %v2127 = vadd.f32 %v589, %v1529
        %v2128 = vadd.f32 %v590, %v1531
        %v2129 = vadd.f32 %v591, %v1533
        %v2130 = vadd.f32 %v592, %v1535
        %v2131 = vadd.f32 %v593, %v1537
        %v2132 = vadd.f32 %v594, %v1539
        %v2133 = vadd.f32 %v595, %v1541
        %v2134 = vadd.f32 %v596, %v1543
        %v2135 = vadd.f32 %v597, %v1545
        %v2136 = vadd.f32 %v598, %v1547
        %v2137 = vadd.f32 %v599, %v1549
        %v2138 = vadd.f32 %v600, %v1551
        %v2139 = vadd.f32 %v601, %v1553
        %v2140 = vadd.f32 %v602, %v1555
        %v2141 = vadd.f32 %v603, %v1557
        %v2142 = vadd.f32 %v604, %v1559
        %v2143 = vadd.f32 %v605, %v1561
        %v2144 = vadd.f32 %v606, %v1563
        %v2145 = vadd.f32 %v607, %v1565
        %v2146 = vadd.f32 %v608, %v1567
        %v2147 = vadd.f32 %v609, %v1569
        %v2148 = vadd.f32 %v610, %v1571
        %v2149 = vadd.f32 %v611, %v1573
        %v2150 = vadd.f32 %v612, %v1575
        %v2151 = vadd.f32 %v613, %v1577
        %v2152 = vadd.f32 %v614, %v1579
        %v2153 = vadd.f32 %v615, %v1581
        %v2154 = vadd.f32 %v616, %v1583
        %v2155 = vadd.f32 %v617, %v1585
        %v2156 = vadd.f32 %v618, %v1587
        %v2157 = vadd.f32 %v619, %v1589
        %v2158 = vadd.f32 %v620, %v1591
        %v2159 = vadd.f32 %v621, %v1593
        %v2160 = vadd.f32 %v622, %v1595
        %v2161 = vadd.f32 %v623, %v1597
        %v2162 = vadd.f32 %v624, %v1599
        %v2163 = vadd.f32 %v625, %v1601
        %v2164 = vadd.f32 %v626, %v1603
        %v2165 = vadd.f32 %v627, %v1605
        %v2166 = vadd.f32 %v628, %v1607
        %v2167 = vadd.f32 %v629, %v1609
        %v2168 = vadd.f32 %v630, %v1611
        %v2169 = vadd.f32 %v631, %v1613
        %v2170 = vadd.f32 %v632, %v1615
        %v2171 = vadd.f32 %v633, %v1617
        %v2172 = vadd.f32 %v634, %v1619
        %v2173 = vadd.f32 %v635, %v1621
        %v2174 = vadd.f32 %v636, %v1623
        %v2175 = vadd.f32 %v637, %v1625
        %v2176 = vadd.f32 %v638, %v1627
        %v2177 = vadd.f32 %v639, %v1629
        %v2178 = vadd.f32 %v640, %v1631
        %v2179 = vadd.f32 %v641, %v1633
        %v2180 = vadd.f32 %v642, %v1635
        %v2181 = vadd.f32 %v643, %v1637
        %v2182 = vadd.f32 %v644, %v1639
        %v2183 = vadd.f32 %v645, %v1641
        %v2184 = vadd.f32 %v646, %v1643
        %v2185 = vadd.f32 %v647, %v1645
        %v2186 = vadd.f32 %v648, %v1647
        %v2187 = vadd.f32 %v649, %v1649
        %v2188 = vadd.f32 %v650, %v1651
        %v2189 = vadd.f32 %v651, %v1653
        %v2190 = vadd.f32 %v652, %v1655
        %v2191 = vadd.f32 %v653, %v1657
        %v2192 = vadd.f32 %v654, %v1659
        %v2193 = vadd.f32 %v655, %v1661
        %v2194 = vadd.f32 %v656, %v1663
        %v2195 = vadd.f32 %v657, %v1665
        %v2196 = vadd.f32 %v658, %v1667
        %v2197 = vadd.f32 %v659, %v1669
        %v2198 = vadd.f32 %v660, %v1671
        %v2199 = vadd.f32 %v661, %v1673
        %v2200 = vadd.f32 %v662, %v1675
        %v2201 = vadd.f32 %v663, %v1677
        %v2202 = vadd.f32 %v664, %v1679
        %v2203 = vadd.f32 %v665, %v1681
        %v2204 = vadd.f32 %v666, %v1683
        %v2205 = vadd.f32 %v667, %v1685
        %v2206 = vadd.f32 %v668, %v1687
        %v2207 = vadd.f32 %v669, %v1689
        %v2208 = vadd.f32 %v670, %v1691
        %v2209 = vadd.f32 %v671, %v1693
        %v2210 = vadd.f32 %v672, %v1695
        %v2211 = vadd.f32 %v673, %v1697
        %v2212 = vadd.f32 %v674, %v1699
        %v2213 = vadd.f32 %v675, %v1701
        %s2214 = sld [smem:[#allocation2 + $0x2]]
        %v2215 = vstv %s2214
        %v2216 = vmul.f32 %v2215, %v162
        %v2217 = vmul.f32 %v2215, %v163
        %v2218 = vmul.f32 %v2215, %v164
        %v2219 = vmul.f32 %v2215, %v165
        %v2220 = vmul.f32 %v2215, %v166
        %v2221 = vmul.f32 %v2215, %v167
        %v2222 = vmul.f32 %v2215, %v168
        %v2223 = vmul.f32 %v2215, %v169
        %v2224 = vmul.f32 %v2215, %v170
        %v2225 = vmul.f32 %v2215, %v171
        %v2226 = vmul.f32 %v2215, %v172
        %v2227 = vmul.f32 %v2215, %v173
        %v2228 = vmul.f32 %v2215, %v174
        %v2229 = vmul.f32 %v2215, %v175
        %v2230 = vmul.f32 %v2215, %v176
        %v2231 = vmul.f32 %v2215, %v177
        %v2232 = vmul.f32 %v2215, %v178
        %v2233 = vmul.f32 %v2215, %v179
        %v2234 = vmul.f32 %v2215, %v180
        %v2235 = vmul.f32 %v2215, %v181
        %v2236 = vmul.f32 %v2215, %v182
        %v2237 = vmul.f32 %v2215, %v183
        %v2238 = vmul.f32 %v2215, %v184
        %v2239 = vmul.f32 %v2215, %v185
        %v2240 = vmul.f32 %v2215, %v186
        %v2241 = vmul.f32 %v2215, %v187
        %v2242 = vmul.f32 %v2215, %v188
        %v2243 = vmul.f32 %v2215, %v189
        %v2244 = vmul.f32 %v2215, %v190
        %v2245 = vmul.f32 %v2215, %v191
        %v2246 = vmul.f32 %v2215, %v192
        %v2247 = vmul.f32 %v2215, %v193
        %v2248 = vmul.f32 %v2215, %v194
        %v2249 = vmul.f32 %v2215, %v195
        %v2250 = vmul.f32 %v2215, %v196
        %v2251 = vmul.f32 %v2215, %v197
        %v2252 = vmul.f32 %v2215, %v198
        %v2253 = vmul.f32 %v2215, %v199
        %v2254 = vmul.f32 %v2215, %v200
        %v2255 = vmul.f32 %v2215, %v201
        %v2256 = vmul.f32 %v2215, %v202
        %v2257 = vmul.f32 %v2215, %v203
        %v2258 = vmul.f32 %v2215, %v204
        %v2259 = vmul.f32 %v2215, %v205
        %v2260 = vmul.f32 %v2215, %v206
        %v2261 = vmul.f32 %v2215, %v207
        %v2262 = vmul.f32 %v2215, %v208
        %v2263 = vmul.f32 %v2215, %v209
        %v2264 = vmul.f32 %v2215, %v210
        %v2265 = vmul.f32 %v2215, %v211
        %v2266 = vmul.f32 %v2215, %v212
        %v2267 = vmul.f32 %v2215, %v213
        %v2268 = vmul.f32 %v2215, %v214
        %v2269 = vmul.f32 %v2215, %v215
        %v2270 = vmul.f32 %v2215, %v216
        %v2271 = vmul.f32 %v2215, %v217
        %v2272 = vmul.f32 %v2215, %v218
        %v2273 = vmul.f32 %v2215, %v219
        %v2274 = vmul.f32 %v2215, %v220
        %v2275 = vmul.f32 %v2215, %v221
        %v2276 = vmul.f32 %v2215, %v222
        %v2277 = vmul.f32 %v2215, %v223
        %v2278 = vmul.f32 %v2215, %v224
        %v2279 = vmul.f32 %v2215, %v225
        %v2280 = vmul.f32 %v2215, %v226
        %v2281 = vmul.f32 %v2215, %v227
        %v2282 = vmul.f32 %v2215, %v228
        %v2283 = vmul.f32 %v2215, %v229
        %v2284 = vmul.f32 %v2215, %v230
        %v2285 = vmul.f32 %v2215, %v231
        %v2286 = vmul.f32 %v2215, %v232
        %v2287 = vmul.f32 %v2215, %v233
        %v2288 = vmul.f32 %v2215, %v234
        %v2289 = vmul.f32 %v2215, %v235
        %v2290 = vmul.f32 %v2215, %v236
        %v2291 = vmul.f32 %v2215, %v237
        %v2292 = vmul.f32 %v2215, %v238
        %v2293 = vmul.f32 %v2215, %v239
        %v2294 = vmul.f32 %v2215, %v240
        %v2295 = vmul.f32 %v2215, %v241
        %v2296 = vmul.f32 %v2215, %v242
        %v2297 = vmul.f32 %v2215, %v243
        %v2298 = vmul.f32 %v2215, %v244
        %v2299 = vmul.f32 %v2215, %v245
        %v2300 = vmul.f32 %v2215, %v246
        %v2301 = vmul.f32 %v2215, %v247
        %v2302 = vmul.f32 %v2215, %v248
        %v2303 = vmul.f32 %v2215, %v249
        %v2304 = vmul.f32 %v2215, %v250
        %v2305 = vmul.f32 %v2215, %v251
        %v2306 = vmul.f32 %v2215, %v252
        %v2307 = vmul.f32 %v2215, %v253
        %v2308 = vmul.f32 %v2215, %v254
        %v2309 = vmul.f32 %v2215, %v255
        %v2310 = vmul.f32 %v2215, %v256
        %v2311 = vmul.f32 %v2215, %v257
        %v2312 = vmul.f32 %v2215, %v258
        %v2313 = vmul.f32 %v2215, %v259
        %v2314 = vmul.f32 %v2215, %v260
        %v2315 = vmul.f32 %v2215, %v261
        %v2316 = vmul.f32 %v2215, %v262
        %v2317 = vmul.f32 %v2215, %v263
        %v2318 = vmul.f32 %v2215, %v264
        %v2319 = vmul.f32 %v2215, %v265
        %v2320 = vmul.f32 %v2215, %v266
        %v2321 = vmul.f32 %v2215, %v267
        %v2322 = vmul.f32 %v2215, %v268
        %v2323 = vmul.f32 %v2215, %v269
        %v2324 = vmul.f32 %v2215, %v270
        %v2325 = vmul.f32 %v2215, %v271
        %v2326 = vmul.f32 %v2215, %v272
        %v2327 = vmul.f32 %v2215, %v273
        %v2328 = vmul.f32 %v2215, %v274
        %v2329 = vmul.f32 %v2215, %v275
        %v2330 = vmul.f32 %v2215, %v276
        %v2331 = vmul.f32 %v2215, %v277
        %v2332 = vmul.f32 %v2215, %v278
        %v2333 = vmul.f32 %v2215, %v279
        %v2334 = vmul.f32 %v2215, %v280
        %v2335 = vmul.f32 %v2215, %v281
        %v2336 = vmul.f32 %v2215, %v282
        %v2337 = vmul.f32 %v2215, %v283
        %v2338 = vmul.f32 %v2215, %v284
        %v2339 = vmul.f32 %v2215, %v285
        %v2340 = vmul.f32 %v2215, %v286
        %v2341 = vmul.f32 %v2215, %v287
        %v2342 = vmul.f32 %v2215, %v288
        %v2343 = vmul.f32 %v2215, %v289
        %v2344 = vmul.f32 %v2215, %v290
        %v2345 = vmul.f32 %v2215, %v291
        %v2346 = vmul.f32 %v2215, %v292
        %v2347 = vmul.f32 %v2215, %v293
        %v2348 = vmul.f32 %v2215, %v294
        %v2349 = vmul.f32 %v2215, %v295
        %v2350 = vmul.f32 %v2215, %v296
        %v2351 = vmul.f32 %v2215, %v297
        %v2352 = vmul.f32 %v2215, %v298
        %v2353 = vmul.f32 %v2215, %v299
        %v2354 = vmul.f32 %v2215, %v300
        %v2355 = vmul.f32 %v2215, %v301
        %v2356 = vmul.f32 %v2215, %v302
        %v2357 = vmul.f32 %v2215, %v303
        %v2358 = vmul.f32 %v2215, %v304
        %v2359 = vmul.f32 %v2215, %v305
        %v2360 = vmul.f32 %v2215, %v306
        %v2361 = vmul.f32 %v2215, %v307
        %v2362 = vmul.f32 %v2215, %v308
        %v2363 = vmul.f32 %v2215, %v309
        %v2364 = vmul.f32 %v2215, %v310
        %v2365 = vmul.f32 %v2215, %v311
        %v2366 = vmul.f32 %v2215, %v312
        %v2367 = vmul.f32 %v2215, %v313
        %v2368 = vmul.f32 %v2215, %v314
        %v2369 = vmul.f32 %v2215, %v315
        %v2370 = vmul.f32 %v2215, %v316
        %v2371 = vmul.f32 %v2215, %v317
        %v2372 = vmul.f32 %v2215, %v318
        %v2373 = vmul.f32 %v2215, %v319
        %v2374 = vmul.f32 %v2215, %v320
        %v2375 = vmul.f32 %v2215, %v321
        %v2376 = vmul.f32 %v2215, %v322
        %v2377 = vmul.f32 %v2215, %v323
        %v2378 = vmul.f32 %v2215, %v324
        %v2379 = vmul.f32 %v2215, %v325
        %v2380 = vmul.f32 %v2215, %v326
        %v2381 = vmul.f32 %v2215, %v327
        %v2382 = vmul.f32 %v2215, %v328
        %v2383 = vmul.f32 %v2215, %v329
        %v2384 = vmul.f32 %v2215, %v330
        %v2385 = vmul.f32 %v2215, %v331
        %v2386 = vmul.f32 %v2215, %v332
        %v2387 = vmul.f32 %v2215, %v333
        %v2388 = vmul.f32 %v2215, %v334
        %v2389 = vmul.f32 %v2215, %v335
        %v2390 = vmul.f32 %v2215, %v336
        %v2391 = vmul.f32 %v2215, %v337
        %v2392 = vmul.f32 %v2215, %v338
        %v2393 = vmul.f32 %v2215, %v339
        %v2394 = vmul.f32 %v2215, %v340
        %v2395 = vmul.f32 %v2215, %v341
        %v2396 = vmul.f32 %v2215, %v342
        %v2397 = vmul.f32 %v2215, %v343
        %v2398 = vmul.f32 %v2215, %v344
        %v2399 = vmul.f32 %v2215, %v345
        %v2400 = vmul.f32 %v2215, %v346
        %v2401 = vmul.f32 %v2215, %v347
        %v2402 = vmul.f32 %v2215, %v348
        %v2403 = vmul.f32 %v2215, %v349
        %v2404 = vmul.f32 %v2215, %v350
        %v2405 = vmul.f32 %v2215, %v351
        %v2406 = vmul.f32 %v2215, %v352
        %v2407 = vmul.f32 %v2215, %v353
        %v2408 = vmul.f32 %v2215, %v354
        %v2409 = vmul.f32 %v2215, %v355
        %v2410 = vmul.f32 %v2215, %v356
        %v2411 = vmul.f32 %v2215, %v357
        %v2412 = vmul.f32 %v2215, %v358
        %v2413 = vmul.f32 %v2215, %v359
        %v2414 = vmul.f32 %v2215, %v360
        %v2415 = vmul.f32 %v2215, %v361
        %v2416 = vmul.f32 %v2215, %v362
        %v2417 = vmul.f32 %v2215, %v363
        %v2418 = vmul.f32 %v2215, %v364
        %v2419 = vmul.f32 %v2215, %v365
        %v2420 = vmul.f32 %v2215, %v366
        %v2421 = vmul.f32 %v2215, %v367
        %v2422 = vmul.f32 %v2215, %v368
        %v2423 = vmul.f32 %v2215, %v369
        %v2424 = vmul.f32 %v2215, %v370
        %v2425 = vmul.f32 %v2215, %v371
        %v2426 = vmul.f32 %v2215, %v372
        %v2427 = vmul.f32 %v2215, %v373
        %v2428 = vmul.f32 %v2215, %v374
        %v2429 = vmul.f32 %v2215, %v375
        %v2430 = vmul.f32 %v2215, %v376
        %v2431 = vmul.f32 %v2215, %v377
        %v2432 = vmul.f32 %v2215, %v378
        %v2433 = vmul.f32 %v2215, %v379
        %v2434 = vmul.f32 %v2215, %v380
        %v2435 = vmul.f32 %v2215, %v381
        %v2436 = vmul.f32 %v2215, %v382
        %v2437 = vmul.f32 %v2215, %v383
        %v2438 = vmul.f32 %v2215, %v384
        %v2439 = vmul.f32 %v2215, %v385
        %v2440 = vmul.f32 %v2215, %v386
        %v2441 = vmul.f32 %v2215, %v387
        %v2442 = vmul.f32 %v2215, %v388
        %v2443 = vmul.f32 %v2215, %v389
        %v2444 = vmul.f32 %v2215, %v390
        %v2445 = vmul.f32 %v2215, %v391
        %v2446 = vmul.f32 %v2215, %v392
        %v2447 = vmul.f32 %v2215, %v393
        %v2448 = vmul.f32 %v2215, %v394
        %v2449 = vmul.f32 %v2215, %v395
        %v2450 = vmul.f32 %v2215, %v396
        %v2451 = vmul.f32 %v2215, %v397
        %v2452 = vmul.f32 %v2215, %v398
        %v2453 = vmul.f32 %v2215, %v399
        %v2454 = vmul.f32 %v2215, %v400
        %v2455 = vmul.f32 %v2215, %v401
        %v2456 = vmul.f32 %v2215, %v402
        %v2457 = vmul.f32 %v2215, %v403
        %v2458 = vmul.f32 %v2215, %v404
        %v2459 = vmul.f32 %v2215, %v405
        %v2460 = vmul.f32 %v2215, %v406
        %v2461 = vmul.f32 %v2215, %v407
        %v2462 = vmul.f32 %v2215, %v408
        %v2463 = vmul.f32 %v2215, %v409
        %v2464 = vmul.f32 %v2215, %v410
        %v2465 = vmul.f32 %v2215, %v411
        %v2466 = vmul.f32 %v2215, %v412
        %v2467 = vmul.f32 %v2215, %v413
        %v2468 = vmul.f32 %v2215, %v414
        %v2469 = vmul.f32 %v2215, %v415
        %v2470 = vmul.f32 %v2215, %v416
        %v2471 = vmul.f32 %v2215, %v417
        %v2728 = vrot.slane %v2216, 6
        %v2729 = vrot.slane %v2728, 4
        %v2730 = vrot.slane %v2217, 6
        %v2731 = vrot.slane %v2730, 4
        %v2732 = vrot.slane %v2218, 6
        %v2733 = vrot.slane %v2732, 4
        %v2734 = vrot.slane %v2219, 6
        %v2735 = vrot.slane %v2734, 4
        %v2736 = vrot.slane %v2220, 6
        %v2737 = vrot.slane %v2736, 4
        %v2738 = vrot.slane %v2221, 6
        %v2739 = vrot.slane %v2738, 4
        %v2740 = vrot.slane %v2222, 6
        %v2741 = vrot.slane %v2740, 4
        %v2742 = vrot.slane %v2223, 6
        %v2743 = vrot.slane %v2742, 4
        %v2744 = vrot.slane %v2224, 6
        %v2745 = vrot.slane %v2744, 4
        %v2746 = vrot.slane %v2225, 6
        %v2747 = vrot.slane %v2746, 4
        %v2748 = vrot.slane %v2226, 6
        %v2749 = vrot.slane %v2748, 4
        %v2750 = vrot.slane %v2227, 6
        %v2751 = vrot.slane %v2750, 4
        %v2752 = vrot.slane %v2228, 6
        %v2753 = vrot.slane %v2752, 4
        %v2754 = vrot.slane %v2229, 6
        %v2755 = vrot.slane %v2754, 4
        %v2756 = vrot.slane %v2230, 6
        %v2757 = vrot.slane %v2756, 4
        %v2758 = vrot.slane %v2231, 6
        %v2759 = vrot.slane %v2758, 4
        %v2760 = vrot.slane %v2232, 6
        %v2761 = vrot.slane %v2760, 4
        %v2762 = vrot.slane %v2233, 6
        %v2763 = vrot.slane %v2762, 4
        %v2764 = vrot.slane %v2234, 6
        %v2765 = vrot.slane %v2764, 4
        %v2766 = vrot.slane %v2235, 6
        %v2767 = vrot.slane %v2766, 4
        %v2768 = vrot.slane %v2236, 6
        %v2769 = vrot.slane %v2768, 4
        %v2770 = vrot.slane %v2237, 6
        %v2771 = vrot.slane %v2770, 4
        %v2772 = vrot.slane %v2238, 6
        %v2773 = vrot.slane %v2772, 4
        %v2774 = vrot.slane %v2239, 6
        %v2775 = vrot.slane %v2774, 4
        %v2776 = vrot.slane %v2240, 6
        %v2777 = vrot.slane %v2776, 4
        %v2778 = vrot.slane %v2241, 6
        %v2779 = vrot.slane %v2778, 4
        %v2780 = vrot.slane %v2242, 6
        %v2781 = vrot.slane %v2780, 4
        %v2782 = vrot.slane %v2243, 6
        %v2783 = vrot.slane %v2782, 4
        %v2784 = vrot.slane %v2244, 6
        %v2785 = vrot.slane %v2784, 4
        %v2786 = vrot.slane %v2245, 6
        %v2787 = vrot.slane %v2786, 4
        %v2788 = vrot.slane %v2246, 6
        %v2789 = vrot.slane %v2788, 4
        %v2790 = vrot.slane %v2247, 6
        %v2791 = vrot.slane %v2790, 4
        %v2792 = vrot.slane %v2248, 6
        %v2793 = vrot.slane %v2792, 4
        %v2794 = vrot.slane %v2249, 6
        %v2795 = vrot.slane %v2794, 4
        %v2796 = vrot.slane %v2250, 6
        %v2797 = vrot.slane %v2796, 4
        %v2798 = vrot.slane %v2251, 6
        %v2799 = vrot.slane %v2798, 4
        %v2800 = vrot.slane %v2252, 6
        %v2801 = vrot.slane %v2800, 4
        %v2802 = vrot.slane %v2253, 6
        %v2803 = vrot.slane %v2802, 4
        %v2804 = vrot.slane %v2254, 6
        %v2805 = vrot.slane %v2804, 4
        %v2806 = vrot.slane %v2255, 6
        %v2807 = vrot.slane %v2806, 4
        %v2808 = vrot.slane %v2256, 6
        %v2809 = vrot.slane %v2808, 4
        %v2810 = vrot.slane %v2257, 6
        %v2811 = vrot.slane %v2810, 4
        %v2812 = vrot.slane %v2258, 6
        %v2813 = vrot.slane %v2812, 4
        %v2814 = vrot.slane %v2259, 6
        %v2815 = vrot.slane %v2814, 4
        %v2816 = vrot.slane %v2260, 6
        %v2817 = vrot.slane %v2816, 4
        %v2818 = vrot.slane %v2261, 6
        %v2819 = vrot.slane %v2818, 4
        %v2820 = vrot.slane %v2262, 6
        %v2821 = vrot.slane %v2820, 4
        %v2822 = vrot.slane %v2263, 6
        %v2823 = vrot.slane %v2822, 4
        %v2824 = vrot.slane %v2264, 6
        %v2825 = vrot.slane %v2824, 4
        %v2826 = vrot.slane %v2265, 6
        %v2827 = vrot.slane %v2826, 4
        %v2828 = vrot.slane %v2266, 6
        %v2829 = vrot.slane %v2828, 4
        %v2830 = vrot.slane %v2267, 6
        %v2831 = vrot.slane %v2830, 4
        %v2832 = vrot.slane %v2268, 6
        %v2833 = vrot.slane %v2832, 4
        %v2834 = vrot.slane %v2269, 6
        %v2835 = vrot.slane %v2834, 4
        %v2836 = vrot.slane %v2270, 6
        %v2837 = vrot.slane %v2836, 4
        %v2838 = vrot.slane %v2271, 6
        %v2839 = vrot.slane %v2838, 4
        %v2840 = vrot.slane %v2272, 6
        %v2841 = vrot.slane %v2840, 4
        %v2842 = vrot.slane %v2273, 6
        %v2843 = vrot.slane %v2842, 4
        %v2844 = vrot.slane %v2274, 6
        %v2845 = vrot.slane %v2844, 4
        %v2846 = vrot.slane %v2275, 6
        %v2847 = vrot.slane %v2846, 4
        %v2848 = vrot.slane %v2276, 6
        %v2849 = vrot.slane %v2848, 4
        %v2850 = vrot.slane %v2277, 6
        %v2851 = vrot.slane %v2850, 4
        %v2852 = vrot.slane %v2278, 6
        %v2853 = vrot.slane %v2852, 4
        %v2854 = vrot.slane %v2279, 6
        %v2855 = vrot.slane %v2854, 4
        %v2856 = vrot.slane %v2280, 6
        %v2857 = vrot.slane %v2856, 4
        %v2858 = vrot.slane %v2281, 6
        %v2859 = vrot.slane %v2858, 4
        %v2860 = vrot.slane %v2282, 6
        %v2861 = vrot.slane %v2860, 4
        %v2862 = vrot.slane %v2283, 6
        %v2863 = vrot.slane %v2862, 4
        %v2864 = vrot.slane %v2284, 6
        %v2865 = vrot.slane %v2864, 4
        %v2866 = vrot.slane %v2285, 6
        %v2867 = vrot.slane %v2866, 4
        %v2868 = vrot.slane %v2286, 6
        %v2869 = vrot.slane %v2868, 4
        %v2870 = vrot.slane %v2287, 6
        %v2871 = vrot.slane %v2870, 4
        %v2872 = vrot.slane %v2288, 6
        %v2873 = vrot.slane %v2872, 4
        %v2874 = vrot.slane %v2289, 6
        %v2875 = vrot.slane %v2874, 4
        %v2876 = vrot.slane %v2290, 6
        %v2877 = vrot.slane %v2876, 4
        %v2878 = vrot.slane %v2291, 6
        %v2879 = vrot.slane %v2878, 4
        %v2880 = vrot.slane %v2292, 6
        %v2881 = vrot.slane %v2880, 4
        %v2882 = vrot.slane %v2293, 6
        %v2883 = vrot.slane %v2882, 4
        %v2884 = vrot.slane %v2294, 6
        %v2885 = vrot.slane %v2884, 4
        %v2886 = vrot.slane %v2295, 6
        %v2887 = vrot.slane %v2886, 4
        %v2888 = vrot.slane %v2296, 6
        %v2889 = vrot.slane %v2888, 4
        %v2890 = vrot.slane %v2297, 6
        %v2891 = vrot.slane %v2890, 4
        %v2892 = vrot.slane %v2298, 6
        %v2893 = vrot.slane %v2892, 4
        %v2894 = vrot.slane %v2299, 6
        %v2895 = vrot.slane %v2894, 4
        %v2896 = vrot.slane %v2300, 6
        %v2897 = vrot.slane %v2896, 4
        %v2898 = vrot.slane %v2301, 6
        %v2899 = vrot.slane %v2898, 4
        %v2900 = vrot.slane %v2302, 6
        %v2901 = vrot.slane %v2900, 4
        %v2902 = vrot.slane %v2303, 6
        %v2903 = vrot.slane %v2902, 4
        %v2904 = vrot.slane %v2304, 6
        %v2905 = vrot.slane %v2904, 4
        %v2906 = vrot.slane %v2305, 6
        %v2907 = vrot.slane %v2906, 4
        %v2908 = vrot.slane %v2306, 6
        %v2909 = vrot.slane %v2908, 4
        %v2910 = vrot.slane %v2307, 6
        %v2911 = vrot.slane %v2910, 4
        %v2912 = vrot.slane %v2308, 6
        %v2913 = vrot.slane %v2912, 4
        %v2914 = vrot.slane %v2309, 6
        %v2915 = vrot.slane %v2914, 4
        %v2916 = vrot.slane %v2310, 6
        %v2917 = vrot.slane %v2916, 4
        %v2918 = vrot.slane %v2311, 6
        %v2919 = vrot.slane %v2918, 4
        %v2920 = vrot.slane %v2312, 6
        %v2921 = vrot.slane %v2920, 4
        %v2922 = vrot.slane %v2313, 6
        %v2923 = vrot.slane %v2922, 4
        %v2924 = vrot.slane %v2314, 6
        %v2925 = vrot.slane %v2924, 4
        %v2926 = vrot.slane %v2315, 6
        %v2927 = vrot.slane %v2926, 4
        %v2928 = vrot.slane %v2316, 6
        %v2929 = vrot.slane %v2928, 4
        %v2930 = vrot.slane %v2317, 6
        %v2931 = vrot.slane %v2930, 4
        %v2932 = vrot.slane %v2318, 6
        %v2933 = vrot.slane %v2932, 4
        %v2934 = vrot.slane %v2319, 6
        %v2935 = vrot.slane %v2934, 4
        %v2936 = vrot.slane %v2320, 6
        %v2937 = vrot.slane %v2936, 4
        %v2938 = vrot.slane %v2321, 6
        %v2939 = vrot.slane %v2938, 4
        %v2940 = vrot.slane %v2322, 6
        %v2941 = vrot.slane %v2940, 4
        %v2942 = vrot.slane %v2323, 6
        %v2943 = vrot.slane %v2942, 4
        %v2944 = vrot.slane %v2324, 6
        %v2945 = vrot.slane %v2944, 4
        %v2946 = vrot.slane %v2325, 6
        %v2947 = vrot.slane %v2946, 4
        %v2948 = vrot.slane %v2326, 6
        %v2949 = vrot.slane %v2948, 4
        %v2950 = vrot.slane %v2327, 6
        %v2951 = vrot.slane %v2950, 4
        %v2952 = vrot.slane %v2328, 6
        %v2953 = vrot.slane %v2952, 4
        %v2954 = vrot.slane %v2329, 6
        %v2955 = vrot.slane %v2954, 4
        %v2956 = vrot.slane %v2330, 6
        %v2957 = vrot.slane %v2956, 4
        %v2958 = vrot.slane %v2331, 6
        %v2959 = vrot.slane %v2958, 4
        %v2960 = vrot.slane %v2332, 6
        %v2961 = vrot.slane %v2960, 4
        %v2962 = vrot.slane %v2333, 6
        %v2963 = vrot.slane %v2962, 4
        %v2964 = vrot.slane %v2334, 6
        %v2965 = vrot.slane %v2964, 4
        %v2966 = vrot.slane %v2335, 6
        %v2967 = vrot.slane %v2966, 4
        %v2968 = vrot.slane %v2336, 6
        %v2969 = vrot.slane %v2968, 4
        %v2970 = vrot.slane %v2337, 6
        %v2971 = vrot.slane %v2970, 4
        %v2972 = vrot.slane %v2338, 6
        %v2973 = vrot.slane %v2972, 4
        %v2974 = vrot.slane %v2339, 6
        %v2975 = vrot.slane %v2974, 4
        %v2976 = vrot.slane %v2340, 6
        %v2977 = vrot.slane %v2976, 4
        %v2978 = vrot.slane %v2341, 6
        %v2979 = vrot.slane %v2978, 4
        %v2980 = vrot.slane %v2342, 6
        %v2981 = vrot.slane %v2980, 4
        %v2982 = vrot.slane %v2343, 6
        %v2983 = vrot.slane %v2982, 4
        %v2984 = vrot.slane %v2344, 6
        %v2985 = vrot.slane %v2984, 4
        %v2986 = vrot.slane %v2345, 6
        %v2987 = vrot.slane %v2986, 4
        %v2988 = vrot.slane %v2346, 6
        %v2989 = vrot.slane %v2988, 4
        %v2990 = vrot.slane %v2347, 6
        %v2991 = vrot.slane %v2990, 4
        %v2992 = vrot.slane %v2348, 6
        %v2993 = vrot.slane %v2992, 4
        %v2994 = vrot.slane %v2349, 6
        %v2995 = vrot.slane %v2994, 4
        %v2996 = vrot.slane %v2350, 6
        %v2997 = vrot.slane %v2996, 4
        %v2998 = vrot.slane %v2351, 6
        %v2999 = vrot.slane %v2998, 4
        %v3000 = vrot.slane %v2352, 6
        %v3001 = vrot.slane %v3000, 4
        %v3002 = vrot.slane %v2353, 6
        %v3003 = vrot.slane %v3002, 4
        %v3004 = vrot.slane %v2354, 6
        %v3005 = vrot.slane %v3004, 4
        %v3006 = vrot.slane %v2355, 6
        %v3007 = vrot.slane %v3006, 4
        %v3008 = vrot.slane %v2356, 6
        %v3009 = vrot.slane %v3008, 4
        %v3010 = vrot.slane %v2357, 6
        %v3011 = vrot.slane %v3010, 4
        %v3012 = vrot.slane %v2358, 6
        %v3013 = vrot.slane %v3012, 4
        %v3014 = vrot.slane %v2359, 6
        %v3015 = vrot.slane %v3014, 4
        %v3016 = vrot.slane %v2360, 6
        %v3017 = vrot.slane %v3016, 4
        %v3018 = vrot.slane %v2361, 6
        %v3019 = vrot.slane %v3018, 4
        %v3020 = vrot.slane %v2362, 6
        %v3021 = vrot.slane %v3020, 4
        %v3022 = vrot.slane %v2363, 6
        %v3023 = vrot.slane %v3022, 4
        %v3024 = vrot.slane %v2364, 6
        %v3025 = vrot.slane %v3024, 4
        %v3026 = vrot.slane %v2365, 6
        %v3027 = vrot.slane %v3026, 4
        %v3028 = vrot.slane %v2366, 6
        %v3029 = vrot.slane %v3028, 4
        %v3030 = vrot.slane %v2367, 6
        %v3031 = vrot.slane %v3030, 4
        %v3032 = vrot.slane %v2368, 6
        %v3033 = vrot.slane %v3032, 4
        %v3034 = vrot.slane %v2369, 6
        %v3035 = vrot.slane %v3034, 4
        %v3036 = vrot.slane %v2370, 6
        %v3037 = vrot.slane %v3036, 4
        %v3038 = vrot.slane %v2371, 6
        %v3039 = vrot.slane %v3038, 4
        %v3040 = vrot.slane %v2372, 6
        %v3041 = vrot.slane %v3040, 4
        %v3042 = vrot.slane %v2373, 6
        %v3043 = vrot.slane %v3042, 4
        %v3044 = vrot.slane %v2374, 6
        %v3045 = vrot.slane %v3044, 4
        %v3046 = vrot.slane %v2375, 6
        %v3047 = vrot.slane %v3046, 4
        %v3048 = vrot.slane %v2376, 6
        %v3049 = vrot.slane %v3048, 4
        %v3050 = vrot.slane %v2377, 6
        %v3051 = vrot.slane %v3050, 4
        %v3052 = vrot.slane %v2378, 6
        %v3053 = vrot.slane %v3052, 4
        %v3054 = vrot.slane %v2379, 6
        %v3055 = vrot.slane %v3054, 4
        %v3056 = vrot.slane %v2380, 6
        %v3057 = vrot.slane %v3056, 4
        %v3058 = vrot.slane %v2381, 6
        %v3059 = vrot.slane %v3058, 4
        %v3060 = vrot.slane %v2382, 6
        %v3061 = vrot.slane %v3060, 4
        %v3062 = vrot.slane %v2383, 6
        %v3063 = vrot.slane %v3062, 4
        %v3064 = vrot.slane %v2384, 6
        %v3065 = vrot.slane %v3064, 4
        %v3066 = vrot.slane %v2385, 6
        %v3067 = vrot.slane %v3066, 4
        %v3068 = vrot.slane %v2386, 6
        %v3069 = vrot.slane %v3068, 4
        %v3070 = vrot.slane %v2387, 6
        %v3071 = vrot.slane %v3070, 4
        %v3072 = vrot.slane %v2388, 6
        %v3073 = vrot.slane %v3072, 4
        %v3074 = vrot.slane %v2389, 6
        %v3075 = vrot.slane %v3074, 4
        %v3076 = vrot.slane %v2390, 6
        %v3077 = vrot.slane %v3076, 4
        %v3078 = vrot.slane %v2391, 6
        %v3079 = vrot.slane %v3078, 4
        %v3080 = vrot.slane %v2392, 6
        %v3081 = vrot.slane %v3080, 4
        %v3082 = vrot.slane %v2393, 6
        %v3083 = vrot.slane %v3082, 4
        %v3084 = vrot.slane %v2394, 6
        %v3085 = vrot.slane %v3084, 4
        %v3086 = vrot.slane %v2395, 6
        %v3087 = vrot.slane %v3086, 4
        %v3088 = vrot.slane %v2396, 6
        %v3089 = vrot.slane %v3088, 4
        %v3090 = vrot.slane %v2397, 6
        %v3091 = vrot.slane %v3090, 4
        %v3092 = vrot.slane %v2398, 6
        %v3093 = vrot.slane %v3092, 4
        %v3094 = vrot.slane %v2399, 6
        %v3095 = vrot.slane %v3094, 4
        %v3096 = vrot.slane %v2400, 6
        %v3097 = vrot.slane %v3096, 4
        %v3098 = vrot.slane %v2401, 6
        %v3099 = vrot.slane %v3098, 4
        %v3100 = vrot.slane %v2402, 6
        %v3101 = vrot.slane %v3100, 4
        %v3102 = vrot.slane %v2403, 6
        %v3103 = vrot.slane %v3102, 4
        %v3104 = vrot.slane %v2404, 6
        %v3105 = vrot.slane %v3104, 4
        %v3106 = vrot.slane %v2405, 6
        %v3107 = vrot.slane %v3106, 4
        %v3108 = vrot.slane %v2406, 6
        %v3109 = vrot.slane %v3108, 4
        %v3110 = vrot.slane %v2407, 6
        %v3111 = vrot.slane %v3110, 4
        %v3112 = vrot.slane %v2408, 6
        %v3113 = vrot.slane %v3112, 4
        %v3114 = vrot.slane %v2409, 6
        %v3115 = vrot.slane %v3114, 4
        %v3116 = vrot.slane %v2410, 6
        %v3117 = vrot.slane %v3116, 4
        %v3118 = vrot.slane %v2411, 6
        %v3119 = vrot.slane %v3118, 4
        %v3120 = vrot.slane %v2412, 6
        %v3121 = vrot.slane %v3120, 4
        %v3122 = vrot.slane %v2413, 6
        %v3123 = vrot.slane %v3122, 4
        %v3124 = vrot.slane %v2414, 6
        %v3125 = vrot.slane %v3124, 4
        %v3126 = vrot.slane %v2415, 6
        %v3127 = vrot.slane %v3126, 4
        %v3128 = vrot.slane %v2416, 6
        %v3129 = vrot.slane %v3128, 4
        %v3130 = vrot.slane %v2417, 6
        %v3131 = vrot.slane %v3130, 4
        %v3132 = vrot.slane %v2418, 6
        %v3133 = vrot.slane %v3132, 4
        %v3134 = vrot.slane %v2419, 6
        %v3135 = vrot.slane %v3134, 4
        %v3136 = vrot.slane %v2420, 6
        %v3137 = vrot.slane %v3136, 4
        %v3138 = vrot.slane %v2421, 6
        %v3139 = vrot.slane %v3138, 4
        %v3140 = vrot.slane %v2422, 6
        %v3141 = vrot.slane %v3140, 4
        %v3142 = vrot.slane %v2423, 6
        %v3143 = vrot.slane %v3142, 4
        %v3144 = vrot.slane %v2424, 6
        %v3145 = vrot.slane %v3144, 4
        %v3146 = vrot.slane %v2425, 6
        %v3147 = vrot.slane %v3146, 4
        %v3148 = vrot.slane %v2426, 6
        %v3149 = vrot.slane %v3148, 4
        %v3150 = vrot.slane %v2427, 6
        %v3151 = vrot.slane %v3150, 4
        %v3152 = vrot.slane %v2428, 6
        %v3153 = vrot.slane %v3152, 4
        %v3154 = vrot.slane %v2429, 6
        %v3155 = vrot.slane %v3154, 4
        %v3156 = vrot.slane %v2430, 6
        %v3157 = vrot.slane %v3156, 4
        %v3158 = vrot.slane %v2431, 6
        %v3159 = vrot.slane %v3158, 4
        %v3160 = vrot.slane %v2432, 6
        %v3161 = vrot.slane %v3160, 4
        %v3162 = vrot.slane %v2433, 6
        %v3163 = vrot.slane %v3162, 4
        %v3164 = vrot.slane %v2434, 6
        %v3165 = vrot.slane %v3164, 4
        %v3166 = vrot.slane %v2435, 6
        %v3167 = vrot.slane %v3166, 4
        %v3168 = vrot.slane %v2436, 6
        %v3169 = vrot.slane %v3168, 4
        %v3170 = vrot.slane %v2437, 6
        %v3171 = vrot.slane %v3170, 4
        %v3172 = vrot.slane %v2438, 6
        %v3173 = vrot.slane %v3172, 4
        %v3174 = vrot.slane %v2439, 6
        %v3175 = vrot.slane %v3174, 4
        %v3176 = vrot.slane %v2440, 6
        %v3177 = vrot.slane %v3176, 4
        %v3178 = vrot.slane %v2441, 6
        %v3179 = vrot.slane %v3178, 4
        %v3180 = vrot.slane %v2442, 6
        %v3181 = vrot.slane %v3180, 4
        %v3182 = vrot.slane %v2443, 6
        %v3183 = vrot.slane %v3182, 4
        %v3184 = vrot.slane %v2444, 6
        %v3185 = vrot.slane %v3184, 4
        %v3186 = vrot.slane %v2445, 6
        %v3187 = vrot.slane %v3186, 4
        %v3188 = vrot.slane %v2446, 6
        %v3189 = vrot.slane %v3188, 4
        %v3190 = vrot.slane %v2447, 6
        %v3191 = vrot.slane %v3190, 4
        %v3192 = vrot.slane %v2448, 6
        %v3193 = vrot.slane %v3192, 4
        %v3194 = vrot.slane %v2449, 6
        %v3195 = vrot.slane %v3194, 4
        %v3196 = vrot.slane %v2450, 6
        %v3197 = vrot.slane %v3196, 4
        %v3198 = vrot.slane %v2451, 6
        %v3199 = vrot.slane %v3198, 4
        %v3200 = vrot.slane %v2452, 6
        %v3201 = vrot.slane %v3200, 4
        %v3202 = vrot.slane %v2453, 6
        %v3203 = vrot.slane %v3202, 4
        %v3204 = vrot.slane %v2454, 6
        %v3205 = vrot.slane %v3204, 4
        %v3206 = vrot.slane %v2455, 6
        %v3207 = vrot.slane %v3206, 4
        %v3208 = vrot.slane %v2456, 6
        %v3209 = vrot.slane %v3208, 4
        %v3210 = vrot.slane %v2457, 6
        %v3211 = vrot.slane %v3210, 4
        %v3212 = vrot.slane %v2458, 6
        %v3213 = vrot.slane %v3212, 4
        %v3214 = vrot.slane %v2459, 6
        %v3215 = vrot.slane %v3214, 4
        %v3216 = vrot.slane %v2460, 6
        %v3217 = vrot.slane %v3216, 4
        %v3218 = vrot.slane %v2461, 6
        %v3219 = vrot.slane %v3218, 4
        %v3220 = vrot.slane %v2462, 6
        %v3221 = vrot.slane %v3220, 4
        %v3222 = vrot.slane %v2463, 6
        %v3223 = vrot.slane %v3222, 4
        %v3224 = vrot.slane %v2464, 6
        %v3225 = vrot.slane %v3224, 4
        %v3226 = vrot.slane %v2465, 6
        %v3227 = vrot.slane %v3226, 4
        %v3228 = vrot.slane %v2466, 6
        %v3229 = vrot.slane %v3228, 4
        %v3230 = vrot.slane %v2467, 6
        %v3231 = vrot.slane %v3230, 4
        %v3232 = vrot.slane %v2468, 6
        %v3233 = vrot.slane %v3232, 4
        %v3234 = vrot.slane %v2469, 6
        %v3235 = vrot.slane %v3234, 4
        %v3236 = vrot.slane %v2470, 6
        %v3237 = vrot.slane %v3236, 4
        %v3238 = vrot.slane %v2471, 6
        %v3239 = vrot.slane %v3238, 4
        %v3496 = vadd.f32 %v1958, %v2729
        %v3497 = vadd.f32 %v1959, %v2731
        %v3498 = vadd.f32 %v1960, %v2733
        %v3499 = vadd.f32 %v1961, %v2735
        %v3500 = vadd.f32 %v1962, %v2737
        %v3501 = vadd.f32 %v1963, %v2739
        %v3502 = vadd.f32 %v1964, %v2741
        %v3503 = vadd.f32 %v1965, %v2743
        %v3504 = vadd.f32 %v1966, %v2745
        %v3505 = vadd.f32 %v1967, %v2747
        %v3506 = vadd.f32 %v1968, %v2749
        %v3507 = vadd.f32 %v1969, %v2751
        %v3508 = vadd.f32 %v1970, %v2753
        %v3509 = vadd.f32 %v1971, %v2755
        %v3510 = vadd.f32 %v1972, %v2757
        %v3511 = vadd.f32 %v1973, %v2759
        %v3512 = vadd.f32 %v1974, %v2761
        %v3513 = vadd.f32 %v1975, %v2763
        %v3514 = vadd.f32 %v1976, %v2765
        %v3515 = vadd.f32 %v1977, %v2767
        %v3516 = vadd.f32 %v1978, %v2769
        %v3517 = vadd.f32 %v1979, %v2771
        %v3518 = vadd.f32 %v1980, %v2773
        %v3519 = vadd.f32 %v1981, %v2775
        %v3520 = vadd.f32 %v1982, %v2777
        %v3521 = vadd.f32 %v1983, %v2779
        %v3522 = vadd.f32 %v1984, %v2781
        %v3523 = vadd.f32 %v1985, %v2783
        %v3524 = vadd.f32 %v1986, %v2785
        %v3525 = vadd.f32 %v1987, %v2787
        %v3526 = vadd.f32 %v1988, %v2789
        %v3527 = vadd.f32 %v1989, %v2791
        %v3528 = vadd.f32 %v1990, %v2793
        %v3529 = vadd.f32 %v1991, %v2795
        %v3530 = vadd.f32 %v1992, %v2797
        %v3531 = vadd.f32 %v1993, %v2799
        %v3532 = vadd.f32 %v1994, %v2801
        %v3533 = vadd.f32 %v1995, %v2803
        %v3534 = vadd.f32 %v1996, %v2805
        %v3535 = vadd.f32 %v1997, %v2807
        %v3536 = vadd.f32 %v1998, %v2809
        %v3537 = vadd.f32 %v1999, %v2811
        %v3538 = vadd.f32 %v2000, %v2813
        %v3539 = vadd.f32 %v2001, %v2815
        %v3540 = vadd.f32 %v2002, %v2817
        %v3541 = vadd.f32 %v2003, %v2819
        %v3542 = vadd.f32 %v2004, %v2821
        %v3543 = vadd.f32 %v2005, %v2823
        %v3544 = vadd.f32 %v2006, %v2825
        %v3545 = vadd.f32 %v2007, %v2827
        %v3546 = vadd.f32 %v2008, %v2829
        %v3547 = vadd.f32 %v2009, %v2831
        %v3548 = vadd.f32 %v2010, %v2833
        %v3549 = vadd.f32 %v2011, %v2835
        %v3550 = vadd.f32 %v2012, %v2837
        %v3551 = vadd.f32 %v2013, %v2839
        %v3552 = vadd.f32 %v2014, %v2841
        %v3553 = vadd.f32 %v2015, %v2843
        %v3554 = vadd.f32 %v2016, %v2845
        %v3555 = vadd.f32 %v2017, %v2847
        %v3556 = vadd.f32 %v2018, %v2849
        %v3557 = vadd.f32 %v2019, %v2851
        %v3558 = vadd.f32 %v2020, %v2853
        %v3559 = vadd.f32 %v2021, %v2855
        %v3560 = vadd.f32 %v2022, %v2857
        %v3561 = vadd.f32 %v2023, %v2859
        %v3562 = vadd.f32 %v2024, %v2861
        %v3563 = vadd.f32 %v2025, %v2863
        %v3564 = vadd.f32 %v2026, %v2865
        %v3565 = vadd.f32 %v2027, %v2867
        %v3566 = vadd.f32 %v2028, %v2869
        %v3567 = vadd.f32 %v2029, %v2871
        %v3568 = vadd.f32 %v2030, %v2873
        %v3569 = vadd.f32 %v2031, %v2875
        %v3570 = vadd.f32 %v2032, %v2877
        %v3571 = vadd.f32 %v2033, %v2879
        %v3572 = vadd.f32 %v2034, %v2881
        %v3573 = vadd.f32 %v2035, %v2883
        %v3574 = vadd.f32 %v2036, %v2885
        %v3575 = vadd.f32 %v2037, %v2887
        %v3576 = vadd.f32 %v2038, %v2889
        %v3577 = vadd.f32 %v2039, %v2891
        %v3578 = vadd.f32 %v2040, %v2893
        %v3579 = vadd.f32 %v2041, %v2895
        %v3580 = vadd.f32 %v2042, %v2897
        %v3581 = vadd.f32 %v2043, %v2899
        %v3582 = vadd.f32 %v2044, %v2901
        %v3583 = vadd.f32 %v2045, %v2903
        %v3584 = vadd.f32 %v2046, %v2905
        %v3585 = vadd.f32 %v2047, %v2907
        %v3586 = vadd.f32 %v2048, %v2909
        %v3587 = vadd.f32 %v2049, %v2911
        %v3588 = vadd.f32 %v2050, %v2913
        %v3589 = vadd.f32 %v2051, %v2915
        %v3590 = vadd.f32 %v2052, %v2917
        %v3591 = vadd.f32 %v2053, %v2919
        %v3592 = vadd.f32 %v2054, %v2921
        %v3593 = vadd.f32 %v2055, %v2923
        %v3594 = vadd.f32 %v2056, %v2925
        %v3595 = vadd.f32 %v2057, %v2927
        %v3596 = vadd.f32 %v2058, %v2929
        %v3597 = vadd.f32 %v2059, %v2931
        %v3598 = vadd.f32 %v2060, %v2933
        %v3599 = vadd.f32 %v2061, %v2935
        %v3600 = vadd.f32 %v2062, %v2937
        %v3601 = vadd.f32 %v2063, %v2939
        %v3602 = vadd.f32 %v2064, %v2941
        %v3603 = vadd.f32 %v2065, %v2943
        %v3604 = vadd.f32 %v2066, %v2945
        %v3605 = vadd.f32 %v2067, %v2947
        %v3606 = vadd.f32 %v2068, %v2949
        %v3607 = vadd.f32 %v2069, %v2951
        %v3608 = vadd.f32 %v2070, %v2953
        %v3609 = vadd.f32 %v2071, %v2955
        %v3610 = vadd.f32 %v2072, %v2957
        %v3611 = vadd.f32 %v2073, %v2959
        %v3612 = vadd.f32 %v2074, %v2961
        %v3613 = vadd.f32 %v2075, %v2963
        %v3614 = vadd.f32 %v2076, %v2965
        %v3615 = vadd.f32 %v2077, %v2967
        %v3616 = vadd.f32 %v2078, %v2969
        %v3617 = vadd.f32 %v2079, %v2971
        %v3618 = vadd.f32 %v2080, %v2973
        %v3619 = vadd.f32 %v2081, %v2975
        %v3620 = vadd.f32 %v2082, %v2977
        %v3621 = vadd.f32 %v2083, %v2979
        %v3622 = vadd.f32 %v2084, %v2981
        %v3623 = vadd.f32 %v2085, %v2983
        %v3624 = vadd.f32 %v2086, %v2985
        %v3625 = vadd.f32 %v2087, %v2987
        %v3626 = vadd.f32 %v2088, %v2989
        %v3627 = vadd.f32 %v2089, %v2991
        %v3628 = vadd.f32 %v2090, %v2993
        %v3629 = vadd.f32 %v2091, %v2995
        %v3630 = vadd.f32 %v2092, %v2997
        %v3631 = vadd.f32 %v2093, %v2999
        %v3632 = vadd.f32 %v2094, %v3001
        %v3633 = vadd.f32 %v2095, %v3003
        %v3634 = vadd.f32 %v2096, %v3005
        %v3635 = vadd.f32 %v2097, %v3007
        %v3636 = vadd.f32 %v2098, %v3009
        %v3637 = vadd.f32 %v2099, %v3011
        %v3638 = vadd.f32 %v2100, %v3013
        %v3639 = vadd.f32 %v2101, %v3015
        %v3640 = vadd.f32 %v2102, %v3017
        %v3641 = vadd.f32 %v2103, %v3019
        %v3642 = vadd.f32 %v2104, %v3021
        %v3643 = vadd.f32 %v2105, %v3023
        %v3644 = vadd.f32 %v2106, %v3025
        %v3645 = vadd.f32 %v2107, %v3027
        %v3646 = vadd.f32 %v2108, %v3029
        %v3647 = vadd.f32 %v2109, %v3031
        %v3648 = vadd.f32 %v2110, %v3033
        %v3649 = vadd.f32 %v2111, %v3035
        %v3650 = vadd.f32 %v2112, %v3037
        %v3651 = vadd.f32 %v2113, %v3039
        %v3652 = vadd.f32 %v2114, %v3041
        %v3653 = vadd.f32 %v2115, %v3043
        %v3654 = vadd.f32 %v2116, %v3045
        %v3655 = vadd.f32 %v2117, %v3047
        %v3656 = vadd.f32 %v2118, %v3049
        %v3657 = vadd.f32 %v2119, %v3051
        %v3658 = vadd.f32 %v2120, %v3053
        %v3659 = vadd.f32 %v2121, %v3055
        %v3660 = vadd.f32 %v2122, %v3057
        %v3661 = vadd.f32 %v2123, %v3059
        %v3662 = vadd.f32 %v2124, %v3061
        %v3663 = vadd.f32 %v2125, %v3063
        %v3664 = vadd.f32 %v2126, %v3065
        %v3665 = vadd.f32 %v2127, %v3067
        %v3666 = vadd.f32 %v2128, %v3069
        %v3667 = vadd.f32 %v2129, %v3071
        %v3668 = vadd.f32 %v2130, %v3073
        %v3669 = vadd.f32 %v2131, %v3075
        %v3670 = vadd.f32 %v2132, %v3077
        %v3671 = vadd.f32 %v2133, %v3079
        %v3672 = vadd.f32 %v2134, %v3081
        %v3673 = vadd.f32 %v2135, %v3083
        %v3674 = vadd.f32 %v2136, %v3085
        %v3675 = vadd.f32 %v2137, %v3087
        %v3676 = vadd.f32 %v2138, %v3089
        %v3677 = vadd.f32 %v2139, %v3091
        %v3678 = vadd.f32 %v2140, %v3093
        %v3679 = vadd.f32 %v2141, %v3095
        %v3680 = vadd.f32 %v2142, %v3097
        %v3681 = vadd.f32 %v2143, %v3099
        %v3682 = vadd.f32 %v2144, %v3101
        %v3683 = vadd.f32 %v2145, %v3103
        %v3684 = vadd.f32 %v2146, %v3105
        %v3685 = vadd.f32 %v2147, %v3107
        %v3686 = vadd.f32 %v2148, %v3109
        %v3687 = vadd.f32 %v2149, %v3111
        %v3688 = vadd.f32 %v2150, %v3113
        %v3689 = vadd.f32 %v2151, %v3115
        %v3690 = vadd.f32 %v2152, %v3117
        %v3691 = vadd.f32 %v2153, %v3119
        %v3692 = vadd.f32 %v2154, %v3121
        %v3693 = vadd.f32 %v2155, %v3123
        %v3694 = vadd.f32 %v2156, %v3125
        %v3695 = vadd.f32 %v2157, %v3127
        %v3696 = vadd.f32 %v2158, %v3129
        %v3697 = vadd.f32 %v2159, %v3131
        %v3698 = vadd.f32 %v2160, %v3133
        %v3699 = vadd.f32 %v2161, %v3135
        %v3700 = vadd.f32 %v2162, %v3137
        %v3701 = vadd.f32 %v2163, %v3139
        %v3702 = vadd.f32 %v2164, %v3141
        %v3703 = vadd.f32 %v2165, %v3143
        %v3704 = vadd.f32 %v2166, %v3145
        %v3705 = vadd.f32 %v2167, %v3147
        %v3706 = vadd.f32 %v2168, %v3149
        %v3707 = vadd.f32 %v2169, %v3151
        %v3708 = vadd.f32 %v2170, %v3153
        %v3709 = vadd.f32 %v2171, %v3155
        %v3710 = vadd.f32 %v2172, %v3157
        %v3711 = vadd.f32 %v2173, %v3159
        %v3712 = vadd.f32 %v2174, %v3161
        %v3713 = vadd.f32 %v2175, %v3163
        %v3714 = vadd.f32 %v2176, %v3165
        %v3715 = vadd.f32 %v2177, %v3167
        %v3716 = vadd.f32 %v2178, %v3169
        %v3717 = vadd.f32 %v2179, %v3171
        %v3718 = vadd.f32 %v2180, %v3173
        %v3719 = vadd.f32 %v2181, %v3175
        %v3720 = vadd.f32 %v2182, %v3177
        %v3721 = vadd.f32 %v2183, %v3179
        %v3722 = vadd.f32 %v2184, %v3181
        %v3723 = vadd.f32 %v2185, %v3183
        %v3724 = vadd.f32 %v2186, %v3185
        %v3725 = vadd.f32 %v2187, %v3187
        %v3726 = vadd.f32 %v2188, %v3189
        %v3727 = vadd.f32 %v2189, %v3191
        %v3728 = vadd.f32 %v2190, %v3193
        %v3729 = vadd.f32 %v2191, %v3195
        %v3730 = vadd.f32 %v2192, %v3197
        %v3731 = vadd.f32 %v2193, %v3199
        %v3732 = vadd.f32 %v2194, %v3201
        %v3733 = vadd.f32 %v2195, %v3203
        %v3734 = vadd.f32 %v2196, %v3205
        %v3735 = vadd.f32 %v2197, %v3207
        %v3736 = vadd.f32 %v2198, %v3209
        %v3737 = vadd.f32 %v2199, %v3211
        %v3738 = vadd.f32 %v2200, %v3213
        %v3739 = vadd.f32 %v2201, %v3215
        %v3740 = vadd.f32 %v2202, %v3217
        %v3741 = vadd.f32 %v2203, %v3219
        %v3742 = vadd.f32 %v2204, %v3221
        %v3743 = vadd.f32 %v2205, %v3223
        %v3744 = vadd.f32 %v2206, %v3225
        %v3745 = vadd.f32 %v2207, %v3227
        %v3746 = vadd.f32 %v2208, %v3229
        %v3747 = vadd.f32 %v2209, %v3231
        %v3748 = vadd.f32 %v2210, %v3233
        %v3749 = vadd.f32 %v2211, %v3235
        %v3750 = vadd.f32 %v2212, %v3237
        %v3751 = vadd.f32 %v2213, %v3239
        %v4008 = vlaneseq
        %v4009 = vshrl.u32 %v4008, 7
        %v4010 = vsub.s32 0, %v4009
        %v4011 = vrot.slane %v3496, %v4010
        %v4012 = vlaneseq
        %v4013 = vshrl.u32 %v4012, 7
        %v4014 = vsub.s32 4, %v4013
        %v4015 = vrot.slane %v3496, %v4014
        %v4016 = vlaneseq
        %v4017 = vshrl.u32 %v4016, 7
        %v4018 = vsub.s32 0, %v4017
        %v4019 = vrot.slane %v3497, %v4018
        %v4020 = vlaneseq
        %v4021 = vshrl.u32 %v4020, 7
        %v4022 = vsub.s32 4, %v4021
        %v4023 = vrot.slane %v3497, %v4022
        %v4024 = vlaneseq
        %v4025 = vshrl.u32 %v4024, 7
        %v4026 = vsub.s32 0, %v4025
        %v4027 = vrot.slane %v3498, %v4026
        %v4028 = vlaneseq
        %v4029 = vshrl.u32 %v4028, 7
        %v4030 = vsub.s32 4, %v4029
        %v4031 = vrot.slane %v3498, %v4030
        %v4032 = vlaneseq
        %v4033 = vshrl.u32 %v4032, 7
        %v4034 = vsub.s32 0, %v4033
        %v4035 = vrot.slane %v3499, %v4034
        %v4036 = vlaneseq
        %v4037 = vshrl.u32 %v4036, 7
        %v4038 = vsub.s32 4, %v4037
        %v4039 = vrot.slane %v3499, %v4038
        %v4040 = vlaneseq
        %v4041 = vshrl.u32 %v4040, 7
        %v4042 = vsub.s32 0, %v4041
        %v4043 = vrot.slane %v3500, %v4042
        %v4044 = vlaneseq
        %v4045 = vshrl.u32 %v4044, 7
        %v4046 = vsub.s32 4, %v4045
        %v4047 = vrot.slane %v3500, %v4046
        %v4048 = vlaneseq
        %v4049 = vshrl.u32 %v4048, 7
        %v4050 = vsub.s32 0, %v4049
        %v4051 = vrot.slane %v3501, %v4050
        %v4052 = vlaneseq
        %v4053 = vshrl.u32 %v4052, 7
        %v4054 = vsub.s32 4, %v4053
        %v4055 = vrot.slane %v3501, %v4054
        %v4056 = vlaneseq
        %v4057 = vshrl.u32 %v4056, 7
        %v4058 = vsub.s32 0, %v4057
        %v4059 = vrot.slane %v3502, %v4058
        %v4060 = vlaneseq
        %v4061 = vshrl.u32 %v4060, 7
        %v4062 = vsub.s32 4, %v4061
        %v4063 = vrot.slane %v3502, %v4062
        %v4064 = vlaneseq
        %v4065 = vshrl.u32 %v4064, 7
        %v4066 = vsub.s32 0, %v4065
        %v4067 = vrot.slane %v3503, %v4066
        %v4068 = vlaneseq
        %v4069 = vshrl.u32 %v4068, 7
        %v4070 = vsub.s32 4, %v4069
        %v4071 = vrot.slane %v3503, %v4070
        %v4072 = vlaneseq
        %v4073 = vshrl.u32 %v4072, 7
        %v4074 = vsub.s32 0, %v4073
        %v4075 = vrot.slane %v3504, %v4074
        %v4076 = vlaneseq
        %v4077 = vshrl.u32 %v4076, 7
        %v4078 = vsub.s32 4, %v4077
        %v4079 = vrot.slane %v3504, %v4078
        %v4080 = vlaneseq
        %v4081 = vshrl.u32 %v4080, 7
        %v4082 = vsub.s32 0, %v4081
        %v4083 = vrot.slane %v3505, %v4082
        %v4084 = vlaneseq
        %v4085 = vshrl.u32 %v4084, 7
        %v4086 = vsub.s32 4, %v4085
        %v4087 = vrot.slane %v3505, %v4086
        %v4088 = vlaneseq
        %v4089 = vshrl.u32 %v4088, 7
        %v4090 = vsub.s32 0, %v4089
        %v4091 = vrot.slane %v3506, %v4090
        %v4092 = vlaneseq
        %v4093 = vshrl.u32 %v4092, 7
        %v4094 = vsub.s32 4, %v4093
        %v4095 = vrot.slane %v3506, %v4094
        %v4096 = vlaneseq
        %v4097 = vshrl.u32 %v4096, 7
        %v4098 = vsub.s32 0, %v4097
        %v4099 = vrot.slane %v3507, %v4098
        %v4100 = vlaneseq
        %v4101 = vshrl.u32 %v4100, 7
        %v4102 = vsub.s32 4, %v4101
        %v4103 = vrot.slane %v3507, %v4102
        %v4104 = vlaneseq
        %v4105 = vshrl.u32 %v4104, 7
        %v4106 = vsub.s32 0, %v4105
        %v4107 = vrot.slane %v3508, %v4106
        %v4108 = vlaneseq
        %v4109 = vshrl.u32 %v4108, 7
        %v4110 = vsub.s32 4, %v4109
        %v4111 = vrot.slane %v3508, %v4110
        %v4112 = vlaneseq
        %v4113 = vshrl.u32 %v4112, 7
        %v4114 = vsub.s32 0, %v4113
        %v4115 = vrot.slane %v3509, %v4114
        %v4116 = vlaneseq
        %v4117 = vshrl.u32 %v4116, 7
        %v4118 = vsub.s32 4, %v4117
        %v4119 = vrot.slane %v3509, %v4118
        %v4120 = vlaneseq
        %v4121 = vshrl.u32 %v4120, 7
        %v4122 = vsub.s32 0, %v4121
        %v4123 = vrot.slane %v3510, %v4122
        %v4124 = vlaneseq
        %v4125 = vshrl.u32 %v4124, 7
        %v4126 = vsub.s32 4, %v4125
        %v4127 = vrot.slane %v3510, %v4126
        %v4128 = vlaneseq
        %v4129 = vshrl.u32 %v4128, 7
        %v4130 = vsub.s32 0, %v4129
        %v4131 = vrot.slane %v3511, %v4130
        %v4132 = vlaneseq
        %v4133 = vshrl.u32 %v4132, 7
        %v4134 = vsub.s32 4, %v4133
        %v4135 = vrot.slane %v3511, %v4134
        %v4136 = vlaneseq
        %v4137 = vshrl.u32 %v4136, 7
        %v4138 = vsub.s32 0, %v4137
        %v4139 = vrot.slane %v3512, %v4138
        %v4140 = vlaneseq
        %v4141 = vshrl.u32 %v4140, 7
        %v4142 = vsub.s32 4, %v4141
        %v4143 = vrot.slane %v3512, %v4142
        %v4144 = vlaneseq
        %v4145 = vshrl.u32 %v4144, 7
        %v4146 = vsub.s32 0, %v4145
        %v4147 = vrot.slane %v3513, %v4146
        %v4148 = vlaneseq
        %v4149 = vshrl.u32 %v4148, 7
        %v4150 = vsub.s32 4, %v4149
        %v4151 = vrot.slane %v3513, %v4150
        %v4152 = vlaneseq
        %v4153 = vshrl.u32 %v4152, 7
        %v4154 = vsub.s32 0, %v4153
        %v4155 = vrot.slane %v3514, %v4154
        %v4156 = vlaneseq
        %v4157 = vshrl.u32 %v4156, 7
        %v4158 = vsub.s32 4, %v4157
        %v4159 = vrot.slane %v3514, %v4158
        %v4160 = vlaneseq
        %v4161 = vshrl.u32 %v4160, 7
        %v4162 = vsub.s32 0, %v4161
        %v4163 = vrot.slane %v3515, %v4162
        %v4164 = vlaneseq
        %v4165 = vshrl.u32 %v4164, 7
        %v4166 = vsub.s32 4, %v4165
        %v4167 = vrot.slane %v3515, %v4166
        %v4168 = vlaneseq
        %v4169 = vshrl.u32 %v4168, 7
        %v4170 = vsub.s32 0, %v4169
        %v4171 = vrot.slane %v3516, %v4170
        %v4172 = vlaneseq
        %v4173 = vshrl.u32 %v4172, 7
        %v4174 = vsub.s32 4, %v4173
        %v4175 = vrot.slane %v3516, %v4174
        %v4176 = vlaneseq
        %v4177 = vshrl.u32 %v4176, 7
        %v4178 = vsub.s32 0, %v4177
        %v4179 = vrot.slane %v3517, %v4178
        %v4180 = vlaneseq
        %v4181 = vshrl.u32 %v4180, 7
        %v4182 = vsub.s32 4, %v4181
        %v4183 = vrot.slane %v3517, %v4182
        %v4184 = vlaneseq
        %v4185 = vshrl.u32 %v4184, 7
        %v4186 = vsub.s32 0, %v4185
        %v4187 = vrot.slane %v3518, %v4186
        %v4188 = vlaneseq
        %v4189 = vshrl.u32 %v4188, 7
        %v4190 = vsub.s32 4, %v4189
        %v4191 = vrot.slane %v3518, %v4190
        %v4192 = vlaneseq
        %v4193 = vshrl.u32 %v4192, 7
        %v4194 = vsub.s32 0, %v4193
        %v4195 = vrot.slane %v3519, %v4194
        %v4196 = vlaneseq
        %v4197 = vshrl.u32 %v4196, 7
        %v4198 = vsub.s32 4, %v4197
        %v4199 = vrot.slane %v3519, %v4198
        %v4200 = vlaneseq
        %v4201 = vshrl.u32 %v4200, 7
        %v4202 = vsub.s32 0, %v4201
        %v4203 = vrot.slane %v3520, %v4202
        %v4204 = vlaneseq
        %v4205 = vshrl.u32 %v4204, 7
        %v4206 = vsub.s32 4, %v4205
        %v4207 = vrot.slane %v3520, %v4206
        %v4208 = vlaneseq
        %v4209 = vshrl.u32 %v4208, 7
        %v4210 = vsub.s32 0, %v4209
        %v4211 = vrot.slane %v3521, %v4210
        %v4212 = vlaneseq
        %v4213 = vshrl.u32 %v4212, 7
        %v4214 = vsub.s32 4, %v4213
        %v4215 = vrot.slane %v3521, %v4214
        %v4216 = vlaneseq
        %v4217 = vshrl.u32 %v4216, 7
        %v4218 = vsub.s32 0, %v4217
        %v4219 = vrot.slane %v3522, %v4218
        %v4220 = vlaneseq
        %v4221 = vshrl.u32 %v4220, 7
        %v4222 = vsub.s32 4, %v4221
        %v4223 = vrot.slane %v3522, %v4222
        %v4224 = vlaneseq
        %v4225 = vshrl.u32 %v4224, 7
        %v4226 = vsub.s32 0, %v4225
        %v4227 = vrot.slane %v3523, %v4226
        %v4228 = vlaneseq
        %v4229 = vshrl.u32 %v4228, 7
        %v4230 = vsub.s32 4, %v4229
        %v4231 = vrot.slane %v3523, %v4230
        %v4232 = vlaneseq
        %v4233 = vshrl.u32 %v4232, 7
        %v4234 = vsub.s32 0, %v4233
        %v4235 = vrot.slane %v3524, %v4234
        %v4236 = vlaneseq
        %v4237 = vshrl.u32 %v4236, 7
        %v4238 = vsub.s32 4, %v4237
        %v4239 = vrot.slane %v3524, %v4238
        %v4240 = vlaneseq
        %v4241 = vshrl.u32 %v4240, 7
        %v4242 = vsub.s32 0, %v4241
        %v4243 = vrot.slane %v3525, %v4242
        %v4244 = vlaneseq
        %v4245 = vshrl.u32 %v4244, 7
        %v4246 = vsub.s32 4, %v4245
        %v4247 = vrot.slane %v3525, %v4246
        %v4248 = vlaneseq
        %v4249 = vshrl.u32 %v4248, 7
        %v4250 = vsub.s32 0, %v4249
        %v4251 = vrot.slane %v3526, %v4250
        %v4252 = vlaneseq
        %v4253 = vshrl.u32 %v4252, 7
        %v4254 = vsub.s32 4, %v4253
        %v4255 = vrot.slane %v3526, %v4254
        %v4256 = vlaneseq
        %v4257 = vshrl.u32 %v4256, 7
        %v4258 = vsub.s32 0, %v4257
        %v4259 = vrot.slane %v3527, %v4258
        %v4260 = vlaneseq
        %v4261 = vshrl.u32 %v4260, 7
        %v4262 = vsub.s32 4, %v4261
        %v4263 = vrot.slane %v3527, %v4262
        %v4264 = vlaneseq
        %v4265 = vshrl.u32 %v4264, 7
        %v4266 = vsub.s32 0, %v4265
        %v4267 = vrot.slane %v3528, %v4266
        %v4268 = vlaneseq
        %v4269 = vshrl.u32 %v4268, 7
        %v4270 = vsub.s32 4, %v4269
        %v4271 = vrot.slane %v3528, %v4270
        %v4272 = vlaneseq
        %v4273 = vshrl.u32 %v4272, 7
        %v4274 = vsub.s32 0, %v4273
        %v4275 = vrot.slane %v3529, %v4274
        %v4276 = vlaneseq
        %v4277 = vshrl.u32 %v4276, 7
        %v4278 = vsub.s32 4, %v4277
        %v4279 = vrot.slane %v3529, %v4278
        %v4280 = vlaneseq
        %v4281 = vshrl.u32 %v4280, 7
        %v4282 = vsub.s32 0, %v4281
        %v4283 = vrot.slane %v3530, %v4282
        %v4284 = vlaneseq
        %v4285 = vshrl.u32 %v4284, 7
        %v4286 = vsub.s32 4, %v4285
        %v4287 = vrot.slane %v3530, %v4286
        %v4288 = vlaneseq
        %v4289 = vshrl.u32 %v4288, 7
        %v4290 = vsub.s32 0, %v4289
        %v4291 = vrot.slane %v3531, %v4290
        %v4292 = vlaneseq
        %v4293 = vshrl.u32 %v4292, 7
        %v4294 = vsub.s32 4, %v4293
        %v4295 = vrot.slane %v3531, %v4294
        %v4296 = vlaneseq
        %v4297 = vshrl.u32 %v4296, 7
        %v4298 = vsub.s32 0, %v4297
        %v4299 = vrot.slane %v3532, %v4298
        %v4300 = vlaneseq
        %v4301 = vshrl.u32 %v4300, 7
        %v4302 = vsub.s32 4, %v4301
        %v4303 = vrot.slane %v3532, %v4302
        %v4304 = vlaneseq
        %v4305 = vshrl.u32 %v4304, 7
        %v4306 = vsub.s32 0, %v4305
        %v4307 = vrot.slane %v3533, %v4306
        %v4308 = vlaneseq
        %v4309 = vshrl.u32 %v4308, 7
        %v4310 = vsub.s32 4, %v4309
        %v4311 = vrot.slane %v3533, %v4310
        %v4312 = vlaneseq
        %v4313 = vshrl.u32 %v4312, 7
        %v4314 = vsub.s32 0, %v4313
        %v4315 = vrot.slane %v3534, %v4314
        %v4316 = vlaneseq
        %v4317 = vshrl.u32 %v4316, 7
        %v4318 = vsub.s32 4, %v4317
        %v4319 = vrot.slane %v3534, %v4318
        %v4320 = vlaneseq
        %v4321 = vshrl.u32 %v4320, 7
        %v4322 = vsub.s32 0, %v4321
        %v4323 = vrot.slane %v3535, %v4322
        %v4324 = vlaneseq
        %v4325 = vshrl.u32 %v4324, 7
        %v4326 = vsub.s32 4, %v4325
        %v4327 = vrot.slane %v3535, %v4326
        %v4328 = vlaneseq
        %v4329 = vshrl.u32 %v4328, 7
        %v4330 = vsub.s32 0, %v4329
        %v4331 = vrot.slane %v3536, %v4330
        %v4332 = vlaneseq
        %v4333 = vshrl.u32 %v4332, 7
        %v4334 = vsub.s32 4, %v4333
        %v4335 = vrot.slane %v3536, %v4334
        %v4336 = vlaneseq
        %v4337 = vshrl.u32 %v4336, 7
        %v4338 = vsub.s32 0, %v4337
        %v4339 = vrot.slane %v3537, %v4338
        %v4340 = vlaneseq
        %v4341 = vshrl.u32 %v4340, 7
        %v4342 = vsub.s32 4, %v4341
        %v4343 = vrot.slane %v3537, %v4342
        %v4344 = vlaneseq
        %v4345 = vshrl.u32 %v4344, 7
        %v4346 = vsub.s32 0, %v4345
        %v4347 = vrot.slane %v3538, %v4346
        %v4348 = vlaneseq
        %v4349 = vshrl.u32 %v4348, 7
        %v4350 = vsub.s32 4, %v4349
        %v4351 = vrot.slane %v3538, %v4350
        %v4352 = vlaneseq
        %v4353 = vshrl.u32 %v4352, 7
        %v4354 = vsub.s32 0, %v4353
        %v4355 = vrot.slane %v3539, %v4354
        %v4356 = vlaneseq
        %v4357 = vshrl.u32 %v4356, 7
        %v4358 = vsub.s32 4, %v4357
        %v4359 = vrot.slane %v3539, %v4358
        %v4360 = vlaneseq
        %v4361 = vshrl.u32 %v4360, 7
        %v4362 = vsub.s32 0, %v4361
        %v4363 = vrot.slane %v3540, %v4362
        %v4364 = vlaneseq
        %v4365 = vshrl.u32 %v4364, 7
        %v4366 = vsub.s32 4, %v4365
        %v4367 = vrot.slane %v3540, %v4366
        %v4368 = vlaneseq
        %v4369 = vshrl.u32 %v4368, 7
        %v4370 = vsub.s32 0, %v4369
        %v4371 = vrot.slane %v3541, %v4370
        %v4372 = vlaneseq
        %v4373 = vshrl.u32 %v4372, 7
        %v4374 = vsub.s32 4, %v4373
        %v4375 = vrot.slane %v3541, %v4374
        %v4376 = vlaneseq
        %v4377 = vshrl.u32 %v4376, 7
        %v4378 = vsub.s32 0, %v4377
        %v4379 = vrot.slane %v3542, %v4378
        %v4380 = vlaneseq
        %v4381 = vshrl.u32 %v4380, 7
        %v4382 = vsub.s32 4, %v4381
        %v4383 = vrot.slane %v3542, %v4382
        %v4384 = vlaneseq
        %v4385 = vshrl.u32 %v4384, 7
        %v4386 = vsub.s32 0, %v4385
        %v4387 = vrot.slane %v3543, %v4386
        %v4388 = vlaneseq
        %v4389 = vshrl.u32 %v4388, 7
        %v4390 = vsub.s32 4, %v4389
        %v4391 = vrot.slane %v3543, %v4390
        %v4392 = vlaneseq
        %v4393 = vshrl.u32 %v4392, 7
        %v4394 = vsub.s32 0, %v4393
        %v4395 = vrot.slane %v3544, %v4394
        %v4396 = vlaneseq
        %v4397 = vshrl.u32 %v4396, 7
        %v4398 = vsub.s32 4, %v4397
        %v4399 = vrot.slane %v3544, %v4398
        %v4400 = vlaneseq
        %v4401 = vshrl.u32 %v4400, 7
        %v4402 = vsub.s32 0, %v4401
        %v4403 = vrot.slane %v3545, %v4402
        %v4404 = vlaneseq
        %v4405 = vshrl.u32 %v4404, 7
        %v4406 = vsub.s32 4, %v4405
        %v4407 = vrot.slane %v3545, %v4406
        %v4408 = vlaneseq
        %v4409 = vshrl.u32 %v4408, 7
        %v4410 = vsub.s32 0, %v4409
        %v4411 = vrot.slane %v3546, %v4410
        %v4412 = vlaneseq
        %v4413 = vshrl.u32 %v4412, 7
        %v4414 = vsub.s32 4, %v4413
        %v4415 = vrot.slane %v3546, %v4414
        %v4416 = vlaneseq
        %v4417 = vshrl.u32 %v4416, 7
        %v4418 = vsub.s32 0, %v4417
        %v4419 = vrot.slane %v3547, %v4418
        %v4420 = vlaneseq
        %v4421 = vshrl.u32 %v4420, 7
        %v4422 = vsub.s32 4, %v4421
        %v4423 = vrot.slane %v3547, %v4422
        %v4424 = vlaneseq
        %v4425 = vshrl.u32 %v4424, 7
        %v4426 = vsub.s32 0, %v4425
        %v4427 = vrot.slane %v3548, %v4426
        %v4428 = vlaneseq
        %v4429 = vshrl.u32 %v4428, 7
        %v4430 = vsub.s32 4, %v4429
        %v4431 = vrot.slane %v3548, %v4430
        %v4432 = vlaneseq
        %v4433 = vshrl.u32 %v4432, 7
        %v4434 = vsub.s32 0, %v4433
        %v4435 = vrot.slane %v3549, %v4434
        %v4436 = vlaneseq
        %v4437 = vshrl.u32 %v4436, 7
        %v4438 = vsub.s32 4, %v4437
        %v4439 = vrot.slane %v3549, %v4438
        %v4440 = vlaneseq
        %v4441 = vshrl.u32 %v4440, 7
        %v4442 = vsub.s32 0, %v4441
        %v4443 = vrot.slane %v3550, %v4442
        %v4444 = vlaneseq
        %v4445 = vshrl.u32 %v4444, 7
        %v4446 = vsub.s32 4, %v4445
        %v4447 = vrot.slane %v3550, %v4446
        %v4448 = vlaneseq
        %v4449 = vshrl.u32 %v4448, 7
        %v4450 = vsub.s32 0, %v4449
        %v4451 = vrot.slane %v3551, %v4450
        %v4452 = vlaneseq
        %v4453 = vshrl.u32 %v4452, 7
        %v4454 = vsub.s32 4, %v4453
        %v4455 = vrot.slane %v3551, %v4454
        %v4456 = vlaneseq
        %v4457 = vshrl.u32 %v4456, 7
        %v4458 = vsub.s32 0, %v4457
        %v4459 = vrot.slane %v3552, %v4458
        %v4460 = vlaneseq
        %v4461 = vshrl.u32 %v4460, 7
        %v4462 = vsub.s32 4, %v4461
        %v4463 = vrot.slane %v3552, %v4462
        %v4464 = vlaneseq
        %v4465 = vshrl.u32 %v4464, 7
        %v4466 = vsub.s32 0, %v4465
        %v4467 = vrot.slane %v3553, %v4466
        %v4468 = vlaneseq
        %v4469 = vshrl.u32 %v4468, 7
        %v4470 = vsub.s32 4, %v4469
        %v4471 = vrot.slane %v3553, %v4470
        %v4472 = vlaneseq
        %v4473 = vshrl.u32 %v4472, 7
        %v4474 = vsub.s32 0, %v4473
        %v4475 = vrot.slane %v3554, %v4474
        %v4476 = vlaneseq
        %v4477 = vshrl.u32 %v4476, 7
        %v4478 = vsub.s32 4, %v4477
        %v4479 = vrot.slane %v3554, %v4478
        %v4480 = vlaneseq
        %v4481 = vshrl.u32 %v4480, 7
        %v4482 = vsub.s32 0, %v4481
        %v4483 = vrot.slane %v3555, %v4482
        %v4484 = vlaneseq
        %v4485 = vshrl.u32 %v4484, 7
        %v4486 = vsub.s32 4, %v4485
        %v4487 = vrot.slane %v3555, %v4486
        %v4488 = vlaneseq
        %v4489 = vshrl.u32 %v4488, 7
        %v4490 = vsub.s32 0, %v4489
        %v4491 = vrot.slane %v3556, %v4490
        %v4492 = vlaneseq
        %v4493 = vshrl.u32 %v4492, 7
        %v4494 = vsub.s32 4, %v4493
        %v4495 = vrot.slane %v3556, %v4494
        %v4496 = vlaneseq
        %v4497 = vshrl.u32 %v4496, 7
        %v4498 = vsub.s32 0, %v4497
        %v4499 = vrot.slane %v3557, %v4498
        %v4500 = vlaneseq
        %v4501 = vshrl.u32 %v4500, 7
        %v4502 = vsub.s32 4, %v4501
        %v4503 = vrot.slane %v3557, %v4502
        %v4504 = vlaneseq
        %v4505 = vshrl.u32 %v4504, 7
        %v4506 = vsub.s32 0, %v4505
        %v4507 = vrot.slane %v3558, %v4506
        %v4508 = vlaneseq
        %v4509 = vshrl.u32 %v4508, 7
        %v4510 = vsub.s32 4, %v4509
        %v4511 = vrot.slane %v3558, %v4510
        %v4512 = vlaneseq
        %v4513 = vshrl.u32 %v4512, 7
        %v4514 = vsub.s32 0, %v4513
        %v4515 = vrot.slane %v3559, %v4514
        %v4516 = vlaneseq
        %v4517 = vshrl.u32 %v4516, 7
        %v4518 = vsub.s32 4, %v4517
        %v4519 = vrot.slane %v3559, %v4518
        %v4520 = vlaneseq
        %v4521 = vshrl.u32 %v4520, 7
        %v4522 = vsub.s32 0, %v4521
        %v4523 = vrot.slane %v3560, %v4522
        %v4524 = vlaneseq
        %v4525 = vshrl.u32 %v4524, 7
        %v4526 = vsub.s32 4, %v4525
        %v4527 = vrot.slane %v3560, %v4526
        %v4528 = vlaneseq
        %v4529 = vshrl.u32 %v4528, 7
        %v4530 = vsub.s32 0, %v4529
        %v4531 = vrot.slane %v3561, %v4530
        %v4532 = vlaneseq
        %v4533 = vshrl.u32 %v4532, 7
        %v4534 = vsub.s32 4, %v4533
        %v4535 = vrot.slane %v3561, %v4534
        %v4536 = vlaneseq
        %v4537 = vshrl.u32 %v4536, 7
        %v4538 = vsub.s32 0, %v4537
        %v4539 = vrot.slane %v3562, %v4538
        %v4540 = vlaneseq
        %v4541 = vshrl.u32 %v4540, 7
        %v4542 = vsub.s32 4, %v4541
        %v4543 = vrot.slane %v3562, %v4542
        %v4544 = vlaneseq
        %v4545 = vshrl.u32 %v4544, 7
        %v4546 = vsub.s32 0, %v4545
        %v4547 = vrot.slane %v3563, %v4546
        %v4548 = vlaneseq
        %v4549 = vshrl.u32 %v4548, 7
        %v4550 = vsub.s32 4, %v4549
        %v4551 = vrot.slane %v3563, %v4550
        %v4552 = vlaneseq
        %v4553 = vshrl.u32 %v4552, 7
        %v4554 = vsub.s32 0, %v4553
        %v4555 = vrot.slane %v3564, %v4554
        %v4556 = vlaneseq
        %v4557 = vshrl.u32 %v4556, 7
        %v4558 = vsub.s32 4, %v4557
        %v4559 = vrot.slane %v3564, %v4558
        %v4560 = vlaneseq
        %v4561 = vshrl.u32 %v4560, 7
        %v4562 = vsub.s32 0, %v4561
        %v4563 = vrot.slane %v3565, %v4562
        %v4564 = vlaneseq
        %v4565 = vshrl.u32 %v4564, 7
        %v4566 = vsub.s32 4, %v4565
        %v4567 = vrot.slane %v3565, %v4566
        %v4568 = vlaneseq
        %v4569 = vshrl.u32 %v4568, 7
        %v4570 = vsub.s32 0, %v4569
        %v4571 = vrot.slane %v3566, %v4570
        %v4572 = vlaneseq
        %v4573 = vshrl.u32 %v4572, 7
        %v4574 = vsub.s32 4, %v4573
        %v4575 = vrot.slane %v3566, %v4574
        %v4576 = vlaneseq
        %v4577 = vshrl.u32 %v4576, 7
        %v4578 = vsub.s32 0, %v4577
        %v4579 = vrot.slane %v3567, %v4578
        %v4580 = vlaneseq
        %v4581 = vshrl.u32 %v4580, 7
        %v4582 = vsub.s32 4, %v4581
        %v4583 = vrot.slane %v3567, %v4582
        %v4584 = vlaneseq
        %v4585 = vshrl.u32 %v4584, 7
        %v4586 = vsub.s32 0, %v4585
        %v4587 = vrot.slane %v3568, %v4586
        %v4588 = vlaneseq
        %v4589 = vshrl.u32 %v4588, 7
        %v4590 = vsub.s32 4, %v4589
        %v4591 = vrot.slane %v3568, %v4590
        %v4592 = vlaneseq
        %v4593 = vshrl.u32 %v4592, 7
        %v4594 = vsub.s32 0, %v4593
        %v4595 = vrot.slane %v3569, %v4594
        %v4596 = vlaneseq
        %v4597 = vshrl.u32 %v4596, 7
        %v4598 = vsub.s32 4, %v4597
        %v4599 = vrot.slane %v3569, %v4598
        %v4600 = vlaneseq
        %v4601 = vshrl.u32 %v4600, 7
        %v4602 = vsub.s32 0, %v4601
        %v4603 = vrot.slane %v3570, %v4602
        %v4604 = vlaneseq
        %v4605 = vshrl.u32 %v4604, 7
        %v4606 = vsub.s32 4, %v4605
        %v4607 = vrot.slane %v3570, %v4606
        %v4608 = vlaneseq
        %v4609 = vshrl.u32 %v4608, 7
        %v4610 = vsub.s32 0, %v4609
        %v4611 = vrot.slane %v3571, %v4610
        %v4612 = vlaneseq
        %v4613 = vshrl.u32 %v4612, 7
        %v4614 = vsub.s32 4, %v4613
        %v4615 = vrot.slane %v3571, %v4614
        %v4616 = vlaneseq
        %v4617 = vshrl.u32 %v4616, 7
        %v4618 = vsub.s32 0, %v4617
        %v4619 = vrot.slane %v3572, %v4618
        %v4620 = vlaneseq
        %v4621 = vshrl.u32 %v4620, 7
        %v4622 = vsub.s32 4, %v4621
        %v4623 = vrot.slane %v3572, %v4622
        %v4624 = vlaneseq
        %v4625 = vshrl.u32 %v4624, 7
        %v4626 = vsub.s32 0, %v4625
        %v4627 = vrot.slane %v3573, %v4626
        %v4628 = vlaneseq
        %v4629 = vshrl.u32 %v4628, 7
        %v4630 = vsub.s32 4, %v4629
        %v4631 = vrot.slane %v3573, %v4630
        %v4632 = vlaneseq
        %v4633 = vshrl.u32 %v4632, 7
        %v4634 = vsub.s32 0, %v4633
        %v4635 = vrot.slane %v3574, %v4634
        %v4636 = vlaneseq
        %v4637 = vshrl.u32 %v4636, 7
        %v4638 = vsub.s32 4, %v4637
        %v4639 = vrot.slane %v3574, %v4638
        %v4640 = vlaneseq
        %v4641 = vshrl.u32 %v4640, 7
        %v4642 = vsub.s32 0, %v4641
        %v4643 = vrot.slane %v3575, %v4642
        %v4644 = vlaneseq
        %v4645 = vshrl.u32 %v4644, 7
        %v4646 = vsub.s32 4, %v4645
        %v4647 = vrot.slane %v3575, %v4646
        %v4648 = vlaneseq
        %v4649 = vshrl.u32 %v4648, 7
        %v4650 = vsub.s32 0, %v4649
        %v4651 = vrot.slane %v3576, %v4650
        %v4652 = vlaneseq
        %v4653 = vshrl.u32 %v4652, 7
        %v4654 = vsub.s32 4, %v4653
        %v4655 = vrot.slane %v3576, %v4654
        %v4656 = vlaneseq
        %v4657 = vshrl.u32 %v4656, 7
        %v4658 = vsub.s32 0, %v4657
        %v4659 = vrot.slane %v3577, %v4658
        %v4660 = vlaneseq
        %v4661 = vshrl.u32 %v4660, 7
        %v4662 = vsub.s32 4, %v4661
        %v4663 = vrot.slane %v3577, %v4662
        %v4664 = vlaneseq
        %v4665 = vshrl.u32 %v4664, 7
        %v4666 = vsub.s32 0, %v4665
        %v4667 = vrot.slane %v3578, %v4666
        %v4668 = vlaneseq
        %v4669 = vshrl.u32 %v4668, 7
        %v4670 = vsub.s32 4, %v4669
        %v4671 = vrot.slane %v3578, %v4670
        %v4672 = vlaneseq
        %v4673 = vshrl.u32 %v4672, 7
        %v4674 = vsub.s32 0, %v4673
        %v4675 = vrot.slane %v3579, %v4674
        %v4676 = vlaneseq
        %v4677 = vshrl.u32 %v4676, 7
        %v4678 = vsub.s32 4, %v4677
        %v4679 = vrot.slane %v3579, %v4678
        %v4680 = vlaneseq
        %v4681 = vshrl.u32 %v4680, 7
        %v4682 = vsub.s32 0, %v4681
        %v4683 = vrot.slane %v3580, %v4682
        %v4684 = vlaneseq
        %v4685 = vshrl.u32 %v4684, 7
        %v4686 = vsub.s32 4, %v4685
        %v4687 = vrot.slane %v3580, %v4686
        %v4688 = vlaneseq
        %v4689 = vshrl.u32 %v4688, 7
        %v4690 = vsub.s32 0, %v4689
        %v4691 = vrot.slane %v3581, %v4690
        %v4692 = vlaneseq
        %v4693 = vshrl.u32 %v4692, 7
        %v4694 = vsub.s32 4, %v4693
        %v4695 = vrot.slane %v3581, %v4694
        %v4696 = vlaneseq
        %v4697 = vshrl.u32 %v4696, 7
        %v4698 = vsub.s32 0, %v4697
        %v4699 = vrot.slane %v3582, %v4698
        %v4700 = vlaneseq
        %v4701 = vshrl.u32 %v4700, 7
        %v4702 = vsub.s32 4, %v4701
        %v4703 = vrot.slane %v3582, %v4702
        %v4704 = vlaneseq
        %v4705 = vshrl.u32 %v4704, 7
        %v4706 = vsub.s32 0, %v4705
        %v4707 = vrot.slane %v3583, %v4706
        %v4708 = vlaneseq
        %v4709 = vshrl.u32 %v4708, 7
        %v4710 = vsub.s32 4, %v4709
        %v4711 = vrot.slane %v3583, %v4710
        %v4712 = vlaneseq
        %v4713 = vshrl.u32 %v4712, 7
        %v4714 = vsub.s32 0, %v4713
        %v4715 = vrot.slane %v3584, %v4714
        %v4716 = vlaneseq
        %v4717 = vshrl.u32 %v4716, 7
        %v4718 = vsub.s32 4, %v4717
        %v4719 = vrot.slane %v3584, %v4718
        %v4720 = vlaneseq
        %v4721 = vshrl.u32 %v4720, 7
        %v4722 = vsub.s32 0, %v4721
        %v4723 = vrot.slane %v3585, %v4722
        %v4724 = vlaneseq
        %v4725 = vshrl.u32 %v4724, 7
        %v4726 = vsub.s32 4, %v4725
        %v4727 = vrot.slane %v3585, %v4726
        %v4728 = vlaneseq
        %v4729 = vshrl.u32 %v4728, 7
        %v4730 = vsub.s32 0, %v4729
        %v4731 = vrot.slane %v3586, %v4730
        %v4732 = vlaneseq
        %v4733 = vshrl.u32 %v4732, 7
        %v4734 = vsub.s32 4, %v4733
        %v4735 = vrot.slane %v3586, %v4734
        %v4736 = vlaneseq
        %v4737 = vshrl.u32 %v4736, 7
        %v4738 = vsub.s32 0, %v4737
        %v4739 = vrot.slane %v3587, %v4738
        %v4740 = vlaneseq
        %v4741 = vshrl.u32 %v4740, 7
        %v4742 = vsub.s32 4, %v4741
        %v4743 = vrot.slane %v3587, %v4742
        %v4744 = vlaneseq
        %v4745 = vshrl.u32 %v4744, 7
        %v4746 = vsub.s32 0, %v4745
        %v4747 = vrot.slane %v3588, %v4746
        %v4748 = vlaneseq
        %v4749 = vshrl.u32 %v4748, 7
        %v4750 = vsub.s32 4, %v4749
        %v4751 = vrot.slane %v3588, %v4750
        %v4752 = vlaneseq
        %v4753 = vshrl.u32 %v4752, 7
        %v4754 = vsub.s32 0, %v4753
        %v4755 = vrot.slane %v3589, %v4754
        %v4756 = vlaneseq
        %v4757 = vshrl.u32 %v4756, 7
        %v4758 = vsub.s32 4, %v4757
        %v4759 = vrot.slane %v3589, %v4758
        %v4760 = vlaneseq
        %v4761 = vshrl.u32 %v4760, 7
        %v4762 = vsub.s32 0, %v4761
        %v4763 = vrot.slane %v3590, %v4762
        %v4764 = vlaneseq
        %v4765 = vshrl.u32 %v4764, 7
        %v4766 = vsub.s32 4, %v4765
        %v4767 = vrot.slane %v3590, %v4766
        %v4768 = vlaneseq
        %v4769 = vshrl.u32 %v4768, 7
        %v4770 = vsub.s32 0, %v4769
        %v4771 = vrot.slane %v3591, %v4770
        %v4772 = vlaneseq
        %v4773 = vshrl.u32 %v4772, 7
        %v4774 = vsub.s32 4, %v4773
        %v4775 = vrot.slane %v3591, %v4774
        %v4776 = vlaneseq
        %v4777 = vshrl.u32 %v4776, 7
        %v4778 = vsub.s32 0, %v4777
        %v4779 = vrot.slane %v3592, %v4778
        %v4780 = vlaneseq
        %v4781 = vshrl.u32 %v4780, 7
        %v4782 = vsub.s32 4, %v4781
        %v4783 = vrot.slane %v3592, %v4782
        %v4784 = vlaneseq
        %v4785 = vshrl.u32 %v4784, 7
        %v4786 = vsub.s32 0, %v4785
        %v4787 = vrot.slane %v3593, %v4786
        %v4788 = vlaneseq
        %v4789 = vshrl.u32 %v4788, 7
        %v4790 = vsub.s32 4, %v4789
        %v4791 = vrot.slane %v3593, %v4790
        %v4792 = vlaneseq
        %v4793 = vshrl.u32 %v4792, 7
        %v4794 = vsub.s32 0, %v4793
        %v4795 = vrot.slane %v3594, %v4794
        %v4796 = vlaneseq
        %v4797 = vshrl.u32 %v4796, 7
        %v4798 = vsub.s32 4, %v4797
        %v4799 = vrot.slane %v3594, %v4798
        %v4800 = vlaneseq
        %v4801 = vshrl.u32 %v4800, 7
        %v4802 = vsub.s32 0, %v4801
        %v4803 = vrot.slane %v3595, %v4802
        %v4804 = vlaneseq
        %v4805 = vshrl.u32 %v4804, 7
        %v4806 = vsub.s32 4, %v4805
        %v4807 = vrot.slane %v3595, %v4806
        %v4808 = vlaneseq
        %v4809 = vshrl.u32 %v4808, 7
        %v4810 = vsub.s32 0, %v4809
        %v4811 = vrot.slane %v3596, %v4810
        %v4812 = vlaneseq
        %v4813 = vshrl.u32 %v4812, 7
        %v4814 = vsub.s32 4, %v4813
        %v4815 = vrot.slane %v3596, %v4814
        %v4816 = vlaneseq
        %v4817 = vshrl.u32 %v4816, 7
        %v4818 = vsub.s32 0, %v4817
        %v4819 = vrot.slane %v3597, %v4818
        %v4820 = vlaneseq
        %v4821 = vshrl.u32 %v4820, 7
        %v4822 = vsub.s32 4, %v4821
        %v4823 = vrot.slane %v3597, %v4822
        %v4824 = vlaneseq
        %v4825 = vshrl.u32 %v4824, 7
        %v4826 = vsub.s32 0, %v4825
        %v4827 = vrot.slane %v3598, %v4826
        %v4828 = vlaneseq
        %v4829 = vshrl.u32 %v4828, 7
        %v4830 = vsub.s32 4, %v4829
        %v4831 = vrot.slane %v3598, %v4830
        %v4832 = vlaneseq
        %v4833 = vshrl.u32 %v4832, 7
        %v4834 = vsub.s32 0, %v4833
        %v4835 = vrot.slane %v3599, %v4834
        %v4836 = vlaneseq
        %v4837 = vshrl.u32 %v4836, 7
        %v4838 = vsub.s32 4, %v4837
        %v4839 = vrot.slane %v3599, %v4838
        %v4840 = vlaneseq
        %v4841 = vshrl.u32 %v4840, 7
        %v4842 = vsub.s32 0, %v4841
        %v4843 = vrot.slane %v3600, %v4842
        %v4844 = vlaneseq
        %v4845 = vshrl.u32 %v4844, 7
        %v4846 = vsub.s32 4, %v4845
        %v4847 = vrot.slane %v3600, %v4846
        %v4848 = vlaneseq
        %v4849 = vshrl.u32 %v4848, 7
        %v4850 = vsub.s32 0, %v4849
        %v4851 = vrot.slane %v3601, %v4850
        %v4852 = vlaneseq
        %v4853 = vshrl.u32 %v4852, 7
        %v4854 = vsub.s32 4, %v4853
        %v4855 = vrot.slane %v3601, %v4854
        %v4856 = vlaneseq
        %v4857 = vshrl.u32 %v4856, 7
        %v4858 = vsub.s32 0, %v4857
        %v4859 = vrot.slane %v3602, %v4858
        %v4860 = vlaneseq
        %v4861 = vshrl.u32 %v4860, 7
        %v4862 = vsub.s32 4, %v4861
        %v4863 = vrot.slane %v3602, %v4862
        %v4864 = vlaneseq
        %v4865 = vshrl.u32 %v4864, 7
        %v4866 = vsub.s32 0, %v4865
        %v4867 = vrot.slane %v3603, %v4866
        %v4868 = vlaneseq
        %v4869 = vshrl.u32 %v4868, 7
        %v4870 = vsub.s32 4, %v4869
        %v4871 = vrot.slane %v3603, %v4870
        %v4872 = vlaneseq
        %v4873 = vshrl.u32 %v4872, 7
        %v4874 = vsub.s32 0, %v4873
        %v4875 = vrot.slane %v3604, %v4874
        %v4876 = vlaneseq
        %v4877 = vshrl.u32 %v4876, 7
        %v4878 = vsub.s32 4, %v4877
        %v4879 = vrot.slane %v3604, %v4878
        %v4880 = vlaneseq
        %v4881 = vshrl.u32 %v4880, 7
        %v4882 = vsub.s32 0, %v4881
        %v4883 = vrot.slane %v3605, %v4882
        %v4884 = vlaneseq
        %v4885 = vshrl.u32 %v4884, 7
        %v4886 = vsub.s32 4, %v4885
        %v4887 = vrot.slane %v3605, %v4886
        %v4888 = vlaneseq
        %v4889 = vshrl.u32 %v4888, 7
        %v4890 = vsub.s32 0, %v4889
        %v4891 = vrot.slane %v3606, %v4890
        %v4892 = vlaneseq
        %v4893 = vshrl.u32 %v4892, 7
        %v4894 = vsub.s32 4, %v4893
        %v4895 = vrot.slane %v3606, %v4894
        %v4896 = vlaneseq
        %v4897 = vshrl.u32 %v4896, 7
        %v4898 = vsub.s32 0, %v4897
        %v4899 = vrot.slane %v3607, %v4898
        %v4900 = vlaneseq
        %v4901 = vshrl.u32 %v4900, 7
        %v4902 = vsub.s32 4, %v4901
        %v4903 = vrot.slane %v3607, %v4902
        %v4904 = vlaneseq
        %v4905 = vshrl.u32 %v4904, 7
        %v4906 = vsub.s32 0, %v4905
        %v4907 = vrot.slane %v3608, %v4906
        %v4908 = vlaneseq
        %v4909 = vshrl.u32 %v4908, 7
        %v4910 = vsub.s32 4, %v4909
        %v4911 = vrot.slane %v3608, %v4910
        %v4912 = vlaneseq
        %v4913 = vshrl.u32 %v4912, 7
        %v4914 = vsub.s32 0, %v4913
        %v4915 = vrot.slane %v3609, %v4914
        %v4916 = vlaneseq
        %v4917 = vshrl.u32 %v4916, 7
        %v4918 = vsub.s32 4, %v4917
        %v4919 = vrot.slane %v3609, %v4918
        %v4920 = vlaneseq
        %v4921 = vshrl.u32 %v4920, 7
        %v4922 = vsub.s32 0, %v4921
        %v4923 = vrot.slane %v3610, %v4922
        %v4924 = vlaneseq
        %v4925 = vshrl.u32 %v4924, 7
        %v4926 = vsub.s32 4, %v4925
        %v4927 = vrot.slane %v3610, %v4926
        %v4928 = vlaneseq
        %v4929 = vshrl.u32 %v4928, 7
        %v4930 = vsub.s32 0, %v4929
        %v4931 = vrot.slane %v3611, %v4930
        %v4932 = vlaneseq
        %v4933 = vshrl.u32 %v4932, 7
        %v4934 = vsub.s32 4, %v4933
        %v4935 = vrot.slane %v3611, %v4934
        %v4936 = vlaneseq
        %v4937 = vshrl.u32 %v4936, 7
        %v4938 = vsub.s32 0, %v4937
        %v4939 = vrot.slane %v3612, %v4938
        %v4940 = vlaneseq
        %v4941 = vshrl.u32 %v4940, 7
        %v4942 = vsub.s32 4, %v4941
        %v4943 = vrot.slane %v3612, %v4942
        %v4944 = vlaneseq
        %v4945 = vshrl.u32 %v4944, 7
        %v4946 = vsub.s32 0, %v4945
        %v4947 = vrot.slane %v3613, %v4946
        %v4948 = vlaneseq
        %v4949 = vshrl.u32 %v4948, 7
        %v4950 = vsub.s32 4, %v4949
        %v4951 = vrot.slane %v3613, %v4950
        %v4952 = vlaneseq
        %v4953 = vshrl.u32 %v4952, 7
        %v4954 = vsub.s32 0, %v4953
        %v4955 = vrot.slane %v3614, %v4954
        %v4956 = vlaneseq
        %v4957 = vshrl.u32 %v4956, 7
        %v4958 = vsub.s32 4, %v4957
        %v4959 = vrot.slane %v3614, %v4958
        %v4960 = vlaneseq
        %v4961 = vshrl.u32 %v4960, 7
        %v4962 = vsub.s32 0, %v4961
        %v4963 = vrot.slane %v3615, %v4962
        %v4964 = vlaneseq
        %v4965 = vshrl.u32 %v4964, 7
        %v4966 = vsub.s32 4, %v4965
        %v4967 = vrot.slane %v3615, %v4966
        %v4968 = vlaneseq
        %v4969 = vshrl.u32 %v4968, 7
        %v4970 = vsub.s32 0, %v4969
        %v4971 = vrot.slane %v3616, %v4970
        %v4972 = vlaneseq
        %v4973 = vshrl.u32 %v4972, 7
        %v4974 = vsub.s32 4, %v4973
        %v4975 = vrot.slane %v3616, %v4974
        %v4976 = vlaneseq
        %v4977 = vshrl.u32 %v4976, 7
        %v4978 = vsub.s32 0, %v4977
        %v4979 = vrot.slane %v3617, %v4978
        %v4980 = vlaneseq
        %v4981 = vshrl.u32 %v4980, 7
        %v4982 = vsub.s32 4, %v4981
        %v4983 = vrot.slane %v3617, %v4982
        %v4984 = vlaneseq
        %v4985 = vshrl.u32 %v4984, 7
        %v4986 = vsub.s32 0, %v4985
        %v4987 = vrot.slane %v3618, %v4986
        %v4988 = vlaneseq
        %v4989 = vshrl.u32 %v4988, 7
        %v4990 = vsub.s32 4, %v4989
        %v4991 = vrot.slane %v3618, %v4990
        %v4992 = vlaneseq
        %v4993 = vshrl.u32 %v4992, 7
        %v4994 = vsub.s32 0, %v4993
        %v4995 = vrot.slane %v3619, %v4994
        %v4996 = vlaneseq
        %v4997 = vshrl.u32 %v4996, 7
        %v4998 = vsub.s32 4, %v4997
        %v4999 = vrot.slane %v3619, %v4998
        %v5000 = vlaneseq
        %v5001 = vshrl.u32 %v5000, 7
        %v5002 = vsub.s32 0, %v5001
        %v5003 = vrot.slane %v3620, %v5002
        %v5004 = vlaneseq
        %v5005 = vshrl.u32 %v5004, 7
        %v5006 = vsub.s32 4, %v5005
        %v5007 = vrot.slane %v3620, %v5006
        %v5008 = vlaneseq
        %v5009 = vshrl.u32 %v5008, 7
        %v5010 = vsub.s32 0, %v5009
        %v5011 = vrot.slane %v3621, %v5010
        %v5012 = vlaneseq
        %v5013 = vshrl.u32 %v5012, 7
        %v5014 = vsub.s32 4, %v5013
        %v5015 = vrot.slane %v3621, %v5014
        %v5016 = vlaneseq
        %v5017 = vshrl.u32 %v5016, 7
        %v5018 = vsub.s32 0, %v5017
        %v5019 = vrot.slane %v3622, %v5018
        %v5020 = vlaneseq
        %v5021 = vshrl.u32 %v5020, 7
        %v5022 = vsub.s32 4, %v5021
        %v5023 = vrot.slane %v3622, %v5022
        %v5024 = vlaneseq
        %v5025 = vshrl.u32 %v5024, 7
        %v5026 = vsub.s32 0, %v5025
        %v5027 = vrot.slane %v3623, %v5026
        %v5028 = vlaneseq
        %v5029 = vshrl.u32 %v5028, 7
        %v5030 = vsub.s32 4, %v5029
        %v5031 = vrot.slane %v3623, %v5030
        %v5032 = vlaneseq
        %v5033 = vshrl.u32 %v5032, 7
        %v5034 = vsub.s32 0, %v5033
        %v5035 = vrot.slane %v3624, %v5034
        %v5036 = vlaneseq
        %v5037 = vshrl.u32 %v5036, 7
        %v5038 = vsub.s32 4, %v5037
        %v5039 = vrot.slane %v3624, %v5038
        %v5040 = vlaneseq
        %v5041 = vshrl.u32 %v5040, 7
        %v5042 = vsub.s32 0, %v5041
        %v5043 = vrot.slane %v3625, %v5042
        %v5044 = vlaneseq
        %v5045 = vshrl.u32 %v5044, 7
        %v5046 = vsub.s32 4, %v5045
        %v5047 = vrot.slane %v3625, %v5046
        %v5048 = vlaneseq
        %v5049 = vshrl.u32 %v5048, 7
        %v5050 = vsub.s32 0, %v5049
        %v5051 = vrot.slane %v3626, %v5050
        %v5052 = vlaneseq
        %v5053 = vshrl.u32 %v5052, 7
        %v5054 = vsub.s32 4, %v5053
        %v5055 = vrot.slane %v3626, %v5054
        %v5056 = vlaneseq
        %v5057 = vshrl.u32 %v5056, 7
        %v5058 = vsub.s32 0, %v5057
        %v5059 = vrot.slane %v3627, %v5058
        %v5060 = vlaneseq
        %v5061 = vshrl.u32 %v5060, 7
        %v5062 = vsub.s32 4, %v5061
        %v5063 = vrot.slane %v3627, %v5062
        %v5064 = vlaneseq
        %v5065 = vshrl.u32 %v5064, 7
        %v5066 = vsub.s32 0, %v5065
        %v5067 = vrot.slane %v3628, %v5066
        %v5068 = vlaneseq
        %v5069 = vshrl.u32 %v5068, 7
        %v5070 = vsub.s32 4, %v5069
        %v5071 = vrot.slane %v3628, %v5070
        %v5072 = vlaneseq
        %v5073 = vshrl.u32 %v5072, 7
        %v5074 = vsub.s32 0, %v5073
        %v5075 = vrot.slane %v3629, %v5074
        %v5076 = vlaneseq
        %v5077 = vshrl.u32 %v5076, 7
        %v5078 = vsub.s32 4, %v5077
        %v5079 = vrot.slane %v3629, %v5078
        %v5080 = vlaneseq
        %v5081 = vshrl.u32 %v5080, 7
        %v5082 = vsub.s32 0, %v5081
        %v5083 = vrot.slane %v3630, %v5082
        %v5084 = vlaneseq
        %v5085 = vshrl.u32 %v5084, 7
        %v5086 = vsub.s32 4, %v5085
        %v5087 = vrot.slane %v3630, %v5086
        %v5088 = vlaneseq
        %v5089 = vshrl.u32 %v5088, 7
        %v5090 = vsub.s32 0, %v5089
        %v5091 = vrot.slane %v3631, %v5090
        %v5092 = vlaneseq
        %v5093 = vshrl.u32 %v5092, 7
        %v5094 = vsub.s32 4, %v5093
        %v5095 = vrot.slane %v3631, %v5094
        %v5096 = vlaneseq
        %v5097 = vshrl.u32 %v5096, 7
        %v5098 = vsub.s32 0, %v5097
        %v5099 = vrot.slane %v3632, %v5098
        %v5100 = vlaneseq
        %v5101 = vshrl.u32 %v5100, 7
        %v5102 = vsub.s32 4, %v5101
        %v5103 = vrot.slane %v3632, %v5102
        %v5104 = vlaneseq
        %v5105 = vshrl.u32 %v5104, 7
        %v5106 = vsub.s32 0, %v5105
        %v5107 = vrot.slane %v3633, %v5106
        %v5108 = vlaneseq
        %v5109 = vshrl.u32 %v5108, 7
        %v5110 = vsub.s32 4, %v5109
        %v5111 = vrot.slane %v3633, %v5110
        %v5112 = vlaneseq
        %v5113 = vshrl.u32 %v5112, 7
        %v5114 = vsub.s32 0, %v5113
        %v5115 = vrot.slane %v3634, %v5114
        %v5116 = vlaneseq
        %v5117 = vshrl.u32 %v5116, 7
        %v5118 = vsub.s32 4, %v5117
        %v5119 = vrot.slane %v3634, %v5118
        %v5120 = vlaneseq
        %v5121 = vshrl.u32 %v5120, 7
        %v5122 = vsub.s32 0, %v5121
        %v5123 = vrot.slane %v3635, %v5122
        %v5124 = vlaneseq
        %v5125 = vshrl.u32 %v5124, 7
        %v5126 = vsub.s32 4, %v5125
        %v5127 = vrot.slane %v3635, %v5126
        %v5128 = vlaneseq
        %v5129 = vshrl.u32 %v5128, 7
        %v5130 = vsub.s32 0, %v5129
        %v5131 = vrot.slane %v3636, %v5130
        %v5132 = vlaneseq
        %v5133 = vshrl.u32 %v5132, 7
        %v5134 = vsub.s32 4, %v5133
        %v5135 = vrot.slane %v3636, %v5134
        %v5136 = vlaneseq
        %v5137 = vshrl.u32 %v5136, 7
        %v5138 = vsub.s32 0, %v5137
        %v5139 = vrot.slane %v3637, %v5138
        %v5140 = vlaneseq
        %v5141 = vshrl.u32 %v5140, 7
        %v5142 = vsub.s32 4, %v5141
        %v5143 = vrot.slane %v3637, %v5142
        %v5144 = vlaneseq
        %v5145 = vshrl.u32 %v5144, 7
        %v5146 = vsub.s32 0, %v5145
        %v5147 = vrot.slane %v3638, %v5146
        %v5148 = vlaneseq
        %v5149 = vshrl.u32 %v5148, 7
        %v5150 = vsub.s32 4, %v5149
        %v5151 = vrot.slane %v3638, %v5150
        %v5152 = vlaneseq
        %v5153 = vshrl.u32 %v5152, 7
        %v5154 = vsub.s32 0, %v5153
        %v5155 = vrot.slane %v3639, %v5154
        %v5156 = vlaneseq
        %v5157 = vshrl.u32 %v5156, 7
        %v5158 = vsub.s32 4, %v5157
        %v5159 = vrot.slane %v3639, %v5158
        %v5160 = vlaneseq
        %v5161 = vshrl.u32 %v5160, 7
        %v5162 = vsub.s32 0, %v5161
        %v5163 = vrot.slane %v3640, %v5162
        %v5164 = vlaneseq
        %v5165 = vshrl.u32 %v5164, 7
        %v5166 = vsub.s32 4, %v5165
        %v5167 = vrot.slane %v3640, %v5166
        %v5168 = vlaneseq
        %v5169 = vshrl.u32 %v5168, 7
        %v5170 = vsub.s32 0, %v5169
        %v5171 = vrot.slane %v3641, %v5170
        %v5172 = vlaneseq
        %v5173 = vshrl.u32 %v5172, 7
        %v5174 = vsub.s32 4, %v5173
        %v5175 = vrot.slane %v3641, %v5174
        %v5176 = vlaneseq
        %v5177 = vshrl.u32 %v5176, 7
        %v5178 = vsub.s32 0, %v5177
        %v5179 = vrot.slane %v3642, %v5178
        %v5180 = vlaneseq
        %v5181 = vshrl.u32 %v5180, 7
        %v5182 = vsub.s32 4, %v5181
        %v5183 = vrot.slane %v3642, %v5182
        %v5184 = vlaneseq
        %v5185 = vshrl.u32 %v5184, 7
        %v5186 = vsub.s32 0, %v5185
        %v5187 = vrot.slane %v3643, %v5186
        %v5188 = vlaneseq
        %v5189 = vshrl.u32 %v5188, 7
        %v5190 = vsub.s32 4, %v5189
        %v5191 = vrot.slane %v3643, %v5190
        %v5192 = vlaneseq
        %v5193 = vshrl.u32 %v5192, 7
        %v5194 = vsub.s32 0, %v5193
        %v5195 = vrot.slane %v3644, %v5194
        %v5196 = vlaneseq
        %v5197 = vshrl.u32 %v5196, 7
        %v5198 = vsub.s32 4, %v5197
        %v5199 = vrot.slane %v3644, %v5198
        %v5200 = vlaneseq
        %v5201 = vshrl.u32 %v5200, 7
        %v5202 = vsub.s32 0, %v5201
        %v5203 = vrot.slane %v3645, %v5202
        %v5204 = vlaneseq
        %v5205 = vshrl.u32 %v5204, 7
        %v5206 = vsub.s32 4, %v5205
        %v5207 = vrot.slane %v3645, %v5206
        %v5208 = vlaneseq
        %v5209 = vshrl.u32 %v5208, 7
        %v5210 = vsub.s32 0, %v5209
        %v5211 = vrot.slane %v3646, %v5210
        %v5212 = vlaneseq
        %v5213 = vshrl.u32 %v5212, 7
        %v5214 = vsub.s32 4, %v5213
        %v5215 = vrot.slane %v3646, %v5214
        %v5216 = vlaneseq
        %v5217 = vshrl.u32 %v5216, 7
        %v5218 = vsub.s32 0, %v5217
        %v5219 = vrot.slane %v3647, %v5218
        %v5220 = vlaneseq
        %v5221 = vshrl.u32 %v5220, 7
        %v5222 = vsub.s32 4, %v5221
        %v5223 = vrot.slane %v3647, %v5222
        %v5224 = vlaneseq
        %v5225 = vshrl.u32 %v5224, 7
        %v5226 = vsub.s32 0, %v5225
        %v5227 = vrot.slane %v3648, %v5226
        %v5228 = vlaneseq
        %v5229 = vshrl.u32 %v5228, 7
        %v5230 = vsub.s32 4, %v5229
        %v5231 = vrot.slane %v3648, %v5230
        %v5232 = vlaneseq
        %v5233 = vshrl.u32 %v5232, 7
        %v5234 = vsub.s32 0, %v5233
        %v5235 = vrot.slane %v3649, %v5234
        %v5236 = vlaneseq
        %v5237 = vshrl.u32 %v5236, 7
        %v5238 = vsub.s32 4, %v5237
        %v5239 = vrot.slane %v3649, %v5238
        %v5240 = vlaneseq
        %v5241 = vshrl.u32 %v5240, 7
        %v5242 = vsub.s32 0, %v5241
        %v5243 = vrot.slane %v3650, %v5242
        %v5244 = vlaneseq
        %v5245 = vshrl.u32 %v5244, 7
        %v5246 = vsub.s32 4, %v5245
        %v5247 = vrot.slane %v3650, %v5246
        %v5248 = vlaneseq
        %v5249 = vshrl.u32 %v5248, 7
        %v5250 = vsub.s32 0, %v5249
        %v5251 = vrot.slane %v3651, %v5250
        %v5252 = vlaneseq
        %v5253 = vshrl.u32 %v5252, 7
        %v5254 = vsub.s32 4, %v5253
        %v5255 = vrot.slane %v3651, %v5254
        %v5256 = vlaneseq
        %v5257 = vshrl.u32 %v5256, 7
        %v5258 = vsub.s32 0, %v5257
        %v5259 = vrot.slane %v3652, %v5258
        %v5260 = vlaneseq
        %v5261 = vshrl.u32 %v5260, 7
        %v5262 = vsub.s32 4, %v5261
        %v5263 = vrot.slane %v3652, %v5262
        %v5264 = vlaneseq
        %v5265 = vshrl.u32 %v5264, 7
        %v5266 = vsub.s32 0, %v5265
        %v5267 = vrot.slane %v3653, %v5266
        %v5268 = vlaneseq
        %v5269 = vshrl.u32 %v5268, 7
        %v5270 = vsub.s32 4, %v5269
        %v5271 = vrot.slane %v3653, %v5270
        %v5272 = vlaneseq
        %v5273 = vshrl.u32 %v5272, 7
        %v5274 = vsub.s32 0, %v5273
        %v5275 = vrot.slane %v3654, %v5274
        %v5276 = vlaneseq
        %v5277 = vshrl.u32 %v5276, 7
        %v5278 = vsub.s32 4, %v5277
        %v5279 = vrot.slane %v3654, %v5278
        %v5280 = vlaneseq
        %v5281 = vshrl.u32 %v5280, 7
        %v5282 = vsub.s32 0, %v5281
        %v5283 = vrot.slane %v3655, %v5282
        %v5284 = vlaneseq
        %v5285 = vshrl.u32 %v5284, 7
        %v5286 = vsub.s32 4, %v5285
        %v5287 = vrot.slane %v3655, %v5286
        %v5288 = vlaneseq
        %v5289 = vshrl.u32 %v5288, 7
        %v5290 = vsub.s32 0, %v5289
        %v5291 = vrot.slane %v3656, %v5290
        %v5292 = vlaneseq
        %v5293 = vshrl.u32 %v5292, 7
        %v5294 = vsub.s32 4, %v5293
        %v5295 = vrot.slane %v3656, %v5294
        %v5296 = vlaneseq
        %v5297 = vshrl.u32 %v5296, 7
        %v5298 = vsub.s32 0, %v5297
        %v5299 = vrot.slane %v3657, %v5298
        %v5300 = vlaneseq
        %v5301 = vshrl.u32 %v5300, 7
        %v5302 = vsub.s32 4, %v5301
        %v5303 = vrot.slane %v3657, %v5302
        %v5304 = vlaneseq
        %v5305 = vshrl.u32 %v5304, 7
        %v5306 = vsub.s32 0, %v5305
        %v5307 = vrot.slane %v3658, %v5306
        %v5308 = vlaneseq
        %v5309 = vshrl.u32 %v5308, 7
        %v5310 = vsub.s32 4, %v5309
        %v5311 = vrot.slane %v3658, %v5310
        %v5312 = vlaneseq
        %v5313 = vshrl.u32 %v5312, 7
        %v5314 = vsub.s32 0, %v5313
        %v5315 = vrot.slane %v3659, %v5314
        %v5316 = vlaneseq
        %v5317 = vshrl.u32 %v5316, 7
        %v5318 = vsub.s32 4, %v5317
        %v5319 = vrot.slane %v3659, %v5318
        %v5320 = vlaneseq
        %v5321 = vshrl.u32 %v5320, 7
        %v5322 = vsub.s32 0, %v5321
        %v5323 = vrot.slane %v3660, %v5322
        %v5324 = vlaneseq
        %v5325 = vshrl.u32 %v5324, 7
        %v5326 = vsub.s32 4, %v5325
        %v5327 = vrot.slane %v3660, %v5326
        %v5328 = vlaneseq
        %v5329 = vshrl.u32 %v5328, 7
        %v5330 = vsub.s32 0, %v5329
        %v5331 = vrot.slane %v3661, %v5330
        %v5332 = vlaneseq
        %v5333 = vshrl.u32 %v5332, 7
        %v5334 = vsub.s32 4, %v5333
        %v5335 = vrot.slane %v3661, %v5334
        %v5336 = vlaneseq
        %v5337 = vshrl.u32 %v5336, 7
        %v5338 = vsub.s32 0, %v5337
        %v5339 = vrot.slane %v3662, %v5338
        %v5340 = vlaneseq
        %v5341 = vshrl.u32 %v5340, 7
        %v5342 = vsub.s32 4, %v5341
        %v5343 = vrot.slane %v3662, %v5342
        %v5344 = vlaneseq
        %v5345 = vshrl.u32 %v5344, 7
        %v5346 = vsub.s32 0, %v5345
        %v5347 = vrot.slane %v3663, %v5346
        %v5348 = vlaneseq
        %v5349 = vshrl.u32 %v5348, 7
        %v5350 = vsub.s32 4, %v5349
        %v5351 = vrot.slane %v3663, %v5350
        %v5352 = vlaneseq
        %v5353 = vshrl.u32 %v5352, 7
        %v5354 = vsub.s32 0, %v5353
        %v5355 = vrot.slane %v3664, %v5354
        %v5356 = vlaneseq
        %v5357 = vshrl.u32 %v5356, 7
        %v5358 = vsub.s32 4, %v5357
        %v5359 = vrot.slane %v3664, %v5358
        %v5360 = vlaneseq
        %v5361 = vshrl.u32 %v5360, 7
        %v5362 = vsub.s32 0, %v5361
        %v5363 = vrot.slane %v3665, %v5362
        %v5364 = vlaneseq
        %v5365 = vshrl.u32 %v5364, 7
        %v5366 = vsub.s32 4, %v5365
        %v5367 = vrot.slane %v3665, %v5366
        %v5368 = vlaneseq
        %v5369 = vshrl.u32 %v5368, 7
        %v5370 = vsub.s32 0, %v5369
        %v5371 = vrot.slane %v3666, %v5370
        %v5372 = vlaneseq
        %v5373 = vshrl.u32 %v5372, 7
        %v5374 = vsub.s32 4, %v5373
        %v5375 = vrot.slane %v3666, %v5374
        %v5376 = vlaneseq
        %v5377 = vshrl.u32 %v5376, 7
        %v5378 = vsub.s32 0, %v5377
        %v5379 = vrot.slane %v3667, %v5378
        %v5380 = vlaneseq
        %v5381 = vshrl.u32 %v5380, 7
        %v5382 = vsub.s32 4, %v5381
        %v5383 = vrot.slane %v3667, %v5382
        %v5384 = vlaneseq
        %v5385 = vshrl.u32 %v5384, 7
        %v5386 = vsub.s32 0, %v5385
        %v5387 = vrot.slane %v3668, %v5386
        %v5388 = vlaneseq
        %v5389 = vshrl.u32 %v5388, 7
        %v5390 = vsub.s32 4, %v5389
        %v5391 = vrot.slane %v3668, %v5390
        %v5392 = vlaneseq
        %v5393 = vshrl.u32 %v5392, 7
        %v5394 = vsub.s32 0, %v5393
        %v5395 = vrot.slane %v3669, %v5394
        %v5396 = vlaneseq
        %v5397 = vshrl.u32 %v5396, 7
        %v5398 = vsub.s32 4, %v5397
        %v5399 = vrot.slane %v3669, %v5398
        %v5400 = vlaneseq
        %v5401 = vshrl.u32 %v5400, 7
        %v5402 = vsub.s32 0, %v5401
        %v5403 = vrot.slane %v3670, %v5402
        %v5404 = vlaneseq
        %v5405 = vshrl.u32 %v5404, 7
        %v5406 = vsub.s32 4, %v5405
        %v5407 = vrot.slane %v3670, %v5406
        %v5408 = vlaneseq
        %v5409 = vshrl.u32 %v5408, 7
        %v5410 = vsub.s32 0, %v5409
        %v5411 = vrot.slane %v3671, %v5410
        %v5412 = vlaneseq
        %v5413 = vshrl.u32 %v5412, 7
        %v5414 = vsub.s32 4, %v5413
        %v5415 = vrot.slane %v3671, %v5414
        %v5416 = vlaneseq
        %v5417 = vshrl.u32 %v5416, 7
        %v5418 = vsub.s32 0, %v5417
        %v5419 = vrot.slane %v3672, %v5418
        %v5420 = vlaneseq
        %v5421 = vshrl.u32 %v5420, 7
        %v5422 = vsub.s32 4, %v5421
        %v5423 = vrot.slane %v3672, %v5422
        %v5424 = vlaneseq
        %v5425 = vshrl.u32 %v5424, 7
        %v5426 = vsub.s32 0, %v5425
        %v5427 = vrot.slane %v3673, %v5426
        %v5428 = vlaneseq
        %v5429 = vshrl.u32 %v5428, 7
        %v5430 = vsub.s32 4, %v5429
        %v5431 = vrot.slane %v3673, %v5430
        %v5432 = vlaneseq
        %v5433 = vshrl.u32 %v5432, 7
        %v5434 = vsub.s32 0, %v5433
        %v5435 = vrot.slane %v3674, %v5434
        %v5436 = vlaneseq
        %v5437 = vshrl.u32 %v5436, 7
        %v5438 = vsub.s32 4, %v5437
        %v5439 = vrot.slane %v3674, %v5438
        %v5440 = vlaneseq
        %v5441 = vshrl.u32 %v5440, 7
        %v5442 = vsub.s32 0, %v5441
        %v5443 = vrot.slane %v3675, %v5442
        %v5444 = vlaneseq
        %v5445 = vshrl.u32 %v5444, 7
        %v5446 = vsub.s32 4, %v5445
        %v5447 = vrot.slane %v3675, %v5446
        %v5448 = vlaneseq
        %v5449 = vshrl.u32 %v5448, 7
        %v5450 = vsub.s32 0, %v5449
        %v5451 = vrot.slane %v3676, %v5450
        %v5452 = vlaneseq
        %v5453 = vshrl.u32 %v5452, 7
        %v5454 = vsub.s32 4, %v5453
        %v5455 = vrot.slane %v3676, %v5454
        %v5456 = vlaneseq
        %v5457 = vshrl.u32 %v5456, 7
        %v5458 = vsub.s32 0, %v5457
        %v5459 = vrot.slane %v3677, %v5458
        %v5460 = vlaneseq
        %v5461 = vshrl.u32 %v5460, 7
        %v5462 = vsub.s32 4, %v5461
        %v5463 = vrot.slane %v3677, %v5462
        %v5464 = vlaneseq
        %v5465 = vshrl.u32 %v5464, 7
        %v5466 = vsub.s32 0, %v5465
        %v5467 = vrot.slane %v3678, %v5466
        %v5468 = vlaneseq
        %v5469 = vshrl.u32 %v5468, 7
        %v5470 = vsub.s32 4, %v5469
        %v5471 = vrot.slane %v3678, %v5470
        %v5472 = vlaneseq
        %v5473 = vshrl.u32 %v5472, 7
        %v5474 = vsub.s32 0, %v5473
        %v5475 = vrot.slane %v3679, %v5474
        %v5476 = vlaneseq
        %v5477 = vshrl.u32 %v5476, 7
        %v5478 = vsub.s32 4, %v5477
        %v5479 = vrot.slane %v3679, %v5478
        %v5480 = vlaneseq
        %v5481 = vshrl.u32 %v5480, 7
        %v5482 = vsub.s32 0, %v5481
        %v5483 = vrot.slane %v3680, %v5482
        %v5484 = vlaneseq
        %v5485 = vshrl.u32 %v5484, 7
        %v5486 = vsub.s32 4, %v5485
        %v5487 = vrot.slane %v3680, %v5486
        %v5488 = vlaneseq
        %v5489 = vshrl.u32 %v5488, 7
        %v5490 = vsub.s32 0, %v5489
        %v5491 = vrot.slane %v3681, %v5490
        %v5492 = vlaneseq
        %v5493 = vshrl.u32 %v5492, 7
        %v5494 = vsub.s32 4, %v5493
        %v5495 = vrot.slane %v3681, %v5494
        %v5496 = vlaneseq
        %v5497 = vshrl.u32 %v5496, 7
        %v5498 = vsub.s32 0, %v5497
        %v5499 = vrot.slane %v3682, %v5498
        %v5500 = vlaneseq
        %v5501 = vshrl.u32 %v5500, 7
        %v5502 = vsub.s32 4, %v5501
        %v5503 = vrot.slane %v3682, %v5502
        %v5504 = vlaneseq
        %v5505 = vshrl.u32 %v5504, 7
        %v5506 = vsub.s32 0, %v5505
        %v5507 = vrot.slane %v3683, %v5506
        %v5508 = vlaneseq
        %v5509 = vshrl.u32 %v5508, 7
        %v5510 = vsub.s32 4, %v5509
        %v5511 = vrot.slane %v3683, %v5510
        %v5512 = vlaneseq
        %v5513 = vshrl.u32 %v5512, 7
        %v5514 = vsub.s32 0, %v5513
        %v5515 = vrot.slane %v3684, %v5514
        %v5516 = vlaneseq
        %v5517 = vshrl.u32 %v5516, 7
        %v5518 = vsub.s32 4, %v5517
        %v5519 = vrot.slane %v3684, %v5518
        %v5520 = vlaneseq
        %v5521 = vshrl.u32 %v5520, 7
        %v5522 = vsub.s32 0, %v5521
        %v5523 = vrot.slane %v3685, %v5522
        %v5524 = vlaneseq
        %v5525 = vshrl.u32 %v5524, 7
        %v5526 = vsub.s32 4, %v5525
        %v5527 = vrot.slane %v3685, %v5526
        %v5528 = vlaneseq
        %v5529 = vshrl.u32 %v5528, 7
        %v5530 = vsub.s32 0, %v5529
        %v5531 = vrot.slane %v3686, %v5530
        %v5532 = vlaneseq
        %v5533 = vshrl.u32 %v5532, 7
        %v5534 = vsub.s32 4, %v5533
        %v5535 = vrot.slane %v3686, %v5534
        %v5536 = vlaneseq
        %v5537 = vshrl.u32 %v5536, 7
        %v5538 = vsub.s32 0, %v5537
        %v5539 = vrot.slane %v3687, %v5538
        %v5540 = vlaneseq
        %v5541 = vshrl.u32 %v5540, 7
        %v5542 = vsub.s32 4, %v5541
        %v5543 = vrot.slane %v3687, %v5542
        %v5544 = vlaneseq
        %v5545 = vshrl.u32 %v5544, 7
        %v5546 = vsub.s32 0, %v5545
        %v5547 = vrot.slane %v3688, %v5546
        %v5548 = vlaneseq
        %v5549 = vshrl.u32 %v5548, 7
        %v5550 = vsub.s32 4, %v5549
        %v5551 = vrot.slane %v3688, %v5550
        %v5552 = vlaneseq
        %v5553 = vshrl.u32 %v5552, 7
        %v5554 = vsub.s32 0, %v5553
        %v5555 = vrot.slane %v3689, %v5554
        %v5556 = vlaneseq
        %v5557 = vshrl.u32 %v5556, 7
        %v5558 = vsub.s32 4, %v5557
        %v5559 = vrot.slane %v3689, %v5558
        %v5560 = vlaneseq
        %v5561 = vshrl.u32 %v5560, 7
        %v5562 = vsub.s32 0, %v5561
        %v5563 = vrot.slane %v3690, %v5562
        %v5564 = vlaneseq
        %v5565 = vshrl.u32 %v5564, 7
        %v5566 = vsub.s32 4, %v5565
        %v5567 = vrot.slane %v3690, %v5566
        %v5568 = vlaneseq
        %v5569 = vshrl.u32 %v5568, 7
        %v5570 = vsub.s32 0, %v5569
        %v5571 = vrot.slane %v3691, %v5570
        %v5572 = vlaneseq
        %v5573 = vshrl.u32 %v5572, 7
        %v5574 = vsub.s32 4, %v5573
        %v5575 = vrot.slane %v3691, %v5574
        %v5576 = vlaneseq
        %v5577 = vshrl.u32 %v5576, 7
        %v5578 = vsub.s32 0, %v5577
        %v5579 = vrot.slane %v3692, %v5578
        %v5580 = vlaneseq
        %v5581 = vshrl.u32 %v5580, 7
        %v5582 = vsub.s32 4, %v5581
        %v5583 = vrot.slane %v3692, %v5582
        %v5584 = vlaneseq
        %v5585 = vshrl.u32 %v5584, 7
        %v5586 = vsub.s32 0, %v5585
        %v5587 = vrot.slane %v3693, %v5586
        %v5588 = vlaneseq
        %v5589 = vshrl.u32 %v5588, 7
        %v5590 = vsub.s32 4, %v5589
        %v5591 = vrot.slane %v3693, %v5590
        %v5592 = vlaneseq
        %v5593 = vshrl.u32 %v5592, 7
        %v5594 = vsub.s32 0, %v5593
        %v5595 = vrot.slane %v3694, %v5594
        %v5596 = vlaneseq
        %v5597 = vshrl.u32 %v5596, 7
        %v5598 = vsub.s32 4, %v5597
        %v5599 = vrot.slane %v3694, %v5598
        %v5600 = vlaneseq
        %v5601 = vshrl.u32 %v5600, 7
        %v5602 = vsub.s32 0, %v5601
        %v5603 = vrot.slane %v3695, %v5602
        %v5604 = vlaneseq
        %v5605 = vshrl.u32 %v5604, 7
        %v5606 = vsub.s32 4, %v5605
        %v5607 = vrot.slane %v3695, %v5606
        %v5608 = vlaneseq
        %v5609 = vshrl.u32 %v5608, 7
        %v5610 = vsub.s32 0, %v5609
        %v5611 = vrot.slane %v3696, %v5610
        %v5612 = vlaneseq
        %v5613 = vshrl.u32 %v5612, 7
        %v5614 = vsub.s32 4, %v5613
        %v5615 = vrot.slane %v3696, %v5614
        %v5616 = vlaneseq
        %v5617 = vshrl.u32 %v5616, 7
        %v5618 = vsub.s32 0, %v5617
        %v5619 = vrot.slane %v3697, %v5618
        %v5620 = vlaneseq
        %v5621 = vshrl.u32 %v5620, 7
        %v5622 = vsub.s32 4, %v5621
        %v5623 = vrot.slane %v3697, %v5622
        %v5624 = vlaneseq
        %v5625 = vshrl.u32 %v5624, 7
        %v5626 = vsub.s32 0, %v5625
        %v5627 = vrot.slane %v3698, %v5626
        %v5628 = vlaneseq
        %v5629 = vshrl.u32 %v5628, 7
        %v5630 = vsub.s32 4, %v5629
        %v5631 = vrot.slane %v3698, %v5630
        %v5632 = vlaneseq
        %v5633 = vshrl.u32 %v5632, 7
        %v5634 = vsub.s32 0, %v5633
        %v5635 = vrot.slane %v3699, %v5634
        %v5636 = vlaneseq
        %v5637 = vshrl.u32 %v5636, 7
        %v5638 = vsub.s32 4, %v5637
        %v5639 = vrot.slane %v3699, %v5638
        %v5640 = vlaneseq
        %v5641 = vshrl.u32 %v5640, 7
        %v5642 = vsub.s32 0, %v5641
        %v5643 = vrot.slane %v3700, %v5642
        %v5644 = vlaneseq
        %v5645 = vshrl.u32 %v5644, 7
        %v5646 = vsub.s32 4, %v5645
        %v5647 = vrot.slane %v3700, %v5646
        %v5648 = vlaneseq
        %v5649 = vshrl.u32 %v5648, 7
        %v5650 = vsub.s32 0, %v5649
        %v5651 = vrot.slane %v3701, %v5650
        %v5652 = vlaneseq
        %v5653 = vshrl.u32 %v5652, 7
        %v5654 = vsub.s32 4, %v5653
        %v5655 = vrot.slane %v3701, %v5654
        %v5656 = vlaneseq
        %v5657 = vshrl.u32 %v5656, 7
        %v5658 = vsub.s32 0, %v5657
        %v5659 = vrot.slane %v3702, %v5658
        %v5660 = vlaneseq
        %v5661 = vshrl.u32 %v5660, 7
        %v5662 = vsub.s32 4, %v5661
        %v5663 = vrot.slane %v3702, %v5662
        %v5664 = vlaneseq
        %v5665 = vshrl.u32 %v5664, 7
        %v5666 = vsub.s32 0, %v5665
        %v5667 = vrot.slane %v3703, %v5666
        %v5668 = vlaneseq
        %v5669 = vshrl.u32 %v5668, 7
        %v5670 = vsub.s32 4, %v5669
        %v5671 = vrot.slane %v3703, %v5670
        %v5672 = vlaneseq
        %v5673 = vshrl.u32 %v5672, 7
        %v5674 = vsub.s32 0, %v5673
        %v5675 = vrot.slane %v3704, %v5674
        %v5676 = vlaneseq
        %v5677 = vshrl.u32 %v5676, 7
        %v5678 = vsub.s32 4, %v5677
        %v5679 = vrot.slane %v3704, %v5678
        %v5680 = vlaneseq
        %v5681 = vshrl.u32 %v5680, 7
        %v5682 = vsub.s32 0, %v5681
        %v5683 = vrot.slane %v3705, %v5682
        %v5684 = vlaneseq
        %v5685 = vshrl.u32 %v5684, 7
        %v5686 = vsub.s32 4, %v5685
        %v5687 = vrot.slane %v3705, %v5686
        %v5688 = vlaneseq
        %v5689 = vshrl.u32 %v5688, 7
        %v5690 = vsub.s32 0, %v5689
        %v5691 = vrot.slane %v3706, %v5690
        %v5692 = vlaneseq
        %v5693 = vshrl.u32 %v5692, 7
        %v5694 = vsub.s32 4, %v5693
        %v5695 = vrot.slane %v3706, %v5694
        %v5696 = vlaneseq
        %v5697 = vshrl.u32 %v5696, 7
        %v5698 = vsub.s32 0, %v5697
        %v5699 = vrot.slane %v3707, %v5698
        %v5700 = vlaneseq
        %v5701 = vshrl.u32 %v5700, 7
        %v5702 = vsub.s32 4, %v5701
        %v5703 = vrot.slane %v3707, %v5702
        %v5704 = vlaneseq
        %v5705 = vshrl.u32 %v5704, 7
        %v5706 = vsub.s32 0, %v5705
        %v5707 = vrot.slane %v3708, %v5706
        %v5708 = vlaneseq
        %v5709 = vshrl.u32 %v5708, 7
        %v5710 = vsub.s32 4, %v5709
        %v5711 = vrot.slane %v3708, %v5710
        %v5712 = vlaneseq
        %v5713 = vshrl.u32 %v5712, 7
        %v5714 = vsub.s32 0, %v5713
        %v5715 = vrot.slane %v3709, %v5714
        %v5716 = vlaneseq
        %v5717 = vshrl.u32 %v5716, 7
        %v5718 = vsub.s32 4, %v5717
        %v5719 = vrot.slane %v3709, %v5718
        %v5720 = vlaneseq
        %v5721 = vshrl.u32 %v5720, 7
        %v5722 = vsub.s32 0, %v5721
        %v5723 = vrot.slane %v3710, %v5722
        %v5724 = vlaneseq
        %v5725 = vshrl.u32 %v5724, 7
        %v5726 = vsub.s32 4, %v5725
        %v5727 = vrot.slane %v3710, %v5726
        %v5728 = vlaneseq
        %v5729 = vshrl.u32 %v5728, 7
        %v5730 = vsub.s32 0, %v5729
        %v5731 = vrot.slane %v3711, %v5730
        %v5732 = vlaneseq
        %v5733 = vshrl.u32 %v5732, 7
        %v5734 = vsub.s32 4, %v5733
        %v5735 = vrot.slane %v3711, %v5734
        %v5736 = vlaneseq
        %v5737 = vshrl.u32 %v5736, 7
        %v5738 = vsub.s32 0, %v5737
        %v5739 = vrot.slane %v3712, %v5738
        %v5740 = vlaneseq
        %v5741 = vshrl.u32 %v5740, 7
        %v5742 = vsub.s32 4, %v5741
        %v5743 = vrot.slane %v3712, %v5742
        %v5744 = vlaneseq
        %v5745 = vshrl.u32 %v5744, 7
        %v5746 = vsub.s32 0, %v5745
        %v5747 = vrot.slane %v3713, %v5746
        %v5748 = vlaneseq
        %v5749 = vshrl.u32 %v5748, 7
        %v5750 = vsub.s32 4, %v5749
        %v5751 = vrot.slane %v3713, %v5750
        %v5752 = vlaneseq
        %v5753 = vshrl.u32 %v5752, 7
        %v5754 = vsub.s32 0, %v5753
        %v5755 = vrot.slane %v3714, %v5754
        %v5756 = vlaneseq
        %v5757 = vshrl.u32 %v5756, 7
        %v5758 = vsub.s32 4, %v5757
        %v5759 = vrot.slane %v3714, %v5758
        %v5760 = vlaneseq
        %v5761 = vshrl.u32 %v5760, 7
        %v5762 = vsub.s32 0, %v5761
        %v5763 = vrot.slane %v3715, %v5762
        %v5764 = vlaneseq
        %v5765 = vshrl.u32 %v5764, 7
        %v5766 = vsub.s32 4, %v5765
        %v5767 = vrot.slane %v3715, %v5766
        %v5768 = vlaneseq
        %v5769 = vshrl.u32 %v5768, 7
        %v5770 = vsub.s32 0, %v5769
        %v5771 = vrot.slane %v3716, %v5770
        %v5772 = vlaneseq
        %v5773 = vshrl.u32 %v5772, 7
        %v5774 = vsub.s32 4, %v5773
        %v5775 = vrot.slane %v3716, %v5774
        %v5776 = vlaneseq
        %v5777 = vshrl.u32 %v5776, 7
        %v5778 = vsub.s32 0, %v5777
        %v5779 = vrot.slane %v3717, %v5778
        %v5780 = vlaneseq
        %v5781 = vshrl.u32 %v5780, 7
        %v5782 = vsub.s32 4, %v5781
        %v5783 = vrot.slane %v3717, %v5782
        %v5784 = vlaneseq
        %v5785 = vshrl.u32 %v5784, 7
        %v5786 = vsub.s32 0, %v5785
        %v5787 = vrot.slane %v3718, %v5786
        %v5788 = vlaneseq
        %v5789 = vshrl.u32 %v5788, 7
        %v5790 = vsub.s32 4, %v5789
        %v5791 = vrot.slane %v3718, %v5790
        %v5792 = vlaneseq
        %v5793 = vshrl.u32 %v5792, 7
        %v5794 = vsub.s32 0, %v5793
        %v5795 = vrot.slane %v3719, %v5794
        %v5796 = vlaneseq
        %v5797 = vshrl.u32 %v5796, 7
        %v5798 = vsub.s32 4, %v5797
        %v5799 = vrot.slane %v3719, %v5798
        %v5800 = vlaneseq
        %v5801 = vshrl.u32 %v5800, 7
        %v5802 = vsub.s32 0, %v5801
        %v5803 = vrot.slane %v3720, %v5802
        %v5804 = vlaneseq
        %v5805 = vshrl.u32 %v5804, 7
        %v5806 = vsub.s32 4, %v5805
        %v5807 = vrot.slane %v3720, %v5806
        %v5808 = vlaneseq
        %v5809 = vshrl.u32 %v5808, 7
        %v5810 = vsub.s32 0, %v5809
        %v5811 = vrot.slane %v3721, %v5810
        %v5812 = vlaneseq
        %v5813 = vshrl.u32 %v5812, 7
        %v5814 = vsub.s32 4, %v5813
        %v5815 = vrot.slane %v3721, %v5814
        %v5816 = vlaneseq
        %v5817 = vshrl.u32 %v5816, 7
        %v5818 = vsub.s32 0, %v5817
        %v5819 = vrot.slane %v3722, %v5818
        %v5820 = vlaneseq
        %v5821 = vshrl.u32 %v5820, 7
        %v5822 = vsub.s32 4, %v5821
        %v5823 = vrot.slane %v3722, %v5822
        %v5824 = vlaneseq
        %v5825 = vshrl.u32 %v5824, 7
        %v5826 = vsub.s32 0, %v5825
        %v5827 = vrot.slane %v3723, %v5826
        %v5828 = vlaneseq
        %v5829 = vshrl.u32 %v5828, 7
        %v5830 = vsub.s32 4, %v5829
        %v5831 = vrot.slane %v3723, %v5830
        %v5832 = vlaneseq
        %v5833 = vshrl.u32 %v5832, 7
        %v5834 = vsub.s32 0, %v5833
        %v5835 = vrot.slane %v3724, %v5834
        %v5836 = vlaneseq
        %v5837 = vshrl.u32 %v5836, 7
        %v5838 = vsub.s32 4, %v5837
        %v5839 = vrot.slane %v3724, %v5838
        %v5840 = vlaneseq
        %v5841 = vshrl.u32 %v5840, 7
        %v5842 = vsub.s32 0, %v5841
        %v5843 = vrot.slane %v3725, %v5842
        %v5844 = vlaneseq
        %v5845 = vshrl.u32 %v5844, 7
        %v5846 = vsub.s32 4, %v5845
        %v5847 = vrot.slane %v3725, %v5846
        %v5848 = vlaneseq
        %v5849 = vshrl.u32 %v5848, 7
        %v5850 = vsub.s32 0, %v5849
        %v5851 = vrot.slane %v3726, %v5850
        %v5852 = vlaneseq
        %v5853 = vshrl.u32 %v5852, 7
        %v5854 = vsub.s32 4, %v5853
        %v5855 = vrot.slane %v3726, %v5854
        %v5856 = vlaneseq
        %v5857 = vshrl.u32 %v5856, 7
        %v5858 = vsub.s32 0, %v5857
        %v5859 = vrot.slane %v3727, %v5858
        %v5860 = vlaneseq
        %v5861 = vshrl.u32 %v5860, 7
        %v5862 = vsub.s32 4, %v5861
        %v5863 = vrot.slane %v3727, %v5862
        %v5864 = vlaneseq
        %v5865 = vshrl.u32 %v5864, 7
        %v5866 = vsub.s32 0, %v5865
        %v5867 = vrot.slane %v3728, %v5866
        %v5868 = vlaneseq
        %v5869 = vshrl.u32 %v5868, 7
        %v5870 = vsub.s32 4, %v5869
        %v5871 = vrot.slane %v3728, %v5870
        %v5872 = vlaneseq
        %v5873 = vshrl.u32 %v5872, 7
        %v5874 = vsub.s32 0, %v5873
        %v5875 = vrot.slane %v3729, %v5874
        %v5876 = vlaneseq
        %v5877 = vshrl.u32 %v5876, 7
        %v5878 = vsub.s32 4, %v5877
        %v5879 = vrot.slane %v3729, %v5878
        %v5880 = vlaneseq
        %v5881 = vshrl.u32 %v5880, 7
        %v5882 = vsub.s32 0, %v5881
        %v5883 = vrot.slane %v3730, %v5882
        %v5884 = vlaneseq
        %v5885 = vshrl.u32 %v5884, 7
        %v5886 = vsub.s32 4, %v5885
        %v5887 = vrot.slane %v3730, %v5886
        %v5888 = vlaneseq
        %v5889 = vshrl.u32 %v5888, 7
        %v5890 = vsub.s32 0, %v5889
        %v5891 = vrot.slane %v3731, %v5890
        %v5892 = vlaneseq
        %v5893 = vshrl.u32 %v5892, 7
        %v5894 = vsub.s32 4, %v5893
        %v5895 = vrot.slane %v3731, %v5894
        %v5896 = vlaneseq
        %v5897 = vshrl.u32 %v5896, 7
        %v5898 = vsub.s32 0, %v5897
        %v5899 = vrot.slane %v3732, %v5898
        %v5900 = vlaneseq
        %v5901 = vshrl.u32 %v5900, 7
        %v5902 = vsub.s32 4, %v5901
        %v5903 = vrot.slane %v3732, %v5902
        %v5904 = vlaneseq
        %v5905 = vshrl.u32 %v5904, 7
        %v5906 = vsub.s32 0, %v5905
        %v5907 = vrot.slane %v3733, %v5906
        %v5908 = vlaneseq
        %v5909 = vshrl.u32 %v5908, 7
        %v5910 = vsub.s32 4, %v5909
        %v5911 = vrot.slane %v3733, %v5910
        %v5912 = vlaneseq
        %v5913 = vshrl.u32 %v5912, 7
        %v5914 = vsub.s32 0, %v5913
        %v5915 = vrot.slane %v3734, %v5914
        %v5916 = vlaneseq
        %v5917 = vshrl.u32 %v5916, 7
        %v5918 = vsub.s32 4, %v5917
        %v5919 = vrot.slane %v3734, %v5918
        %v5920 = vlaneseq
        %v5921 = vshrl.u32 %v5920, 7
        %v5922 = vsub.s32 0, %v5921
        %v5923 = vrot.slane %v3735, %v5922
        %v5924 = vlaneseq
        %v5925 = vshrl.u32 %v5924, 7
        %v5926 = vsub.s32 4, %v5925
        %v5927 = vrot.slane %v3735, %v5926
        %v5928 = vlaneseq
        %v5929 = vshrl.u32 %v5928, 7
        %v5930 = vsub.s32 0, %v5929
        %v5931 = vrot.slane %v3736, %v5930
        %v5932 = vlaneseq
        %v5933 = vshrl.u32 %v5932, 7
        %v5934 = vsub.s32 4, %v5933
        %v5935 = vrot.slane %v3736, %v5934
        %v5936 = vlaneseq
        %v5937 = vshrl.u32 %v5936, 7
        %v5938 = vsub.s32 0, %v5937
        %v5939 = vrot.slane %v3737, %v5938
        %v5940 = vlaneseq
        %v5941 = vshrl.u32 %v5940, 7
        %v5942 = vsub.s32 4, %v5941
        %v5943 = vrot.slane %v3737, %v5942
        %v5944 = vlaneseq
        %v5945 = vshrl.u32 %v5944, 7
        %v5946 = vsub.s32 0, %v5945
        %v5947 = vrot.slane %v3738, %v5946
        %v5948 = vlaneseq
        %v5949 = vshrl.u32 %v5948, 7
        %v5950 = vsub.s32 4, %v5949
        %v5951 = vrot.slane %v3738, %v5950
        %v5952 = vlaneseq
        %v5953 = vshrl.u32 %v5952, 7
        %v5954 = vsub.s32 0, %v5953
        %v5955 = vrot.slane %v3739, %v5954
        %v5956 = vlaneseq
        %v5957 = vshrl.u32 %v5956, 7
        %v5958 = vsub.s32 4, %v5957
        %v5959 = vrot.slane %v3739, %v5958
        %v5960 = vlaneseq
        %v5961 = vshrl.u32 %v5960, 7
        %v5962 = vsub.s32 0, %v5961
        %v5963 = vrot.slane %v3740, %v5962
        %v5964 = vlaneseq
        %v5965 = vshrl.u32 %v5964, 7
        %v5966 = vsub.s32 4, %v5965
        %v5967 = vrot.slane %v3740, %v5966
        %v5968 = vlaneseq
        %v5969 = vshrl.u32 %v5968, 7
        %v5970 = vsub.s32 0, %v5969
        %v5971 = vrot.slane %v3741, %v5970
        %v5972 = vlaneseq
        %v5973 = vshrl.u32 %v5972, 7
        %v5974 = vsub.s32 4, %v5973
        %v5975 = vrot.slane %v3741, %v5974
        %v5976 = vlaneseq
        %v5977 = vshrl.u32 %v5976, 7
        %v5978 = vsub.s32 0, %v5977
        %v5979 = vrot.slane %v3742, %v5978
        %v5980 = vlaneseq
        %v5981 = vshrl.u32 %v5980, 7
        %v5982 = vsub.s32 4, %v5981
        %v5983 = vrot.slane %v3742, %v5982
        %v5984 = vlaneseq
        %v5985 = vshrl.u32 %v5984, 7
        %v5986 = vsub.s32 0, %v5985
        %v5987 = vrot.slane %v3743, %v5986
        %v5988 = vlaneseq
        %v5989 = vshrl.u32 %v5988, 7
        %v5990 = vsub.s32 4, %v5989
        %v5991 = vrot.slane %v3743, %v5990
        %v5992 = vlaneseq
        %v5993 = vshrl.u32 %v5992, 7
        %v5994 = vsub.s32 0, %v5993
        %v5995 = vrot.slane %v3744, %v5994
        %v5996 = vlaneseq
        %v5997 = vshrl.u32 %v5996, 7
        %v5998 = vsub.s32 4, %v5997
        %v5999 = vrot.slane %v3744, %v5998
        %v6000 = vlaneseq
        %v6001 = vshrl.u32 %v6000, 7
        %v6002 = vsub.s32 0, %v6001
        %v6003 = vrot.slane %v3745, %v6002
        %v6004 = vlaneseq
        %v6005 = vshrl.u32 %v6004, 7
        %v6006 = vsub.s32 4, %v6005
        %v6007 = vrot.slane %v3745, %v6006
        %v6008 = vlaneseq
        %v6009 = vshrl.u32 %v6008, 7
        %v6010 = vsub.s32 0, %v6009
        %v6011 = vrot.slane %v3746, %v6010
        %v6012 = vlaneseq
        %v6013 = vshrl.u32 %v6012, 7
        %v6014 = vsub.s32 4, %v6013
        %v6015 = vrot.slane %v3746, %v6014
        %v6016 = vlaneseq
        %v6017 = vshrl.u32 %v6016, 7
        %v6018 = vsub.s32 0, %v6017
        %v6019 = vrot.slane %v3747, %v6018
        %v6020 = vlaneseq
        %v6021 = vshrl.u32 %v6020, 7
        %v6022 = vsub.s32 4, %v6021
        %v6023 = vrot.slane %v3747, %v6022
        %v6024 = vlaneseq
        %v6025 = vshrl.u32 %v6024, 7
        %v6026 = vsub.s32 0, %v6025
        %v6027 = vrot.slane %v3748, %v6026
        %v6028 = vlaneseq
        %v6029 = vshrl.u32 %v6028, 7
        %v6030 = vsub.s32 4, %v6029
        %v6031 = vrot.slane %v3748, %v6030
        %v6032 = vlaneseq
        %v6033 = vshrl.u32 %v6032, 7
        %v6034 = vsub.s32 0, %v6033
        %v6035 = vrot.slane %v3749, %v6034
        %v6036 = vlaneseq
        %v6037 = vshrl.u32 %v6036, 7
        %v6038 = vsub.s32 4, %v6037
        %v6039 = vrot.slane %v3749, %v6038
        %v6040 = vlaneseq
        %v6041 = vshrl.u32 %v6040, 7
        %v6042 = vsub.s32 0, %v6041
        %v6043 = vrot.slane %v3750, %v6042
        %v6044 = vlaneseq
        %v6045 = vshrl.u32 %v6044, 7
        %v6046 = vsub.s32 4, %v6045
        %v6047 = vrot.slane %v3750, %v6046
        %v6048 = vlaneseq
        %v6049 = vshrl.u32 %v6048, 7
        %v6050 = vsub.s32 0, %v6049
        %v6051 = vrot.slane %v3751, %v6050
        %v6052 = vlaneseq
        %v6053 = vshrl.u32 %v6052, 7
        %v6054 = vsub.s32 4, %v6053
        %v6055 = vrot.slane %v3751, %v6054
        %vm6056 = vcmask 1041409
        %v6057 = vsel %vm6056, %v4019, %v4011
        %vm6058 = vcmask 1042434
        %v6059 = vsel %vm6058, %v4027, %v6057
        %vm6060 = vcmask 1043459
        %v6061 = vsel %vm6060, %v4035, %v6059
        %vm6062 = vcmask 1044484
        %v6063 = vsel %vm6062, %v4043, %v6061
        %vm6064 = vcmask 1045509
        %v6065 = vsel %vm6064, %v4051, %v6063
        %vm6066 = vcmask 1046534
        %v6067 = vsel %vm6066, %v4059, %v6065
        %vm6068 = vcmask 1047559
        %v6069 = vsel %vm6068, %v4067, %v6067
        %v6070 = vsel %vm6056, %v4023, %v4015
        %v6071 = vsel %vm6058, %v4031, %v6070
        %v6072 = vsel %vm6060, %v4039, %v6071
        %v6073 = vsel %vm6062, %v4047, %v6072
        %v6074 = vsel %vm6064, %v4055, %v6073
        %v6075 = vsel %vm6066, %v4063, %v6074
        %v6076 = vsel %vm6068, %v4071, %v6075
        %v6077 = vsel %vm6056, %v4083, %v4075
        %v6078 = vsel %vm6058, %v4091, %v6077
        %v6079 = vsel %vm6060, %v4099, %v6078
        %v6080 = vsel %vm6062, %v4107, %v6079
        %v6081 = vsel %vm6064, %v4115, %v6080
        %v6082 = vsel %vm6066, %v4123, %v6081
        %v6083 = vsel %vm6068, %v4131, %v6082
        %v6084 = vsel %vm6056, %v4087, %v4079
        %v6085 = vsel %vm6058, %v4095, %v6084
        %v6086 = vsel %vm6060, %v4103, %v6085
        %v6087 = vsel %vm6062, %v4111, %v6086
        %v6088 = vsel %vm6064, %v4119, %v6087
        %v6089 = vsel %vm6066, %v4127, %v6088
        %v6090 = vsel %vm6068, %v4135, %v6089
        %v6091 = vsel %vm6056, %v4147, %v4139
        %v6092 = vsel %vm6058, %v4155, %v6091
        %v6093 = vsel %vm6060, %v4163, %v6092
        %v6094 = vsel %vm6062, %v4171, %v6093
        %v6095 = vsel %vm6064, %v4179, %v6094
        %v6096 = vsel %vm6066, %v4187, %v6095
        %v6097 = vsel %vm6068, %v4195, %v6096
        %v6098 = vsel %vm6056, %v4151, %v4143
        %v6099 = vsel %vm6058, %v4159, %v6098
        %v6100 = vsel %vm6060, %v4167, %v6099
        %v6101 = vsel %vm6062, %v4175, %v6100
        %v6102 = vsel %vm6064, %v4183, %v6101
        %v6103 = vsel %vm6066, %v4191, %v6102
        %v6104 = vsel %vm6068, %v4199, %v6103
        %v6105 = vsel %vm6056, %v4211, %v4203
        %v6106 = vsel %vm6058, %v4219, %v6105
        %v6107 = vsel %vm6060, %v4227, %v6106
        %v6108 = vsel %vm6062, %v4235, %v6107
        %v6109 = vsel %vm6064, %v4243, %v6108
        %v6110 = vsel %vm6066, %v4251, %v6109
        %v6111 = vsel %vm6068, %v4259, %v6110
        %v6112 = vsel %vm6056, %v4215, %v4207
        %v6113 = vsel %vm6058, %v4223, %v6112
        %v6114 = vsel %vm6060, %v4231, %v6113
        %v6115 = vsel %vm6062, %v4239, %v6114
        %v6116 = vsel %vm6064, %v4247, %v6115
        %v6117 = vsel %vm6066, %v4255, %v6116
        %v6118 = vsel %vm6068, %v4263, %v6117
        %v6119 = vsel %vm6056, %v4275, %v4267
        %v6120 = vsel %vm6058, %v4283, %v6119
        %v6121 = vsel %vm6060, %v4291, %v6120
        %v6122 = vsel %vm6062, %v4299, %v6121
        %v6123 = vsel %vm6064, %v4307, %v6122
        %v6124 = vsel %vm6066, %v4315, %v6123
        %v6125 = vsel %vm6068, %v4323, %v6124
        %v6126 = vsel %vm6056, %v4279, %v4271
        %v6127 = vsel %vm6058, %v4287, %v6126
        %v6128 = vsel %vm6060, %v4295, %v6127
        %v6129 = vsel %vm6062, %v4303, %v6128
        %v6130 = vsel %vm6064, %v4311, %v6129
        %v6131 = vsel %vm6066, %v4319, %v6130
        %v6132 = vsel %vm6068, %v4327, %v6131
        %v6133 = vsel %vm6056, %v4339, %v4331
        %v6134 = vsel %vm6058, %v4347, %v6133
        %v6135 = vsel %vm6060, %v4355, %v6134
        %v6136 = vsel %vm6062, %v4363, %v6135
        %v6137 = vsel %vm6064, %v4371, %v6136
        %v6138 = vsel %vm6066, %v4379, %v6137
        %v6139 = vsel %vm6068, %v4387, %v6138
        %v6140 = vsel %vm6056, %v4343, %v4335
        %v6141 = vsel %vm6058, %v4351, %v6140
        %v6142 = vsel %vm6060, %v4359, %v6141
        %v6143 = vsel %vm6062, %v4367, %v6142
        %v6144 = vsel %vm6064, %v4375, %v6143
        %v6145 = vsel %vm6066, %v4383, %v6144
        %v6146 = vsel %vm6068, %v4391, %v6145
        %v6147 = vsel %vm6056, %v4403, %v4395
        %v6148 = vsel %vm6058, %v4411, %v6147
        %v6149 = vsel %vm6060, %v4419, %v6148
        %v6150 = vsel %vm6062, %v4427, %v6149
        %v6151 = vsel %vm6064, %v4435, %v6150
        %v6152 = vsel %vm6066, %v4443, %v6151
        %v6153 = vsel %vm6068, %v4451, %v6152
        %v6154 = vsel %vm6056, %v4407, %v4399
        %v6155 = vsel %vm6058, %v4415, %v6154
        %v6156 = vsel %vm6060, %v4423, %v6155
        %v6157 = vsel %vm6062, %v4431, %v6156
        %v6158 = vsel %vm6064, %v4439, %v6157
        %v6159 = vsel %vm6066, %v4447, %v6158
        %v6160 = vsel %vm6068, %v4455, %v6159
        %v6161 = vsel %vm6056, %v4467, %v4459
        %v6162 = vsel %vm6058, %v4475, %v6161
        %v6163 = vsel %vm6060, %v4483, %v6162
        %v6164 = vsel %vm6062, %v4491, %v6163
        %v6165 = vsel %vm6064, %v4499, %v6164
        %v6166 = vsel %vm6066, %v4507, %v6165
        %v6167 = vsel %vm6068, %v4515, %v6166
        %v6168 = vsel %vm6056, %v4471, %v4463
        %v6169 = vsel %vm6058, %v4479, %v6168
        %v6170 = vsel %vm6060, %v4487, %v6169
        %v6171 = vsel %vm6062, %v4495, %v6170
        %v6172 = vsel %vm6064, %v4503, %v6171
        %v6173 = vsel %vm6066, %v4511, %v6172
        %v6174 = vsel %vm6068, %v4519, %v6173
        %v6175 = vsel %vm6056, %v4531, %v4523
        %v6176 = vsel %vm6058, %v4539, %v6175
        %v6177 = vsel %vm6060, %v4547, %v6176
        %v6178 = vsel %vm6062, %v4555, %v6177
        %v6179 = vsel %vm6064, %v4563, %v6178
        %v6180 = vsel %vm6066, %v4571, %v6179
        %v6181 = vsel %vm6068, %v4579, %v6180
        %v6182 = vsel %vm6056, %v4535, %v4527
        %v6183 = vsel %vm6058, %v4543, %v6182
        %v6184 = vsel %vm6060, %v4551, %v6183
        %v6185 = vsel %vm6062, %v4559, %v6184
        %v6186 = vsel %vm6064, %v4567, %v6185
        %v6187 = vsel %vm6066, %v4575, %v6186
        %v6188 = vsel %vm6068, %v4583, %v6187
        %v6189 = vsel %vm6056, %v4595, %v4587
        %v6190 = vsel %vm6058, %v4603, %v6189
        %v6191 = vsel %vm6060, %v4611, %v6190
        %v6192 = vsel %vm6062, %v4619, %v6191
        %v6193 = vsel %vm6064, %v4627, %v6192
        %v6194 = vsel %vm6066, %v4635, %v6193
        %v6195 = vsel %vm6068, %v4643, %v6194
        %v6196 = vsel %vm6056, %v4599, %v4591
        %v6197 = vsel %vm6058, %v4607, %v6196
        %v6198 = vsel %vm6060, %v4615, %v6197
        %v6199 = vsel %vm6062, %v4623, %v6198
        %v6200 = vsel %vm6064, %v4631, %v6199
        %v6201 = vsel %vm6066, %v4639, %v6200
        %v6202 = vsel %vm6068, %v4647, %v6201
        %v6203 = vsel %vm6056, %v4659, %v4651
        %v6204 = vsel %vm6058, %v4667, %v6203
        %v6205 = vsel %vm6060, %v4675, %v6204
        %v6206 = vsel %vm6062, %v4683, %v6205
        %v6207 = vsel %vm6064, %v4691, %v6206
        %v6208 = vsel %vm6066, %v4699, %v6207
        %v6209 = vsel %vm6068, %v4707, %v6208
        %v6210 = vsel %vm6056, %v4663, %v4655
        %v6211 = vsel %vm6058, %v4671, %v6210
        %v6212 = vsel %vm6060, %v4679, %v6211
        %v6213 = vsel %vm6062, %v4687, %v6212
        %v6214 = vsel %vm6064, %v4695, %v6213
        %v6215 = vsel %vm6066, %v4703, %v6214
        %v6216 = vsel %vm6068, %v4711, %v6215
        %v6217 = vsel %vm6056, %v4723, %v4715
        %v6218 = vsel %vm6058, %v4731, %v6217
        %v6219 = vsel %vm6060, %v4739, %v6218
        %v6220 = vsel %vm6062, %v4747, %v6219
        %v6221 = vsel %vm6064, %v4755, %v6220
        %v6222 = vsel %vm6066, %v4763, %v6221
        %v6223 = vsel %vm6068, %v4771, %v6222
        %v6224 = vsel %vm6056, %v4727, %v4719
        %v6225 = vsel %vm6058, %v4735, %v6224
        %v6226 = vsel %vm6060, %v4743, %v6225
        %v6227 = vsel %vm6062, %v4751, %v6226
        %v6228 = vsel %vm6064, %v4759, %v6227
        %v6229 = vsel %vm6066, %v4767, %v6228
        %v6230 = vsel %vm6068, %v4775, %v6229
        %v6231 = vsel %vm6056, %v4787, %v4779
        %v6232 = vsel %vm6058, %v4795, %v6231
        %v6233 = vsel %vm6060, %v4803, %v6232
        %v6234 = vsel %vm6062, %v4811, %v6233
        %v6235 = vsel %vm6064, %v4819, %v6234
        %v6236 = vsel %vm6066, %v4827, %v6235
        %v6237 = vsel %vm6068, %v4835, %v6236
        %v6238 = vsel %vm6056, %v4791, %v4783
        %v6239 = vsel %vm6058, %v4799, %v6238
        %v6240 = vsel %vm6060, %v4807, %v6239
        %v6241 = vsel %vm6062, %v4815, %v6240
        %v6242 = vsel %vm6064, %v4823, %v6241
        %v6243 = vsel %vm6066, %v4831, %v6242
        %v6244 = vsel %vm6068, %v4839, %v6243
        %v6245 = vsel %vm6056, %v4851, %v4843
        %v6246 = vsel %vm6058, %v4859, %v6245
        %v6247 = vsel %vm6060, %v4867, %v6246
        %v6248 = vsel %vm6062, %v4875, %v6247
        %v6249 = vsel %vm6064, %v4883, %v6248
        %v6250 = vsel %vm6066, %v4891, %v6249
        %v6251 = vsel %vm6068, %v4899, %v6250
        %v6252 = vsel %vm6056, %v4855, %v4847
        %v6253 = vsel %vm6058, %v4863, %v6252
        %v6254 = vsel %vm6060, %v4871, %v6253
        %v6255 = vsel %vm6062, %v4879, %v6254
        %v6256 = vsel %vm6064, %v4887, %v6255
        %v6257 = vsel %vm6066, %v4895, %v6256
        %v6258 = vsel %vm6068, %v4903, %v6257
        %v6259 = vsel %vm6056, %v4915, %v4907
        %v6260 = vsel %vm6058, %v4923, %v6259
        %v6261 = vsel %vm6060, %v4931, %v6260
        %v6262 = vsel %vm6062, %v4939, %v6261
        %v6263 = vsel %vm6064, %v4947, %v6262
        %v6264 = vsel %vm6066, %v4955, %v6263
        %v6265 = vsel %vm6068, %v4963, %v6264
        %v6266 = vsel %vm6056, %v4919, %v4911
        %v6267 = vsel %vm6058, %v4927, %v6266
        %v6268 = vsel %vm6060, %v4935, %v6267
        %v6269 = vsel %vm6062, %v4943, %v6268
        %v6270 = vsel %vm6064, %v4951, %v6269
        %v6271 = vsel %vm6066, %v4959, %v6270
        %v6272 = vsel %vm6068, %v4967, %v6271
        %v6273 = vsel %vm6056, %v4979, %v4971
        %v6274 = vsel %vm6058, %v4987, %v6273
        %v6275 = vsel %vm6060, %v4995, %v6274
        %v6276 = vsel %vm6062, %v5003, %v6275
        %v6277 = vsel %vm6064, %v5011, %v6276
        %v6278 = vsel %vm6066, %v5019, %v6277
        %v6279 = vsel %vm6068, %v5027, %v6278
        %v6280 = vsel %vm6056, %v4983, %v4975
        %v6281 = vsel %vm6058, %v4991, %v6280
        %v6282 = vsel %vm6060, %v4999, %v6281
        %v6283 = vsel %vm6062, %v5007, %v6282
        %v6284 = vsel %vm6064, %v5015, %v6283
        %v6285 = vsel %vm6066, %v5023, %v6284
        %v6286 = vsel %vm6068, %v5031, %v6285
        %v6287 = vsel %vm6056, %v5043, %v5035
        %v6288 = vsel %vm6058, %v5051, %v6287
        %v6289 = vsel %vm6060, %v5059, %v6288
        %v6290 = vsel %vm6062, %v5067, %v6289
        %v6291 = vsel %vm6064, %v5075, %v6290
        %v6292 = vsel %vm6066, %v5083, %v6291
        %v6293 = vsel %vm6068, %v5091, %v6292
        %v6294 = vsel %vm6056, %v5047, %v5039
        %v6295 = vsel %vm6058, %v5055, %v6294
        %v6296 = vsel %vm6060, %v5063, %v6295
        %v6297 = vsel %vm6062, %v5071, %v6296
        %v6298 = vsel %vm6064, %v5079, %v6297
        %v6299 = vsel %vm6066, %v5087, %v6298
        %v6300 = vsel %vm6068, %v5095, %v6299
        %v6301 = vsel %vm6056, %v5107, %v5099
        %v6302 = vsel %vm6058, %v5115, %v6301
        %v6303 = vsel %vm6060, %v5123, %v6302
        %v6304 = vsel %vm6062, %v5131, %v6303
        %v6305 = vsel %vm6064, %v5139, %v6304
        %v6306 = vsel %vm6066, %v5147, %v6305
        %v6307 = vsel %vm6068, %v5155, %v6306
        %v6308 = vsel %vm6056, %v5111, %v5103
        %v6309 = vsel %vm6058, %v5119, %v6308
        %v6310 = vsel %vm6060, %v5127, %v6309
        %v6311 = vsel %vm6062, %v5135, %v6310
        %v6312 = vsel %vm6064, %v5143, %v6311
        %v6313 = vsel %vm6066, %v5151, %v6312
        %v6314 = vsel %vm6068, %v5159, %v6313
        %v6315 = vsel %vm6056, %v5171, %v5163
        %v6316 = vsel %vm6058, %v5179, %v6315
        %v6317 = vsel %vm6060, %v5187, %v6316
        %v6318 = vsel %vm6062, %v5195, %v6317
        %v6319 = vsel %vm6064, %v5203, %v6318
        %v6320 = vsel %vm6066, %v5211, %v6319
        %v6321 = vsel %vm6068, %v5219, %v6320
        %v6322 = vsel %vm6056, %v5175, %v5167
        %v6323 = vsel %vm6058, %v5183, %v6322
        %v6324 = vsel %vm6060, %v5191, %v6323
        %v6325 = vsel %vm6062, %v5199, %v6324
        %v6326 = vsel %vm6064, %v5207, %v6325
        %v6327 = vsel %vm6066, %v5215, %v6326
        %v6328 = vsel %vm6068, %v5223, %v6327
        %v6329 = vsel %vm6056, %v5235, %v5227
        %v6330 = vsel %vm6058, %v5243, %v6329
        %v6331 = vsel %vm6060, %v5251, %v6330
        %v6332 = vsel %vm6062, %v5259, %v6331
        %v6333 = vsel %vm6064, %v5267, %v6332
        %v6334 = vsel %vm6066, %v5275, %v6333
        %v6335 = vsel %vm6068, %v5283, %v6334
        %v6336 = vsel %vm6056, %v5239, %v5231
        %v6337 = vsel %vm6058, %v5247, %v6336
        %v6338 = vsel %vm6060, %v5255, %v6337
        %v6339 = vsel %vm6062, %v5263, %v6338
        %v6340 = vsel %vm6064, %v5271, %v6339
        %v6341 = vsel %vm6066, %v5279, %v6340
        %v6342 = vsel %vm6068, %v5287, %v6341
        %v6343 = vsel %vm6056, %v5299, %v5291
        %v6344 = vsel %vm6058, %v5307, %v6343
        %v6345 = vsel %vm6060, %v5315, %v6344
        %v6346 = vsel %vm6062, %v5323, %v6345
        %v6347 = vsel %vm6064, %v5331, %v6346
        %v6348 = vsel %vm6066, %v5339, %v6347
        %v6349 = vsel %vm6068, %v5347, %v6348
        %v6350 = vsel %vm6056, %v5303, %v5295
        %v6351 = vsel %vm6058, %v5311, %v6350
        %v6352 = vsel %vm6060, %v5319, %v6351
        %v6353 = vsel %vm6062, %v5327, %v6352
        %v6354 = vsel %vm6064, %v5335, %v6353
        %v6355 = vsel %vm6066, %v5343, %v6354
        %v6356 = vsel %vm6068, %v5351, %v6355
        %v6357 = vsel %vm6056, %v5363, %v5355
        %v6358 = vsel %vm6058, %v5371, %v6357
        %v6359 = vsel %vm6060, %v5379, %v6358
        %v6360 = vsel %vm6062, %v5387, %v6359
        %v6361 = vsel %vm6064, %v5395, %v6360
        %v6362 = vsel %vm6066, %v5403, %v6361
        %v6363 = vsel %vm6068, %v5411, %v6362
        %v6364 = vsel %vm6056, %v5367, %v5359
        %v6365 = vsel %vm6058, %v5375, %v6364
        %v6366 = vsel %vm6060, %v5383, %v6365
        %v6367 = vsel %vm6062, %v5391, %v6366
        %v6368 = vsel %vm6064, %v5399, %v6367
        %v6369 = vsel %vm6066, %v5407, %v6368
        %v6370 = vsel %vm6068, %v5415, %v6369
        %v6371 = vsel %vm6056, %v5427, %v5419
        %v6372 = vsel %vm6058, %v5435, %v6371
        %v6373 = vsel %vm6060, %v5443, %v6372
        %v6374 = vsel %vm6062, %v5451, %v6373
        %v6375 = vsel %vm6064, %v5459, %v6374
        %v6376 = vsel %vm6066, %v5467, %v6375
        %v6377 = vsel %vm6068, %v5475, %v6376
        %v6378 = vsel %vm6056, %v5431, %v5423
        %v6379 = vsel %vm6058, %v5439, %v6378
        %v6380 = vsel %vm6060, %v5447, %v6379
        %v6381 = vsel %vm6062, %v5455, %v6380
        %v6382 = vsel %vm6064, %v5463, %v6381
        %v6383 = vsel %vm6066, %v5471, %v6382
        %v6384 = vsel %vm6068, %v5479, %v6383
        %v6385 = vsel %vm6056, %v5491, %v5483
        %v6386 = vsel %vm6058, %v5499, %v6385
        %v6387 = vsel %vm6060, %v5507, %v6386
        %v6388 = vsel %vm6062, %v5515, %v6387
        %v6389 = vsel %vm6064, %v5523, %v6388
        %v6390 = vsel %vm6066, %v5531, %v6389
        %v6391 = vsel %vm6068, %v5539, %v6390
        %v6392 = vsel %vm6056, %v5495, %v5487
        %v6393 = vsel %vm6058, %v5503, %v6392
        %v6394 = vsel %vm6060, %v5511, %v6393
        %v6395 = vsel %vm6062, %v5519, %v6394
        %v6396 = vsel %vm6064, %v5527, %v6395
        %v6397 = vsel %vm6066, %v5535, %v6396
        %v6398 = vsel %vm6068, %v5543, %v6397
        %v6399 = vsel %vm6056, %v5555, %v5547
        %v6400 = vsel %vm6058, %v5563, %v6399
        %v6401 = vsel %vm6060, %v5571, %v6400
        %v6402 = vsel %vm6062, %v5579, %v6401
        %v6403 = vsel %vm6064, %v5587, %v6402
        %v6404 = vsel %vm6066, %v5595, %v6403
        %v6405 = vsel %vm6068, %v5603, %v6404
        %v6406 = vsel %vm6056, %v5559, %v5551
        %v6407 = vsel %vm6058, %v5567, %v6406
        %v6408 = vsel %vm6060, %v5575, %v6407
        %v6409 = vsel %vm6062, %v5583, %v6408
        %v6410 = vsel %vm6064, %v5591, %v6409
        %v6411 = vsel %vm6066, %v5599, %v6410
        %v6412 = vsel %vm6068, %v5607, %v6411
        %v6413 = vsel %vm6056, %v5619, %v5611
        %v6414 = vsel %vm6058, %v5627, %v6413
        %v6415 = vsel %vm6060, %v5635, %v6414
        %v6416 = vsel %vm6062, %v5643, %v6415
        %v6417 = vsel %vm6064, %v5651, %v6416
        %v6418 = vsel %vm6066, %v5659, %v6417
        %v6419 = vsel %vm6068, %v5667, %v6418
        %v6420 = vsel %vm6056, %v5623, %v5615
        %v6421 = vsel %vm6058, %v5631, %v6420
        %v6422 = vsel %vm6060, %v5639, %v6421
        %v6423 = vsel %vm6062, %v5647, %v6422
        %v6424 = vsel %vm6064, %v5655, %v6423
        %v6425 = vsel %vm6066, %v5663, %v6424
        %v6426 = vsel %vm6068, %v5671, %v6425
        %v6427 = vsel %vm6056, %v5683, %v5675
        %v6428 = vsel %vm6058, %v5691, %v6427
        %v6429 = vsel %vm6060, %v5699, %v6428
        %v6430 = vsel %vm6062, %v5707, %v6429
        %v6431 = vsel %vm6064, %v5715, %v6430
        %v6432 = vsel %vm6066, %v5723, %v6431
        %v6433 = vsel %vm6068, %v5731, %v6432
        %v6434 = vsel %vm6056, %v5687, %v5679
        %v6435 = vsel %vm6058, %v5695, %v6434
        %v6436 = vsel %vm6060, %v5703, %v6435
        %v6437 = vsel %vm6062, %v5711, %v6436
        %v6438 = vsel %vm6064, %v5719, %v6437
        %v6439 = vsel %vm6066, %v5727, %v6438
        %v6440 = vsel %vm6068, %v5735, %v6439
        %v6441 = vsel %vm6056, %v5747, %v5739
        %v6442 = vsel %vm6058, %v5755, %v6441
        %v6443 = vsel %vm6060, %v5763, %v6442
        %v6444 = vsel %vm6062, %v5771, %v6443
        %v6445 = vsel %vm6064, %v5779, %v6444
        %v6446 = vsel %vm6066, %v5787, %v6445
        %v6447 = vsel %vm6068, %v5795, %v6446
        %v6448 = vsel %vm6056, %v5751, %v5743
        %v6449 = vsel %vm6058, %v5759, %v6448
        %v6450 = vsel %vm6060, %v5767, %v6449
        %v6451 = vsel %vm6062, %v5775, %v6450
        %v6452 = vsel %vm6064, %v5783, %v6451
        %v6453 = vsel %vm6066, %v5791, %v6452
        %v6454 = vsel %vm6068, %v5799, %v6453
        %v6455 = vsel %vm6056, %v5811, %v5803
        %v6456 = vsel %vm6058, %v5819, %v6455
        %v6457 = vsel %vm6060, %v5827, %v6456
        %v6458 = vsel %vm6062, %v5835, %v6457
        %v6459 = vsel %vm6064, %v5843, %v6458
        %v6460 = vsel %vm6066, %v5851, %v6459
        %v6461 = vsel %vm6068, %v5859, %v6460
        %v6462 = vsel %vm6056, %v5815, %v5807
        %v6463 = vsel %vm6058, %v5823, %v6462
        %v6464 = vsel %vm6060, %v5831, %v6463
        %v6465 = vsel %vm6062, %v5839, %v6464
        %v6466 = vsel %vm6064, %v5847, %v6465
        %v6467 = vsel %vm6066, %v5855, %v6466
        %v6468 = vsel %vm6068, %v5863, %v6467
        %v6469 = vsel %vm6056, %v5875, %v5867
        %v6470 = vsel %vm6058, %v5883, %v6469
        %v6471 = vsel %vm6060, %v5891, %v6470
        %v6472 = vsel %vm6062, %v5899, %v6471
        %v6473 = vsel %vm6064, %v5907, %v6472
        %v6474 = vsel %vm6066, %v5915, %v6473
        %v6475 = vsel %vm6068, %v5923, %v6474
        %v6476 = vsel %vm6056, %v5879, %v5871
        %v6477 = vsel %vm6058, %v5887, %v6476
        %v6478 = vsel %vm6060, %v5895, %v6477
        %v6479 = vsel %vm6062, %v5903, %v6478
        %v6480 = vsel %vm6064, %v5911, %v6479
        %v6481 = vsel %vm6066, %v5919, %v6480
        %v6482 = vsel %vm6068, %v5927, %v6481
        %v6483 = vsel %vm6056, %v5939, %v5931
        %v6484 = vsel %vm6058, %v5947, %v6483
        %v6485 = vsel %vm6060, %v5955, %v6484
        %v6486 = vsel %vm6062, %v5963, %v6485
        %v6487 = vsel %vm6064, %v5971, %v6486
        %v6488 = vsel %vm6066, %v5979, %v6487
        %v6489 = vsel %vm6068, %v5987, %v6488
        %v6490 = vsel %vm6056, %v5943, %v5935
        %v6491 = vsel %vm6058, %v5951, %v6490
        %v6492 = vsel %vm6060, %v5959, %v6491
        %v6493 = vsel %vm6062, %v5967, %v6492
        %v6494 = vsel %vm6064, %v5975, %v6493
        %v6495 = vsel %vm6066, %v5983, %v6494
        %v6496 = vsel %vm6068, %v5991, %v6495
        %v6497 = vsel %vm6056, %v6003, %v5995
        %v6498 = vsel %vm6058, %v6011, %v6497
        %v6499 = vsel %vm6060, %v6019, %v6498
        %v6500 = vsel %vm6062, %v6027, %v6499
        %v6501 = vsel %vm6064, %v6035, %v6500
        %v6502 = vsel %vm6066, %v6043, %v6501
        %v6503 = vsel %vm6068, %v6051, %v6502
        %v6504 = vsel %vm6056, %v6007, %v5999
        %v6505 = vsel %vm6058, %v6015, %v6504
        %v6506 = vsel %vm6060, %v6023, %v6505
        %v6507 = vsel %vm6062, %v6031, %v6506
        %v6508 = vsel %vm6064, %v6039, %v6507
        %v6509 = vsel %vm6066, %v6047, %v6508
        %v6510 = vsel %vm6068, %v6055, %v6509
        %6575 = vst [vmem:[%s153] sm:$0xff] %v6069
        %6576 = vst [vmem:[%s153 + $0x8] sm:$0xff] %v6076
        %6577 = vst [vmem:[%s153 + $0x10] sm:$0xff] %v6083
        %6578 = vst [vmem:[%s153 + $0x18] sm:$0xff] %v6090
        %6579 = vst [vmem:[%s153 + $0x20] sm:$0xff] %v6097
        %6580 = vst [vmem:[%s153 + $0x28] sm:$0xff] %v6104
        %6581 = vst [vmem:[%s153 + $0x30] sm:$0xff] %v6111
        %6582 = vst [vmem:[%s153 + $0x38] sm:$0xff] %v6118
        %6583 = vst [vmem:[%s153 + $0x40] sm:$0xff] %v6125
        %6584 = vst [vmem:[%s153 + $0x48] sm:$0xff] %v6132
        %6585 = vst [vmem:[%s153 + $0x50] sm:$0xff] %v6139
        %6586 = vst [vmem:[%s153 + $0x58] sm:$0xff] %v6146
        %6587 = vst [vmem:[%s153 + $0x60] sm:$0xff] %v6153
        %6588 = vst [vmem:[%s153 + $0x68] sm:$0xff] %v6160
        %6589 = vst [vmem:[%s153 + $0x70] sm:$0xff] %v6167
        %6590 = vst [vmem:[%s153 + $0x78] sm:$0xff] %v6174
        %6591 = vst [vmem:[%s153 + $0x80] sm:$0xff] %v6181
        %6592 = vst [vmem:[%s153 + $0x88] sm:$0xff] %v6188
        %6593 = vst [vmem:[%s153 + $0x90] sm:$0xff] %v6195
        %6594 = vst [vmem:[%s153 + $0x98] sm:$0xff] %v6202
        %6595 = vst [vmem:[%s153 + $0xa0] sm:$0xff] %v6209
        %6596 = vst [vmem:[%s153 + $0xa8] sm:$0xff] %v6216
        %6597 = vst [vmem:[%s153 + $0xb0] sm:$0xff] %v6223
        %6598 = vst [vmem:[%s153 + $0xb8] sm:$0xff] %v6230
        %6599 = vst [vmem:[%s153 + $0xc0] sm:$0xff] %v6237
        %6600 = vst [vmem:[%s153 + $0xc8] sm:$0xff] %v6244
        %6601 = vst [vmem:[%s153 + $0xd0] sm:$0xff] %v6251
        %6602 = vst [vmem:[%s153 + $0xd8] sm:$0xff] %v6258
        %6603 = vst [vmem:[%s153 + $0xe0] sm:$0xff] %v6265
        %6604 = vst [vmem:[%s153 + $0xe8] sm:$0xff] %v6272
        %6605 = vst [vmem:[%s153 + $0xf0] sm:$0xff] %v6279
        %6606 = vst [vmem:[%s153 + $0xf8] sm:$0xff] %v6286
        %6607 = vst [vmem:[%s153 + $0x100] sm:$0xff] %v6293
        %6608 = vst [vmem:[%s153 + $0x108] sm:$0xff] %v6300
        %6609 = vst [vmem:[%s153 + $0x110] sm:$0xff] %v6307
        %6610 = vst [vmem:[%s153 + $0x118] sm:$0xff] %v6314
        %6611 = vst [vmem:[%s153 + $0x120] sm:$0xff] %v6321
        %6612 = vst [vmem:[%s153 + $0x128] sm:$0xff] %v6328
        %6613 = vst [vmem:[%s153 + $0x130] sm:$0xff] %v6335
        %6614 = vst [vmem:[%s153 + $0x138] sm:$0xff] %v6342
        %6615 = vst [vmem:[%s153 + $0x140] sm:$0xff] %v6349
        %6616 = vst [vmem:[%s153 + $0x148] sm:$0xff] %v6356
        %6617 = vst [vmem:[%s153 + $0x150] sm:$0xff] %v6363
        %6618 = vst [vmem:[%s153 + $0x158] sm:$0xff] %v6370
        %6619 = vst [vmem:[%s153 + $0x160] sm:$0xff] %v6377
        %6620 = vst [vmem:[%s153 + $0x168] sm:$0xff] %v6384
        %6621 = vst [vmem:[%s153 + $0x170] sm:$0xff] %v6391
        %6622 = vst [vmem:[%s153 + $0x178] sm:$0xff] %v6398
        %6623 = vst [vmem:[%s153 + $0x180] sm:$0xff] %v6405
        %6624 = vst [vmem:[%s153 + $0x188] sm:$0xff] %v6412
        %6625 = vst [vmem:[%s153 + $0x190] sm:$0xff] %v6419
        %6626 = vst [vmem:[%s153 + $0x198] sm:$0xff] %v6426
        %6627 = vst [vmem:[%s153 + $0x1a0] sm:$0xff] %v6433
        %6628 = vst [vmem:[%s153 + $0x1a8] sm:$0xff] %v6440
        %6629 = vst [vmem:[%s153 + $0x1b0] sm:$0xff] %v6447
        %6630 = vst [vmem:[%s153 + $0x1b8] sm:$0xff] %v6454
        %6631 = vst [vmem:[%s153 + $0x1c0] sm:$0xff] %v6461
        %6632 = vst [vmem:[%s153 + $0x1c8] sm:$0xff] %v6468
        %6633 = vst [vmem:[%s153 + $0x1d0] sm:$0xff] %v6475
        %6634 = vst [vmem:[%s153 + $0x1d8] sm:$0xff] %v6482
        %6635 = vst [vmem:[%s153 + $0x1e0] sm:$0xff] %v6489
        %6636 = vst [vmem:[%s153 + $0x1e8] sm:$0xff] %v6496
        %6637 = vst [vmem:[%s153 + $0x1f0] sm:$0xff] %v6503
        %6638 = vst [vmem:[%s153 + $0x1f8] sm:$0xff] %v6510
        %s6639 = sand.u32 %s72, 1
        %s6640 = scalar_lea.sflag [#allocation3], %s6639
        %s6641 = sand.u32 %s72, 1
        %s6642 = smul.addr %s6641, 512
        %s6643 = scalar_lea.vmem [#allocation5], %s6642
        // Predicated region
        $region33: #{semantic_attention.3} parent=27 // pred_check
          %p6644 = pneg %p82
        $region34: #{semantic_attention.3} parent=27 // pred_check_branch
          %6646 = sbr.rel (%p6644) target = $region36
        $region35: #{semantic_attention.3} parent=27 // pred_region
          %s6647 = smul.u32 32, %s17
          %s6649 = ssub.s32 8192, 8192
          %6650 = vsyncadd %s6640, %s6649
          %s6651 = smul.addr %s6647, 2
          %s6652 = smul.addr %s6651, 128
          %s6653 = scalar_lea.hbm %s2, %s6652
          %s6654 = sshll.u32 %s6643, 4
          %s6655 = int_to_ptr.vmem [resolvable:$true] %s6654
          %6660 = dma.vmem_to_hbm [thread:$0]  %s6655, 8192, %s6653, %s6640, 256, 256, 16
        $region36: #{semantic_attention.3} parent=27 // pred_fallthru
          _
      $region28: #{semantic_attention.3} parent=5 // pred_fallthru
        _
      %p6661 = scmp.le.s32.totalorder 2, %s12
      // Predicated region
      $region37: #{semantic_attention.3} parent=5 // pred_check
        %p6662 = pneg %p6661
      $region38: #{semantic_attention.3} parent=5 // pred_check_branch
        %6664 = sbr.rel (%p6662) target = $region40
      $region39: #{semantic_attention.3} parent=5 // pred_region
        %s6665 = ssub.s32 %s12, 2
        // Predicated region
        $region41: #{semantic_attention.3} parent=39 // pred_check
          %p6666 = pneg %p88
        $region42: #{semantic_attention.3} parent=39 // pred_check_branch
          %6668 = sbr.rel (%p6666) target = $region44
        $region43: #{semantic_attention.3} parent=39 // pred_region
          %s6669 = sand.u32 %s73, 1
          %s6670 = scalar_lea.sflag [#allocation3], %s6669
          %s6671 = sand.u32 %s73, 1
          %s6672 = smul.addr %s6671, 512
          %s6673 = scalar_lea.vmem [#allocation5], %s6672
          %6674 = dma.done %s6670, 8192
        $region44: #{semantic_attention.3} parent=39 // pred_fallthru
          _
      $region40: #{semantic_attention.3} parent=5 // pred_fallthru
        _
    $region6: #{semantic_attention.3} parent=1 // loop_footer
      %s16 = sadd.s32 1, %s12
    $region7: #{semantic_attention.3} parent=1 // loop_footer_branch
      %11 = sbr.rel target = $region3
    $region8: #{semantic_attention.3} parent=1 // loop_exit
      _
    %6675 = vsyncpa [#allocation3], 1
    %s6676 = scalar_lea.sflag [#allocation3], 1
    %6677 = vsyncpa %s6676, 1
    %6678 = vsyncpa [#allocation4], 1
    %s6679 = scalar_lea.sflag [#allocation4], 1
    %6680 = vsyncpa %s6679, 1

</llo_original>
